<compile_context>
chip_gen: v7x
topology: tpu7x:2x2x1
jax: 0.10.0
libtpu: 0.0.40
codegen_flags: <defaults>
</compile_context>

<pallas_src>
import functools

import jax
import jax.numpy as jnp
from jax.experimental import pallas as pl
from jax.experimental.pallas import tpu as pltpu

LANE = 128  # TPU lane width; final outputs are padded to this for dense stores.


# ----------------------------------------------------------------------------
# Single fused kernel: lstm1 (T steps) -> lstm2 (2T steps) -> linear + clf.
# All refs are full-array VMEM blocks (no grid).
# ----------------------------------------------------------------------------
def _fused_kernel(x_ref,
                  wih0_1_ref, whh0_1_ref, b0_1_ref, W1_1_ref, b1_1_ref,
                  wih0_2_ref, whh0_2_ref, b0_2_ref, W1_2_ref, b1_2_ref,
                  wlin_ref, blin_ref, wclf_ref, bclf_ref,
                  xt_ref, clf_ref, *, T, B, H):
    f32 = jnp.float32

    def cell_gates(gates, c):
        # Gate layout matches PyTorch: [i | f | g | o] along the 4H axis.
        # Apply activations to the full-width gates tensor (2 EUP passes),
        # then slice the 32-lane sub-blocks.
        sg = jax.nn.sigmoid(gates)
        tg = jnp.tanh(gates)
        i = sg[:, 0 * H:1 * H]
        f = sg[:, 1 * H:2 * H]
        g = tg[:, 2 * H:3 * H]
        o = sg[:, 3 * H:4 * H]
        c_new = f * c + i * g
        h_new = o * jnp.tanh(c_new)
        return h_new, c_new

    # ------------------------- LSTM1 (encoder), T steps -----------------------
    # Hoisted layer-0 input projection for all T steps at once (off the chain).
    xp1 = (jnp.dot(x_ref[...], wih0_1_ref[...], preferred_element_type=f32)
           + b0_1_ref[...])                                   # (T*B, 4H), time-major rows

    whh0_1 = whh0_1_ref[...]
    W1_1 = W1_1_ref[...]                                      # (2H, 4H) = [Wih1; Whh1]
    b1_1 = b1_1_ref[...]

    zeros = jnp.zeros((B, H), f32)
    h0, c0, h1, c1 = zeros, zeros, zeros, zeros
    for t in range(T):                                        # statically unrolled
        g0 = xp1[t * B:(t + 1) * B] + jnp.dot(h0, whh0_1, preferred_element_type=f32)
        h0, c0 = cell_gates(g0, c0)
        g1 = jnp.dot(jnp.concatenate([h0, h1], axis=1), W1_1,
                     preferred_element_type=f32) + b1_1       # merged ih+hh matmul
        h1, c1 = cell_gates(g1, c1)
    hn0, hn1 = h0, h1                                         # h_n of lstm1 (layers 0, 1)

    # ------------------------- LSTM2 (decoder), 2T steps ----------------------
    # Decoder input is h_n tiled -> its layer-0 projection has only 2 distinct
    # values; compute both once instead of 2T times.
    wih0_2 = wih0_2_ref[...]
    b0_2 = b0_2_ref[...]
    p_even = jnp.dot(hn0, wih0_2, preferred_element_type=f32) + b0_2   # z_t = h_n[0] (t even)
    p_odd = jnp.dot(hn1, wih0_2, preferred_element_type=f32) + b0_2    # z_t = h_n[1] (t odd)

    whh0_2 = whh0_2_ref[...]
    W1_2 = W1_2_ref[...]
    b1_2 = b1_2_ref[...]
    wlin = wlin_ref[...]                                      # (H, 128) zero-padded
    blin = blin_ref[...]                                      # (1, 128) zero-padded

    h0, c0, h1, c1 = zeros, zeros, zeros, zeros
    clf_acc = jnp.zeros((B, LANE), f32)
    for t in range(2 * T):                                    # statically unrolled
        p_t = p_even if t % 2 == 0 else p_odd
        g0 = p_t + jnp.dot(h0, whh0_2, preferred_element_type=f32)
        h0, c0 = cell_gates(g0, c0)
        g1 = jnp.dot(jnp.concatenate([h0, h1], axis=1), W1_2,
                     preferred_element_type=f32) + b1_2
        h1, c1 = cell_gates(g1, c1)
        # Per-token reconstruction + classifier contribution: both depend only
        # on h1 of this step (off the recurrent serial chain), lane-dense (128).
        xt_ref[t] = jnp.dot(h1, wlin, preferred_element_type=f32) + blin
        clf_acc = clf_acc + jnp.dot(h1, wclf_ref[t], preferred_element_type=f32)

    clf_ref[...] = clf_acc + bclf_ref[...]


# ----------------------------------------------------------------------------
# Wrapper: one pallas_call for the whole forward. Only XLA glue left is the
# tiny time-major flatten of x and the final slice/transpose of x_tilde.
# ----------------------------------------------------------------------------
def autoencoder_forward(x, prep, *, n_hidden):
    """x: (B, T, F) batch-first. prep: tuple from prepare_params()."""
    B, T, F = x.shape
    H = n_hidden
    x_flat = jnp.transpose(x, (1, 0, 2)).reshape(T * B, F)    # time-major rows

    kernel = functools.partial(_fused_kernel, T=T, B=B, H=H)
    xt_pad, clf_pad = pl.pallas_call(
        kernel,
        out_shape=(jax.ShapeDtypeStruct((2 * T, B, LANE), jnp.float32),
                   jax.ShapeDtypeStruct((B, LANE), jnp.float32)),
        compiler_params=pltpu.CompilerParams(vmem_limit_bytes=32 * 1024 * 1024),
    )(x_flat, *prep)

    # TODO(synk): nn.Dropout(0.35) reproduced in eval mode (identity); the
    # training-mode random mask/scale is not applied.
    x_tilde = jnp.transpose(xt_pad[:, :, :F], (1, 0, 2))      # (B, 2T, F)
    clf_output = clf_pad[:, :10]                              # (B, 10)
    return x_tilde, clf_output


# ----------------------------------------------------------------------------
# One-time weight packing: merge layer-1 ih/hh weights, lane-pad the two output
# projections, reshape the classifier weight to time-major per-step blocks.
# ----------------------------------------------------------------------------
def prepare_params(params, T, n_features, n_hidden):
    H = n_hidden
    assert n_features <= LANE and 10 <= LANE

    def pad_lane(a):
        return jnp.pad(a, ((0, 0), (0, LANE - a.shape[1])))

    wih0_1, whh0_1, b0_1, wih1_1, whh1_1, b1_1 = params["lstm1"]
    wih0_2, whh0_2, b0_2, wih1_2, whh1_2, b1_2 = params["lstm2"]

    W1_1 = jnp.concatenate([wih1_1, whh1_1], axis=0)          # (2H, 4H)
    W1_2 = jnp.concatenate([wih1_2, whh1_2], axis=0)          # (2H, 4H)

    wlin_pad = pad_lane(params["w_lin"])                      # (H, 128)
    blin_pad = pad_lane(params["b_lin"])                      # (1, 128)
    # Batch-first flatten index of output (B, 2T, H) is t*H + h -> reshape the
    # (2T*H, 10) weight into per-timestep (H, 10) blocks, pad lanes to 128.
    wclf_tm = jnp.pad(params["w_clf"].reshape(2 * T, H, 10),
                      ((0, 0), (0, 0), (0, LANE - 10)))       # (2T, H, 128)
    bclf_pad = pad_lane(params["b_clf"])                      # (1, 128)

    return (wih0_1, whh0_1, b0_1, W1_1, b1_1,
            wih0_2, whh0_2, b0_2, W1_2, b1_2,
            wlin_pad, blin_pad, wclf_tm, bclf_pad)


# ----------------------------------------------------------------------------
# Deterministic parameter init (PyTorch-style U(-1/sqrt(fan), 1/sqrt(fan))).
# ----------------------------------------------------------------------------
def init_params(key, T, n_features, n_hidden, num_layers=2):
    keys = iter(jax.random.split(key, 32))
    kH = 1.0 / float(n_hidden) ** 0.5

    def u(shape, k):
        return jax.random.uniform(next(keys), shape, jnp.float32, -k, k)

    def lstm_params(in0):
        # Weights stored (in, 4H); bias = b_ih + b_hh stored (1, 4H).
        return (u((in0, 4 * n_hidden), kH), u((n_hidden, 4 * n_hidden), kH),
                u((1, 4 * n_hidden), kH) + u((1, 4 * n_hidden), kH),
                u((n_hidden, 4 * n_hidden), kH), u((n_hidden, 4 * n_hidden), kH),
                u((1, 4 * n_hidden), kH) + u((1, 4 * n_hidden), kH))

    kC = 1.0 / float(n_hidden * T * num_layers) ** 0.5
    return {
        "lstm1": lstm_params(n_features),
        "lstm2": lstm_params(n_hidden),
        # lstm3 exists in __init__ but is unused in forward -> not materialized.
        "w_lin": u((n_hidden, n_features), kH),
        "b_lin": u((1, n_features), kH),
        "w_clf": u((n_hidden * T * num_layers, 10), kC),
        "b_clf": u((1, 10), kC),
    }


# ----------------------------------------------------------------------------
# Pure-JAX reference (same math, no Pallas) for correctness check.
# ----------------------------------------------------------------------------
def _lstm2_ref(x_tm, p, hidden):
    wih0, whh0, b0, wih1, whh1, b1 = p
    T, B, _ = x_tm.shape

    def cell(x_t, h, c, wih, whh, b):
        g = x_t @ wih + h @ whh + b
        i = jax.nn.sigmoid(g[:, :hidden])
        f = jax.nn.sigmoid(g[:, hidden:2 * hidden])
        gg = jnp.tanh(g[:, 2 * hidden:3 * hidden])
        o = jax.nn.sigmoid(g[:, 3 * hidden:])
        c = f * c + i * gg
        return o * jnp.tanh(c), c

    h0 = c0 = h1 = c1 = jnp.zeros((B, hidden), jnp.float32)
    outs = []
    for t in range(T):
        h0, c0 = cell(x_tm[t], h0, c0, wih0, whh0, b0)
        h1, c1 = cell(h0, h1, c1, wih1, whh1, b1)
        outs.append(h1)
    return jnp.stack(outs), jnp.stack([h0, h1])


def reference_forward(x, params, n_hidden):
    B, T, F = x.shape
    x_tm = jnp.transpose(x, (1, 0, 2))
    _, h_n1 = _lstm2_ref(x_tm, params["lstm1"], n_hidden)
    z_tm = jnp.tile(h_n1, (T, 1, 1))
    out2, _ = _lstm2_ref(z_tm, params["lstm2"], n_hidden)
    output = jnp.transpose(out2, (1, 0, 2))
    clf = output.reshape(B, -1) @ params["w_clf"] + params["b_clf"]
    x_tilde = output @ params["w_lin"] + params["b_lin"]
    return x_tilde, clf


if __name__ == "__main__":
    B, T, F, H = 2, 8, 4, 32          # batch, seq, n_features, n_hidden
    key = jax.random.PRNGKey(0)
    pkey, xkey = jax.random.split(key)
    params = init_params(pkey, T, F, H)
    x = jax.random.normal(xkey, (B, T, F), jnp.float32)

    prep = prepare_params(params, T, F, H)        # one-time weight packing
    fwd = jax.jit(functools.partial(autoencoder_forward, n_hidden=H))
    x_tilde, clf_out = fwd(x, prep)
    jax.block_until_ready((x_tilde, clf_out))

    assert x_tilde.shape == (B, 2 * T, F), x_tilde.shape
    assert clf_out.shape == (B, 10), clf_out.shape

    # Tolerance covers MXU-pass rounding / summation-order differences between
    # the fused kernel and the XLA reference.
    xt_ref, clf_ref = reference_forward(x, params, H)
    assert jnp.allclose(x_tilde, xt_ref, atol=2e-3, rtol=2e-3)
    assert jnp.allclose(clf_out, clf_ref, atol=2e-3, rtol=2e-3)

    print("KERNEL_OK")
</pallas_src>

<mosaic_0001>
module attributes {stable_mosaic.version = 11 : i64} {
  func.func @_fused_kernel(%arg0: memref<16x4xf32, #tpu.memory_space<vmem>>, %arg1: memref<4x128xf32, #tpu.memory_space<vmem>>, %arg2: memref<32x128xf32, #tpu.memory_space<vmem>>, %arg3: memref<1x128xf32, #tpu.memory_space<vmem>>, %arg4: memref<64x128xf32, #tpu.memory_space<vmem>>, %arg5: memref<1x128xf32, #tpu.memory_space<vmem>>, %arg6: memref<32x128xf32, #tpu.memory_space<vmem>>, %arg7: memref<32x128xf32, #tpu.memory_space<vmem>>, %arg8: memref<1x128xf32, #tpu.memory_space<vmem>>, %arg9: memref<64x128xf32, #tpu.memory_space<vmem>>, %arg10: memref<1x128xf32, #tpu.memory_space<vmem>>, %arg11: memref<32x128xf32, #tpu.memory_space<vmem>>, %arg12: memref<1x128xf32, #tpu.memory_space<vmem>>, %arg13: memref<16x32x128xf32, #tpu.memory_space<vmem>>, %arg14: memref<1x128xf32, #tpu.memory_space<vmem>>, %arg15: memref<16x2x128xf32, #tpu.memory_space<vmem>>, %arg16: memref<2x128xf32, #tpu.memory_space<vmem>>) attributes {dimension_semantics = [], scalar_prefetch = 0 : i64, scratch_operands = 0 : i64, tpu.core_type = #tpu.core_type<tc>} {
    %c0 = arith.constant 0 : index
    %c0_0 = arith.constant 0 : index
    %0 = vector.load %arg0[%c0, %c0_0] : memref<16x4xf32, #tpu.memory_space<vmem>>, vector<16x4xf32>
    %c0_1 = arith.constant 0 : index
    %c0_2 = arith.constant 0 : index
    %1 = vector.load %arg1[%c0_1, %c0_2] : memref<4x128xf32, #tpu.memory_space<vmem>>, vector<4x128xf32>
    %cst = arith.constant dense<0.000000e+00> : vector<16x128xf32>
    %2 = tpu.matmul %0, %1, %cst {dimension_numbers = #tpu.dot_dimension_numbers<[1], [0], [0], [1], [0, 0, 1, 1], [], []>} : vector<16x4xf32>, vector<4x128xf32>, vector<16x128xf32> -> vector<16x128xf32>
    %c0_3 = arith.constant 0 : index
    %c0_4 = arith.constant 0 : index
    %3 = vector.load %arg3[%c0_3, %c0_4] : memref<1x128xf32, #tpu.memory_space<vmem>>, vector<1x128xf32>
    %4 = vector.broadcast %3 : vector<1x128xf32> to vector<16x128xf32>
    %5 = arith.addf %2, %4 : vector<16x128xf32>
    %c0_5 = arith.constant 0 : index
    %c0_6 = arith.constant 0 : index
    %6 = vector.load %arg2[%c0_5, %c0_6] : memref<32x128xf32, #tpu.memory_space<vmem>>, vector<32x128xf32>
    %c0_7 = arith.constant 0 : index
    %c0_8 = arith.constant 0 : index
    %7 = vector.load %arg4[%c0_7, %c0_8] : memref<64x128xf32, #tpu.memory_space<vmem>>, vector<64x128xf32>
    %c0_9 = arith.constant 0 : index
    %c0_10 = arith.constant 0 : index
    %8 = vector.load %arg5[%c0_9, %c0_10] : memref<1x128xf32, #tpu.memory_space<vmem>>, vector<1x128xf32>
    %cst_11 = arith.constant 0.000000e+00 : f32
    %9 = vector.broadcast %cst_11 : f32 to vector<2x32xf32>
    %10 = vector.extract_strided_slice %5 {offsets = [0, 0], sizes = [2, 128], strides = [1, 1]} : vector<16x128xf32> to vector<2x128xf32>
    %cst_12 = arith.constant dense<0.000000e+00> : vector<2x128xf32>
    %11 = tpu.matmul %9, %6, %cst_12 {dimension_numbers = #tpu.dot_dimension_numbers<[1], [0], [0], [1], [0, 0, 1, 1], [], []>} : vector<2x32xf32>, vector<32x128xf32>, vector<2x128xf32> -> vector<2x128xf32>
    %12 = arith.addf %10, %11 : vector<2x128xf32>
    %13 = arith.negf %12 : vector<2x128xf32>
    %14 = math.exp %13 : vector<2x128xf32>
    %cst_13 = arith.constant 1.000000e+00 : f32
    %15 = vector.broadcast %cst_13 : f32 to vector<2x128xf32>
    %16 = arith.addf %15, %14 : vector<2x128xf32>
    %17 = arith.divf %15, %16 : vector<2x128xf32>
    %18 = math.tanh %12 : vector<2x128xf32>
    %19 = vector.extract_strided_slice %17 {offsets = [0, 0], sizes = [2, 32], strides = [1, 1]} : vector<2x128xf32> to vector<2x32xf32>
    %20 = vector.extract_strided_slice %17 {offsets = [0, 32], sizes = [2, 32], strides = [1, 1]} : vector<2x128xf32> to vector<2x32xf32>
    %21 = vector.extract_strided_slice %18 {offsets = [0, 64], sizes = [2, 32], strides = [1, 1]} : vector<2x128xf32> to vector<2x32xf32>
    %22 = vector.extract_strided_slice %17 {offsets = [0, 96], sizes = [2, 32], strides = [1, 1]} : vector<2x128xf32> to vector<2x32xf32>
    %23 = arith.mulf %20, %9 : vector<2x32xf32>
    %24 = arith.mulf %19, %21 : vector<2x32xf32>
    %25 = arith.addf %23, %24 : vector<2x32xf32>
    %26 = math.tanh %25 : vector<2x32xf32>
    %27 = arith.mulf %22, %26 : vector<2x32xf32>
    %28 = tpu.concatenate %27, %9 in 1 : vector<2x32xf32>, vector<2x32xf32> -> vector<2x64xf32>
    %cst_14 = arith.constant dense<0.000000e+00> : vector<2x128xf32>
    %29 = tpu.matmul %28, %7, %cst_14 {dimension_numbers = #tpu.dot_dimension_numbers<[1], [0], [0], [1], [0, 0, 1, 1], [], []>} : vector<2x64xf32>, vector<64x128xf32>, vector<2x128xf32> -> vector<2x128xf32>
    %30 = vector.broadcast %8 : vector<1x128xf32> to vector<2x128xf32>
    %31 = arith.addf %29, %30 : vector<2x128xf32>
    %32 = arith.negf %31 : vector<2x128xf32>
    %33 = math.exp %32 : vector<2x128xf32>
    %cst_15 = arith.constant 1.000000e+00 : f32
    %34 = vector.broadcast %cst_15 : f32 to vector<2x128xf32>
    %35 = arith.addf %34, %33 : vector<2x128xf32>
    %36 = arith.divf %34, %35 : vector<2x128xf32>
    %37 = math.tanh %31 : vector<2x128xf32>
    %38 = vector.extract_strided_slice %36 {offsets = [0, 0], sizes = [2, 32], strides = [1, 1]} : vector<2x128xf32> to vector<2x32xf32>
    %39 = vector.extract_strided_slice %36 {offsets = [0, 32], sizes = [2, 32], strides = [1, 1]} : vector<2x128xf32> to vector<2x32xf32>
    %40 = vector.extract_strided_slice %37 {offsets = [0, 64], sizes = [2, 32], strides = [1, 1]} : vector<2x128xf32> to vector<2x32xf32>
    %41 = vector.extract_strided_slice %36 {offsets = [0, 96], sizes = [2, 32], strides = [1, 1]} : vector<2x128xf32> to vector<2x32xf32>
    %42 = arith.mulf %39, %9 : vector<2x32xf32>
    %43 = arith.mulf %38, %40 : vector<2x32xf32>
    %44 = arith.addf %42, %43 : vector<2x32xf32>
    %45 = math.tanh %44 : vector<2x32xf32>
    %46 = arith.mulf %41, %45 : vector<2x32xf32>
    %47 = vector.extract_strided_slice %5 {offsets = [2, 0], sizes = [2, 128], strides = [1, 1]} : vector<16x128xf32> to vector<2x128xf32>
    %cst_16 = arith.constant dense<0.000000e+00> : vector<2x128xf32>
    %48 = tpu.matmul %27, %6, %cst_16 {dimension_numbers = #tpu.dot_dimension_numbers<[1], [0], [0], [1], [0, 0, 1, 1], [], []>} : vector<2x32xf32>, vector<32x128xf32>, vector<2x128xf32> -> vector<2x128xf32>
    %49 = arith.addf %47, %48 : vector<2x128xf32>
    %50 = arith.negf %49 : vector<2x128xf32>
    %51 = math.exp %50 : vector<2x128xf32>
    %cst_17 = arith.constant 1.000000e+00 : f32
    %52 = vector.broadcast %cst_17 : f32 to vector<2x128xf32>
    %53 = arith.addf %52, %51 : vector<2x128xf32>
    %54 = arith.divf %52, %53 : vector<2x128xf32>
    %55 = math.tanh %49 : vector<2x128xf32>
    %56 = vector.extract_strided_slice %54 {offsets = [0, 0], sizes = [2, 32], strides = [1, 1]} : vector<2x128xf32> to vector<2x32xf32>
    %57 = vector.extract_strided_slice %54 {offsets = [0, 32], sizes = [2, 32], strides = [1, 1]} : vector<2x128xf32> to vector<2x32xf32>
    %58 = vector.extract_strided_slice %55 {offsets = [0, 64], sizes = [2, 32], strides = [1, 1]} : vector<2x128xf32> to vector<2x32xf32>
    %59 = vector.extract_strided_slice %54 {offsets = [0, 96], sizes = [2, 32], strides = [1, 1]} : vector<2x128xf32> to vector<2x32xf32>
    %60 = arith.mulf %57, %25 : vector<2x32xf32>
    %61 = arith.mulf %56, %58 : vector<2x32xf32>
    %62 = arith.addf %60, %61 : vector<2x32xf32>
    %63 = math.tanh %62 : vector<2x32xf32>
    %64 = arith.mulf %59, %63 : vector<2x32xf32>
    %65 = tpu.concatenate %64, %46 in 1 : vector<2x32xf32>, vector<2x32xf32> -> vector<2x64xf32>
    %cst_18 = arith.constant dense<0.000000e+00> : vector<2x128xf32>
    %66 = tpu.matmul %65, %7, %cst_18 {dimension_numbers = #tpu.dot_dimension_numbers<[1], [0], [0], [1], [0, 0, 1, 1], [], []>} : vector<2x64xf32>, vector<64x128xf32>, vector<2x128xf32> -> vector<2x128xf32>
    %67 = vector.broadcast %8 : vector<1x128xf32> to vector<2x128xf32>
    %68 = arith.addf %66, %67 : vector<2x128xf32>
    %69 = arith.negf %68 : vector<2x128xf32>
    %70 = math.exp %69 : vector<2x128xf32>
    %cst_19 = arith.constant 1.000000e+00 : f32
    %71 = vector.broadcast %cst_19 : f32 to vector<2x128xf32>
    %72 = arith.addf %71, %70 : vector<2x128xf32>
    %73 = arith.divf %71, %72 : vector<2x128xf32>
    %74 = math.tanh %68 : vector<2x128xf32>
    %75 = vector.extract_strided_slice %73 {offsets = [0, 0], sizes = [2, 32], strides = [1, 1]} : vector<2x128xf32> to vector<2x32xf32>
    %76 = vector.extract_strided_slice %73 {offsets = [0, 32], sizes = [2, 32], strides = [1, 1]} : vector<2x128xf32> to vector<2x32xf32>
    %77 = vector.extract_strided_slice %74 {offsets = [0, 64], sizes = [2, 32], strides = [1, 1]} : vector<2x128xf32> to vector<2x32xf32>
    %78 = vector.extract_strided_slice %73 {offsets = [0, 96], sizes = [2, 32], strides = [1, 1]} : vector<2x128xf32> to vector<2x32xf32>
    %79 = arith.mulf %76, %44 : vector<2x32xf32>
    %80 = arith.mulf %75, %77 : vector<2x32xf32>
    %81 = arith.addf %79, %80 : vector<2x32xf32>
    %82 = math.tanh %81 : vector<2x32xf32>
    %83 = arith.mulf %78, %82 : vector<2x32xf32>
    %84 = vector.extract_strided_slice %5 {offsets = [4, 0], sizes = [2, 128], strides = [1, 1]} : vector<16x128xf32> to vector<2x128xf32>
    %cst_20 = arith.constant dense<0.000000e+00> : vector<2x128xf32>
    %85 = tpu.matmul %64, %6, %cst_20 {dimension_numbers = #tpu.dot_dimension_numbers<[1], [0], [0], [1], [0, 0, 1, 1], [], []>} : vector<2x32xf32>, vector<32x128xf32>, vector<2x128xf32> -> vector<2x128xf32>
    %86 = arith.addf %84, %85 : vector<2x128xf32>
    %87 = arith.negf %86 : vector<2x128xf32>
    %88 = math.exp %87 : vector<2x128xf32>
    %cst_21 = arith.constant 1.000000e+00 : f32
    %89 = vector.broadcast %cst_21 : f32 to vector<2x128xf32>
    %90 = arith.addf %89, %88 : vector<2x128xf32>
    %91 = arith.divf %89, %90 : vector<2x128xf32>
    %92 = math.tanh %86 : vector<2x128xf32>
    %93 = vector.extract_strided_slice %91 {offsets = [0, 0], sizes = [2, 32], strides = [1, 1]} : vector<2x128xf32> to vector<2x32xf32>
    %94 = vector.extract_strided_slice %91 {offsets = [0, 32], sizes = [2, 32], strides = [1, 1]} : vector<2x128xf32> to vector<2x32xf32>
    %95 = vector.extract_strided_slice %92 {offsets = [0, 64], sizes = [2, 32], strides = [1, 1]} : vector<2x128xf32> to vector<2x32xf32>
    %96 = vector.extract_strided_slice %91 {offsets = [0, 96], sizes = [2, 32], strides = [1, 1]} : vector<2x128xf32> to vector<2x32xf32>
    %97 = arith.mulf %94, %62 : vector<2x32xf32>
    %98 = arith.mulf %93, %95 : vector<2x32xf32>
    %99 = arith.addf %97, %98 : vector<2x32xf32>
    %100 = math.tanh %99 : vector<2x32xf32>
    %101 = arith.mulf %96, %100 : vector<2x32xf32>
    %102 = tpu.concatenate %101, %83 in 1 : vector<2x32xf32>, vector<2x32xf32> -> vector<2x64xf32>
    %cst_22 = arith.constant dense<0.000000e+00> : vector<2x128xf32>
    %103 = tpu.matmul %102, %7, %cst_22 {dimension_numbers = #tpu.dot_dimension_numbers<[1], [0], [0], [1], [0, 0, 1, 1], [], []>} : vector<2x64xf32>, vector<64x128xf32>, vector<2x128xf32> -> vector<2x128xf32>
    %104 = vector.broadcast %8 : vector<1x128xf32> to vector<2x128xf32>
    %105 = arith.addf %103, %104 : vector<2x128xf32>
    %106 = arith.negf %105 : vector<2x128xf32>
    %107 = math.exp %106 : vector<2x128xf32>
    %cst_23 = arith.constant 1.000000e+00 : f32
    %108 = vector.broadcast %cst_23 : f32 to vector<2x128xf32>
    %109 = arith.addf %108, %107 : vector<2x128xf32>
    %110 = arith.divf %108, %109 : vector<2x128xf32>
    %111 = math.tanh %105 : vector<2x128xf32>
    %112 = vector.extract_strided_slice %110 {offsets = [0, 0], sizes = [2, 32], strides = [1, 1]} : vector<2x128xf32> to vector<2x32xf32>
    %113 = vector.extract_strided_slice %110 {offsets = [0, 32], sizes = [2, 32], strides = [1, 1]} : vector<2x128xf32> to vector<2x32xf32>
    %114 = vector.extract_strided_slice %111 {offsets = [0, 64], sizes = [2, 32], strides = [1, 1]} : vector<2x128xf32> to vector<2x32xf32>
    %115 = vector.extract_strided_slice %110 {offsets = [0, 96], sizes = [2, 32], strides = [1, 1]} : vector<2x128xf32> to vector<2x32xf32>
    %116 = arith.mulf %113, %81 : vector<2x32xf32>
    %117 = arith.mulf %112, %114 : vector<2x32xf32>
    %118 = arith.addf %116, %117 : vector<2x32xf32>
    %119 = math.tanh %118 : vector<2x32xf32>
    %120 = arith.mulf %115, %119 : vector<2x32xf32>
    %121 = vector.extract_strided_slice %5 {offsets = [6, 0], sizes = [2, 128], strides = [1, 1]} : vector<16x128xf32> to vector<2x128xf32>
    %cst_24 = arith.constant dense<0.000000e+00> : vector<2x128xf32>
    %122 = tpu.matmul %101, %6, %cst_24 {dimension_numbers = #tpu.dot_dimension_numbers<[1], [0], [0], [1], [0, 0, 1, 1], [], []>} : vector<2x32xf32>, vector<32x128xf32>, vector<2x128xf32> -> vector<2x128xf32>
    %123 = arith.addf %121, %122 : vector<2x128xf32>
    %124 = arith.negf %123 : vector<2x128xf32>
    %125 = math.exp %124 : vector<2x128xf32>
    %cst_25 = arith.constant 1.000000e+00 : f32
    %126 = vector.broadcast %cst_25 : f32 to vector<2x128xf32>
    %127 = arith.addf %126, %125 : vector<2x128xf32>
    %128 = arith.divf %126, %127 : vector<2x128xf32>
    %129 = math.tanh %123 : vector<2x128xf32>
    %130 = vector.extract_strided_slice %128 {offsets = [0, 0], sizes = [2, 32], strides = [1, 1]} : vector<2x128xf32> to vector<2x32xf32>
    %131 = vector.extract_strided_slice %128 {offsets = [0, 32], sizes = [2, 32], strides = [1, 1]} : vector<2x128xf32> to vector<2x32xf32>
    %132 = vector.extract_strided_slice %129 {offsets = [0, 64], sizes = [2, 32], strides = [1, 1]} : vector<2x128xf32> to vector<2x32xf32>
    %133 = vector.extract_strided_slice %128 {offsets = [0, 96], sizes = [2, 32], strides = [1, 1]} : vector<2x128xf32> to vector<2x32xf32>
    %134 = arith.mulf %131, %99 : vector<2x32xf32>
    %135 = arith.mulf %130, %132 : vector<2x32xf32>
    %136 = arith.addf %134, %135 : vector<2x32xf32>
    %137 = math.tanh %136 : vector<2x32xf32>
    %138 = arith.mulf %133, %137 : vector<2x32xf32>
    %139 = tpu.concatenate %138, %120 in 1 : vector<2x32xf32>, vector<2x32xf32> -> vector<2x64xf32>
    %cst_26 = arith.constant dense<0.000000e+00> : vector<2x128xf32>
    %140 = tpu.matmul %139, %7, %cst_26 {dimension_numbers = #tpu.dot_dimension_numbers<[1], [0], [0], [1], [0, 0, 1, 1], [], []>} : vector<2x64xf32>, vector<64x128xf32>, vector<2x128xf32> -> vector<2x128xf32>
    %141 = vector.broadcast %8 : vector<1x128xf32> to vector<2x128xf32>
    %142 = arith.addf %140, %141 : vector<2x128xf32>
    %143 = arith.negf %142 : vector<2x128xf32>
    %144 = math.exp %143 : vector<2x128xf32>
    %cst_27 = arith.constant 1.000000e+00 : f32
    %145 = vector.broadcast %cst_27 : f32 to vector<2x128xf32>
    %146 = arith.addf %145, %144 : vector<2x128xf32>
    %147 = arith.divf %145, %146 : vector<2x128xf32>
    %148 = math.tanh %142 : vector<2x128xf32>
    %149 = vector.extract_strided_slice %147 {offsets = [0, 0], sizes = [2, 32], strides = [1, 1]} : vector<2x128xf32> to vector<2x32xf32>
    %150 = vector.extract_strided_slice %147 {offsets = [0, 32], sizes = [2, 32], strides = [1, 1]} : vector<2x128xf32> to vector<2x32xf32>
    %151 = vector.extract_strided_slice %148 {offsets = [0, 64], sizes = [2, 32], strides = [1, 1]} : vector<2x128xf32> to vector<2x32xf32>
    %152 = vector.extract_strided_slice %147 {offsets = [0, 96], sizes = [2, 32], strides = [1, 1]} : vector<2x128xf32> to vector<2x32xf32>
    %153 = arith.mulf %150, %118 : vector<2x32xf32>
    %154 = arith.mulf %149, %151 : vector<2x32xf32>
    %155 = arith.addf %153, %154 : vector<2x32xf32>
    %156 = math.tanh %155 : vector<2x32xf32>
    %157 = arith.mulf %152, %156 : vector<2x32xf32>
    %158 = vector.extract_strided_slice %5 {offsets = [8, 0], sizes = [2, 128], strides = [1, 1]} : vector<16x128xf32> to vector<2x128xf32>
    %cst_28 = arith.constant dense<0.000000e+00> : vector<2x128xf32>
    %159 = tpu.matmul %138, %6, %cst_28 {dimension_numbers = #tpu.dot_dimension_numbers<[1], [0], [0], [1], [0, 0, 1, 1], [], []>} : vector<2x32xf32>, vector<32x128xf32>, vector<2x128xf32> -> vector<2x128xf32>
    %160 = arith.addf %158, %159 : vector<2x128xf32>
    %161 = arith.negf %160 : vector<2x128xf32>
    %162 = math.exp %161 : vector<2x128xf32>
    %cst_29 = arith.constant 1.000000e+00 : f32
    %163 = vector.broadcast %cst_29 : f32 to vector<2x128xf32>
    %164 = arith.addf %163, %162 : vector<2x128xf32>
    %165 = arith.divf %163, %164 : vector<2x128xf32>
    %166 = math.tanh %160 : vector<2x128xf32>
    %167 = vector.extract_strided_slice %165 {offsets = [0, 0], sizes = [2, 32], strides = [1, 1]} : vector<2x128xf32> to vector<2x32xf32>
    %168 = vector.extract_strided_slice %165 {offsets = [0, 32], sizes = [2, 32], strides = [1, 1]} : vector<2x128xf32> to vector<2x32xf32>
    %169 = vector.extract_strided_slice %166 {offsets = [0, 64], sizes = [2, 32], strides = [1, 1]} : vector<2x128xf32> to vector<2x32xf32>
    %170 = vector.extract_strided_slice %165 {offsets = [0, 96], sizes = [2, 32], strides = [1, 1]} : vector<2x128xf32> to vector<2x32xf32>
    %171 = arith.mulf %168, %136 : vector<2x32xf32>
    %172 = arith.mulf %167, %169 : vector<2x32xf32>
    %173 = arith.addf %171, %172 : vector<2x32xf32>
    %174 = math.tanh %173 : vector<2x32xf32>
    %175 = arith.mulf %170, %174 : vector<2x32xf32>
    %176 = tpu.concatenate %175, %157 in 1 : vector<2x32xf32>, vector<2x32xf32> -> vector<2x64xf32>
    %cst_30 = arith.constant dense<0.000000e+00> : vector<2x128xf32>
    %177 = tpu.matmul %176, %7, %cst_30 {dimension_numbers = #tpu.dot_dimension_numbers<[1], [0], [0], [1], [0, 0, 1, 1], [], []>} : vector<2x64xf32>, vector<64x128xf32>, vector<2x128xf32> -> vector<2x128xf32>
    %178 = vector.broadcast %8 : vector<1x128xf32> to vector<2x128xf32>
    %179 = arith.addf %177, %178 : vector<2x128xf32>
    %180 = arith.negf %179 : vector<2x128xf32>
    %181 = math.exp %180 : vector<2x128xf32>
    %cst_31 = arith.constant 1.000000e+00 : f32
    %182 = vector.broadcast %cst_31 : f32 to vector<2x128xf32>
    %183 = arith.addf %182, %181 : vector<2x128xf32>
    %184 = arith.divf %182, %183 : vector<2x128xf32>
    %185 = math.tanh %179 : vector<2x128xf32>
    %186 = vector.extract_strided_slice %184 {offsets = [0, 0], sizes = [2, 32], strides = [1, 1]} : vector<2x128xf32> to vector<2x32xf32>
    %187 = vector.extract_strided_slice %184 {offsets = [0, 32], sizes = [2, 32], strides = [1, 1]} : vector<2x128xf32> to vector<2x32xf32>
    %188 = vector.extract_strided_slice %185 {offsets = [0, 64], sizes = [2, 32], strides = [1, 1]} : vector<2x128xf32> to vector<2x32xf32>
    %189 = vector.extract_strided_slice %184 {offsets = [0, 96], sizes = [2, 32], strides = [1, 1]} : vector<2x128xf32> to vector<2x32xf32>
    %190 = arith.mulf %187, %155 : vector<2x32xf32>
    %191 = arith.mulf %186, %188 : vector<2x32xf32>
    %192 = arith.addf %190, %191 : vector<2x32xf32>
    %193 = math.tanh %192 : vector<2x32xf32>
    %194 = arith.mulf %189, %193 : vector<2x32xf32>
    %195 = vector.extract_strided_slice %5 {offsets = [10, 0], sizes = [2, 128], strides = [1, 1]} : vector<16x128xf32> to vector<2x128xf32>
    %cst_32 = arith.constant dense<0.000000e+00> : vector<2x128xf32>
    %196 = tpu.matmul %175, %6, %cst_32 {dimension_numbers = #tpu.dot_dimension_numbers<[1], [0], [0], [1], [0, 0, 1, 1], [], []>} : vector<2x32xf32>, vector<32x128xf32>, vector<2x128xf32> -> vector<2x128xf32>
    %197 = arith.addf %195, %196 : vector<2x128xf32>
    %198 = arith.negf %197 : vector<2x128xf32>
    %199 = math.exp %198 : vector<2x128xf32>
    %cst_33 = arith.constant 1.000000e+00 : f32
    %200 = vector.broadcast %cst_33 : f32 to vector<2x128xf32>
    %201 = arith.addf %200, %199 : vector<2x128xf32>
    %202 = arith.divf %200, %201 : vector<2x128xf32>
    %203 = math.tanh %197 : vector<2x128xf32>
    %204 = vector.extract_strided_slice %202 {offsets = [0, 0], sizes = [2, 32], strides = [1, 1]} : vector<2x128xf32> to vector<2x32xf32>
    %205 = vector.extract_strided_slice %202 {offsets = [0, 32], sizes = [2, 32], strides = [1, 1]} : vector<2x128xf32> to vector<2x32xf32>
    %206 = vector.extract_strided_slice %203 {offsets = [0, 64], sizes = [2, 32], strides = [1, 1]} : vector<2x128xf32> to vector<2x32xf32>
    %207 = vector.extract_strided_slice %202 {offsets = [0, 96], sizes = [2, 32], strides = [1, 1]} : vector<2x128xf32> to vector<2x32xf32>
    %208 = arith.mulf %205, %173 : vector<2x32xf32>
    %209 = arith.mulf %204, %206 : vector<2x32xf32>
    %210 = arith.addf %208, %209 : vector<2x32xf32>
    %211 = math.tanh %210 : vector<2x32xf32>
    %212 = arith.mulf %207, %211 : vector<2x32xf32>
    %213 = tpu.concatenate %212, %194 in 1 : vector<2x32xf32>, vector<2x32xf32> -> vector<2x64xf32>
    %cst_34 = arith.constant dense<0.000000e+00> : vector<2x128xf32>
    %214 = tpu.matmul %213, %7, %cst_34 {dimension_numbers = #tpu.dot_dimension_numbers<[1], [0], [0], [1], [0, 0, 1, 1], [], []>} : vector<2x64xf32>, vector<64x128xf32>, vector<2x128xf32> -> vector<2x128xf32>
    %215 = vector.broadcast %8 : vector<1x128xf32> to vector<2x128xf32>
    %216 = arith.addf %214, %215 : vector<2x128xf32>
    %217 = arith.negf %216 : vector<2x128xf32>
    %218 = math.exp %217 : vector<2x128xf32>
    %cst_35 = arith.constant 1.000000e+00 : f32
    %219 = vector.broadcast %cst_35 : f32 to vector<2x128xf32>
    %220 = arith.addf %219, %218 : vector<2x128xf32>
    %221 = arith.divf %219, %220 : vector<2x128xf32>
    %222 = math.tanh %216 : vector<2x128xf32>
    %223 = vector.extract_strided_slice %221 {offsets = [0, 0], sizes = [2, 32], strides = [1, 1]} : vector<2x128xf32> to vector<2x32xf32>
    %224 = vector.extract_strided_slice %221 {offsets = [0, 32], sizes = [2, 32], strides = [1, 1]} : vector<2x128xf32> to vector<2x32xf32>
    %225 = vector.extract_strided_slice %222 {offsets = [0, 64], sizes = [2, 32], strides = [1, 1]} : vector<2x128xf32> to vector<2x32xf32>
    %226 = vector.extract_strided_slice %221 {offsets = [0, 96], sizes = [2, 32], strides = [1, 1]} : vector<2x128xf32> to vector<2x32xf32>
    %227 = arith.mulf %224, %192 : vector<2x32xf32>
    %228 = arith.mulf %223, %225 : vector<2x32xf32>
    %229 = arith.addf %227, %228 : vector<2x32xf32>
    %230 = math.tanh %229 : vector<2x32xf32>
    %231 = arith.mulf %226, %230 : vector<2x32xf32>
    %232 = vector.extract_strided_slice %5 {offsets = [12, 0], sizes = [2, 128], strides = [1, 1]} : vector<16x128xf32> to vector<2x128xf32>
    %cst_36 = arith.constant dense<0.000000e+00> : vector<2x128xf32>
    %233 = tpu.matmul %212, %6, %cst_36 {dimension_numbers = #tpu.dot_dimension_numbers<[1], [0], [0], [1], [0, 0, 1, 1], [], []>} : vector<2x32xf32>, vector<32x128xf32>, vector<2x128xf32> -> vector<2x128xf32>
    %234 = arith.addf %232, %233 : vector<2x128xf32>
    %235 = arith.negf %234 : vector<2x128xf32>
    %236 = math.exp %235 : vector<2x128xf32>
    %cst_37 = arith.constant 1.000000e+00 : f32
    %237 = vector.broadcast %cst_37 : f32 to vector<2x128xf32>
    %238 = arith.addf %237, %236 : vector<2x128xf32>
    %239 = arith.divf %237, %238 : vector<2x128xf32>
    %240 = math.tanh %234 : vector<2x128xf32>
    %241 = vector.extract_strided_slice %239 {offsets = [0, 0], sizes = [2, 32], strides = [1, 1]} : vector<2x128xf32> to vector<2x32xf32>
    %242 = vector.extract_strided_slice %239 {offsets = [0, 32], sizes = [2, 32], strides = [1, 1]} : vector<2x128xf32> to vector<2x32xf32>
    %243 = vector.extract_strided_slice %240 {offsets = [0, 64], sizes = [2, 32], strides = [1, 1]} : vector<2x128xf32> to vector<2x32xf32>
    %244 = vector.extract_strided_slice %239 {offsets = [0, 96], sizes = [2, 32], strides = [1, 1]} : vector<2x128xf32> to vector<2x32xf32>
    %245 = arith.mulf %242, %210 : vector<2x32xf32>
    %246 = arith.mulf %241, %243 : vector<2x32xf32>
    %247 = arith.addf %245, %246 : vector<2x32xf32>
    %248 = math.tanh %247 : vector<2x32xf32>
    %249 = arith.mulf %244, %248 : vector<2x32xf32>
    %250 = tpu.concatenate %249, %231 in 1 : vector<2x32xf32>, vector<2x32xf32> -> vector<2x64xf32>
    %cst_38 = arith.constant dense<0.000000e+00> : vector<2x128xf32>
    %251 = tpu.matmul %250, %7, %cst_38 {dimension_numbers = #tpu.dot_dimension_numbers<[1], [0], [0], [1], [0, 0, 1, 1], [], []>} : vector<2x64xf32>, vector<64x128xf32>, vector<2x128xf32> -> vector<2x128xf32>
    %252 = vector.broadcast %8 : vector<1x128xf32> to vector<2x128xf32>
    %253 = arith.addf %251, %252 : vector<2x128xf32>
    %254 = arith.negf %253 : vector<2x128xf32>
    %255 = math.exp %254 : vector<2x128xf32>
    %cst_39 = arith.constant 1.000000e+00 : f32
    %256 = vector.broadcast %cst_39 : f32 to vector<2x128xf32>
    %257 = arith.addf %256, %255 : vector<2x128xf32>
    %258 = arith.divf %256, %257 : vector<2x128xf32>
    %259 = math.tanh %253 : vector<2x128xf32>
    %260 = vector.extract_strided_slice %258 {offsets = [0, 0], sizes = [2, 32], strides = [1, 1]} : vector<2x128xf32> to vector<2x32xf32>
    %261 = vector.extract_strided_slice %258 {offsets = [0, 32], sizes = [2, 32], strides = [1, 1]} : vector<2x128xf32> to vector<2x32xf32>
    %262 = vector.extract_strided_slice %259 {offsets = [0, 64], sizes = [2, 32], strides = [1, 1]} : vector<2x128xf32> to vector<2x32xf32>
    %263 = vector.extract_strided_slice %258 {offsets = [0, 96], sizes = [2, 32], strides = [1, 1]} : vector<2x128xf32> to vector<2x32xf32>
    %264 = arith.mulf %261, %229 : vector<2x32xf32>
    %265 = arith.mulf %260, %262 : vector<2x32xf32>
    %266 = arith.addf %264, %265 : vector<2x32xf32>
    %267 = math.tanh %266 : vector<2x32xf32>
    %268 = arith.mulf %263, %267 : vector<2x32xf32>
    %269 = vector.extract_strided_slice %5 {offsets = [14, 0], sizes = [2, 128], strides = [1, 1]} : vector<16x128xf32> to vector<2x128xf32>
    %cst_40 = arith.constant dense<0.000000e+00> : vector<2x128xf32>
    %270 = tpu.matmul %249, %6, %cst_40 {dimension_numbers = #tpu.dot_dimension_numbers<[1], [0], [0], [1], [0, 0, 1, 1], [], []>} : vector<2x32xf32>, vector<32x128xf32>, vector<2x128xf32> -> vector<2x128xf32>
    %271 = arith.addf %269, %270 : vector<2x128xf32>
    %272 = arith.negf %271 : vector<2x128xf32>
    %273 = math.exp %272 : vector<2x128xf32>
    %cst_41 = arith.constant 1.000000e+00 : f32
    %274 = vector.broadcast %cst_41 : f32 to vector<2x128xf32>
    %275 = arith.addf %274, %273 : vector<2x128xf32>
    %276 = arith.divf %274, %275 : vector<2x128xf32>
    %277 = math.tanh %271 : vector<2x128xf32>
    %278 = vector.extract_strided_slice %276 {offsets = [0, 0], sizes = [2, 32], strides = [1, 1]} : vector<2x128xf32> to vector<2x32xf32>
    %279 = vector.extract_strided_slice %276 {offsets = [0, 32], sizes = [2, 32], strides = [1, 1]} : vector<2x128xf32> to vector<2x32xf32>
    %280 = vector.extract_strided_slice %277 {offsets = [0, 64], sizes = [2, 32], strides = [1, 1]} : vector<2x128xf32> to vector<2x32xf32>
    %281 = vector.extract_strided_slice %276 {offsets = [0, 96], sizes = [2, 32], strides = [1, 1]} : vector<2x128xf32> to vector<2x32xf32>
    %282 = arith.mulf %279, %247 : vector<2x32xf32>
    %283 = arith.mulf %278, %280 : vector<2x32xf32>
    %284 = arith.addf %282, %283 : vector<2x32xf32>
    %285 = math.tanh %284 : vector<2x32xf32>
    %286 = arith.mulf %281, %285 : vector<2x32xf32>
    %287 = tpu.concatenate %286, %268 in 1 : vector<2x32xf32>, vector<2x32xf32> -> vector<2x64xf32>
    %cst_42 = arith.constant dense<0.000000e+00> : vector<2x128xf32>
    %288 = tpu.matmul %287, %7, %cst_42 {dimension_numbers = #tpu.dot_dimension_numbers<[1], [0], [0], [1], [0, 0, 1, 1], [], []>} : vector<2x64xf32>, vector<64x128xf32>, vector<2x128xf32> -> vector<2x128xf32>
    %289 = vector.broadcast %8 : vector<1x128xf32> to vector<2x128xf32>
    %290 = arith.addf %288, %289 : vector<2x128xf32>
    %291 = arith.negf %290 : vector<2x128xf32>
    %292 = math.exp %291 : vector<2x128xf32>
    %cst_43 = arith.constant 1.000000e+00 : f32
    %293 = vector.broadcast %cst_43 : f32 to vector<2x128xf32>
    %294 = arith.addf %293, %292 : vector<2x128xf32>
    %295 = arith.divf %293, %294 : vector<2x128xf32>
    %296 = math.tanh %290 : vector<2x128xf32>
    %297 = vector.extract_strided_slice %295 {offsets = [0, 0], sizes = [2, 32], strides = [1, 1]} : vector<2x128xf32> to vector<2x32xf32>
    %298 = vector.extract_strided_slice %295 {offsets = [0, 32], sizes = [2, 32], strides = [1, 1]} : vector<2x128xf32> to vector<2x32xf32>
    %299 = vector.extract_strided_slice %296 {offsets = [0, 64], sizes = [2, 32], strides = [1, 1]} : vector<2x128xf32> to vector<2x32xf32>
    %300 = vector.extract_strided_slice %295 {offsets = [0, 96], sizes = [2, 32], strides = [1, 1]} : vector<2x128xf32> to vector<2x32xf32>
    %301 = arith.mulf %298, %266 : vector<2x32xf32>
    %302 = arith.mulf %297, %299 : vector<2x32xf32>
    %303 = arith.addf %301, %302 : vector<2x32xf32>
    %304 = math.tanh %303 : vector<2x32xf32>
    %305 = arith.mulf %300, %304 : vector<2x32xf32>
    %c0_44 = arith.constant 0 : index
    %c0_45 = arith.constant 0 : index
    %306 = vector.load %arg6[%c0_44, %c0_45] : memref<32x128xf32, #tpu.memory_space<vmem>>, vector<32x128xf32>
    %c0_46 = arith.constant 0 : index
    %c0_47 = arith.constant 0 : index
    %307 = vector.load %arg8[%c0_46, %c0_47] : memref<1x128xf32, #tpu.memory_space<vmem>>, vector<1x128xf32>
    %cst_48 = arith.constant dense<0.000000e+00> : vector<2x128xf32>
    %308 = tpu.matmul %286, %306, %cst_48 {dimension_numbers = #tpu.dot_dimension_numbers<[1], [0], [0], [1], [0, 0, 1, 1], [], []>} : vector<2x32xf32>, vector<32x128xf32>, vector<2x128xf32> -> vector<2x128xf32>
    %309 = vector.broadcast %307 : vector<1x128xf32> to vector<2x128xf32>
    %310 = arith.addf %308, %309 : vector<2x128xf32>
    %cst_49 = arith.constant dense<0.000000e+00> : vector<2x128xf32>
    %311 = tpu.matmul %305, %306, %cst_49 {dimension_numbers = #tpu.dot_dimension_numbers<[1], [0], [0], [1], [0, 0, 1, 1], [], []>} : vector<2x32xf32>, vector<32x128xf32>, vector<2x128xf32> -> vector<2x128xf32>
    %312 = vector.broadcast %307 : vector<1x128xf32> to vector<2x128xf32>
    %313 = arith.addf %311, %312 : vector<2x128xf32>
    %c0_50 = arith.constant 0 : index
    %c0_51 = arith.constant 0 : index
    %314 = vector.load %arg7[%c0_50, %c0_51] : memref<32x128xf32, #tpu.memory_space<vmem>>, vector<32x128xf32>
    %c0_52 = arith.constant 0 : index
    %c0_53 = arith.constant 0 : index
    %315 = vector.load %arg9[%c0_52, %c0_53] : memref<64x128xf32, #tpu.memory_space<vmem>>, vector<64x128xf32>
    %c0_54 = arith.constant 0 : index
    %c0_55 = arith.constant 0 : index
    %316 = vector.load %arg10[%c0_54, %c0_55] : memref<1x128xf32, #tpu.memory_space<vmem>>, vector<1x128xf32>
    %c0_56 = arith.constant 0 : index
    %c0_57 = arith.constant 0 : index
    %317 = vector.load %arg11[%c0_56, %c0_57] : memref<32x128xf32, #tpu.memory_space<vmem>>, vector<32x128xf32>
    %c0_58 = arith.constant 0 : index
    %c0_59 = arith.constant 0 : index
    %318 = vector.load %arg12[%c0_58, %c0_59] : memref<1x128xf32, #tpu.memory_space<vmem>>, vector<1x128xf32>
    %cst_60 = arith.constant 0.000000e+00 : f32
    %319 = vector.broadcast %cst_60 : f32 to vector<2x128xf32>
    %cst_61 = arith.constant dense<0.000000e+00> : vector<2x128xf32>
    %320 = tpu.matmul %9, %314, %cst_61 {dimension_numbers = #tpu.dot_dimension_numbers<[1], [0], [0], [1], [0, 0, 1, 1], [], []>} : vector<2x32xf32>, vector<32x128xf32>, vector<2x128xf32> -> vector<2x128xf32>
    %321 = arith.addf %310, %320 : vector<2x128xf32>
    %322 = arith.negf %321 : vector<2x128xf32>
    %323 = math.exp %322 : vector<2x128xf32>
    %cst_62 = arith.constant 1.000000e+00 : f32
    %324 = vector.broadcast %cst_62 : f32 to vector<2x128xf32>
    %325 = arith.addf %324, %323 : vector<2x128xf32>
    %326 = arith.divf %324, %325 : vector<2x128xf32>
    %327 = math.tanh %321 : vector<2x128xf32>
    %328 = vector.extract_strided_slice %326 {offsets = [0, 0], sizes = [2, 32], strides = [1, 1]} : vector<2x128xf32> to vector<2x32xf32>
    %329 = vector.extract_strided_slice %326 {offsets = [0, 32], sizes = [2, 32], strides = [1, 1]} : vector<2x128xf32> to vector<2x32xf32>
    %330 = vector.extract_strided_slice %327 {offsets = [0, 64], sizes = [2, 32], strides = [1, 1]} : vector<2x128xf32> to vector<2x32xf32>
    %331 = vector.extract_strided_slice %326 {offsets = [0, 96], sizes = [2, 32], strides = [1, 1]} : vector<2x128xf32> to vector<2x32xf32>
    %332 = arith.mulf %329, %9 : vector<2x32xf32>
    %333 = arith.mulf %328, %330 : vector<2x32xf32>
    %334 = arith.addf %332, %333 : vector<2x32xf32>
    %335 = math.tanh %334 : vector<2x32xf32>
    %336 = arith.mulf %331, %335 : vector<2x32xf32>
    %337 = tpu.concatenate %336, %9 in 1 : vector<2x32xf32>, vector<2x32xf32> -> vector<2x64xf32>
    %cst_63 = arith.constant dense<0.000000e+00> : vector<2x128xf32>
    %338 = tpu.matmul %337, %315, %cst_63 {dimension_numbers = #tpu.dot_dimension_numbers<[1], [0], [0], [1], [0, 0, 1, 1], [], []>} : vector<2x64xf32>, vector<64x128xf32>, vector<2x128xf32> -> vector<2x128xf32>
    %339 = vector.broadcast %316 : vector<1x128xf32> to vector<2x128xf32>
    %340 = arith.addf %338, %339 : vector<2x128xf32>
    %341 = arith.negf %340 : vector<2x128xf32>
    %342 = math.exp %341 : vector<2x128xf32>
    %cst_64 = arith.constant 1.000000e+00 : f32
    %343 = vector.broadcast %cst_64 : f32 to vector<2x128xf32>
    %344 = arith.addf %343, %342 : vector<2x128xf32>
    %345 = arith.divf %343, %344 : vector<2x128xf32>
    %346 = math.tanh %340 : vector<2x128xf32>
    %347 = vector.extract_strided_slice %345 {offsets = [0, 0], sizes = [2, 32], strides = [1, 1]} : vector<2x128xf32> to vector<2x32xf32>
    %348 = vector.extract_strided_slice %345 {offsets = [0, 32], sizes = [2, 32], strides = [1, 1]} : vector<2x128xf32> to vector<2x32xf32>
    %349 = vector.extract_strided_slice %346 {offsets = [0, 64], sizes = [2, 32], strides = [1, 1]} : vector<2x128xf32> to vector<2x32xf32>
    %350 = vector.extract_strided_slice %345 {offsets = [0, 96], sizes = [2, 32], strides = [1, 1]} : vector<2x128xf32> to vector<2x32xf32>
    %351 = arith.mulf %348, %9 : vector<2x32xf32>
    %352 = arith.mulf %347, %349 : vector<2x32xf32>
    %353 = arith.addf %351, %352 : vector<2x32xf32>
    %354 = math.tanh %353 : vector<2x32xf32>
    %355 = arith.mulf %350, %354 : vector<2x32xf32>
    %cst_65 = arith.constant dense<0.000000e+00> : vector<2x128xf32>
    %356 = tpu.matmul %355, %317, %cst_65 {dimension_numbers = #tpu.dot_dimension_numbers<[1], [0], [0], [1], [0, 0, 1, 1], [], []>} : vector<2x32xf32>, vector<32x128xf32>, vector<2x128xf32> -> vector<2x128xf32>
    %357 = vector.broadcast %318 : vector<1x128xf32> to vector<2x128xf32>
    %358 = arith.addf %356, %357 : vector<2x128xf32>
    %c0_66 = arith.constant 0 : index
    %c0_67 = arith.constant 0 : index
    %c0_68 = arith.constant 0 : index
    %359 = vector.load %arg15[%c0_66, %c0_67, %c0_68] : memref<16x2x128xf32, #tpu.memory_space<vmem>>, vector<1x2x128xf32>
    %360 = vector.shape_cast %359 : vector<1x2x128xf32> to vector<2x128xf32>
    %361 = vector.shape_cast %358 : vector<2x128xf32> to vector<1x2x128xf32>
    tpu.vector_store %arg15[%c0_66, %c0_67, %c0_68], %361 {strides = array<i32>} : memref<16x2x128xf32, #tpu.memory_space<vmem>>, vector<1x2x128xf32>,
    %c0_69 = arith.constant 0 : index
    %c0_70 = arith.constant 0 : index
    %c0_71 = arith.constant 0 : index
    %362 = vector.load %arg13[%c0_69, %c0_70, %c0_71] : memref<16x32x128xf32, #tpu.memory_space<vmem>>, vector<1x32x128xf32>
    %363 = vector.shape_cast %362 : vector<1x32x128xf32> to vector<32x128xf32>
    %cst_72 = arith.constant dense<0.000000e+00> : vector<2x128xf32>
    %364 = tpu.matmul %355, %363, %cst_72 {dimension_numbers = #tpu.dot_dimension_numbers<[1], [0], [0], [1], [0, 0, 1, 1], [], []>} : vector<2x32xf32>, vector<32x128xf32>, vector<2x128xf32> -> vector<2x128xf32>
    %365 = arith.addf %319, %364 : vector<2x128xf32>
    %cst_73 = arith.constant dense<0.000000e+00> : vector<2x128xf32>
    %366 = tpu.matmul %336, %314, %cst_73 {dimension_numbers = #tpu.dot_dimension_numbers<[1], [0], [0], [1], [0, 0, 1, 1], [], []>} : vector<2x32xf32>, vector<32x128xf32>, vector<2x128xf32> -> vector<2x128xf32>
    %367 = arith.addf %313, %366 : vector<2x128xf32>
    %368 = arith.negf %367 : vector<2x128xf32>
    %369 = math.exp %368 : vector<2x128xf32>
    %cst_74 = arith.constant 1.000000e+00 : f32
    %370 = vector.broadcast %cst_74 : f32 to vector<2x128xf32>
    %371 = arith.addf %370, %369 : vector<2x128xf32>
    %372 = arith.divf %370, %371 : vector<2x128xf32>
    %373 = math.tanh %367 : vector<2x128xf32>
    %374 = vector.extract_strided_slice %372 {offsets = [0, 0], sizes = [2, 32], strides = [1, 1]} : vector<2x128xf32> to vector<2x32xf32>
    %375 = vector.extract_strided_slice %372 {offsets = [0, 32], sizes = [2, 32], strides = [1, 1]} : vector<2x128xf32> to vector<2x32xf32>
    %376 = vector.extract_strided_slice %373 {offsets = [0, 64], sizes = [2, 32], strides = [1, 1]} : vector<2x128xf32> to vector<2x32xf32>
    %377 = vector.extract_strided_slice %372 {offsets = [0, 96], sizes = [2, 32], strides = [1, 1]} : vector<2x128xf32> to vector<2x32xf32>
    %378 = arith.mulf %375, %334 : vector<2x32xf32>
    %379 = arith.mulf %374, %376 : vector<2x32xf32>
    %380 = arith.addf %378, %379 : vector<2x32xf32>
    %381 = math.tanh %380 : vector<2x32xf32>
    %382 = arith.mulf %377, %381 : vector<2x32xf32>
    %383 = tpu.concatenate %382, %355 in 1 : vector<2x32xf32>, vector<2x32xf32> -> vector<2x64xf32>
    %cst_75 = arith.constant dense<0.000000e+00> : vector<2x128xf32>
    %384 = tpu.matmul %383, %315, %cst_75 {dimension_numbers = #tpu.dot_dimension_numbers<[1], [0], [0], [1], [0, 0, 1, 1], [], []>} : vector<2x64xf32>, vector<64x128xf32>, vector<2x128xf32> -> vector<2x128xf32>
    %385 = vector.broadcast %316 : vector<1x128xf32> to vector<2x128xf32>
    %386 = arith.addf %384, %385 : vector<2x128xf32>
    %387 = arith.negf %386 : vector<2x128xf32>
    %388 = math.exp %387 : vector<2x128xf32>
    %cst_76 = arith.constant 1.000000e+00 : f32
    %389 = vector.broadcast %cst_76 : f32 to vector<2x128xf32>
    %390 = arith.addf %389, %388 : vector<2x128xf32>
    %391 = arith.divf %389, %390 : vector<2x128xf32>
    %392 = math.tanh %386 : vector<2x128xf32>
    %393 = vector.extract_strided_slice %391 {offsets = [0, 0], sizes = [2, 32], strides = [1, 1]} : vector<2x128xf32> to vector<2x32xf32>
    %394 = vector.extract_strided_slice %391 {offsets = [0, 32], sizes = [2, 32], strides = [1, 1]} : vector<2x128xf32> to vector<2x32xf32>
    %395 = vector.extract_strided_slice %392 {offsets = [0, 64], sizes = [2, 32], strides = [1, 1]} : vector<2x128xf32> to vector<2x32xf32>
    %396 = vector.extract_strided_slice %391 {offsets = [0, 96], sizes = [2, 32], strides = [1, 1]} : vector<2x128xf32> to vector<2x32xf32>
    %397 = arith.mulf %394, %353 : vector<2x32xf32>
    %398 = arith.mulf %393, %395 : vector<2x32xf32>
    %399 = arith.addf %397, %398 : vector<2x32xf32>
    %400 = math.tanh %399 : vector<2x32xf32>
    %401 = arith.mulf %396, %400 : vector<2x32xf32>
    %cst_77 = arith.constant dense<0.000000e+00> : vector<2x128xf32>
    %402 = tpu.matmul %401, %317, %cst_77 {dimension_numbers = #tpu.dot_dimension_numbers<[1], [0], [0], [1], [0, 0, 1, 1], [], []>} : vector<2x32xf32>, vector<32x128xf32>, vector<2x128xf32> -> vector<2x128xf32>
    %403 = vector.broadcast %318 : vector<1x128xf32> to vector<2x128xf32>
    %404 = arith.addf %402, %403 : vector<2x128xf32>
    %c1 = arith.constant 1 : index
    %c0_78 = arith.constant 0 : index
    %c0_79 = arith.constant 0 : index
    %405 = vector.load %arg15[%c1, %c0_78, %c0_79] : memref<16x2x128xf32, #tpu.memory_space<vmem>>, vector<1x2x128xf32>
    %406 = vector.shape_cast %405 : vector<1x2x128xf32> to vector<2x128xf32>
    %407 = vector.shape_cast %404 : vector<2x128xf32> to vector<1x2x128xf32>
    tpu.vector_store %arg15[%c1, %c0_78, %c0_79], %407 {strides = array<i32>} : memref<16x2x128xf32, #tpu.memory_space<vmem>>, vector<1x2x128xf32>,
    %c1_80 = arith.constant 1 : index
    %c0_81 = arith.constant 0 : index
    %c0_82 = arith.constant 0 : index
    %408 = vector.load %arg13[%c1_80, %c0_81, %c0_82] : memref<16x32x128xf32, #tpu.memory_space<vmem>>, vector<1x32x128xf32>
    %409 = vector.shape_cast %408 : vector<1x32x128xf32> to vector<32x128xf32>
    %cst_83 = arith.constant dense<0.000000e+00> : vector<2x128xf32>
    %410 = tpu.matmul %401, %409, %cst_83 {dimension_numbers = #tpu.dot_dimension_numbers<[1], [0], [0], [1], [0, 0, 1, 1], [], []>} : vector<2x32xf32>, vector<32x128xf32>, vector<2x128xf32> -> vector<2x128xf32>
    %411 = arith.addf %365, %410 : vector<2x128xf32>
    %cst_84 = arith.constant dense<0.000000e+00> : vector<2x128xf32>
    %412 = tpu.matmul %382, %314, %cst_84 {dimension_numbers = #tpu.dot_dimension_numbers<[1], [0], [0], [1], [0, 0, 1, 1], [], []>} : vector<2x32xf32>, vector<32x128xf32>, vector<2x128xf32> -> vector<2x128xf32>
    %413 = arith.addf %310, %412 : vector<2x128xf32>
    %414 = arith.negf %413 : vector<2x128xf32>
    %415 = math.exp %414 : vector<2x128xf32>
    %cst_85 = arith.constant 1.000000e+00 : f32
    %416 = vector.broadcast %cst_85 : f32 to vector<2x128xf32>
    %417 = arith.addf %416, %415 : vector<2x128xf32>
    %418 = arith.divf %416, %417 : vector<2x128xf32>
    %419 = math.tanh %413 : vector<2x128xf32>
    %420 = vector.extract_strided_slice %418 {offsets = [0, 0], sizes = [2, 32], strides = [1, 1]} : vector<2x128xf32> to vector<2x32xf32>
    %421 = vector.extract_strided_slice %418 {offsets = [0, 32], sizes = [2, 32], strides = [1, 1]} : vector<2x128xf32> to vector<2x32xf32>
    %422 = vector.extract_strided_slice %419 {offsets = [0, 64], sizes = [2, 32], strides = [1, 1]} : vector<2x128xf32> to vector<2x32xf32>
    %423 = vector.extract_strided_slice %418 {offsets = [0, 96], sizes = [2, 32], strides = [1, 1]} : vector<2x128xf32> to vector<2x32xf32>
    %424 = arith.mulf %421, %380 : vector<2x32xf32>
    %425 = arith.mulf %420, %422 : vector<2x32xf32>
    %426 = arith.addf %424, %425 : vector<2x32xf32>
    %427 = math.tanh %426 : vector<2x32xf32>
    %428 = arith.mulf %423, %427 : vector<2x32xf32>
    %429 = tpu.concatenate %428, %401 in 1 : vector<2x32xf32>, vector<2x32xf32> -> vector<2x64xf32>
    %cst_86 = arith.constant dense<0.000000e+00> : vector<2x128xf32>
    %430 = tpu.matmul %429, %315, %cst_86 {dimension_numbers = #tpu.dot_dimension_numbers<[1], [0], [0], [1], [0, 0, 1, 1], [], []>} : vector<2x64xf32>, vector<64x128xf32>, vector<2x128xf32> -> vector<2x128xf32>
    %431 = vector.broadcast %316 : vector<1x128xf32> to vector<2x128xf32>
    %432 = arith.addf %430, %431 : vector<2x128xf32>
    %433 = arith.negf %432 : vector<2x128xf32>
    %434 = math.exp %433 : vector<2x128xf32>
    %cst_87 = arith.constant 1.000000e+00 : f32
    %435 = vector.broadcast %cst_87 : f32 to vector<2x128xf32>
    %436 = arith.addf %435, %434 : vector<2x128xf32>
    %437 = arith.divf %435, %436 : vector<2x128xf32>
    %438 = math.tanh %432 : vector<2x128xf32>
    %439 = vector.extract_strided_slice %437 {offsets = [0, 0], sizes = [2, 32], strides = [1, 1]} : vector<2x128xf32> to vector<2x32xf32>
    %440 = vector.extract_strided_slice %437 {offsets = [0, 32], sizes = [2, 32], strides = [1, 1]} : vector<2x128xf32> to vector<2x32xf32>
    %441 = vector.extract_strided_slice %438 {offsets = [0, 64], sizes = [2, 32], strides = [1, 1]} : vector<2x128xf32> to vector<2x32xf32>
    %442 = vector.extract_strided_slice %437 {offsets = [0, 96], sizes = [2, 32], strides = [1, 1]} : vector<2x128xf32> to vector<2x32xf32>
    %443 = arith.mulf %440, %399 : vector<2x32xf32>
    %444 = arith.mulf %439, %441 : vector<2x32xf32>
    %445 = arith.addf %443, %444 : vector<2x32xf32>
    %446 = math.tanh %445 : vector<2x32xf32>
    %447 = arith.mulf %442, %446 : vector<2x32xf32>
    %cst_88 = arith.constant dense<0.000000e+00> : vector<2x128xf32>
    %448 = tpu.matmul %447, %317, %cst_88 {dimension_numbers = #tpu.dot_dimension_numbers<[1], [0], [0], [1], [0, 0, 1, 1], [], []>} : vector<2x32xf32>, vector<32x128xf32>, vector<2x128xf32> -> vector<2x128xf32>
    %449 = vector.broadcast %318 : vector<1x128xf32> to vector<2x128xf32>
    %450 = arith.addf %448, %449 : vector<2x128xf32>
    %c2 = arith.constant 2 : index
    %c0_89 = arith.constant 0 : index
    %c0_90 = arith.constant 0 : index
    %451 = vector.load %arg15[%c2, %c0_89, %c0_90] : memref<16x2x128xf32, #tpu.memory_space<vmem>>, vector<1x2x128xf32>
    %452 = vector.shape_cast %451 : vector<1x2x128xf32> to vector<2x128xf32>
    %453 = vector.shape_cast %450 : vector<2x128xf32> to vector<1x2x128xf32>
    tpu.vector_store %arg15[%c2, %c0_89, %c0_90], %453 {strides = array<i32>} : memref<16x2x128xf32, #tpu.memory_space<vmem>>, vector<1x2x128xf32>,
    %c2_91 = arith.constant 2 : index
    %c0_92 = arith.constant 0 : index
    %c0_93 = arith.constant 0 : index
    %454 = vector.load %arg13[%c2_91, %c0_92, %c0_93] : memref<16x32x128xf32, #tpu.memory_space<vmem>>, vector<1x32x128xf32>
    %455 = vector.shape_cast %454 : vector<1x32x128xf32> to vector<32x128xf32>
    %cst_94 = arith.constant dense<0.000000e+00> : vector<2x128xf32>
    %456 = tpu.matmul %447, %455, %cst_94 {dimension_numbers = #tpu.dot_dimension_numbers<[1], [0], [0], [1], [0, 0, 1, 1], [], []>} : vector<2x32xf32>, vector<32x128xf32>, vector<2x128xf32> -> vector<2x128xf32>
    %457 = arith.addf %411, %456 : vector<2x128xf32>
    %cst_95 = arith.constant dense<0.000000e+00> : vector<2x128xf32>
    %458 = tpu.matmul %428, %314, %cst_95 {dimension_numbers = #tpu.dot_dimension_numbers<[1], [0], [0], [1], [0, 0, 1, 1], [], []>} : vector<2x32xf32>, vector<32x128xf32>, vector<2x128xf32> -> vector<2x128xf32>
    %459 = arith.addf %313, %458 : vector<2x128xf32>
    %460 = arith.negf %459 : vector<2x128xf32>
    %461 = math.exp %460 : vector<2x128xf32>
    %cst_96 = arith.constant 1.000000e+00 : f32
    %462 = vector.broadcast %cst_96 : f32 to vector<2x128xf32>
    %463 = arith.addf %462, %461 : vector<2x128xf32>
    %464 = arith.divf %462, %463 : vector<2x128xf32>
    %465 = math.tanh %459 : vector<2x128xf32>
    %466 = vector.extract_strided_slice %464 {offsets = [0, 0], sizes = [2, 32], strides = [1, 1]} : vector<2x128xf32> to vector<2x32xf32>
    %467 = vector.extract_strided_slice %464 {offsets = [0, 32], sizes = [2, 32], strides = [1, 1]} : vector<2x128xf32> to vector<2x32xf32>
    %468 = vector.extract_strided_slice %465 {offsets = [0, 64], sizes = [2, 32], strides = [1, 1]} : vector<2x128xf32> to vector<2x32xf32>
    %469 = vector.extract_strided_slice %464 {offsets = [0, 96], sizes = [2, 32], strides = [1, 1]} : vector<2x128xf32> to vector<2x32xf32>
    %470 = arith.mulf %467, %426 : vector<2x32xf32>
    %471 = arith.mulf %466, %468 : vector<2x32xf32>
    %472 = arith.addf %470, %471 : vector<2x32xf32>
    %473 = math.tanh %472 : vector<2x32xf32>
    %474 = arith.mulf %469, %473 : vector<2x32xf32>
    %475 = tpu.concatenate %474, %447 in 1 : vector<2x32xf32>, vector<2x32xf32> -> vector<2x64xf32>
    %cst_97 = arith.constant dense<0.000000e+00> : vector<2x128xf32>
    %476 = tpu.matmul %475, %315, %cst_97 {dimension_numbers = #tpu.dot_dimension_numbers<[1], [0], [0], [1], [0, 0, 1, 1], [], []>} : vector<2x64xf32>, vector<64x128xf32>, vector<2x128xf32> -> vector<2x128xf32>
    %477 = vector.broadcast %316 : vector<1x128xf32> to vector<2x128xf32>
    %478 = arith.addf %476, %477 : vector<2x128xf32>
    %479 = arith.negf %478 : vector<2x128xf32>
    %480 = math.exp %479 : vector<2x128xf32>
    %cst_98 = arith.constant 1.000000e+00 : f32
    %481 = vector.broadcast %cst_98 : f32 to vector<2x128xf32>
    %482 = arith.addf %481, %480 : vector<2x128xf32>
    %483 = arith.divf %481, %482 : vector<2x128xf32>
    %484 = math.tanh %478 : vector<2x128xf32>
    %485 = vector.extract_strided_slice %483 {offsets = [0, 0], sizes = [2, 32], strides = [1, 1]} : vector<2x128xf32> to vector<2x32xf32>
    %486 = vector.extract_strided_slice %483 {offsets = [0, 32], sizes = [2, 32], strides = [1, 1]} : vector<2x128xf32> to vector<2x32xf32>
    %487 = vector.extract_strided_slice %484 {offsets = [0, 64], sizes = [2, 32], strides = [1, 1]} : vector<2x128xf32> to vector<2x32xf32>
    %488 = vector.extract_strided_slice %483 {offsets = [0, 96], sizes = [2, 32], strides = [1, 1]} : vector<2x128xf32> to vector<2x32xf32>
    %489 = arith.mulf %486, %445 : vector<2x32xf32>
    %490 = arith.mulf %485, %487 : vector<2x32xf32>
    %491 = arith.addf %489, %490 : vector<2x32xf32>
    %492 = math.tanh %491 : vector<2x32xf32>
    %493 = arith.mulf %488, %492 : vector<2x32xf32>
    %cst_99 = arith.constant dense<0.000000e+00> : vector<2x128xf32>
    %494 = tpu.matmul %493, %317, %cst_99 {dimension_numbers = #tpu.dot_dimension_numbers<[1], [0], [0], [1], [0, 0, 1, 1], [], []>} : vector<2x32xf32>, vector<32x128xf32>, vector<2x128xf32> -> vector<2x128xf32>
    %495 = vector.broadcast %318 : vector<1x128xf32> to vector<2x128xf32>
    %496 = arith.addf %494, %495 : vector<2x128xf32>
    %c3 = arith.constant 3 : index
    %c0_100 = arith.constant 0 : index
    %c0_101 = arith.constant 0 : index
    %497 = vector.load %arg15[%c3, %c0_100, %c0_101] : memref<16x2x128xf32, #tpu.memory_space<vmem>>, vector<1x2x128xf32>
    %498 = vector.shape_cast %497 : vector<1x2x128xf32> to vector<2x128xf32>
    %499 = vector.shape_cast %496 : vector<2x128xf32> to vector<1x2x128xf32>
    tpu.vector_store %arg15[%c3, %c0_100, %c0_101], %499 {strides = array<i32>} : memref<16x2x128xf32, #tpu.memory_space<vmem>>, vector<1x2x128xf32>,
    %c3_102 = arith.constant 3 : index
    %c0_103 = arith.constant 0 : index
    %c0_104 = arith.constant 0 : index
    %500 = vector.load %arg13[%c3_102, %c0_103, %c0_104] : memref<16x32x128xf32, #tpu.memory_space<vmem>>, vector<1x32x128xf32>
    %501 = vector.shape_cast %500 : vector<1x32x128xf32> to vector<32x128xf32>
    %cst_105 = arith.constant dense<0.000000e+00> : vector<2x128xf32>
    %502 = tpu.matmul %493, %501, %cst_105 {dimension_numbers = #tpu.dot_dimension_numbers<[1], [0], [0], [1], [0, 0, 1, 1], [], []>} : vector<2x32xf32>, vector<32x128xf32>, vector<2x128xf32> -> vector<2x128xf32>
    %503 = arith.addf %457, %502 : vector<2x128xf32>
    %cst_106 = arith.constant dense<0.000000e+00> : vector<2x128xf32>
    %504 = tpu.matmul %474, %314, %cst_106 {dimension_numbers = #tpu.dot_dimension_numbers<[1], [0], [0], [1], [0, 0, 1, 1], [], []>} : vector<2x32xf32>, vector<32x128xf32>, vector<2x128xf32> -> vector<2x128xf32>
    %505 = arith.addf %310, %504 : vector<2x128xf32>
    %506 = arith.negf %505 : vector<2x128xf32>
    %507 = math.exp %506 : vector<2x128xf32>
    %cst_107 = arith.constant 1.000000e+00 : f32
    %508 = vector.broadcast %cst_107 : f32 to vector<2x128xf32>
    %509 = arith.addf %508, %507 : vector<2x128xf32>
    %510 = arith.divf %508, %509 : vector<2x128xf32>
    %511 = math.tanh %505 : vector<2x128xf32>
    %512 = vector.extract_strided_slice %510 {offsets = [0, 0], sizes = [2, 32], strides = [1, 1]} : vector<2x128xf32> to vector<2x32xf32>
    %513 = vector.extract_strided_slice %510 {offsets = [0, 32], sizes = [2, 32], strides = [1, 1]} : vector<2x128xf32> to vector<2x32xf32>
    %514 = vector.extract_strided_slice %511 {offsets = [0, 64], sizes = [2, 32], strides = [1, 1]} : vector<2x128xf32> to vector<2x32xf32>
    %515 = vector.extract_strided_slice %510 {offsets = [0, 96], sizes = [2, 32], strides = [1, 1]} : vector<2x128xf32> to vector<2x32xf32>
    %516 = arith.mulf %513, %472 : vector<2x32xf32>
    %517 = arith.mulf %512, %514 : vector<2x32xf32>
    %518 = arith.addf %516, %517 : vector<2x32xf32>
    %519 = math.tanh %518 : vector<2x32xf32>
    %520 = arith.mulf %515, %519 : vector<2x32xf32>
    %521 = tpu.concatenate %520, %493 in 1 : vector<2x32xf32>, vector<2x32xf32> -> vector<2x64xf32>
    %cst_108 = arith.constant dense<0.000000e+00> : vector<2x128xf32>
    %522 = tpu.matmul %521, %315, %cst_108 {dimension_numbers = #tpu.dot_dimension_numbers<[1], [0], [0], [1], [0, 0, 1, 1], [], []>} : vector<2x64xf32>, vector<64x128xf32>, vector<2x128xf32> -> vector<2x128xf32>
    %523 = vector.broadcast %316 : vector<1x128xf32> to vector<2x128xf32>
    %524 = arith.addf %522, %523 : vector<2x128xf32>
    %525 = arith.negf %524 : vector<2x128xf32>
    %526 = math.exp %525 : vector<2x128xf32>
    %cst_109 = arith.constant 1.000000e+00 : f32
    %527 = vector.broadcast %cst_109 : f32 to vector<2x128xf32>
    %528 = arith.addf %527, %526 : vector<2x128xf32>
    %529 = arith.divf %527, %528 : vector<2x128xf32>
    %530 = math.tanh %524 : vector<2x128xf32>
    %531 = vector.extract_strided_slice %529 {offsets = [0, 0], sizes = [2, 32], strides = [1, 1]} : vector<2x128xf32> to vector<2x32xf32>
    %532 = vector.extract_strided_slice %529 {offsets = [0, 32], sizes = [2, 32], strides = [1, 1]} : vector<2x128xf32> to vector<2x32xf32>
    %533 = vector.extract_strided_slice %530 {offsets = [0, 64], sizes = [2, 32], strides = [1, 1]} : vector<2x128xf32> to vector<2x32xf32>
    %534 = vector.extract_strided_slice %529 {offsets = [0, 96], sizes = [2, 32], strides = [1, 1]} : vector<2x128xf32> to vector<2x32xf32>
    %535 = arith.mulf %532, %491 : vector<2x32xf32>
    %536 = arith.mulf %531, %533 : vector<2x32xf32>
    %537 = arith.addf %535, %536 : vector<2x32xf32>
    %538 = math.tanh %537 : vector<2x32xf32>
    %539 = arith.mulf %534, %538 : vector<2x32xf32>
    %cst_110 = arith.constant dense<0.000000e+00> : vector<2x128xf32>
    %540 = tpu.matmul %539, %317, %cst_110 {dimension_numbers = #tpu.dot_dimension_numbers<[1], [0], [0], [1], [0, 0, 1, 1], [], []>} : vector<2x32xf32>, vector<32x128xf32>, vector<2x128xf32> -> vector<2x128xf32>
    %541 = vector.broadcast %318 : vector<1x128xf32> to vector<2x128xf32>
    %542 = arith.addf %540, %541 : vector<2x128xf32>
    %c4 = arith.constant 4 : index
    %c0_111 = arith.constant 0 : index
    %c0_112 = arith.constant 0 : index
    %543 = vector.load %arg15[%c4, %c0_111, %c0_112] : memref<16x2x128xf32, #tpu.memory_space<vmem>>, vector<1x2x128xf32>
    %544 = vector.shape_cast %543 : vector<1x2x128xf32> to vector<2x128xf32>
    %545 = vector.shape_cast %542 : vector<2x128xf32> to vector<1x2x128xf32>
    tpu.vector_store %arg15[%c4, %c0_111, %c0_112], %545 {strides = array<i32>} : memref<16x2x128xf32, #tpu.memory_space<vmem>>, vector<1x2x128xf32>,
    %c4_113 = arith.constant 4 : index
    %c0_114 = arith.constant 0 : index
    %c0_115 = arith.constant 0 : index
    %546 = vector.load %arg13[%c4_113, %c0_114, %c0_115] : memref<16x32x128xf32, #tpu.memory_space<vmem>>, vector<1x32x128xf32>
    %547 = vector.shape_cast %546 : vector<1x32x128xf32> to vector<32x128xf32>
    %cst_116 = arith.constant dense<0.000000e+00> : vector<2x128xf32>
    %548 = tpu.matmul %539, %547, %cst_116 {dimension_numbers = #tpu.dot_dimension_numbers<[1], [0], [0], [1], [0, 0, 1, 1], [], []>} : vector<2x32xf32>, vector<32x128xf32>, vector<2x128xf32> -> vector<2x128xf32>
    %549 = arith.addf %503, %548 : vector<2x128xf32>
    %cst_117 = arith.constant dense<0.000000e+00> : vector<2x128xf32>
    %550 = tpu.matmul %520, %314, %cst_117 {dimension_numbers = #tpu.dot_dimension_numbers<[1], [0], [0], [1], [0, 0, 1, 1], [], []>} : vector<2x32xf32>, vector<32x128xf32>, vector<2x128xf32> -> vector<2x128xf32>
    %551 = arith.addf %313, %550 : vector<2x128xf32>
    %552 = arith.negf %551 : vector<2x128xf32>
    %553 = math.exp %552 : vector<2x128xf32>
    %cst_118 = arith.constant 1.000000e+00 : f32
    %554 = vector.broadcast %cst_118 : f32 to vector<2x128xf32>
    %555 = arith.addf %554, %553 : vector<2x128xf32>
    %556 = arith.divf %554, %555 : vector<2x128xf32>
    %557 = math.tanh %551 : vector<2x128xf32>
    %558 = vector.extract_strided_slice %556 {offsets = [0, 0], sizes = [2, 32], strides = [1, 1]} : vector<2x128xf32> to vector<2x32xf32>
    %559 = vector.extract_strided_slice %556 {offsets = [0, 32], sizes = [2, 32], strides = [1, 1]} : vector<2x128xf32> to vector<2x32xf32>
    %560 = vector.extract_strided_slice %557 {offsets = [0, 64], sizes = [2, 32], strides = [1, 1]} : vector<2x128xf32> to vector<2x32xf32>
    %561 = vector.extract_strided_slice %556 {offsets = [0, 96], sizes = [2, 32], strides = [1, 1]} : vector<2x128xf32> to vector<2x32xf32>
    %562 = arith.mulf %559, %518 : vector<2x32xf32>
    %563 = arith.mulf %558, %560 : vector<2x32xf32>
    %564 = arith.addf %562, %563 : vector<2x32xf32>
    %565 = math.tanh %564 : vector<2x32xf32>
    %566 = arith.mulf %561, %565 : vector<2x32xf32>
    %567 = tpu.concatenate %566, %539 in 1 : vector<2x32xf32>, vector<2x32xf32> -> vector<2x64xf32>
    %cst_119 = arith.constant dense<0.000000e+00> : vector<2x128xf32>
    %568 = tpu.matmul %567, %315, %cst_119 {dimension_numbers = #tpu.dot_dimension_numbers<[1], [0], [0], [1], [0, 0, 1, 1], [], []>} : vector<2x64xf32>, vector<64x128xf32>, vector<2x128xf32> -> vector<2x128xf32>
    %569 = vector.broadcast %316 : vector<1x128xf32> to vector<2x128xf32>
    %570 = arith.addf %568, %569 : vector<2x128xf32>
    %571 = arith.negf %570 : vector<2x128xf32>
    %572 = math.exp %571 : vector<2x128xf32>
    %cst_120 = arith.constant 1.000000e+00 : f32
    %573 = vector.broadcast %cst_120 : f32 to vector<2x128xf32>
    %574 = arith.addf %573, %572 : vector<2x128xf32>
    %575 = arith.divf %573, %574 : vector<2x128xf32>
    %576 = math.tanh %570 : vector<2x128xf32>
    %577 = vector.extract_strided_slice %575 {offsets = [0, 0], sizes = [2, 32], strides = [1, 1]} : vector<2x128xf32> to vector<2x32xf32>
    %578 = vector.extract_strided_slice %575 {offsets = [0, 32], sizes = [2, 32], strides = [1, 1]} : vector<2x128xf32> to vector<2x32xf32>
    %579 = vector.extract_strided_slice %576 {offsets = [0, 64], sizes = [2, 32], strides = [1, 1]} : vector<2x128xf32> to vector<2x32xf32>
    %580 = vector.extract_strided_slice %575 {offsets = [0, 96], sizes = [2, 32], strides = [1, 1]} : vector<2x128xf32> to vector<2x32xf32>
    %581 = arith.mulf %578, %537 : vector<2x32xf32>
    %582 = arith.mulf %577, %579 : vector<2x32xf32>
    %583 = arith.addf %581, %582 : vector<2x32xf32>
    %584 = math.tanh %583 : vector<2x32xf32>
    %585 = arith.mulf %580, %584 : vector<2x32xf32>
    %cst_121 = arith.constant dense<0.000000e+00> : vector<2x128xf32>
    %586 = tpu.matmul %585, %317, %cst_121 {dimension_numbers = #tpu.dot_dimension_numbers<[1], [0], [0], [1], [0, 0, 1, 1], [], []>} : vector<2x32xf32>, vector<32x128xf32>, vector<2x128xf32> -> vector<2x128xf32>
    %587 = vector.broadcast %318 : vector<1x128xf32> to vector<2x128xf32>
    %588 = arith.addf %586, %587 : vector<2x128xf32>
    %c5 = arith.constant 5 : index
    %c0_122 = arith.constant 0 : index
    %c0_123 = arith.constant 0 : index
    %589 = vector.load %arg15[%c5, %c0_122, %c0_123] : memref<16x2x128xf32, #tpu.memory_space<vmem>>, vector<1x2x128xf32>
    %590 = vector.shape_cast %589 : vector<1x2x128xf32> to vector<2x128xf32>
    %591 = vector.shape_cast %588 : vector<2x128xf32> to vector<1x2x128xf32>
    tpu.vector_store %arg15[%c5, %c0_122, %c0_123], %591 {strides = array<i32>} : memref<16x2x128xf32, #tpu.memory_space<vmem>>, vector<1x2x128xf32>,
    %c5_124 = arith.constant 5 : index
    %c0_125 = arith.constant 0 : index
    %c0_126 = arith.constant 0 : index
    %592 = vector.load %arg13[%c5_124, %c0_125, %c0_126] : memref<16x32x128xf32, #tpu.memory_space<vmem>>, vector<1x32x128xf32>
    %593 = vector.shape_cast %592 : vector<1x32x128xf32> to vector<32x128xf32>
    %cst_127 = arith.constant dense<0.000000e+00> : vector<2x128xf32>
    %594 = tpu.matmul %585, %593, %cst_127 {dimension_numbers = #tpu.dot_dimension_numbers<[1], [0], [0], [1], [0, 0, 1, 1], [], []>} : vector<2x32xf32>, vector<32x128xf32>, vector<2x128xf32> -> vector<2x128xf32>
    %595 = arith.addf %549, %594 : vector<2x128xf32>
    %cst_128 = arith.constant dense<0.000000e+00> : vector<2x128xf32>
    %596 = tpu.matmul %566, %314, %cst_128 {dimension_numbers = #tpu.dot_dimension_numbers<[1], [0], [0], [1], [0, 0, 1, 1], [], []>} : vector<2x32xf32>, vector<32x128xf32>, vector<2x128xf32> -> vector<2x128xf32>
    %597 = arith.addf %310, %596 : vector<2x128xf32>
    %598 = arith.negf %597 : vector<2x128xf32>
    %599 = math.exp %598 : vector<2x128xf32>
    %cst_129 = arith.constant 1.000000e+00 : f32
    %600 = vector.broadcast %cst_129 : f32 to vector<2x128xf32>
    %601 = arith.addf %600, %599 : vector<2x128xf32>
    %602 = arith.divf %600, %601 : vector<2x128xf32>
    %603 = math.tanh %597 : vector<2x128xf32>
    %604 = vector.extract_strided_slice %602 {offsets = [0, 0], sizes = [2, 32], strides = [1, 1]} : vector<2x128xf32> to vector<2x32xf32>
    %605 = vector.extract_strided_slice %602 {offsets = [0, 32], sizes = [2, 32], strides = [1, 1]} : vector<2x128xf32> to vector<2x32xf32>
    %606 = vector.extract_strided_slice %603 {offsets = [0, 64], sizes = [2, 32], strides = [1, 1]} : vector<2x128xf32> to vector<2x32xf32>
    %607 = vector.extract_strided_slice %602 {offsets = [0, 96], sizes = [2, 32], strides = [1, 1]} : vector<2x128xf32> to vector<2x32xf32>
    %608 = arith.mulf %605, %564 : vector<2x32xf32>
    %609 = arith.mulf %604, %606 : vector<2x32xf32>
    %610 = arith.addf %608, %609 : vector<2x32xf32>
    %611 = math.tanh %610 : vector<2x32xf32>
    %612 = arith.mulf %607, %611 : vector<2x32xf32>
    %613 = tpu.concatenate %612, %585 in 1 : vector<2x32xf32>, vector<2x32xf32> -> vector<2x64xf32>
    %cst_130 = arith.constant dense<0.000000e+00> : vector<2x128xf32>
    %614 = tpu.matmul %613, %315, %cst_130 {dimension_numbers = #tpu.dot_dimension_numbers<[1], [0], [0], [1], [0, 0, 1, 1], [], []>} : vector<2x64xf32>, vector<64x128xf32>, vector<2x128xf32> -> vector<2x128xf32>
    %615 = vector.broadcast %316 : vector<1x128xf32> to vector<2x128xf32>
    %616 = arith.addf %614, %615 : vector<2x128xf32>
    %617 = arith.negf %616 : vector<2x128xf32>
    %618 = math.exp %617 : vector<2x128xf32>
    %cst_131 = arith.constant 1.000000e+00 : f32
    %619 = vector.broadcast %cst_131 : f32 to vector<2x128xf32>
    %620 = arith.addf %619, %618 : vector<2x128xf32>
    %621 = arith.divf %619, %620 : vector<2x128xf32>
    %622 = math.tanh %616 : vector<2x128xf32>
    %623 = vector.extract_strided_slice %621 {offsets = [0, 0], sizes = [2, 32], strides = [1, 1]} : vector<2x128xf32> to vector<2x32xf32>
    %624 = vector.extract_strided_slice %621 {offsets = [0, 32], sizes = [2, 32], strides = [1, 1]} : vector<2x128xf32> to vector<2x32xf32>
    %625 = vector.extract_strided_slice %622 {offsets = [0, 64], sizes = [2, 32], strides = [1, 1]} : vector<2x128xf32> to vector<2x32xf32>
    %626 = vector.extract_strided_slice %621 {offsets = [0, 96], sizes = [2, 32], strides = [1, 1]} : vector<2x128xf32> to vector<2x32xf32>
    %627 = arith.mulf %624, %583 : vector<2x32xf32>
    %628 = arith.mulf %623, %625 : vector<2x32xf32>
    %629 = arith.addf %627, %628 : vector<2x32xf32>
    %630 = math.tanh %629 : vector<2x32xf32>
    %631 = arith.mulf %626, %630 : vector<2x32xf32>
    %cst_132 = arith.constant dense<0.000000e+00> : vector<2x128xf32>
    %632 = tpu.matmul %631, %317, %cst_132 {dimension_numbers = #tpu.dot_dimension_numbers<[1], [0], [0], [1], [0, 0, 1, 1], [], []>} : vector<2x32xf32>, vector<32x128xf32>, vector<2x128xf32> -> vector<2x128xf32>
    %633 = vector.broadcast %318 : vector<1x128xf32> to vector<2x128xf32>
    %634 = arith.addf %632, %633 : vector<2x128xf32>
    %c6 = arith.constant 6 : index
    %c0_133 = arith.constant 0 : index
    %c0_134 = arith.constant 0 : index
    %635 = vector.load %arg15[%c6, %c0_133, %c0_134] : memref<16x2x128xf32, #tpu.memory_space<vmem>>, vector<1x2x128xf32>
    %636 = vector.shape_cast %635 : vector<1x2x128xf32> to vector<2x128xf32>
    %637 = vector.shape_cast %634 : vector<2x128xf32> to vector<1x2x128xf32>
    tpu.vector_store %arg15[%c6, %c0_133, %c0_134], %637 {strides = array<i32>} : memref<16x2x128xf32, #tpu.memory_space<vmem>>, vector<1x2x128xf32>,
    %c6_135 = arith.constant 6 : index
    %c0_136 = arith.constant 0 : index
    %c0_137 = arith.constant 0 : index
    %638 = vector.load %arg13[%c6_135, %c0_136, %c0_137] : memref<16x32x128xf32, #tpu.memory_space<vmem>>, vector<1x32x128xf32>
    %639 = vector.shape_cast %638 : vector<1x32x128xf32> to vector<32x128xf32>
    %cst_138 = arith.constant dense<0.000000e+00> : vector<2x128xf32>
    %640 = tpu.matmul %631, %639, %cst_138 {dimension_numbers = #tpu.dot_dimension_numbers<[1], [0], [0], [1], [0, 0, 1, 1], [], []>} : vector<2x32xf32>, vector<32x128xf32>, vector<2x128xf32> -> vector<2x128xf32>
    %641 = arith.addf %595, %640 : vector<2x128xf32>
    %cst_139 = arith.constant dense<0.000000e+00> : vector<2x128xf32>
    %642 = tpu.matmul %612, %314, %cst_139 {dimension_numbers = #tpu.dot_dimension_numbers<[1], [0], [0], [1], [0, 0, 1, 1], [], []>} : vector<2x32xf32>, vector<32x128xf32>, vector<2x128xf32> -> vector<2x128xf32>
    %643 = arith.addf %313, %642 : vector<2x128xf32>
    %644 = arith.negf %643 : vector<2x128xf32>
    %645 = math.exp %644 : vector<2x128xf32>
    %cst_140 = arith.constant 1.000000e+00 : f32
    %646 = vector.broadcast %cst_140 : f32 to vector<2x128xf32>
    %647 = arith.addf %646, %645 : vector<2x128xf32>
    %648 = arith.divf %646, %647 : vector<2x128xf32>
    %649 = math.tanh %643 : vector<2x128xf32>
    %650 = vector.extract_strided_slice %648 {offsets = [0, 0], sizes = [2, 32], strides = [1, 1]} : vector<2x128xf32> to vector<2x32xf32>
    %651 = vector.extract_strided_slice %648 {offsets = [0, 32], sizes = [2, 32], strides = [1, 1]} : vector<2x128xf32> to vector<2x32xf32>
    %652 = vector.extract_strided_slice %649 {offsets = [0, 64], sizes = [2, 32], strides = [1, 1]} : vector<2x128xf32> to vector<2x32xf32>
    %653 = vector.extract_strided_slice %648 {offsets = [0, 96], sizes = [2, 32], strides = [1, 1]} : vector<2x128xf32> to vector<2x32xf32>
    %654 = arith.mulf %651, %610 : vector<2x32xf32>
    %655 = arith.mulf %650, %652 : vector<2x32xf32>
    %656 = arith.addf %654, %655 : vector<2x32xf32>
    %657 = math.tanh %656 : vector<2x32xf32>
    %658 = arith.mulf %653, %657 : vector<2x32xf32>
    %659 = tpu.concatenate %658, %631 in 1 : vector<2x32xf32>, vector<2x32xf32> -> vector<2x64xf32>
    %cst_141 = arith.constant dense<0.000000e+00> : vector<2x128xf32>
    %660 = tpu.matmul %659, %315, %cst_141 {dimension_numbers = #tpu.dot_dimension_numbers<[1], [0], [0], [1], [0, 0, 1, 1], [], []>} : vector<2x64xf32>, vector<64x128xf32>, vector<2x128xf32> -> vector<2x128xf32>
    %661 = vector.broadcast %316 : vector<1x128xf32> to vector<2x128xf32>
    %662 = arith.addf %660, %661 : vector<2x128xf32>
    %663 = arith.negf %662 : vector<2x128xf32>
    %664 = math.exp %663 : vector<2x128xf32>
    %cst_142 = arith.constant 1.000000e+00 : f32
    %665 = vector.broadcast %cst_142 : f32 to vector<2x128xf32>
    %666 = arith.addf %665, %664 : vector<2x128xf32>
    %667 = arith.divf %665, %666 : vector<2x128xf32>
    %668 = math.tanh %662 : vector<2x128xf32>
    %669 = vector.extract_strided_slice %667 {offsets = [0, 0], sizes = [2, 32], strides = [1, 1]} : vector<2x128xf32> to vector<2x32xf32>
    %670 = vector.extract_strided_slice %667 {offsets = [0, 32], sizes = [2, 32], strides = [1, 1]} : vector<2x128xf32> to vector<2x32xf32>
    %671 = vector.extract_strided_slice %668 {offsets = [0, 64], sizes = [2, 32], strides = [1, 1]} : vector<2x128xf32> to vector<2x32xf32>
    %672 = vector.extract_strided_slice %667 {offsets = [0, 96], sizes = [2, 32], strides = [1, 1]} : vector<2x128xf32> to vector<2x32xf32>
    %673 = arith.mulf %670, %629 : vector<2x32xf32>
    %674 = arith.mulf %669, %671 : vector<2x32xf32>
    %675 = arith.addf %673, %674 : vector<2x32xf32>
    %676 = math.tanh %675 : vector<2x32xf32>
    %677 = arith.mulf %672, %676 : vector<2x32xf32>
    %cst_143 = arith.constant dense<0.000000e+00> : vector<2x128xf32>
    %678 = tpu.matmul %677, %317, %cst_143 {dimension_numbers = #tpu.dot_dimension_numbers<[1], [0], [0], [1], [0, 0, 1, 1], [], []>} : vector<2x32xf32>, vector<32x128xf32>, vector<2x128xf32> -> vector<2x128xf32>
    %679 = vector.broadcast %318 : vector<1x128xf32> to vector<2x128xf32>
    %680 = arith.addf %678, %679 : vector<2x128xf32>
    %c7 = arith.constant 7 : index
    %c0_144 = arith.constant 0 : index
    %c0_145 = arith.constant 0 : index
    %681 = vector.load %arg15[%c7, %c0_144, %c0_145] : memref<16x2x128xf32, #tpu.memory_space<vmem>>, vector<1x2x128xf32>
    %682 = vector.shape_cast %681 : vector<1x2x128xf32> to vector<2x128xf32>
    %683 = vector.shape_cast %680 : vector<2x128xf32> to vector<1x2x128xf32>
    tpu.vector_store %arg15[%c7, %c0_144, %c0_145], %683 {strides = array<i32>} : memref<16x2x128xf32, #tpu.memory_space<vmem>>, vector<1x2x128xf32>,
    %c7_146 = arith.constant 7 : index
    %c0_147 = arith.constant 0 : index
    %c0_148 = arith.constant 0 : index
    %684 = vector.load %arg13[%c7_146, %c0_147, %c0_148] : memref<16x32x128xf32, #tpu.memory_space<vmem>>, vector<1x32x128xf32>
    %685 = vector.shape_cast %684 : vector<1x32x128xf32> to vector<32x128xf32>
    %cst_149 = arith.constant dense<0.000000e+00> : vector<2x128xf32>
    %686 = tpu.matmul %677, %685, %cst_149 {dimension_numbers = #tpu.dot_dimension_numbers<[1], [0], [0], [1], [0, 0, 1, 1], [], []>} : vector<2x32xf32>, vector<32x128xf32>, vector<2x128xf32> -> vector<2x128xf32>
    %687 = arith.addf %641, %686 : vector<2x128xf32>
    %cst_150 = arith.constant dense<0.000000e+00> : vector<2x128xf32>
    %688 = tpu.matmul %658, %314, %cst_150 {dimension_numbers = #tpu.dot_dimension_numbers<[1], [0], [0], [1], [0, 0, 1, 1], [], []>} : vector<2x32xf32>, vector<32x128xf32>, vector<2x128xf32> -> vector<2x128xf32>
    %689 = arith.addf %310, %688 : vector<2x128xf32>
    %690 = arith.negf %689 : vector<2x128xf32>
    %691 = math.exp %690 : vector<2x128xf32>
    %cst_151 = arith.constant 1.000000e+00 : f32
    %692 = vector.broadcast %cst_151 : f32 to vector<2x128xf32>
    %693 = arith.addf %692, %691 : vector<2x128xf32>
    %694 = arith.divf %692, %693 : vector<2x128xf32>
    %695 = math.tanh %689 : vector<2x128xf32>
    %696 = vector.extract_strided_slice %694 {offsets = [0, 0], sizes = [2, 32], strides = [1, 1]} : vector<2x128xf32> to vector<2x32xf32>
    %697 = vector.extract_strided_slice %694 {offsets = [0, 32], sizes = [2, 32], strides = [1, 1]} : vector<2x128xf32> to vector<2x32xf32>
    %698 = vector.extract_strided_slice %695 {offsets = [0, 64], sizes = [2, 32], strides = [1, 1]} : vector<2x128xf32> to vector<2x32xf32>
    %699 = vector.extract_strided_slice %694 {offsets = [0, 96], sizes = [2, 32], strides = [1, 1]} : vector<2x128xf32> to vector<2x32xf32>
    %700 = arith.mulf %697, %656 : vector<2x32xf32>
    %701 = arith.mulf %696, %698 : vector<2x32xf32>
    %702 = arith.addf %700, %701 : vector<2x32xf32>
    %703 = math.tanh %702 : vector<2x32xf32>
    %704 = arith.mulf %699, %703 : vector<2x32xf32>
    %705 = tpu.concatenate %704, %677 in 1 : vector<2x32xf32>, vector<2x32xf32> -> vector<2x64xf32>
    %cst_152 = arith.constant dense<0.000000e+00> : vector<2x128xf32>
    %706 = tpu.matmul %705, %315, %cst_152 {dimension_numbers = #tpu.dot_dimension_numbers<[1], [0], [0], [1], [0, 0, 1, 1], [], []>} : vector<2x64xf32>, vector<64x128xf32>, vector<2x128xf32> -> vector<2x128xf32>
    %707 = vector.broadcast %316 : vector<1x128xf32> to vector<2x128xf32>
    %708 = arith.addf %706, %707 : vector<2x128xf32>
    %709 = arith.negf %708 : vector<2x128xf32>
    %710 = math.exp %709 : vector<2x128xf32>
    %cst_153 = arith.constant 1.000000e+00 : f32
    %711 = vector.broadcast %cst_153 : f32 to vector<2x128xf32>
    %712 = arith.addf %711, %710 : vector<2x128xf32>
    %713 = arith.divf %711, %712 : vector<2x128xf32>
    %714 = math.tanh %708 : vector<2x128xf32>
    %715 = vector.extract_strided_slice %713 {offsets = [0, 0], sizes = [2, 32], strides = [1, 1]} : vector<2x128xf32> to vector<2x32xf32>
    %716 = vector.extract_strided_slice %713 {offsets = [0, 32], sizes = [2, 32], strides = [1, 1]} : vector<2x128xf32> to vector<2x32xf32>
    %717 = vector.extract_strided_slice %714 {offsets = [0, 64], sizes = [2, 32], strides = [1, 1]} : vector<2x128xf32> to vector<2x32xf32>
    %718 = vector.extract_strided_slice %713 {offsets = [0, 96], sizes = [2, 32], strides = [1, 1]} : vector<2x128xf32> to vector<2x32xf32>
    %719 = arith.mulf %716, %675 : vector<2x32xf32>
    %720 = arith.mulf %715, %717 : vector<2x32xf32>
    %721 = arith.addf %719, %720 : vector<2x32xf32>
    %722 = math.tanh %721 : vector<2x32xf32>
    %723 = arith.mulf %718, %722 : vector<2x32xf32>
    %cst_154 = arith.constant dense<0.000000e+00> : vector<2x128xf32>
    %724 = tpu.matmul %723, %317, %cst_154 {dimension_numbers = #tpu.dot_dimension_numbers<[1], [0], [0], [1], [0, 0, 1, 1], [], []>} : vector<2x32xf32>, vector<32x128xf32>, vector<2x128xf32> -> vector<2x128xf32>
    %725 = vector.broadcast %318 : vector<1x128xf32> to vector<2x128xf32>
    %726 = arith.addf %724, %725 : vector<2x128xf32>
    %c8 = arith.constant 8 : index
    %c0_155 = arith.constant 0 : index
    %c0_156 = arith.constant 0 : index
    %727 = vector.load %arg15[%c8, %c0_155, %c0_156] : memref<16x2x128xf32, #tpu.memory_space<vmem>>, vector<1x2x128xf32>
    %728 = vector.shape_cast %727 : vector<1x2x128xf32> to vector<2x128xf32>
    %729 = vector.shape_cast %726 : vector<2x128xf32> to vector<1x2x128xf32>
    tpu.vector_store %arg15[%c8, %c0_155, %c0_156], %729 {strides = array<i32>} : memref<16x2x128xf32, #tpu.memory_space<vmem>>, vector<1x2x128xf32>,
    %c8_157 = arith.constant 8 : index
    %c0_158 = arith.constant 0 : index
    %c0_159 = arith.constant 0 : index
    %730 = vector.load %arg13[%c8_157, %c0_158, %c0_159] : memref<16x32x128xf32, #tpu.memory_space<vmem>>, vector<1x32x128xf32>
    %731 = vector.shape_cast %730 : vector<1x32x128xf32> to vector<32x128xf32>
    %cst_160 = arith.constant dense<0.000000e+00> : vector<2x128xf32>
    %732 = tpu.matmul %723, %731, %cst_160 {dimension_numbers = #tpu.dot_dimension_numbers<[1], [0], [0], [1], [0, 0, 1, 1], [], []>} : vector<2x32xf32>, vector<32x128xf32>, vector<2x128xf32> -> vector<2x128xf32>
    %733 = arith.addf %687, %732 : vector<2x128xf32>
    %cst_161 = arith.constant dense<0.000000e+00> : vector<2x128xf32>
    %734 = tpu.matmul %704, %314, %cst_161 {dimension_numbers = #tpu.dot_dimension_numbers<[1], [0], [0], [1], [0, 0, 1, 1], [], []>} : vector<2x32xf32>, vector<32x128xf32>, vector<2x128xf32> -> vector<2x128xf32>
    %735 = arith.addf %313, %734 : vector<2x128xf32>
    %736 = arith.negf %735 : vector<2x128xf32>
    %737 = math.exp %736 : vector<2x128xf32>
    %cst_162 = arith.constant 1.000000e+00 : f32
    %738 = vector.broadcast %cst_162 : f32 to vector<2x128xf32>
    %739 = arith.addf %738, %737 : vector<2x128xf32>
    %740 = arith.divf %738, %739 : vector<2x128xf32>
    %741 = math.tanh %735 : vector<2x128xf32>
    %742 = vector.extract_strided_slice %740 {offsets = [0, 0], sizes = [2, 32], strides = [1, 1]} : vector<2x128xf32> to vector<2x32xf32>
    %743 = vector.extract_strided_slice %740 {offsets = [0, 32], sizes = [2, 32], strides = [1, 1]} : vector<2x128xf32> to vector<2x32xf32>
    %744 = vector.extract_strided_slice %741 {offsets = [0, 64], sizes = [2, 32], strides = [1, 1]} : vector<2x128xf32> to vector<2x32xf32>
    %745 = vector.extract_strided_slice %740 {offsets = [0, 96], sizes = [2, 32], strides = [1, 1]} : vector<2x128xf32> to vector<2x32xf32>
    %746 = arith.mulf %743, %702 : vector<2x32xf32>
    %747 = arith.mulf %742, %744 : vector<2x32xf32>
    %748 = arith.addf %746, %747 : vector<2x32xf32>
    %749 = math.tanh %748 : vector<2x32xf32>
    %750 = arith.mulf %745, %749 : vector<2x32xf32>
    %751 = tpu.concatenate %750, %723 in 1 : vector<2x32xf32>, vector<2x32xf32> -> vector<2x64xf32>
    %cst_163 = arith.constant dense<0.000000e+00> : vector<2x128xf32>
    %752 = tpu.matmul %751, %315, %cst_163 {dimension_numbers = #tpu.dot_dimension_numbers<[1], [0], [0], [1], [0, 0, 1, 1], [], []>} : vector<2x64xf32>, vector<64x128xf32>, vector<2x128xf32> -> vector<2x128xf32>
    %753 = vector.broadcast %316 : vector<1x128xf32> to vector<2x128xf32>
    %754 = arith.addf %752, %753 : vector<2x128xf32>
    %755 = arith.negf %754 : vector<2x128xf32>
    %756 = math.exp %755 : vector<2x128xf32>
    %cst_164 = arith.constant 1.000000e+00 : f32
    %757 = vector.broadcast %cst_164 : f32 to vector<2x128xf32>
    %758 = arith.addf %757, %756 : vector<2x128xf32>
    %759 = arith.divf %757, %758 : vector<2x128xf32>
    %760 = math.tanh %754 : vector<2x128xf32>
    %761 = vector.extract_strided_slice %759 {offsets = [0, 0], sizes = [2, 32], strides = [1, 1]} : vector<2x128xf32> to vector<2x32xf32>
    %762 = vector.extract_strided_slice %759 {offsets = [0, 32], sizes = [2, 32], strides = [1, 1]} : vector<2x128xf32> to vector<2x32xf32>
    %763 = vector.extract_strided_slice %760 {offsets = [0, 64], sizes = [2, 32], strides = [1, 1]} : vector<2x128xf32> to vector<2x32xf32>
    %764 = vector.extract_strided_slice %759 {offsets = [0, 96], sizes = [2, 32], strides = [1, 1]} : vector<2x128xf32> to vector<2x32xf32>
    %765 = arith.mulf %762, %721 : vector<2x32xf32>
    %766 = arith.mulf %761, %763 : vector<2x32xf32>
    %767 = arith.addf %765, %766 : vector<2x32xf32>
    %768 = math.tanh %767 : vector<2x32xf32>
    %769 = arith.mulf %764, %768 : vector<2x32xf32>
    %cst_165 = arith.constant dense<0.000000e+00> : vector<2x128xf32>
    %770 = tpu.matmul %769, %317, %cst_165 {dimension_numbers = #tpu.dot_dimension_numbers<[1], [0], [0], [1], [0, 0, 1, 1], [], []>} : vector<2x32xf32>, vector<32x128xf32>, vector<2x128xf32> -> vector<2x128xf32>
    %771 = vector.broadcast %318 : vector<1x128xf32> to vector<2x128xf32>
    %772 = arith.addf %770, %771 : vector<2x128xf32>
    %c9 = arith.constant 9 : index
    %c0_166 = arith.constant 0 : index
    %c0_167 = arith.constant 0 : index
    %773 = vector.load %arg15[%c9, %c0_166, %c0_167] : memref<16x2x128xf32, #tpu.memory_space<vmem>>, vector<1x2x128xf32>
    %774 = vector.shape_cast %773 : vector<1x2x128xf32> to vector<2x128xf32>
    %775 = vector.shape_cast %772 : vector<2x128xf32> to vector<1x2x128xf32>
    tpu.vector_store %arg15[%c9, %c0_166, %c0_167], %775 {strides = array<i32>} : memref<16x2x128xf32, #tpu.memory_space<vmem>>, vector<1x2x128xf32>,
    %c9_168 = arith.constant 9 : index
    %c0_169 = arith.constant 0 : index
    %c0_170 = arith.constant 0 : index
    %776 = vector.load %arg13[%c9_168, %c0_169, %c0_170] : memref<16x32x128xf32, #tpu.memory_space<vmem>>, vector<1x32x128xf32>
    %777 = vector.shape_cast %776 : vector<1x32x128xf32> to vector<32x128xf32>
    %cst_171 = arith.constant dense<0.000000e+00> : vector<2x128xf32>
    %778 = tpu.matmul %769, %777, %cst_171 {dimension_numbers = #tpu.dot_dimension_numbers<[1], [0], [0], [1], [0, 0, 1, 1], [], []>} : vector<2x32xf32>, vector<32x128xf32>, vector<2x128xf32> -> vector<2x128xf32>
    %779 = arith.addf %733, %778 : vector<2x128xf32>
    %cst_172 = arith.constant dense<0.000000e+00> : vector<2x128xf32>
    %780 = tpu.matmul %750, %314, %cst_172 {dimension_numbers = #tpu.dot_dimension_numbers<[1], [0], [0], [1], [0, 0, 1, 1], [], []>} : vector<2x32xf32>, vector<32x128xf32>, vector<2x128xf32> -> vector<2x128xf32>
    %781 = arith.addf %310, %780 : vector<2x128xf32>
    %782 = arith.negf %781 : vector<2x128xf32>
    %783 = math.exp %782 : vector<2x128xf32>
    %cst_173 = arith.constant 1.000000e+00 : f32
    %784 = vector.broadcast %cst_173 : f32 to vector<2x128xf32>
    %785 = arith.addf %784, %783 : vector<2x128xf32>
    %786 = arith.divf %784, %785 : vector<2x128xf32>
    %787 = math.tanh %781 : vector<2x128xf32>
    %788 = vector.extract_strided_slice %786 {offsets = [0, 0], sizes = [2, 32], strides = [1, 1]} : vector<2x128xf32> to vector<2x32xf32>
    %789 = vector.extract_strided_slice %786 {offsets = [0, 32], sizes = [2, 32], strides = [1, 1]} : vector<2x128xf32> to vector<2x32xf32>
    %790 = vector.extract_strided_slice %787 {offsets = [0, 64], sizes = [2, 32], strides = [1, 1]} : vector<2x128xf32> to vector<2x32xf32>
    %791 = vector.extract_strided_slice %786 {offsets = [0, 96], sizes = [2, 32], strides = [1, 1]} : vector<2x128xf32> to vector<2x32xf32>
    %792 = arith.mulf %789, %748 : vector<2x32xf32>
    %793 = arith.mulf %788, %790 : vector<2x32xf32>
    %794 = arith.addf %792, %793 : vector<2x32xf32>
    %795 = math.tanh %794 : vector<2x32xf32>
    %796 = arith.mulf %791, %795 : vector<2x32xf32>
    %797 = tpu.concatenate %796, %769 in 1 : vector<2x32xf32>, vector<2x32xf32> -> vector<2x64xf32>
    %cst_174 = arith.constant dense<0.000000e+00> : vector<2x128xf32>
    %798 = tpu.matmul %797, %315, %cst_174 {dimension_numbers = #tpu.dot_dimension_numbers<[1], [0], [0], [1], [0, 0, 1, 1], [], []>} : vector<2x64xf32>, vector<64x128xf32>, vector<2x128xf32> -> vector<2x128xf32>
    %799 = vector.broadcast %316 : vector<1x128xf32> to vector<2x128xf32>
    %800 = arith.addf %798, %799 : vector<2x128xf32>
    %801 = arith.negf %800 : vector<2x128xf32>
    %802 = math.exp %801 : vector<2x128xf32>
    %cst_175 = arith.constant 1.000000e+00 : f32
    %803 = vector.broadcast %cst_175 : f32 to vector<2x128xf32>
    %804 = arith.addf %803, %802 : vector<2x128xf32>
    %805 = arith.divf %803, %804 : vector<2x128xf32>
    %806 = math.tanh %800 : vector<2x128xf32>
    %807 = vector.extract_strided_slice %805 {offsets = [0, 0], sizes = [2, 32], strides = [1, 1]} : vector<2x128xf32> to vector<2x32xf32>
    %808 = vector.extract_strided_slice %805 {offsets = [0, 32], sizes = [2, 32], strides = [1, 1]} : vector<2x128xf32> to vector<2x32xf32>
    %809 = vector.extract_strided_slice %806 {offsets = [0, 64], sizes = [2, 32], strides = [1, 1]} : vector<2x128xf32> to vector<2x32xf32>
    %810 = vector.extract_strided_slice %805 {offsets = [0, 96], sizes = [2, 32], strides = [1, 1]} : vector<2x128xf32> to vector<2x32xf32>
    %811 = arith.mulf %808, %767 : vector<2x32xf32>
    %812 = arith.mulf %807, %809 : vector<2x32xf32>
    %813 = arith.addf %811, %812 : vector<2x32xf32>
    %814 = math.tanh %813 : vector<2x32xf32>
    %815 = arith.mulf %810, %814 : vector<2x32xf32>
    %cst_176 = arith.constant dense<0.000000e+00> : vector<2x128xf32>
    %816 = tpu.matmul %815, %317, %cst_176 {dimension_numbers = #tpu.dot_dimension_numbers<[1], [0], [0], [1], [0, 0, 1, 1], [], []>} : vector<2x32xf32>, vector<32x128xf32>, vector<2x128xf32> -> vector<2x128xf32>
    %817 = vector.broadcast %318 : vector<1x128xf32> to vector<2x128xf32>
    %818 = arith.addf %816, %817 : vector<2x128xf32>
    %c10 = arith.constant 10 : index
    %c0_177 = arith.constant 0 : index
    %c0_178 = arith.constant 0 : index
    %819 = vector.load %arg15[%c10, %c0_177, %c0_178] : memref<16x2x128xf32, #tpu.memory_space<vmem>>, vector<1x2x128xf32>
    %820 = vector.shape_cast %819 : vector<1x2x128xf32> to vector<2x128xf32>
    %821 = vector.shape_cast %818 : vector<2x128xf32> to vector<1x2x128xf32>
    tpu.vector_store %arg15[%c10, %c0_177, %c0_178], %821 {strides = array<i32>} : memref<16x2x128xf32, #tpu.memory_space<vmem>>, vector<1x2x128xf32>,
    %c10_179 = arith.constant 10 : index
    %c0_180 = arith.constant 0 : index
    %c0_181 = arith.constant 0 : index
    %822 = vector.load %arg13[%c10_179, %c0_180, %c0_181] : memref<16x32x128xf32, #tpu.memory_space<vmem>>, vector<1x32x128xf32>
    %823 = vector.shape_cast %822 : vector<1x32x128xf32> to vector<32x128xf32>
    %cst_182 = arith.constant dense<0.000000e+00> : vector<2x128xf32>
    %824 = tpu.matmul %815, %823, %cst_182 {dimension_numbers = #tpu.dot_dimension_numbers<[1], [0], [0], [1], [0, 0, 1, 1], [], []>} : vector<2x32xf32>, vector<32x128xf32>, vector<2x128xf32> -> vector<2x128xf32>
    %825 = arith.addf %779, %824 : vector<2x128xf32>
    %cst_183 = arith.constant dense<0.000000e+00> : vector<2x128xf32>
    %826 = tpu.matmul %796, %314, %cst_183 {dimension_numbers = #tpu.dot_dimension_numbers<[1], [0], [0], [1], [0, 0, 1, 1], [], []>} : vector<2x32xf32>, vector<32x128xf32>, vector<2x128xf32> -> vector<2x128xf32>
    %827 = arith.addf %313, %826 : vector<2x128xf32>
    %828 = arith.negf %827 : vector<2x128xf32>
    %829 = math.exp %828 : vector<2x128xf32>
    %cst_184 = arith.constant 1.000000e+00 : f32
    %830 = vector.broadcast %cst_184 : f32 to vector<2x128xf32>
    %831 = arith.addf %830, %829 : vector<2x128xf32>
    %832 = arith.divf %830, %831 : vector<2x128xf32>
    %833 = math.tanh %827 : vector<2x128xf32>
    %834 = vector.extract_strided_slice %832 {offsets = [0, 0], sizes = [2, 32], strides = [1, 1]} : vector<2x128xf32> to vector<2x32xf32>
    %835 = vector.extract_strided_slice %832 {offsets = [0, 32], sizes = [2, 32], strides = [1, 1]} : vector<2x128xf32> to vector<2x32xf32>
    %836 = vector.extract_strided_slice %833 {offsets = [0, 64], sizes = [2, 32], strides = [1, 1]} : vector<2x128xf32> to vector<2x32xf32>
    %837 = vector.extract_strided_slice %832 {offsets = [0, 96], sizes = [2, 32], strides = [1, 1]} : vector<2x128xf32> to vector<2x32xf32>
    %838 = arith.mulf %835, %794 : vector<2x32xf32>
    %839 = arith.mulf %834, %836 : vector<2x32xf32>
    %840 = arith.addf %838, %839 : vector<2x32xf32>
    %841 = math.tanh %840 : vector<2x32xf32>
    %842 = arith.mulf %837, %841 : vector<2x32xf32>
    %843 = tpu.concatenate %842, %815 in 1 : vector<2x32xf32>, vector<2x32xf32> -> vector<2x64xf32>
    %cst_185 = arith.constant dense<0.000000e+00> : vector<2x128xf32>
    %844 = tpu.matmul %843, %315, %cst_185 {dimension_numbers = #tpu.dot_dimension_numbers<[1], [0], [0], [1], [0, 0, 1, 1], [], []>} : vector<2x64xf32>, vector<64x128xf32>, vector<2x128xf32> -> vector<2x128xf32>
    %845 = vector.broadcast %316 : vector<1x128xf32> to vector<2x128xf32>
    %846 = arith.addf %844, %845 : vector<2x128xf32>
    %847 = arith.negf %846 : vector<2x128xf32>
    %848 = math.exp %847 : vector<2x128xf32>
    %cst_186 = arith.constant 1.000000e+00 : f32
    %849 = vector.broadcast %cst_186 : f32 to vector<2x128xf32>
    %850 = arith.addf %849, %848 : vector<2x128xf32>
    %851 = arith.divf %849, %850 : vector<2x128xf32>
    %852 = math.tanh %846 : vector<2x128xf32>
    %853 = vector.extract_strided_slice %851 {offsets = [0, 0], sizes = [2, 32], strides = [1, 1]} : vector<2x128xf32> to vector<2x32xf32>
    %854 = vector.extract_strided_slice %851 {offsets = [0, 32], sizes = [2, 32], strides = [1, 1]} : vector<2x128xf32> to vector<2x32xf32>
    %855 = vector.extract_strided_slice %852 {offsets = [0, 64], sizes = [2, 32], strides = [1, 1]} : vector<2x128xf32> to vector<2x32xf32>
    %856 = vector.extract_strided_slice %851 {offsets = [0, 96], sizes = [2, 32], strides = [1, 1]} : vector<2x128xf32> to vector<2x32xf32>
    %857 = arith.mulf %854, %813 : vector<2x32xf32>
    %858 = arith.mulf %853, %855 : vector<2x32xf32>
    %859 = arith.addf %857, %858 : vector<2x32xf32>
    %860 = math.tanh %859 : vector<2x32xf32>
    %861 = arith.mulf %856, %860 : vector<2x32xf32>
    %cst_187 = arith.constant dense<0.000000e+00> : vector<2x128xf32>
    %862 = tpu.matmul %861, %317, %cst_187 {dimension_numbers = #tpu.dot_dimension_numbers<[1], [0], [0], [1], [0, 0, 1, 1], [], []>} : vector<2x32xf32>, vector<32x128xf32>, vector<2x128xf32> -> vector<2x128xf32>
    %863 = vector.broadcast %318 : vector<1x128xf32> to vector<2x128xf32>
    %864 = arith.addf %862, %863 : vector<2x128xf32>
    %c11 = arith.constant 11 : index
    %c0_188 = arith.constant 0 : index
    %c0_189 = arith.constant 0 : index
    %865 = vector.load %arg15[%c11, %c0_188, %c0_189] : memref<16x2x128xf32, #tpu.memory_space<vmem>>, vector<1x2x128xf32>
    %866 = vector.shape_cast %865 : vector<1x2x128xf32> to vector<2x128xf32>
    %867 = vector.shape_cast %864 : vector<2x128xf32> to vector<1x2x128xf32>
    tpu.vector_store %arg15[%c11, %c0_188, %c0_189], %867 {strides = array<i32>} : memref<16x2x128xf32, #tpu.memory_space<vmem>>, vector<1x2x128xf32>,
    %c11_190 = arith.constant 11 : index
    %c0_191 = arith.constant 0 : index
    %c0_192 = arith.constant 0 : index
    %868 = vector.load %arg13[%c11_190, %c0_191, %c0_192] : memref<16x32x128xf32, #tpu.memory_space<vmem>>, vector<1x32x128xf32>
    %869 = vector.shape_cast %868 : vector<1x32x128xf32> to vector<32x128xf32>
    %cst_193 = arith.constant dense<0.000000e+00> : vector<2x128xf32>
    %870 = tpu.matmul %861, %869, %cst_193 {dimension_numbers = #tpu.dot_dimension_numbers<[1], [0], [0], [1], [0, 0, 1, 1], [], []>} : vector<2x32xf32>, vector<32x128xf32>, vector<2x128xf32> -> vector<2x128xf32>
    %871 = arith.addf %825, %870 : vector<2x128xf32>
    %cst_194 = arith.constant dense<0.000000e+00> : vector<2x128xf32>
    %872 = tpu.matmul %842, %314, %cst_194 {dimension_numbers = #tpu.dot_dimension_numbers<[1], [0], [0], [1], [0, 0, 1, 1], [], []>} : vector<2x32xf32>, vector<32x128xf32>, vector<2x128xf32> -> vector<2x128xf32>
    %873 = arith.addf %310, %872 : vector<2x128xf32>
    %874 = arith.negf %873 : vector<2x128xf32>
    %875 = math.exp %874 : vector<2x128xf32>
    %cst_195 = arith.constant 1.000000e+00 : f32
    %876 = vector.broadcast %cst_195 : f32 to vector<2x128xf32>
    %877 = arith.addf %876, %875 : vector<2x128xf32>
    %878 = arith.divf %876, %877 : vector<2x128xf32>
    %879 = math.tanh %873 : vector<2x128xf32>
    %880 = vector.extract_strided_slice %878 {offsets = [0, 0], sizes = [2, 32], strides = [1, 1]} : vector<2x128xf32> to vector<2x32xf32>
    %881 = vector.extract_strided_slice %878 {offsets = [0, 32], sizes = [2, 32], strides = [1, 1]} : vector<2x128xf32> to vector<2x32xf32>
    %882 = vector.extract_strided_slice %879 {offsets = [0, 64], sizes = [2, 32], strides = [1, 1]} : vector<2x128xf32> to vector<2x32xf32>
    %883 = vector.extract_strided_slice %878 {offsets = [0, 96], sizes = [2, 32], strides = [1, 1]} : vector<2x128xf32> to vector<2x32xf32>
    %884 = arith.mulf %881, %840 : vector<2x32xf32>
    %885 = arith.mulf %880, %882 : vector<2x32xf32>
    %886 = arith.addf %884, %885 : vector<2x32xf32>
    %887 = math.tanh %886 : vector<2x32xf32>
    %888 = arith.mulf %883, %887 : vector<2x32xf32>
    %889 = tpu.concatenate %888, %861 in 1 : vector<2x32xf32>, vector<2x32xf32> -> vector<2x64xf32>
    %cst_196 = arith.constant dense<0.000000e+00> : vector<2x128xf32>
    %890 = tpu.matmul %889, %315, %cst_196 {dimension_numbers = #tpu.dot_dimension_numbers<[1], [0], [0], [1], [0, 0, 1, 1], [], []>} : vector<2x64xf32>, vector<64x128xf32>, vector<2x128xf32> -> vector<2x128xf32>
    %891 = vector.broadcast %316 : vector<1x128xf32> to vector<2x128xf32>
    %892 = arith.addf %890, %891 : vector<2x128xf32>
    %893 = arith.negf %892 : vector<2x128xf32>
    %894 = math.exp %893 : vector<2x128xf32>
    %cst_197 = arith.constant 1.000000e+00 : f32
    %895 = vector.broadcast %cst_197 : f32 to vector<2x128xf32>
    %896 = arith.addf %895, %894 : vector<2x128xf32>
    %897 = arith.divf %895, %896 : vector<2x128xf32>
    %898 = math.tanh %892 : vector<2x128xf32>
    %899 = vector.extract_strided_slice %897 {offsets = [0, 0], sizes = [2, 32], strides = [1, 1]} : vector<2x128xf32> to vector<2x32xf32>
    %900 = vector.extract_strided_slice %897 {offsets = [0, 32], sizes = [2, 32], strides = [1, 1]} : vector<2x128xf32> to vector<2x32xf32>
    %901 = vector.extract_strided_slice %898 {offsets = [0, 64], sizes = [2, 32], strides = [1, 1]} : vector<2x128xf32> to vector<2x32xf32>
    %902 = vector.extract_strided_slice %897 {offsets = [0, 96], sizes = [2, 32], strides = [1, 1]} : vector<2x128xf32> to vector<2x32xf32>
    %903 = arith.mulf %900, %859 : vector<2x32xf32>
    %904 = arith.mulf %899, %901 : vector<2x32xf32>
    %905 = arith.addf %903, %904 : vector<2x32xf32>
    %906 = math.tanh %905 : vector<2x32xf32>
    %907 = arith.mulf %902, %906 : vector<2x32xf32>
    %cst_198 = arith.constant dense<0.000000e+00> : vector<2x128xf32>
    %908 = tpu.matmul %907, %317, %cst_198 {dimension_numbers = #tpu.dot_dimension_numbers<[1], [0], [0], [1], [0, 0, 1, 1], [], []>} : vector<2x32xf32>, vector<32x128xf32>, vector<2x128xf32> -> vector<2x128xf32>
    %909 = vector.broadcast %318 : vector<1x128xf32> to vector<2x128xf32>
    %910 = arith.addf %908, %909 : vector<2x128xf32>
    %c12 = arith.constant 12 : index
    %c0_199 = arith.constant 0 : index
    %c0_200 = arith.constant 0 : index
    %911 = vector.load %arg15[%c12, %c0_199, %c0_200] : memref<16x2x128xf32, #tpu.memory_space<vmem>>, vector<1x2x128xf32>
    %912 = vector.shape_cast %911 : vector<1x2x128xf32> to vector<2x128xf32>
    %913 = vector.shape_cast %910 : vector<2x128xf32> to vector<1x2x128xf32>
    tpu.vector_store %arg15[%c12, %c0_199, %c0_200], %913 {strides = array<i32>} : memref<16x2x128xf32, #tpu.memory_space<vmem>>, vector<1x2x128xf32>,
    %c12_201 = arith.constant 12 : index
    %c0_202 = arith.constant 0 : index
    %c0_203 = arith.constant 0 : index
    %914 = vector.load %arg13[%c12_201, %c0_202, %c0_203] : memref<16x32x128xf32, #tpu.memory_space<vmem>>, vector<1x32x128xf32>
    %915 = vector.shape_cast %914 : vector<1x32x128xf32> to vector<32x128xf32>
    %cst_204 = arith.constant dense<0.000000e+00> : vector<2x128xf32>
    %916 = tpu.matmul %907, %915, %cst_204 {dimension_numbers = #tpu.dot_dimension_numbers<[1], [0], [0], [1], [0, 0, 1, 1], [], []>} : vector<2x32xf32>, vector<32x128xf32>, vector<2x128xf32> -> vector<2x128xf32>
    %917 = arith.addf %871, %916 : vector<2x128xf32>
    %cst_205 = arith.constant dense<0.000000e+00> : vector<2x128xf32>
    %918 = tpu.matmul %888, %314, %cst_205 {dimension_numbers = #tpu.dot_dimension_numbers<[1], [0], [0], [1], [0, 0, 1, 1], [], []>} : vector<2x32xf32>, vector<32x128xf32>, vector<2x128xf32> -> vector<2x128xf32>
    %919 = arith.addf %313, %918 : vector<2x128xf32>
    %920 = arith.negf %919 : vector<2x128xf32>
    %921 = math.exp %920 : vector<2x128xf32>
    %cst_206 = arith.constant 1.000000e+00 : f32
    %922 = vector.broadcast %cst_206 : f32 to vector<2x128xf32>
    %923 = arith.addf %922, %921 : vector<2x128xf32>
    %924 = arith.divf %922, %923 : vector<2x128xf32>
    %925 = math.tanh %919 : vector<2x128xf32>
    %926 = vector.extract_strided_slice %924 {offsets = [0, 0], sizes = [2, 32], strides = [1, 1]} : vector<2x128xf32> to vector<2x32xf32>
    %927 = vector.extract_strided_slice %924 {offsets = [0, 32], sizes = [2, 32], strides = [1, 1]} : vector<2x128xf32> to vector<2x32xf32>
    %928 = vector.extract_strided_slice %925 {offsets = [0, 64], sizes = [2, 32], strides = [1, 1]} : vector<2x128xf32> to vector<2x32xf32>
    %929 = vector.extract_strided_slice %924 {offsets = [0, 96], sizes = [2, 32], strides = [1, 1]} : vector<2x128xf32> to vector<2x32xf32>
    %930 = arith.mulf %927, %886 : vector<2x32xf32>
    %931 = arith.mulf %926, %928 : vector<2x32xf32>
    %932 = arith.addf %930, %931 : vector<2x32xf32>
    %933 = math.tanh %932 : vector<2x32xf32>
    %934 = arith.mulf %929, %933 : vector<2x32xf32>
    %935 = tpu.concatenate %934, %907 in 1 : vector<2x32xf32>, vector<2x32xf32> -> vector<2x64xf32>
    %cst_207 = arith.constant dense<0.000000e+00> : vector<2x128xf32>
    %936 = tpu.matmul %935, %315, %cst_207 {dimension_numbers = #tpu.dot_dimension_numbers<[1], [0], [0], [1], [0, 0, 1, 1], [], []>} : vector<2x64xf32>, vector<64x128xf32>, vector<2x128xf32> -> vector<2x128xf32>
    %937 = vector.broadcast %316 : vector<1x128xf32> to vector<2x128xf32>
    %938 = arith.addf %936, %937 : vector<2x128xf32>
    %939 = arith.negf %938 : vector<2x128xf32>
    %940 = math.exp %939 : vector<2x128xf32>
    %cst_208 = arith.constant 1.000000e+00 : f32
    %941 = vector.broadcast %cst_208 : f32 to vector<2x128xf32>
    %942 = arith.addf %941, %940 : vector<2x128xf32>
    %943 = arith.divf %941, %942 : vector<2x128xf32>
    %944 = math.tanh %938 : vector<2x128xf32>
    %945 = vector.extract_strided_slice %943 {offsets = [0, 0], sizes = [2, 32], strides = [1, 1]} : vector<2x128xf32> to vector<2x32xf32>
    %946 = vector.extract_strided_slice %943 {offsets = [0, 32], sizes = [2, 32], strides = [1, 1]} : vector<2x128xf32> to vector<2x32xf32>
    %947 = vector.extract_strided_slice %944 {offsets = [0, 64], sizes = [2, 32], strides = [1, 1]} : vector<2x128xf32> to vector<2x32xf32>
    %948 = vector.extract_strided_slice %943 {offsets = [0, 96], sizes = [2, 32], strides = [1, 1]} : vector<2x128xf32> to vector<2x32xf32>
    %949 = arith.mulf %946, %905 : vector<2x32xf32>
    %950 = arith.mulf %945, %947 : vector<2x32xf32>
    %951 = arith.addf %949, %950 : vector<2x32xf32>
    %952 = math.tanh %951 : vector<2x32xf32>
    %953 = arith.mulf %948, %952 : vector<2x32xf32>
    %cst_209 = arith.constant dense<0.000000e+00> : vector<2x128xf32>
    %954 = tpu.matmul %953, %317, %cst_209 {dimension_numbers = #tpu.dot_dimension_numbers<[1], [0], [0], [1], [0, 0, 1, 1], [], []>} : vector<2x32xf32>, vector<32x128xf32>, vector<2x128xf32> -> vector<2x128xf32>
    %955 = vector.broadcast %318 : vector<1x128xf32> to vector<2x128xf32>
    %956 = arith.addf %954, %955 : vector<2x128xf32>
    %c13 = arith.constant 13 : index
    %c0_210 = arith.constant 0 : index
    %c0_211 = arith.constant 0 : index
    %957 = vector.load %arg15[%c13, %c0_210, %c0_211] : memref<16x2x128xf32, #tpu.memory_space<vmem>>, vector<1x2x128xf32>
    %958 = vector.shape_cast %957 : vector<1x2x128xf32> to vector<2x128xf32>
    %959 = vector.shape_cast %956 : vector<2x128xf32> to vector<1x2x128xf32>
    tpu.vector_store %arg15[%c13, %c0_210, %c0_211], %959 {strides = array<i32>} : memref<16x2x128xf32, #tpu.memory_space<vmem>>, vector<1x2x128xf32>,
    %c13_212 = arith.constant 13 : index
    %c0_213 = arith.constant 0 : index
    %c0_214 = arith.constant 0 : index
    %960 = vector.load %arg13[%c13_212, %c0_213, %c0_214] : memref<16x32x128xf32, #tpu.memory_space<vmem>>, vector<1x32x128xf32>
    %961 = vector.shape_cast %960 : vector<1x32x128xf32> to vector<32x128xf32>
    %cst_215 = arith.constant dense<0.000000e+00> : vector<2x128xf32>
    %962 = tpu.matmul %953, %961, %cst_215 {dimension_numbers = #tpu.dot_dimension_numbers<[1], [0], [0], [1], [0, 0, 1, 1], [], []>} : vector<2x32xf32>, vector<32x128xf32>, vector<2x128xf32> -> vector<2x128xf32>
    %963 = arith.addf %917, %962 : vector<2x128xf32>
    %cst_216 = arith.constant dense<0.000000e+00> : vector<2x128xf32>
    %964 = tpu.matmul %934, %314, %cst_216 {dimension_numbers = #tpu.dot_dimension_numbers<[1], [0], [0], [1], [0, 0, 1, 1], [], []>} : vector<2x32xf32>, vector<32x128xf32>, vector<2x128xf32> -> vector<2x128xf32>
    %965 = arith.addf %310, %964 : vector<2x128xf32>
    %966 = arith.negf %965 : vector<2x128xf32>
    %967 = math.exp %966 : vector<2x128xf32>
    %cst_217 = arith.constant 1.000000e+00 : f32
    %968 = vector.broadcast %cst_217 : f32 to vector<2x128xf32>
    %969 = arith.addf %968, %967 : vector<2x128xf32>
    %970 = arith.divf %968, %969 : vector<2x128xf32>
    %971 = math.tanh %965 : vector<2x128xf32>
    %972 = vector.extract_strided_slice %970 {offsets = [0, 0], sizes = [2, 32], strides = [1, 1]} : vector<2x128xf32> to vector<2x32xf32>
    %973 = vector.extract_strided_slice %970 {offsets = [0, 32], sizes = [2, 32], strides = [1, 1]} : vector<2x128xf32> to vector<2x32xf32>
    %974 = vector.extract_strided_slice %971 {offsets = [0, 64], sizes = [2, 32], strides = [1, 1]} : vector<2x128xf32> to vector<2x32xf32>
    %975 = vector.extract_strided_slice %970 {offsets = [0, 96], sizes = [2, 32], strides = [1, 1]} : vector<2x128xf32> to vector<2x32xf32>
    %976 = arith.mulf %973, %932 : vector<2x32xf32>
    %977 = arith.mulf %972, %974 : vector<2x32xf32>
    %978 = arith.addf %976, %977 : vector<2x32xf32>
    %979 = math.tanh %978 : vector<2x32xf32>
    %980 = arith.mulf %975, %979 : vector<2x32xf32>
    %981 = tpu.concatenate %980, %953 in 1 : vector<2x32xf32>, vector<2x32xf32> -> vector<2x64xf32>
    %cst_218 = arith.constant dense<0.000000e+00> : vector<2x128xf32>
    %982 = tpu.matmul %981, %315, %cst_218 {dimension_numbers = #tpu.dot_dimension_numbers<[1], [0], [0], [1], [0, 0, 1, 1], [], []>} : vector<2x64xf32>, vector<64x128xf32>, vector<2x128xf32> -> vector<2x128xf32>
    %983 = vector.broadcast %316 : vector<1x128xf32> to vector<2x128xf32>
    %984 = arith.addf %982, %983 : vector<2x128xf32>
    %985 = arith.negf %984 : vector<2x128xf32>
    %986 = math.exp %985 : vector<2x128xf32>
    %cst_219 = arith.constant 1.000000e+00 : f32
    %987 = vector.broadcast %cst_219 : f32 to vector<2x128xf32>
    %988 = arith.addf %987, %986 : vector<2x128xf32>
    %989 = arith.divf %987, %988 : vector<2x128xf32>
    %990 = math.tanh %984 : vector<2x128xf32>
    %991 = vector.extract_strided_slice %989 {offsets = [0, 0], sizes = [2, 32], strides = [1, 1]} : vector<2x128xf32> to vector<2x32xf32>
    %992 = vector.extract_strided_slice %989 {offsets = [0, 32], sizes = [2, 32], strides = [1, 1]} : vector<2x128xf32> to vector<2x32xf32>
    %993 = vector.extract_strided_slice %990 {offsets = [0, 64], sizes = [2, 32], strides = [1, 1]} : vector<2x128xf32> to vector<2x32xf32>
    %994 = vector.extract_strided_slice %989 {offsets = [0, 96], sizes = [2, 32], strides = [1, 1]} : vector<2x128xf32> to vector<2x32xf32>
    %995 = arith.mulf %992, %951 : vector<2x32xf32>
    %996 = arith.mulf %991, %993 : vector<2x32xf32>
    %997 = arith.addf %995, %996 : vector<2x32xf32>
    %998 = math.tanh %997 : vector<2x32xf32>
    %999 = arith.mulf %994, %998 : vector<2x32xf32>
    %cst_220 = arith.constant dense<0.000000e+00> : vector<2x128xf32>
    %1000 = tpu.matmul %999, %317, %cst_220 {dimension_numbers = #tpu.dot_dimension_numbers<[1], [0], [0], [1], [0, 0, 1, 1], [], []>} : vector<2x32xf32>, vector<32x128xf32>, vector<2x128xf32> -> vector<2x128xf32>
    %1001 = vector.broadcast %318 : vector<1x128xf32> to vector<2x128xf32>
    %1002 = arith.addf %1000, %1001 : vector<2x128xf32>
    %c14 = arith.constant 14 : index
    %c0_221 = arith.constant 0 : index
    %c0_222 = arith.constant 0 : index
    %1003 = vector.load %arg15[%c14, %c0_221, %c0_222] : memref<16x2x128xf32, #tpu.memory_space<vmem>>, vector<1x2x128xf32>
    %1004 = vector.shape_cast %1003 : vector<1x2x128xf32> to vector<2x128xf32>
    %1005 = vector.shape_cast %1002 : vector<2x128xf32> to vector<1x2x128xf32>
    tpu.vector_store %arg15[%c14, %c0_221, %c0_222], %1005 {strides = array<i32>} : memref<16x2x128xf32, #tpu.memory_space<vmem>>, vector<1x2x128xf32>,
    %c14_223 = arith.constant 14 : index
    %c0_224 = arith.constant 0 : index
    %c0_225 = arith.constant 0 : index
    %1006 = vector.load %arg13[%c14_223, %c0_224, %c0_225] : memref<16x32x128xf32, #tpu.memory_space<vmem>>, vector<1x32x128xf32>
    %1007 = vector.shape_cast %1006 : vector<1x32x128xf32> to vector<32x128xf32>
    %cst_226 = arith.constant dense<0.000000e+00> : vector<2x128xf32>
    %1008 = tpu.matmul %999, %1007, %cst_226 {dimension_numbers = #tpu.dot_dimension_numbers<[1], [0], [0], [1], [0, 0, 1, 1], [], []>} : vector<2x32xf32>, vector<32x128xf32>, vector<2x128xf32> -> vector<2x128xf32>
    %1009 = arith.addf %963, %1008 : vector<2x128xf32>
    %cst_227 = arith.constant dense<0.000000e+00> : vector<2x128xf32>
    %1010 = tpu.matmul %980, %314, %cst_227 {dimension_numbers = #tpu.dot_dimension_numbers<[1], [0], [0], [1], [0, 0, 1, 1], [], []>} : vector<2x32xf32>, vector<32x128xf32>, vector<2x128xf32> -> vector<2x128xf32>
    %1011 = arith.addf %313, %1010 : vector<2x128xf32>
    %1012 = arith.negf %1011 : vector<2x128xf32>
    %1013 = math.exp %1012 : vector<2x128xf32>
    %cst_228 = arith.constant 1.000000e+00 : f32
    %1014 = vector.broadcast %cst_228 : f32 to vector<2x128xf32>
    %1015 = arith.addf %1014, %1013 : vector<2x128xf32>
    %1016 = arith.divf %1014, %1015 : vector<2x128xf32>
    %1017 = math.tanh %1011 : vector<2x128xf32>
    %1018 = vector.extract_strided_slice %1016 {offsets = [0, 0], sizes = [2, 32], strides = [1, 1]} : vector<2x128xf32> to vector<2x32xf32>
    %1019 = vector.extract_strided_slice %1016 {offsets = [0, 32], sizes = [2, 32], strides = [1, 1]} : vector<2x128xf32> to vector<2x32xf32>
    %1020 = vector.extract_strided_slice %1017 {offsets = [0, 64], sizes = [2, 32], strides = [1, 1]} : vector<2x128xf32> to vector<2x32xf32>
    %1021 = vector.extract_strided_slice %1016 {offsets = [0, 96], sizes = [2, 32], strides = [1, 1]} : vector<2x128xf32> to vector<2x32xf32>
    %1022 = arith.mulf %1019, %978 : vector<2x32xf32>
    %1023 = arith.mulf %1018, %1020 : vector<2x32xf32>
    %1024 = arith.addf %1022, %1023 : vector<2x32xf32>
    %1025 = math.tanh %1024 : vector<2x32xf32>
    %1026 = arith.mulf %1021, %1025 : vector<2x32xf32>
    %1027 = tpu.concatenate %1026, %999 in 1 : vector<2x32xf32>, vector<2x32xf32> -> vector<2x64xf32>
    %cst_229 = arith.constant dense<0.000000e+00> : vector<2x128xf32>
    %1028 = tpu.matmul %1027, %315, %cst_229 {dimension_numbers = #tpu.dot_dimension_numbers<[1], [0], [0], [1], [0, 0, 1, 1], [], []>} : vector<2x64xf32>, vector<64x128xf32>, vector<2x128xf32> -> vector<2x128xf32>
    %1029 = vector.broadcast %316 : vector<1x128xf32> to vector<2x128xf32>
    %1030 = arith.addf %1028, %1029 : vector<2x128xf32>
    %1031 = arith.negf %1030 : vector<2x128xf32>
    %1032 = math.exp %1031 : vector<2x128xf32>
    %cst_230 = arith.constant 1.000000e+00 : f32
    %1033 = vector.broadcast %cst_230 : f32 to vector<2x128xf32>
    %1034 = arith.addf %1033, %1032 : vector<2x128xf32>
    %1035 = arith.divf %1033, %1034 : vector<2x128xf32>
    %1036 = math.tanh %1030 : vector<2x128xf32>
    %1037 = vector.extract_strided_slice %1035 {offsets = [0, 0], sizes = [2, 32], strides = [1, 1]} : vector<2x128xf32> to vector<2x32xf32>
    %1038 = vector.extract_strided_slice %1035 {offsets = [0, 32], sizes = [2, 32], strides = [1, 1]} : vector<2x128xf32> to vector<2x32xf32>
    %1039 = vector.extract_strided_slice %1036 {offsets = [0, 64], sizes = [2, 32], strides = [1, 1]} : vector<2x128xf32> to vector<2x32xf32>
    %1040 = vector.extract_strided_slice %1035 {offsets = [0, 96], sizes = [2, 32], strides = [1, 1]} : vector<2x128xf32> to vector<2x32xf32>
    %1041 = arith.mulf %1038, %997 : vector<2x32xf32>
    %1042 = arith.mulf %1037, %1039 : vector<2x32xf32>
    %1043 = arith.addf %1041, %1042 : vector<2x32xf32>
    %1044 = math.tanh %1043 : vector<2x32xf32>
    %1045 = arith.mulf %1040, %1044 : vector<2x32xf32>
    %cst_231 = arith.constant dense<0.000000e+00> : vector<2x128xf32>
    %1046 = tpu.matmul %1045, %317, %cst_231 {dimension_numbers = #tpu.dot_dimension_numbers<[1], [0], [0], [1], [0, 0, 1, 1], [], []>} : vector<2x32xf32>, vector<32x128xf32>, vector<2x128xf32> -> vector<2x128xf32>
    %1047 = vector.broadcast %318 : vector<1x128xf32> to vector<2x128xf32>
    %1048 = arith.addf %1046, %1047 : vector<2x128xf32>
    %c15 = arith.constant 15 : index
    %c0_232 = arith.constant 0 : index
    %c0_233 = arith.constant 0 : index
    %1049 = vector.load %arg15[%c15, %c0_232, %c0_233] : memref<16x2x128xf32, #tpu.memory_space<vmem>>, vector<1x2x128xf32>
    %1050 = vector.shape_cast %1049 : vector<1x2x128xf32> to vector<2x128xf32>
    %1051 = vector.shape_cast %1048 : vector<2x128xf32> to vector<1x2x128xf32>
    tpu.vector_store %arg15[%c15, %c0_232, %c0_233], %1051 {strides = array<i32>} : memref<16x2x128xf32, #tpu.memory_space<vmem>>, vector<1x2x128xf32>,
    %c15_234 = arith.constant 15 : index
    %c0_235 = arith.constant 0 : index
    %c0_236 = arith.constant 0 : index
    %1052 = vector.load %arg13[%c15_234, %c0_235, %c0_236] : memref<16x32x128xf32, #tpu.memory_space<vmem>>, vector<1x32x128xf32>
    %1053 = vector.shape_cast %1052 : vector<1x32x128xf32> to vector<32x128xf32>
    %cst_237 = arith.constant dense<0.000000e+00> : vector<2x128xf32>
    %1054 = tpu.matmul %1045, %1053, %cst_237 {dimension_numbers = #tpu.dot_dimension_numbers<[1], [0], [0], [1], [0, 0, 1, 1], [], []>} : vector<2x32xf32>, vector<32x128xf32>, vector<2x128xf32> -> vector<2x128xf32>
    %1055 = arith.addf %1009, %1054 : vector<2x128xf32>
    %c0_238 = arith.constant 0 : index
    %c0_239 = arith.constant 0 : index
    %1056 = vector.load %arg14[%c0_238, %c0_239] : memref<1x128xf32, #tpu.memory_space<vmem>>, vector<1x128xf32>
    %1057 = vector.broadcast %1056 : vector<1x128xf32> to vector<2x128xf32>
    %1058 = arith.addf %1055, %1057 : vector<2x128xf32>
    %c0_240 = arith.constant 0 : index
    %c0_241 = arith.constant 0 : index
    %1059 = vector.load %arg16[%c0_240, %c0_241] : memref<2x128xf32, #tpu.memory_space<vmem>>, vector<2x128xf32>
    tpu.vector_store %arg16[%c0_240, %c0_241], %1058 {strides = array<i32>} : memref<2x128xf32, #tpu.memory_space<vmem>>, vector<2x128xf32>,
    return
  }
}

</mosaic_0001>

<llo_original>
// kernel: autoencoder_forward.1
$region0: #{autoencoder_forward.1}
  #allocation0 [shape = 'u32[]', space=smem, size = 0x4, offset = 0x4, fixed_abs, tag = 'smem constant byte address 0x4 - core index']
  #allocation1 [shape = 'u32[144,128]{1,0:T(1,128)}', space=vmem, size = 0x12000, scoped, tag = 'internal scratch']
  %s0 = inlined_call_operand.vmem [shape: f32[16,4], index: 0, kind: input, shape index: {}]
  %s1 = inlined_call_operand.hbm [shape: f32[4,128], index: 1, kind: input, shape index: {}]
  %s2 = inlined_call_operand.hbm [shape: f32[32,128], index: 2, kind: input, shape index: {}]
  %s3 = inlined_call_operand.vmem [shape: f32[1,128], index: 3, kind: input, shape index: {}]
  %s4 = inlined_call_operand.hbm [shape: f32[64,128], index: 4, kind: input, shape index: {}]
  %s5 = inlined_call_operand.hbm [shape: f32[1,128], index: 5, kind: input, shape index: {}]
  %s6 = inlined_call_operand.hbm [shape: f32[32,128], index: 6, kind: input, shape index: {}]
  %s7 = inlined_call_operand.hbm [shape: f32[32,128], index: 7, kind: input, shape index: {}]
  %s8 = inlined_call_operand.hbm [shape: f32[1,128], index: 8, kind: input, shape index: {}]
  %s9 = inlined_call_operand.vmem [shape: f32[64,128], index: 9, kind: input, shape index: {}]
  %s10 = inlined_call_operand.vmem [shape: f32[1,128], index: 10, kind: input, shape index: {}]
  %s11 = inlined_call_operand.hbm [shape: f32[32,128], index: 11, kind: input, shape index: {}]
  %s12 = inlined_call_operand.vmem [shape: f32[1,128], index: 12, kind: input, shape index: {}]
  %s13 = inlined_call_operand.hbm [shape: f32[16,32,128], index: 13, kind: input, shape index: {}]
  %s14 = inlined_call_operand.vmem [shape: f32[1,128], index: 14, kind: input, shape index: {}]
  %s15 = inlined_call_operand.vmem [shape: f32[16,2,128], index: 15, kind: output, shape index: {0}]
  %s16 = inlined_call_operand.hbm [shape: f32[2,128], index: 16, kind: output, shape index: {1}]
  %17 = xla_tuple %s15, %s16
  %s18 = sld [smem:[#allocation0]]
  $region114: #{autoencoder_forward.1} parent=0
    _
  %s20 = ssub.s32 1, %s18
  %s21 = scalar_select 0, %s20, %s18
  $region1: #{autoencoder_forward.1} parent=0
    #allocation2 [shape = 'u8[2048]{0}', space=vmem, size = 0x800, scoped, tag = 'input window, operand 1, single buffered']
    #allocation3 [shape = 's32[1]{0}', space=sflag, size = 0x4, scoped, tag = 'scoped memory for autoencoder_forward.1']
    #allocation4 [shape = 's32[1]{0}', space=sflag, size = 0x4, scoped, tag = 'scoped memory for autoencoder_forward.1']
    #allocation5 [shape = 'u8[16384]{0}', space=vmem, size = 0x4000, scoped, tag = 'input window, operand 2, single buffered']
    #allocation6 [shape = 's32[1]{0}', space=sflag, size = 0x4, scoped, tag = 'scoped memory for autoencoder_forward.1']
    #allocation7 [shape = 'u8[32768]{0}', space=vmem, size = 0x8000, scoped, tag = 'input window, operand 4, single buffered']
    #allocation8 [shape = 'u8[512]{0}', space=vmem, size = 0x400, scoped, tag = 'input window, operand 5, single buffered']
    #allocation9 [shape = 's32[1]{0}', space=sflag, size = 0x4, scoped, tag = 'scoped memory for autoencoder_forward.1']
    #allocation10 [shape = 'u8[16384]{0}', space=vmem, size = 0x4000, scoped, tag = 'input window, operand 6, single buffered']
    #allocation11 [shape = 'u8[16384]{0}', space=vmem, size = 0x4000, scoped, tag = 'input window, operand 7, single buffered']
    #allocation12 [shape = 's32[1]{0}', space=sflag, size = 0x4, scoped, tag = 'scoped memory for autoencoder_forward.1']
    #allocation13 [shape = 'u8[512]{0}', space=vmem, size = 0x400, scoped, tag = 'input window, operand 8, single buffered']
    #allocation14 [shape = 'u8[16384]{0}', space=vmem, size = 0x4000, scoped, tag = 'input window, operand 11, single buffered']
    #allocation15 [shape = 's32[1]{0}', space=sflag, size = 0x4, scoped, tag = 'scoped memory for autoencoder_forward.1']
    #allocation16 [shape = 'u8[262144]{0}', space=vmem, size = 0x40000, scoped, tag = 'input window, operand 13, single buffered']
    #allocation17 [shape = 'u8[1024]{0}', space=vmem, size = 0x400, scoped, tag = 'output window, operand 1, single buffered']
    %22 = vsyncpa [#allocation3], 0
    %23 = vsyncpa [#allocation6], 0
    %24 = vsyncpa [#allocation9], 0
    %25 = vsyncpa [#allocation12], 0
    %26 = vsyncpa [#allocation15], 0
    %27 = vsyncpa [#allocation4], 0
    // Predicated region
    $region2: #{autoencoder_forward.1} parent=1 // pred_check
      _
    $region3: #{autoencoder_forward.1} parent=1 // pred_check_branch
      %29 = sbr.rel (0) target = $region5
    $region4: #{autoencoder_forward.1} parent=1 // pred_region
      _
    $region5: #{autoencoder_forward.1} parent=1 // pred_fallthru
      _
    // Predicated region
    $region6: #{autoencoder_forward.1} parent=1 // pred_check
      _
    $region7: #{autoencoder_forward.1} parent=1 // pred_check_branch
      %31 = sbr.rel (0) target = $region9
    $region8: #{autoencoder_forward.1} parent=1 // pred_region
      %s33 = ssub.s32 64, 64
      %34 = vsyncadd [#allocation3], %s33
      %s36 = sshll.u32 [#allocation2], 4
      %s37 = int_to_ptr.vmem [resolvable:$true] %s36
      %39 = dma.hbm_to_vmem [thread:$0]  %s1, 64, %s37, [#allocation3]
    $region9: #{autoencoder_forward.1} parent=1 // pred_fallthru
      _
    // Predicated region
    $region10: #{autoencoder_forward.1} parent=1 // pred_check
      _
    $region11: #{autoencoder_forward.1} parent=1 // pred_check_branch
      %41 = sbr.rel (0) target = $region13
    $region12: #{autoencoder_forward.1} parent=1 // pred_region
      %s43 = ssub.s32 512, 512
      %44 = vsyncadd [#allocation6], %s43
      %s45 = sshll.u32 [#allocation5], 4
      %s46 = int_to_ptr.vmem [resolvable:$true] %s45
      %51 = dma.hbm_to_vmem [thread:$0]  %s2, 512, %s46, [#allocation6], 128, 128, 8
    $region13: #{autoencoder_forward.1} parent=1 // pred_fallthru
      _
    // Predicated region
    $region14: #{autoencoder_forward.1} parent=1 // pred_check
      _
    $region15: #{autoencoder_forward.1} parent=1 // pred_check_branch
      %53 = sbr.rel (0) target = $region17
    $region16: #{autoencoder_forward.1} parent=1 // pred_region
      _
    $region17: #{autoencoder_forward.1} parent=1 // pred_fallthru
      _
    // Predicated region
    $region18: #{autoencoder_forward.1} parent=1 // pred_check
      _
    $region19: #{autoencoder_forward.1} parent=1 // pred_check_branch
      %55 = sbr.rel (0) target = $region21
    $region20: #{autoencoder_forward.1} parent=1 // pred_region
      %s57 = ssub.s32 1024, 1024
      %58 = vsyncadd [#allocation6], %s57
      %s59 = sshll.u32 [#allocation7], 4
      %s60 = int_to_ptr.vmem [resolvable:$true] %s59
      %65 = dma.hbm_to_vmem [thread:$0]  %s4, 1024, %s60, [#allocation6], 128, 128, 8
    $region21: #{autoencoder_forward.1} parent=1 // pred_fallthru
      _
    // Predicated region
    $region22: #{autoencoder_forward.1} parent=1 // pred_check
      _
    $region23: #{autoencoder_forward.1} parent=1 // pred_check_branch
      %67 = sbr.rel (0) target = $region25
    $region24: #{autoencoder_forward.1} parent=1 // pred_region
      %s69 = ssub.s32 16, 16
      %70 = vsyncadd [#allocation9], %s69
      %s72 = sshll.u32 [#allocation8], 4
      %s73 = int_to_ptr.vmem [resolvable:$true] %s72
      %75 = dma.hbm_to_vmem [thread:$0]  %s5, 16, %s73, [#allocation9]
    $region25: #{autoencoder_forward.1} parent=1 // pred_fallthru
      _
    // Predicated region
    $region26: #{autoencoder_forward.1} parent=1 // pred_check
      _
    $region27: #{autoencoder_forward.1} parent=1 // pred_check_branch
      %77 = sbr.rel (0) target = $region29
    $region28: #{autoencoder_forward.1} parent=1 // pred_region
      %s79 = ssub.s32 512, 512
      %80 = vsyncadd [#allocation9], %s79
      %s81 = sshll.u32 [#allocation10], 4
      %s82 = int_to_ptr.vmem [resolvable:$true] %s81
      %87 = dma.hbm_to_vmem [thread:$0]  %s6, 512, %s82, [#allocation9], 128, 128, 8
    $region29: #{autoencoder_forward.1} parent=1 // pred_fallthru
      _
    // Predicated region
    $region30: #{autoencoder_forward.1} parent=1 // pred_check
      _
    $region31: #{autoencoder_forward.1} parent=1 // pred_check_branch
      %89 = sbr.rel (0) target = $region33
    $region32: #{autoencoder_forward.1} parent=1 // pred_region
      %s91 = ssub.s32 512, 512
      %92 = vsyncadd [#allocation12], %s91
      %s93 = sshll.u32 [#allocation11], 4
      %s94 = int_to_ptr.vmem [resolvable:$true] %s93
      %99 = dma.hbm_to_vmem [thread:$0]  %s7, 512, %s94, [#allocation12], 128, 128, 8
    $region33: #{autoencoder_forward.1} parent=1 // pred_fallthru
      _
    // Predicated region
    $region34: #{autoencoder_forward.1} parent=1 // pred_check
      _
    $region35: #{autoencoder_forward.1} parent=1 // pred_check_branch
      %101 = sbr.rel (0) target = $region37
    $region36: #{autoencoder_forward.1} parent=1 // pred_region
      %s103 = ssub.s32 16, 16
      %104 = vsyncadd [#allocation12], %s103
      %s106 = sshll.u32 [#allocation13], 4
      %s107 = int_to_ptr.vmem [resolvable:$true] %s106
      %109 = dma.hbm_to_vmem [thread:$0]  %s8, 16, %s107, [#allocation12]
    $region37: #{autoencoder_forward.1} parent=1 // pred_fallthru
      _
    // Predicated region
    $region38: #{autoencoder_forward.1} parent=1 // pred_check
      _
    $region39: #{autoencoder_forward.1} parent=1 // pred_check_branch
      %111 = sbr.rel (0) target = $region41
    $region40: #{autoencoder_forward.1} parent=1 // pred_region
      _
    $region41: #{autoencoder_forward.1} parent=1 // pred_fallthru
      _
    // Predicated region
    $region42: #{autoencoder_forward.1} parent=1 // pred_check
      _
    $region43: #{autoencoder_forward.1} parent=1 // pred_check_branch
      %113 = sbr.rel (0) target = $region45
    $region44: #{autoencoder_forward.1} parent=1 // pred_region
      _
    $region45: #{autoencoder_forward.1} parent=1 // pred_fallthru
      _
    // Predicated region
    $region46: #{autoencoder_forward.1} parent=1 // pred_check
      _
    $region47: #{autoencoder_forward.1} parent=1 // pred_check_branch
      %115 = sbr.rel (0) target = $region49
    $region48: #{autoencoder_forward.1} parent=1 // pred_region
      %s117 = ssub.s32 512, 512
      %118 = vsyncadd [#allocation15], %s117
      %s119 = sshll.u32 [#allocation14], 4
      %s120 = int_to_ptr.vmem [resolvable:$true] %s119
      %125 = dma.hbm_to_vmem [thread:$0]  %s11, 512, %s120, [#allocation15], 128, 128, 8
    $region49: #{autoencoder_forward.1} parent=1 // pred_fallthru
      _
    // Predicated region
    $region50: #{autoencoder_forward.1} parent=1 // pred_check
      _
    $region51: #{autoencoder_forward.1} parent=1 // pred_check_branch
      %127 = sbr.rel (0) target = $region53
    $region52: #{autoencoder_forward.1} parent=1 // pred_region
      _
    $region53: #{autoencoder_forward.1} parent=1 // pred_fallthru
      _
    // Predicated region
    $region54: #{autoencoder_forward.1} parent=1 // pred_check
      _
    $region55: #{autoencoder_forward.1} parent=1 // pred_check_branch
      %129 = sbr.rel (0) target = $region57
    $region56: #{autoencoder_forward.1} parent=1 // pred_region
      %s131 = ssub.s32 8192, 8192
      %132 = vsyncadd [#allocation15], %s131
      %s133 = sshll.u32 [#allocation16], 4
      %s134 = int_to_ptr.vmem [resolvable:$true] %s133
      %139 = dma.hbm_to_vmem [thread:$0]  %s13, 8192, %s134, [#allocation15], 128, 128, 8
    $region57: #{autoencoder_forward.1} parent=1 // pred_fallthru
      _
    // Predicated region
    $region58: #{autoencoder_forward.1} parent=1 // pred_check
      _
    $region59: #{autoencoder_forward.1} parent=1 // pred_check_branch
      %141 = sbr.rel (0) target = $region61
    $region60: #{autoencoder_forward.1} parent=1 // pred_region
      _
    $region61: #{autoencoder_forward.1} parent=1 // pred_fallthru
      _
    // Predicated region
    $region62: #{autoencoder_forward.1} parent=1 // pred_check
      _
    $region63: #{autoencoder_forward.1} parent=1 // pred_check_branch
      %143 = sbr.rel (0) target = $region65
    $region64: #{autoencoder_forward.1} parent=1 // pred_region
      %144 = dma.done [#allocation3], 64
    $region65: #{autoencoder_forward.1} parent=1 // pred_fallthru
      _
    // Predicated region
    $region66: #{autoencoder_forward.1} parent=1 // pred_check
      _
    $region67: #{autoencoder_forward.1} parent=1 // pred_check_branch
      %146 = sbr.rel (0) target = $region69
    $region68: #{autoencoder_forward.1} parent=1 // pred_region
      %147 = dma.done [#allocation6], 512
    $region69: #{autoencoder_forward.1} parent=1 // pred_fallthru
      _
    // Predicated region
    $region70: #{autoencoder_forward.1} parent=1 // pred_check
      _
    $region71: #{autoencoder_forward.1} parent=1 // pred_check_branch
      %149 = sbr.rel (0) target = $region73
    $region72: #{autoencoder_forward.1} parent=1 // pred_region
      %150 = dma.done [#allocation6], 1024
    $region73: #{autoencoder_forward.1} parent=1 // pred_fallthru
      _
    // Predicated region
    $region74: #{autoencoder_forward.1} parent=1 // pred_check
      _
    $region75: #{autoencoder_forward.1} parent=1 // pred_check_branch
      %152 = sbr.rel (0) target = $region77
    $region76: #{autoencoder_forward.1} parent=1 // pred_region
      %153 = dma.done [#allocation9], 16
    $region77: #{autoencoder_forward.1} parent=1 // pred_fallthru
      _
    // Predicated region
    $region78: #{autoencoder_forward.1} parent=1 // pred_check
      _
    $region79: #{autoencoder_forward.1} parent=1 // pred_check_branch
      %155 = sbr.rel (0) target = $region81
    $region80: #{autoencoder_forward.1} parent=1 // pred_region
      %156 = dma.done [#allocation9], 512
    $region81: #{autoencoder_forward.1} parent=1 // pred_fallthru
      _
    // Predicated region
    $region82: #{autoencoder_forward.1} parent=1 // pred_check
      _
    $region83: #{autoencoder_forward.1} parent=1 // pred_check_branch
      %158 = sbr.rel (0) target = $region85
    $region84: #{autoencoder_forward.1} parent=1 // pred_region
      %159 = dma.done [#allocation12], 512
    $region85: #{autoencoder_forward.1} parent=1 // pred_fallthru
      _
    // Predicated region
    $region86: #{autoencoder_forward.1} parent=1 // pred_check
      _
    $region87: #{autoencoder_forward.1} parent=1 // pred_check_branch
      %161 = sbr.rel (0) target = $region89
    $region88: #{autoencoder_forward.1} parent=1 // pred_region
      %162 = dma.done [#allocation12], 16
    $region89: #{autoencoder_forward.1} parent=1 // pred_fallthru
      _
    // Predicated region
    $region90: #{autoencoder_forward.1} parent=1 // pred_check
      _
    $region91: #{autoencoder_forward.1} parent=1 // pred_check_branch
      %164 = sbr.rel (0) target = $region93
    $region92: #{autoencoder_forward.1} parent=1 // pred_region
      %165 = dma.done [#allocation15], 512
    $region93: #{autoencoder_forward.1} parent=1 // pred_fallthru
      _
    // Predicated region
    $region94: #{autoencoder_forward.1} parent=1 // pred_check
      _
    $region95: #{autoencoder_forward.1} parent=1 // pred_check_branch
      %167 = sbr.rel (0) target = $region97
    $region96: #{autoencoder_forward.1} parent=1 // pred_region
      %168 = dma.done [#allocation15], 8192
    $region97: #{autoencoder_forward.1} parent=1 // pred_fallthru
      _
    %v169 = vld [vmem:[%s0] sm:$0xff]
    %v170 = vld [vmem:[%s0 + $0x8] sm:$0xff]
    %v171 = vld [vmem:[#allocation2] sm:$0xf]
    %v172 = vld [vmem:[%s3] sm:$0x1]
    %v174 = vlaneseq
    %v175 = vshrl.u32 %v174, 7
    %v176 = vsub.s32 0, %v175
    %v177 = vrot.slane %v172, %v176
    %vm179 = vcmask 31744
    %v181 = vsel %vm179, %v169, 0
    %v184 = vsel %vm179, %v170, 0
    %vm186 = vcmask 1043456
    %v188 = vsel %vm186, %v171, 0
    %190 = vmatprep.subr.mxu0 0.0
    %191 = vmatpush1.msra.mxu0 %v188
    %192 = vmatprep.subr.mxu0 0.0
    %193 = vmatpush1.msra.mxu0 0.0
    %194 = vmatprep.subr.mxu0 0.0
    %195 = vmatpush1.msra.mxu0 0.0
    %196 = vmatprep.subr.mxu0 0.0
    %197 = vmatpush1.msra.mxu0 0.0
    %198 = vmatprep.subr.mxu0 0.0
    %199 = vmatpush1.msra.mxu0 0.0
    %200 = vmatprep.subr.mxu0 0.0
    %201 = vmatpush1.msra.mxu0 0.0
    %202 = vmatprep.subr.mxu0 0.0
    %203 = vmatpush1.msra.mxu0 0.0
    %204 = vmatprep.subr.mxu0 0.0
    %205 = vmatpush1.msra.mxu0 0.0
    %206 = vmatprep.subr.mxu0 0.0
    %207 = vmatpush1.msra.mxu0 0.0
    %208 = vmatprep.subr.mxu0 0.0
    %209 = vmatpush1.msra.mxu0 0.0
    %210 = vmatprep.subr.mxu0 0.0
    %211 = vmatpush1.msra.mxu0 0.0
    %212 = vmatprep.subr.mxu0 0.0
    %213 = vmatpush1.msra.mxu0 0.0
    %214 = vmatprep.subr.mxu0 0.0
    %215 = vmatpush1.msra.mxu0 0.0
    %216 = vmatprep.subr.mxu0 0.0
    %217 = vmatpush1.msra.mxu0 0.0
    %218 = vmatprep.subr.mxu0 0.0
    %219 = vmatpush1.msra.mxu0 0.0
    %220 = vmatprep.subr.mxu0 0.0
    %221 = vmatpush1.msra.mxu0 0.0
    %222 = vmatprep.subr.mxu0 0.0
    %223 = vmatpush1.msra.mxu0 0.0
    %224 = vmatprep.subr.mxu0 0.0
    %225 = vmatpush1.msra.mxu0 0.0
    %226 = vmatprep.subr.mxu0 0.0
    %227 = vmatpush1.msra.mxu0 0.0
    %228 = vmatprep.subr.mxu0 0.0
    %229 = vmatpush1.msra.mxu0 0.0
    %230 = vmatprep.subr.mxu0 0.0
    %231 = vmatpush1.msra.mxu0 0.0
    %232 = vmatprep.subr.mxu0 0.0
    %233 = vmatpush1.msra.mxu0 0.0
    %234 = vmatprep.subr.mxu0 0.0
    %235 = vmatpush1.msra.mxu0 0.0
    %236 = vmatprep.subr.mxu0 0.0
    %237 = vmatpush1.msra.mxu0 0.0
    %238 = vmatprep.subr.mxu0 0.0
    %239 = vmatpush1.msra.mxu0 0.0
    %240 = vmatprep.subr.mxu0 0.0
    %241 = vmatpush1.msra.mxu0 0.0
    %242 = vmatprep.subr.mxu0 0.0
    %243 = vmatpush1.msra.mxu0 0.0
    %244 = vmatprep.subr.mxu0 0.0
    %245 = vmatpush1.msra.mxu0 0.0
    %246 = vmatprep.subr.mxu0 0.0
    %247 = vmatpush1.msra.mxu0 0.0
    %248 = vmatprep.subr.mxu0 0.0
    %249 = vmatpush1.msra.mxu0 0.0
    %250 = vmatprep.subr.mxu0 0.0
    %251 = vmatpush1.msra.mxu0 0.0
    %252 = vmatprep.subr.mxu0 0.0
    %253 = vmatpush1.msra.mxu0 0.0
    %254 = vmatprep.mubr.f32.mxu0 0.0
    %255 = vmatmul.mubr.f32.gmra.mrb[0].mxu0 %v181
    %v256 = vpop.f32.mrb[0].mxu0
    %v257 = vadd.f32 %v177, %v256
    %v258 = vpop.f32.mrb[0].mxu0
    %259 = vmatprep.mubr.f32.mxu0 0.0
    %260 = vmatmul.mubr.f32.gmra.mrb[0].mxu0 %v184
    %v261 = vpop.f32.mrb[0].mxu0
    %v262 = vadd.f32 %v177, %v261
    %v263 = vpop.f32.mrb[0].mxu0
    %264 = vdwg.mxu0
    %v265 = vld [vmem:[#allocation5] sm:$0xff]
    %v266 = vld [vmem:[#allocation5 + $0x8] sm:$0xff]
    %v267 = vld [vmem:[#allocation5 + $0x10] sm:$0xff]
    %v268 = vld [vmem:[#allocation5 + $0x18] sm:$0xff]
    %v269 = vld [vmem:[#allocation7] sm:$0xff]
    %v270 = vld [vmem:[#allocation7 + $0x8] sm:$0xff]
    %v271 = vld [vmem:[#allocation7 + $0x10] sm:$0xff]
    %v272 = vld [vmem:[#allocation7 + $0x18] sm:$0xff]
    %v273 = vld [vmem:[#allocation7 + $0x20] sm:$0xff]
    %v274 = vld [vmem:[#allocation7 + $0x28] sm:$0xff]
    %v275 = vld [vmem:[#allocation7 + $0x30] sm:$0xff]
    %v276 = vld [vmem:[#allocation7 + $0x38] sm:$0xff]
    %v277 = vld [vmem:[#allocation8] sm:$0x1]
    %vm278 = vcmask 261120
    %v280 = vsel %vm278, 0.0, 0
    %282 = vmatprep.subr.mxu0 0.0
    %283 = vmatpush1.msra.mxu0 %v265
    %284 = vmatprep.subr.mxu0 0.0
    %285 = vmatpush1.msra.mxu0 %v266
    %286 = vmatprep.subr.mxu0 0.0
    %287 = vmatpush1.msra.mxu0 %v267
    %288 = vmatprep.subr.mxu0 0.0
    %289 = vmatpush1.msra.mxu0 %v268
    %290 = vmatprep.subr.mxu0 0.0
    %291 = vmatpush1.msra.mxu0 0.0
    %292 = vmatprep.subr.mxu0 0.0
    %293 = vmatpush1.msra.mxu0 0.0
    %294 = vmatprep.subr.mxu0 0.0
    %295 = vmatpush1.msra.mxu0 0.0
    %296 = vmatprep.subr.mxu0 0.0
    %297 = vmatpush1.msra.mxu0 0.0
    %298 = vmatprep.subr.mxu0 0.0
    %299 = vmatpush1.msra.mxu0 0.0
    %300 = vmatprep.subr.mxu0 0.0
    %301 = vmatpush1.msra.mxu0 0.0
    %302 = vmatprep.subr.mxu0 0.0
    %303 = vmatpush1.msra.mxu0 0.0
    %304 = vmatprep.subr.mxu0 0.0
    %305 = vmatpush1.msra.mxu0 0.0
    %306 = vmatprep.subr.mxu0 0.0
    %307 = vmatpush1.msra.mxu0 0.0
    %308 = vmatprep.subr.mxu0 0.0
    %309 = vmatpush1.msra.mxu0 0.0
    %310 = vmatprep.subr.mxu0 0.0
    %311 = vmatpush1.msra.mxu0 0.0
    %312 = vmatprep.subr.mxu0 0.0
    %313 = vmatpush1.msra.mxu0 0.0
    %314 = vmatprep.subr.mxu0 0.0
    %315 = vmatpush1.msra.mxu0 0.0
    %316 = vmatprep.subr.mxu0 0.0
    %317 = vmatpush1.msra.mxu0 0.0
    %318 = vmatprep.subr.mxu0 0.0
    %319 = vmatpush1.msra.mxu0 0.0
    %320 = vmatprep.subr.mxu0 0.0
    %321 = vmatpush1.msra.mxu0 0.0
    %322 = vmatprep.subr.mxu0 0.0
    %323 = vmatpush1.msra.mxu0 0.0
    %324 = vmatprep.subr.mxu0 0.0
    %325 = vmatpush1.msra.mxu0 0.0
    %326 = vmatprep.subr.mxu0 0.0
    %327 = vmatpush1.msra.mxu0 0.0
    %328 = vmatprep.subr.mxu0 0.0
    %329 = vmatpush1.msra.mxu0 0.0
    %330 = vmatprep.subr.mxu0 0.0
    %331 = vmatpush1.msra.mxu0 0.0
    %332 = vmatprep.subr.mxu0 0.0
    %333 = vmatpush1.msra.mxu0 0.0
    %334 = vmatprep.subr.mxu0 0.0
    %335 = vmatpush1.msra.mxu0 0.0
    %336 = vmatprep.subr.mxu0 0.0
    %337 = vmatpush1.msra.mxu0 0.0
    %338 = vmatprep.subr.mxu0 0.0
    %339 = vmatpush1.msra.mxu0 0.0
    %340 = vmatprep.subr.mxu0 0.0
    %341 = vmatpush1.msra.mxu0 0.0
    %342 = vmatprep.subr.mxu0 0.0
    %343 = vmatpush1.msra.mxu0 0.0
    %344 = vmatprep.subr.mxu0 0.0
    %345 = vmatpush1.msra.mxu0 0.0
    %346 = vmatprep.mubr.f32.mxu0 0.0
    %347 = vmatmul.mubr.f32.gmra.mrb[0].mxu0 %v280
    %v348 = vpop.f32.mrb[0].mxu0
    %v349 = vadd.f32 0.0, %v348
    %v350 = vpop.f32.mrb[0].mxu0
    %351 = vdwg.mxu0
    %v352 = vadd.f32 %v257, %v349
    %v353 = vxor.u32 %v352, 2147483648
    %v354 = vmul.f32 %v353, 1.442695
    %v355 = vpow.pop %v354
    %v356 = vadd.f32 %v355, 1.0
    %v357 = vrcp.pop %v356
    %v358 = vmul.f32 1.0, %v357
    %v359 = vtanh.pop %v352
    %v360 = vmul.f32 %v358, 0.0
    %362 = vrot.lane.b32.xlu0 %v359, 64
    %v363 = vpop.permute.xlu0 %362
    %v365 = vmul.f32 %v358, %v363
    %367 = vrot.lane.b32.xlu0 %v365, 32
    %v368 = vpop.permute.xlu0 %367
    %v370 = vadd.f32 %v360, %v368
    %v371 = vtanh.pop %v370
    %373 = vrot.lane.b32.xlu0 %v371, 64
    %v374 = vpop.permute.xlu0 %373
    %v376 = vmul.f32 %v358, %v374
    %378 = vrot.lane.b32.xlu0 %v376, 32
    %v379 = vpop.permute.xlu0 %378
    %v381 = vsel %vm278, %v379, 0.0
    %v383 = vlaneseq
    %v384 = vshrl.u32 %v383, 7
    %v385 = vsub.s32 0, %v384
    %v386 = vrot.slane %v277, %v385
    %vm388 = vcmask 523264
    %v390 = vsel %vm388, %v381, 0
    %392 = vmatprep.subr.mxu0 0.0
    %393 = vmatpush1.msra.mxu0 %v269
    %394 = vmatprep.subr.mxu0 0.0
    %395 = vmatpush1.msra.mxu0 %v270
    %396 = vmatprep.subr.mxu0 0.0
    %397 = vmatpush1.msra.mxu0 %v271
    %398 = vmatprep.subr.mxu0 0.0
    %399 = vmatpush1.msra.mxu0 %v272
    %400 = vmatprep.subr.mxu0 0.0
    %401 = vmatpush1.msra.mxu0 %v273
    %402 = vmatprep.subr.mxu0 0.0
    %403 = vmatpush1.msra.mxu0 %v274
    %404 = vmatprep.subr.mxu0 0.0
    %405 = vmatpush1.msra.mxu0 %v275
    %406 = vmatprep.subr.mxu0 0.0
    %407 = vmatpush1.msra.mxu0 %v276
    %408 = vmatprep.subr.mxu0 0.0
    %409 = vmatpush1.msra.mxu0 0.0
    %410 = vmatprep.subr.mxu0 0.0
    %411 = vmatpush1.msra.mxu0 0.0
    %412 = vmatprep.subr.mxu0 0.0
    %413 = vmatpush1.msra.mxu0 0.0
    %414 = vmatprep.subr.mxu0 0.0
    %415 = vmatpush1.msra.mxu0 0.0
    %416 = vmatprep.subr.mxu0 0.0
    %417 = vmatpush1.msra.mxu0 0.0
    %418 = vmatprep.subr.mxu0 0.0
    %419 = vmatpush1.msra.mxu0 0.0
    %420 = vmatprep.subr.mxu0 0.0
    %421 = vmatpush1.msra.mxu0 0.0
    %422 = vmatprep.subr.mxu0 0.0
    %423 = vmatpush1.msra.mxu0 0.0
    %424 = vmatprep.subr.mxu0 0.0
    %425 = vmatpush1.msra.mxu0 0.0
    %426 = vmatprep.subr.mxu0 0.0
    %427 = vmatpush1.msra.mxu0 0.0
    %428 = vmatprep.subr.mxu0 0.0
    %429 = vmatpush1.msra.mxu0 0.0
    %430 = vmatprep.subr.mxu0 0.0
    %431 = vmatpush1.msra.mxu0 0.0
    %432 = vmatprep.subr.mxu0 0.0
    %433 = vmatpush1.msra.mxu0 0.0
    %434 = vmatprep.subr.mxu0 0.0
    %435 = vmatpush1.msra.mxu0 0.0
    %436 = vmatprep.subr.mxu0 0.0
    %437 = vmatpush1.msra.mxu0 0.0
    %438 = vmatprep.subr.mxu0 0.0
    %439 = vmatpush1.msra.mxu0 0.0
    %440 = vmatprep.subr.mxu0 0.0
    %441 = vmatpush1.msra.mxu0 0.0
    %442 = vmatprep.subr.mxu0 0.0
    %443 = vmatpush1.msra.mxu0 0.0
    %444 = vmatprep.subr.mxu0 0.0
    %445 = vmatpush1.msra.mxu0 0.0
    %446 = vmatprep.subr.mxu0 0.0
    %447 = vmatpush1.msra.mxu0 0.0
    %448 = vmatprep.subr.mxu0 0.0
    %449 = vmatpush1.msra.mxu0 0.0
    %450 = vmatprep.subr.mxu0 0.0
    %451 = vmatpush1.msra.mxu0 0.0
    %452 = vmatprep.subr.mxu0 0.0
    %453 = vmatpush1.msra.mxu0 0.0
    %454 = vmatprep.subr.mxu0 0.0
    %455 = vmatpush1.msra.mxu0 0.0
    %456 = vmatprep.mubr.f32.mxu0 0.0
    %457 = vmatmul.mubr.f32.gmra.mrb[0].mxu0 %v390
    %v458 = vpop.f32.mrb[0].mxu0
    %v459 = vadd.f32 %v386, %v458
    %v460 = vpop.f32.mrb[0].mxu0
    %461 = vdwg.mxu0
    %v462 = vxor.u32 %v459, 2147483648
    %v463 = vmul.f32 %v462, 1.442695
    %v464 = vpow.pop %v463
    %v465 = vadd.f32 %v464, 1.0
    %v466 = vrcp.pop %v465
    %v467 = vmul.f32 1.0, %v466
    %v468 = vtanh.pop %v459
    %v469 = vmul.f32 %v467, 0.0
    %471 = vrot.lane.b32.xlu0 %v468, 64
    %v472 = vpop.permute.xlu0 %471
    %v474 = vmul.f32 %v467, %v472
    %476 = vrot.lane.b32.xlu0 %v474, 32
    %v477 = vpop.permute.xlu0 %476
    %v479 = vadd.f32 %v469, %v477
    %v480 = vtanh.pop %v479
    %482 = vrot.lane.b32.xlu0 %v480, 64
    %v483 = vpop.permute.xlu0 %482
    %v485 = vmul.f32 %v467, %v483
    %v486 = vsel %vm278, %v379, 0
    %488 = vmatprep.subr.mxu0 0.0
    %489 = vmatpush1.msra.mxu0 %v265
    %490 = vmatprep.subr.mxu0 0.0
    %491 = vmatpush1.msra.mxu0 %v266
    %492 = vmatprep.subr.mxu0 0.0
    %493 = vmatpush1.msra.mxu0 %v267
    %494 = vmatprep.subr.mxu0 0.0
    %495 = vmatpush1.msra.mxu0 %v268
    %496 = vmatprep.subr.mxu0 0.0
    %497 = vmatpush1.msra.mxu0 0.0
    %498 = vmatprep.subr.mxu0 0.0
    %499 = vmatpush1.msra.mxu0 0.0
    %500 = vmatprep.subr.mxu0 0.0
    %501 = vmatpush1.msra.mxu0 0.0
    %502 = vmatprep.subr.mxu0 0.0
    %503 = vmatpush1.msra.mxu0 0.0
    %504 = vmatprep.subr.mxu0 0.0
    %505 = vmatpush1.msra.mxu0 0.0
    %506 = vmatprep.subr.mxu0 0.0
    %507 = vmatpush1.msra.mxu0 0.0
    %508 = vmatprep.subr.mxu0 0.0
    %509 = vmatpush1.msra.mxu0 0.0
    %510 = vmatprep.subr.mxu0 0.0
    %511 = vmatpush1.msra.mxu0 0.0
    %512 = vmatprep.subr.mxu0 0.0
    %513 = vmatpush1.msra.mxu0 0.0
    %514 = vmatprep.subr.mxu0 0.0
    %515 = vmatpush1.msra.mxu0 0.0
    %516 = vmatprep.subr.mxu0 0.0
    %517 = vmatpush1.msra.mxu0 0.0
    %518 = vmatprep.subr.mxu0 0.0
    %519 = vmatpush1.msra.mxu0 0.0
    %520 = vmatprep.subr.mxu0 0.0
    %521 = vmatpush1.msra.mxu0 0.0
    %522 = vmatprep.subr.mxu0 0.0
    %523 = vmatpush1.msra.mxu0 0.0
    %524 = vmatprep.subr.mxu0 0.0
    %525 = vmatpush1.msra.mxu0 0.0
    %526 = vmatprep.subr.mxu0 0.0
    %527 = vmatpush1.msra.mxu0 0.0
    %528 = vmatprep.subr.mxu0 0.0
    %529 = vmatpush1.msra.mxu0 0.0
    %530 = vmatprep.subr.mxu0 0.0
    %531 = vmatpush1.msra.mxu0 0.0
    %532 = vmatprep.subr.mxu0 0.0
    %533 = vmatpush1.msra.mxu0 0.0
    %534 = vmatprep.subr.mxu0 0.0
    %535 = vmatpush1.msra.mxu0 0.0
    %536 = vmatprep.subr.mxu0 0.0
    %537 = vmatpush1.msra.mxu0 0.0
    %538 = vmatprep.subr.mxu0 0.0
    %539 = vmatpush1.msra.mxu0 0.0
    %540 = vmatprep.subr.mxu0 0.0
    %541 = vmatpush1.msra.mxu0 0.0
    %542 = vmatprep.subr.mxu0 0.0
    %543 = vmatpush1.msra.mxu0 0.0
    %544 = vmatprep.subr.mxu0 0.0
    %545 = vmatpush1.msra.mxu0 0.0
    %546 = vmatprep.subr.mxu0 0.0
    %547 = vmatpush1.msra.mxu0 0.0
    %548 = vmatprep.subr.mxu0 0.0
    %549 = vmatpush1.msra.mxu0 0.0
    %550 = vmatprep.subr.mxu0 0.0
    %551 = vmatpush1.msra.mxu0 0.0
    %552 = vmatprep.mubr.f32.mxu0 0.0
    %553 = vmatmul.mubr.f32.gmra.mrb[0].mxu0 %v486
    %v554 = vpop.f32.mrb[0].mxu0
    %v555 = vadd.f32 0.0, %v554
    %v556 = vpop.f32.mrb[0].mxu0
    %557 = vdwg.mxu0
    %v559 = vrot.slane %v555, 6
    %v561 = vadd.f32 %v257, %v559
    %v562 = vxor.u32 %v561, 2147483648
    %v563 = vmul.f32 %v562, 1.442695
    %v564 = vpow.pop %v563
    %v565 = vadd.f32 %v564, 1.0
    %v566 = vrcp.pop %v565
    %v567 = vmul.f32 1.0, %v566
    %v568 = vtanh.pop %v561
    %v570 = vrot.slane %v370, 6
    %v572 = vmul.f32 %v567, %v570
    %574 = vrot.lane.b32.xlu0 %v568, 64
    %v575 = vpop.permute.xlu0 %574
    %v577 = vmul.f32 %v567, %v575
    %579 = vrot.lane.b32.xlu0 %v577, 32
    %v580 = vpop.permute.xlu0 %579
    %v582 = vadd.f32 %v572, %v580
    %v583 = vtanh.pop %v582
    %585 = vrot.lane.b32.xlu0 %v583, 64
    %v586 = vpop.permute.xlu0 %585
    %v588 = vmul.f32 %v567, %v586
    %590 = vrot.lane.b32.xlu0 %v588, 32
    %v591 = vpop.permute.xlu0 %590
    %v594 = vrot.slane %v485, 6
    %595 = vrot.lane.b32.xlu0 %v594, 64
    %v596 = vpop.permute.xlu0 %595
    %v598 = vsel %vm278, %v591, %v596
    %v600 = vrot.slane %v598, 2
    %v601 = vsel %vm388, %v600, 0
    %603 = vmatprep.subr.mxu0 0.0
    %604 = vmatpush1.msra.mxu0 %v269
    %605 = vmatprep.subr.mxu0 0.0
    %606 = vmatpush1.msra.mxu0 %v270
    %607 = vmatprep.subr.mxu0 0.0
    %608 = vmatpush1.msra.mxu0 %v271
    %609 = vmatprep.subr.mxu0 0.0
    %610 = vmatpush1.msra.mxu0 %v272
    %611 = vmatprep.subr.mxu0 0.0
    %612 = vmatpush1.msra.mxu0 %v273
    %613 = vmatprep.subr.mxu0 0.0
    %614 = vmatpush1.msra.mxu0 %v274
    %615 = vmatprep.subr.mxu0 0.0
    %616 = vmatpush1.msra.mxu0 %v275
    %617 = vmatprep.subr.mxu0 0.0
    %618 = vmatpush1.msra.mxu0 %v276
    %619 = vmatprep.subr.mxu0 0.0
    %620 = vmatpush1.msra.mxu0 0.0
    %621 = vmatprep.subr.mxu0 0.0
    %622 = vmatpush1.msra.mxu0 0.0
    %623 = vmatprep.subr.mxu0 0.0
    %624 = vmatpush1.msra.mxu0 0.0
    %625 = vmatprep.subr.mxu0 0.0
    %626 = vmatpush1.msra.mxu0 0.0
    %627 = vmatprep.subr.mxu0 0.0
    %628 = vmatpush1.msra.mxu0 0.0
    %629 = vmatprep.subr.mxu0 0.0
    %630 = vmatpush1.msra.mxu0 0.0
    %631 = vmatprep.subr.mxu0 0.0
    %632 = vmatpush1.msra.mxu0 0.0
    %633 = vmatprep.subr.mxu0 0.0
    %634 = vmatpush1.msra.mxu0 0.0
    %635 = vmatprep.subr.mxu0 0.0
    %636 = vmatpush1.msra.mxu0 0.0
    %637 = vmatprep.subr.mxu0 0.0
    %638 = vmatpush1.msra.mxu0 0.0
    %639 = vmatprep.subr.mxu0 0.0
    %640 = vmatpush1.msra.mxu0 0.0
    %641 = vmatprep.subr.mxu0 0.0
    %642 = vmatpush1.msra.mxu0 0.0
    %643 = vmatprep.subr.mxu0 0.0
    %644 = vmatpush1.msra.mxu0 0.0
    %645 = vmatprep.subr.mxu0 0.0
    %646 = vmatpush1.msra.mxu0 0.0
    %647 = vmatprep.subr.mxu0 0.0
    %648 = vmatpush1.msra.mxu0 0.0
    %649 = vmatprep.subr.mxu0 0.0
    %650 = vmatpush1.msra.mxu0 0.0
    %651 = vmatprep.subr.mxu0 0.0
    %652 = vmatpush1.msra.mxu0 0.0
    %653 = vmatprep.subr.mxu0 0.0
    %654 = vmatpush1.msra.mxu0 0.0
    %655 = vmatprep.subr.mxu0 0.0
    %656 = vmatpush1.msra.mxu0 0.0
    %657 = vmatprep.subr.mxu0 0.0
    %658 = vmatpush1.msra.mxu0 0.0
    %659 = vmatprep.subr.mxu0 0.0
    %660 = vmatpush1.msra.mxu0 0.0
    %661 = vmatprep.subr.mxu0 0.0
    %662 = vmatpush1.msra.mxu0 0.0
    %663 = vmatprep.subr.mxu0 0.0
    %664 = vmatpush1.msra.mxu0 0.0
    %665 = vmatprep.subr.mxu0 0.0
    %666 = vmatpush1.msra.mxu0 0.0
    %667 = vmatprep.mubr.f32.mxu0 0.0
    %668 = vmatmul.mubr.f32.gmra.mrb[0].mxu0 %v601
    %v669 = vpop.f32.mrb[0].mxu0
    %v670 = vadd.f32 %v386, %v669
    %v671 = vpop.f32.mrb[0].mxu0
    %672 = vdwg.mxu0
    %v673 = vxor.u32 %v670, 2147483648
    %v674 = vmul.f32 %v673, 1.442695
    %v675 = vpow.pop %v674
    %v676 = vadd.f32 %v675, 1.0
    %v677 = vrcp.pop %v676
    %v678 = vmul.f32 1.0, %v677
    %v679 = vtanh.pop %v670
    %v680 = vmul.f32 %v678, %v479
    %682 = vrot.lane.b32.xlu0 %v679, 64
    %v683 = vpop.permute.xlu0 %682
    %v685 = vmul.f32 %v678, %v683
    %687 = vrot.lane.b32.xlu0 %v685, 32
    %v688 = vpop.permute.xlu0 %687
    %v690 = vadd.f32 %v680, %v688
    %v691 = vtanh.pop %v690
    %693 = vrot.lane.b32.xlu0 %v691, 64
    %v694 = vpop.permute.xlu0 %693
    %v696 = vmul.f32 %v678, %v694
    %v697 = vrot.slane %v588, 2
    %698 = vrot.lane.b32.xlu0 %v697, 32
    %v699 = vpop.permute.xlu0 %698
    %v700 = vsel %vm278, %v699, 0
    %702 = vmatprep.subr.mxu0 0.0
    %703 = vmatpush1.msra.mxu0 %v265
    %704 = vmatprep.subr.mxu0 0.0
    %705 = vmatpush1.msra.mxu0 %v266
    %706 = vmatprep.subr.mxu0 0.0
    %707 = vmatpush1.msra.mxu0 %v267
    %708 = vmatprep.subr.mxu0 0.0
    %709 = vmatpush1.msra.mxu0 %v268
    %710 = vmatprep.subr.mxu0 0.0
    %711 = vmatpush1.msra.mxu0 0.0
    %712 = vmatprep.subr.mxu0 0.0
    %713 = vmatpush1.msra.mxu0 0.0
    %714 = vmatprep.subr.mxu0 0.0
    %715 = vmatpush1.msra.mxu0 0.0
    %716 = vmatprep.subr.mxu0 0.0
    %717 = vmatpush1.msra.mxu0 0.0
    %718 = vmatprep.subr.mxu0 0.0
    %719 = vmatpush1.msra.mxu0 0.0
    %720 = vmatprep.subr.mxu0 0.0
    %721 = vmatpush1.msra.mxu0 0.0
    %722 = vmatprep.subr.mxu0 0.0
    %723 = vmatpush1.msra.mxu0 0.0
    %724 = vmatprep.subr.mxu0 0.0
    %725 = vmatpush1.msra.mxu0 0.0
    %726 = vmatprep.subr.mxu0 0.0
    %727 = vmatpush1.msra.mxu0 0.0
    %728 = vmatprep.subr.mxu0 0.0
    %729 = vmatpush1.msra.mxu0 0.0
    %730 = vmatprep.subr.mxu0 0.0
    %731 = vmatpush1.msra.mxu0 0.0
    %732 = vmatprep.subr.mxu0 0.0
    %733 = vmatpush1.msra.mxu0 0.0
    %734 = vmatprep.subr.mxu0 0.0
    %735 = vmatpush1.msra.mxu0 0.0
    %736 = vmatprep.subr.mxu0 0.0
    %737 = vmatpush1.msra.mxu0 0.0
    %738 = vmatprep.subr.mxu0 0.0
    %739 = vmatpush1.msra.mxu0 0.0
    %740 = vmatprep.subr.mxu0 0.0
    %741 = vmatpush1.msra.mxu0 0.0
    %742 = vmatprep.subr.mxu0 0.0
    %743 = vmatpush1.msra.mxu0 0.0
    %744 = vmatprep.subr.mxu0 0.0
    %745 = vmatpush1.msra.mxu0 0.0
    %746 = vmatprep.subr.mxu0 0.0
    %747 = vmatpush1.msra.mxu0 0.0
    %748 = vmatprep.subr.mxu0 0.0
    %749 = vmatpush1.msra.mxu0 0.0
    %750 = vmatprep.subr.mxu0 0.0
    %751 = vmatpush1.msra.mxu0 0.0
    %752 = vmatprep.subr.mxu0 0.0
    %753 = vmatpush1.msra.mxu0 0.0
    %754 = vmatprep.subr.mxu0 0.0
    %755 = vmatpush1.msra.mxu0 0.0
    %756 = vmatprep.subr.mxu0 0.0
    %757 = vmatpush1.msra.mxu0 0.0
    %758 = vmatprep.subr.mxu0 0.0
    %759 = vmatpush1.msra.mxu0 0.0
    %760 = vmatprep.subr.mxu0 0.0
    %761 = vmatpush1.msra.mxu0 0.0
    %762 = vmatprep.subr.mxu0 0.0
    %763 = vmatpush1.msra.mxu0 0.0
    %764 = vmatprep.subr.mxu0 0.0
    %765 = vmatpush1.msra.mxu0 0.0
    %766 = vmatprep.mubr.f32.mxu0 0.0
    %767 = vmatmul.mubr.f32.gmra.mrb[0].mxu0 %v700
    %v768 = vpop.f32.mrb[0].mxu0
    %v769 = vadd.f32 0.0, %v768
    %v770 = vpop.f32.mrb[0].mxu0
    %771 = vdwg.mxu0
    %v773 = vrot.slane %v769, 4
    %v775 = vadd.f32 %v257, %v773
    %v776 = vxor.u32 %v775, 2147483648
    %v777 = vmul.f32 %v776, 1.442695
    %v778 = vpow.pop %v777
    %v779 = vadd.f32 %v778, 1.0
    %v780 = vrcp.pop %v779
    %v781 = vmul.f32 1.0, %v780
    %v782 = vtanh.pop %v775
    %v784 = vrot.slane %v582, 6
    %v786 = vmul.f32 %v781, %v784
    %788 = vrot.lane.b32.xlu0 %v782, 64
    %v789 = vpop.permute.xlu0 %788
    %v791 = vmul.f32 %v781, %v789
    %793 = vrot.lane.b32.xlu0 %v791, 32
    %v794 = vpop.permute.xlu0 %793
    %v796 = vadd.f32 %v786, %v794
    %v797 = vtanh.pop %v796
    %799 = vrot.lane.b32.xlu0 %v797, 64
    %v800 = vpop.permute.xlu0 %799
    %v802 = vmul.f32 %v781, %v800
    %804 = vrot.lane.b32.xlu0 %v802, 32
    %v805 = vpop.permute.xlu0 %804
    %v808 = vrot.slane %v696, 4
    %809 = vrot.lane.b32.xlu0 %v808, 64
    %v810 = vpop.permute.xlu0 %809
    %v812 = vsel %vm278, %v805, %v810
    %v814 = vrot.slane %v812, 4
    %v815 = vsel %vm388, %v814, 0
    %817 = vmatprep.subr.mxu0 0.0
    %818 = vmatpush1.msra.mxu0 %v269
    %819 = vmatprep.subr.mxu0 0.0
    %820 = vmatpush1.msra.mxu0 %v270
    %821 = vmatprep.subr.mxu0 0.0
    %822 = vmatpush1.msra.mxu0 %v271
    %823 = vmatprep.subr.mxu0 0.0
    %824 = vmatpush1.msra.mxu0 %v272
    %825 = vmatprep.subr.mxu0 0.0
    %826 = vmatpush1.msra.mxu0 %v273
    %827 = vmatprep.subr.mxu0 0.0
    %828 = vmatpush1.msra.mxu0 %v274
    %829 = vmatprep.subr.mxu0 0.0
    %830 = vmatpush1.msra.mxu0 %v275
    %831 = vmatprep.subr.mxu0 0.0
    %832 = vmatpush1.msra.mxu0 %v276
    %833 = vmatprep.subr.mxu0 0.0
    %834 = vmatpush1.msra.mxu0 0.0
    %835 = vmatprep.subr.mxu0 0.0
    %836 = vmatpush1.msra.mxu0 0.0
    %837 = vmatprep.subr.mxu0 0.0
    %838 = vmatpush1.msra.mxu0 0.0
    %839 = vmatprep.subr.mxu0 0.0
    %840 = vmatpush1.msra.mxu0 0.0
    %841 = vmatprep.subr.mxu0 0.0
    %842 = vmatpush1.msra.mxu0 0.0
    %843 = vmatprep.subr.mxu0 0.0
    %844 = vmatpush1.msra.mxu0 0.0
    %845 = vmatprep.subr.mxu0 0.0
    %846 = vmatpush1.msra.mxu0 0.0
    %847 = vmatprep.subr.mxu0 0.0
    %848 = vmatpush1.msra.mxu0 0.0
    %849 = vmatprep.subr.mxu0 0.0
    %850 = vmatpush1.msra.mxu0 0.0
    %851 = vmatprep.subr.mxu0 0.0
    %852 = vmatpush1.msra.mxu0 0.0
    %853 = vmatprep.subr.mxu0 0.0
    %854 = vmatpush1.msra.mxu0 0.0
    %855 = vmatprep.subr.mxu0 0.0
    %856 = vmatpush1.msra.mxu0 0.0
    %857 = vmatprep.subr.mxu0 0.0
    %858 = vmatpush1.msra.mxu0 0.0
    %859 = vmatprep.subr.mxu0 0.0
    %860 = vmatpush1.msra.mxu0 0.0
    %861 = vmatprep.subr.mxu0 0.0
    %862 = vmatpush1.msra.mxu0 0.0
    %863 = vmatprep.subr.mxu0 0.0
    %864 = vmatpush1.msra.mxu0 0.0
    %865 = vmatprep.subr.mxu0 0.0
    %866 = vmatpush1.msra.mxu0 0.0
    %867 = vmatprep.subr.mxu0 0.0
    %868 = vmatpush1.msra.mxu0 0.0
    %869 = vmatprep.subr.mxu0 0.0
    %870 = vmatpush1.msra.mxu0 0.0
    %871 = vmatprep.subr.mxu0 0.0
    %872 = vmatpush1.msra.mxu0 0.0
    %873 = vmatprep.subr.mxu0 0.0
    %874 = vmatpush1.msra.mxu0 0.0
    %875 = vmatprep.subr.mxu0 0.0
    %876 = vmatpush1.msra.mxu0 0.0
    %877 = vmatprep.subr.mxu0 0.0
    %878 = vmatpush1.msra.mxu0 0.0
    %879 = vmatprep.subr.mxu0 0.0
    %880 = vmatpush1.msra.mxu0 0.0
    %881 = vmatprep.mubr.f32.mxu0 0.0
    %882 = vmatmul.mubr.f32.gmra.mrb[0].mxu0 %v815
    %v883 = vpop.f32.mrb[0].mxu0
    %v884 = vadd.f32 %v386, %v883
    %v885 = vpop.f32.mrb[0].mxu0
    %886 = vdwg.mxu0
    %v887 = vxor.u32 %v884, 2147483648
    %v888 = vmul.f32 %v887, 1.442695
    %v889 = vpow.pop %v888
    %v890 = vadd.f32 %v889, 1.0
    %v891 = vrcp.pop %v890
    %v892 = vmul.f32 1.0, %v891
    %v893 = vtanh.pop %v884
    %v894 = vmul.f32 %v892, %v690
    %896 = vrot.lane.b32.xlu0 %v893, 64
    %v897 = vpop.permute.xlu0 %896
    %v899 = vmul.f32 %v892, %v897
    %901 = vrot.lane.b32.xlu0 %v899, 32
    %v902 = vpop.permute.xlu0 %901
    %v904 = vadd.f32 %v894, %v902
    %v905 = vtanh.pop %v904
    %907 = vrot.lane.b32.xlu0 %v905, 64
    %v908 = vpop.permute.xlu0 %907
    %v910 = vmul.f32 %v892, %v908
    %v911 = vrot.slane %v802, 4
    %912 = vrot.lane.b32.xlu0 %v911, 32
    %v913 = vpop.permute.xlu0 %912
    %v914 = vsel %vm278, %v913, 0
    %916 = vmatprep.subr.mxu0 0.0
    %917 = vmatpush1.msra.mxu0 %v265
    %918 = vmatprep.subr.mxu0 0.0
    %919 = vmatpush1.msra.mxu0 %v266
    %920 = vmatprep.subr.mxu0 0.0
    %921 = vmatpush1.msra.mxu0 %v267
    %922 = vmatprep.subr.mxu0 0.0
    %923 = vmatpush1.msra.mxu0 %v268
    %924 = vmatprep.subr.mxu0 0.0
    %925 = vmatpush1.msra.mxu0 0.0
    %926 = vmatprep.subr.mxu0 0.0
    %927 = vmatpush1.msra.mxu0 0.0
    %928 = vmatprep.subr.mxu0 0.0
    %929 = vmatpush1.msra.mxu0 0.0
    %930 = vmatprep.subr.mxu0 0.0
    %931 = vmatpush1.msra.mxu0 0.0
    %932 = vmatprep.subr.mxu0 0.0
    %933 = vmatpush1.msra.mxu0 0.0
    %934 = vmatprep.subr.mxu0 0.0
    %935 = vmatpush1.msra.mxu0 0.0
    %936 = vmatprep.subr.mxu0 0.0
    %937 = vmatpush1.msra.mxu0 0.0
    %938 = vmatprep.subr.mxu0 0.0
    %939 = vmatpush1.msra.mxu0 0.0
    %940 = vmatprep.subr.mxu0 0.0
    %941 = vmatpush1.msra.mxu0 0.0
    %942 = vmatprep.subr.mxu0 0.0
    %943 = vmatpush1.msra.mxu0 0.0
    %944 = vmatprep.subr.mxu0 0.0
    %945 = vmatpush1.msra.mxu0 0.0
    %946 = vmatprep.subr.mxu0 0.0
    %947 = vmatpush1.msra.mxu0 0.0
    %948 = vmatprep.subr.mxu0 0.0
    %949 = vmatpush1.msra.mxu0 0.0
    %950 = vmatprep.subr.mxu0 0.0
    %951 = vmatpush1.msra.mxu0 0.0
    %952 = vmatprep.subr.mxu0 0.0
    %953 = vmatpush1.msra.mxu0 0.0
    %954 = vmatprep.subr.mxu0 0.0
    %955 = vmatpush1.msra.mxu0 0.0
    %956 = vmatprep.subr.mxu0 0.0
    %957 = vmatpush1.msra.mxu0 0.0
    %958 = vmatprep.subr.mxu0 0.0
    %959 = vmatpush1.msra.mxu0 0.0
    %960 = vmatprep.subr.mxu0 0.0
    %961 = vmatpush1.msra.mxu0 0.0
    %962 = vmatprep.subr.mxu0 0.0
    %963 = vmatpush1.msra.mxu0 0.0
    %964 = vmatprep.subr.mxu0 0.0
    %965 = vmatpush1.msra.mxu0 0.0
    %966 = vmatprep.subr.mxu0 0.0
    %967 = vmatpush1.msra.mxu0 0.0
    %968 = vmatprep.subr.mxu0 0.0
    %969 = vmatpush1.msra.mxu0 0.0
    %970 = vmatprep.subr.mxu0 0.0
    %971 = vmatpush1.msra.mxu0 0.0
    %972 = vmatprep.subr.mxu0 0.0
    %973 = vmatpush1.msra.mxu0 0.0
    %974 = vmatprep.subr.mxu0 0.0
    %975 = vmatpush1.msra.mxu0 0.0
    %976 = vmatprep.subr.mxu0 0.0
    %977 = vmatpush1.msra.mxu0 0.0
    %978 = vmatprep.subr.mxu0 0.0
    %979 = vmatpush1.msra.mxu0 0.0
    %980 = vmatprep.mubr.f32.mxu0 0.0
    %981 = vmatmul.mubr.f32.gmra.mrb[0].mxu0 %v914
    %v982 = vpop.f32.mrb[0].mxu0
    %v983 = vadd.f32 0.0, %v982
    %v984 = vpop.f32.mrb[0].mxu0
    %985 = vdwg.mxu0
    %v987 = vrot.slane %v983, 2
    %v989 = vadd.f32 %v257, %v987
    %v990 = vxor.u32 %v989, 2147483648
    %v991 = vmul.f32 %v990, 1.442695
    %v992 = vpow.pop %v991
    %v993 = vadd.f32 %v992, 1.0
    %v994 = vrcp.pop %v993
    %v995 = vmul.f32 1.0, %v994
    %v996 = vtanh.pop %v989
    %v998 = vrot.slane %v796, 6
    %v1000 = vmul.f32 %v995, %v998
    %1002 = vrot.lane.b32.xlu0 %v996, 64
    %v1003 = vpop.permute.xlu0 %1002
    %v1005 = vmul.f32 %v995, %v1003
    %1007 = vrot.lane.b32.xlu0 %v1005, 32
    %v1008 = vpop.permute.xlu0 %1007
    %v1010 = vadd.f32 %v1000, %v1008
    %v1011 = vtanh.pop %v1010
    %1013 = vrot.lane.b32.xlu0 %v1011, 64
    %v1014 = vpop.permute.xlu0 %1013
    %v1016 = vmul.f32 %v995, %v1014
    %1018 = vrot.lane.b32.xlu0 %v1016, 32
    %v1019 = vpop.permute.xlu0 %1018
    %v1022 = vrot.slane %v910, 2
    %1023 = vrot.lane.b32.xlu0 %v1022, 64
    %v1024 = vpop.permute.xlu0 %1023
    %v1026 = vsel %vm278, %v1019, %v1024
    %v1028 = vrot.slane %v1026, 6
    %v1029 = vsel %vm388, %v1028, 0
    %1031 = vmatprep.subr.mxu0 0.0
    %1032 = vmatpush1.msra.mxu0 %v269
    %1033 = vmatprep.subr.mxu0 0.0
    %1034 = vmatpush1.msra.mxu0 %v270
    %1035 = vmatprep.subr.mxu0 0.0
    %1036 = vmatpush1.msra.mxu0 %v271
    %1037 = vmatprep.subr.mxu0 0.0
    %1038 = vmatpush1.msra.mxu0 %v272
    %1039 = vmatprep.subr.mxu0 0.0
    %1040 = vmatpush1.msra.mxu0 %v273
    %1041 = vmatprep.subr.mxu0 0.0
    %1042 = vmatpush1.msra.mxu0 %v274
    %1043 = vmatprep.subr.mxu0 0.0
    %1044 = vmatpush1.msra.mxu0 %v275
    %1045 = vmatprep.subr.mxu0 0.0
    %1046 = vmatpush1.msra.mxu0 %v276
    %1047 = vmatprep.subr.mxu0 0.0
    %1048 = vmatpush1.msra.mxu0 0.0
    %1049 = vmatprep.subr.mxu0 0.0
    %1050 = vmatpush1.msra.mxu0 0.0
    %1051 = vmatprep.subr.mxu0 0.0
    %1052 = vmatpush1.msra.mxu0 0.0
    %1053 = vmatprep.subr.mxu0 0.0
    %1054 = vmatpush1.msra.mxu0 0.0
    %1055 = vmatprep.subr.mxu0 0.0
    %1056 = vmatpush1.msra.mxu0 0.0
    %1057 = vmatprep.subr.mxu0 0.0
    %1058 = vmatpush1.msra.mxu0 0.0
    %1059 = vmatprep.subr.mxu0 0.0
    %1060 = vmatpush1.msra.mxu0 0.0
    %1061 = vmatprep.subr.mxu0 0.0
    %1062 = vmatpush1.msra.mxu0 0.0
    %1063 = vmatprep.subr.mxu0 0.0
    %1064 = vmatpush1.msra.mxu0 0.0
    %1065 = vmatprep.subr.mxu0 0.0
    %1066 = vmatpush1.msra.mxu0 0.0
    %1067 = vmatprep.subr.mxu0 0.0
    %1068 = vmatpush1.msra.mxu0 0.0
    %1069 = vmatprep.subr.mxu0 0.0
    %1070 = vmatpush1.msra.mxu0 0.0
    %1071 = vmatprep.subr.mxu0 0.0
    %1072 = vmatpush1.msra.mxu0 0.0
    %1073 = vmatprep.subr.mxu0 0.0
    %1074 = vmatpush1.msra.mxu0 0.0
    %1075 = vmatprep.subr.mxu0 0.0
    %1076 = vmatpush1.msra.mxu0 0.0
    %1077 = vmatprep.subr.mxu0 0.0
    %1078 = vmatpush1.msra.mxu0 0.0
    %1079 = vmatprep.subr.mxu0 0.0
    %1080 = vmatpush1.msra.mxu0 0.0
    %1081 = vmatprep.subr.mxu0 0.0
    %1082 = vmatpush1.msra.mxu0 0.0
    %1083 = vmatprep.subr.mxu0 0.0
    %1084 = vmatpush1.msra.mxu0 0.0
    %1085 = vmatprep.subr.mxu0 0.0
    %1086 = vmatpush1.msra.mxu0 0.0
    %1087 = vmatprep.subr.mxu0 0.0
    %1088 = vmatpush1.msra.mxu0 0.0
    %1089 = vmatprep.subr.mxu0 0.0
    %1090 = vmatpush1.msra.mxu0 0.0
    %1091 = vmatprep.subr.mxu0 0.0
    %1092 = vmatpush1.msra.mxu0 0.0
    %1093 = vmatprep.subr.mxu0 0.0
    %1094 = vmatpush1.msra.mxu0 0.0
    %1095 = vmatprep.mubr.f32.mxu0 0.0
    %1096 = vmatmul.mubr.f32.gmra.mrb[0].mxu0 %v1029
    %v1097 = vpop.f32.mrb[0].mxu0
    %v1098 = vadd.f32 %v386, %v1097
    %v1099 = vpop.f32.mrb[0].mxu0
    %1100 = vdwg.mxu0
    %v1101 = vxor.u32 %v1098, 2147483648
    %v1102 = vmul.f32 %v1101, 1.442695
    %v1103 = vpow.pop %v1102
    %v1104 = vadd.f32 %v1103, 1.0
    %v1105 = vrcp.pop %v1104
    %v1106 = vmul.f32 1.0, %v1105
    %v1107 = vtanh.pop %v1098
    %v1108 = vmul.f32 %v1106, %v904
    %1110 = vrot.lane.b32.xlu0 %v1107, 64
    %v1111 = vpop.permute.xlu0 %1110
    %v1113 = vmul.f32 %v1106, %v1111
    %1115 = vrot.lane.b32.xlu0 %v1113, 32
    %v1116 = vpop.permute.xlu0 %1115
    %v1118 = vadd.f32 %v1108, %v1116
    %v1119 = vtanh.pop %v1118
    %1121 = vrot.lane.b32.xlu0 %v1119, 64
    %v1122 = vpop.permute.xlu0 %1121
    %v1124 = vmul.f32 %v1106, %v1122
    %v1125 = vrot.slane %v1016, 6
    %1126 = vrot.lane.b32.xlu0 %v1125, 32
    %v1127 = vpop.permute.xlu0 %1126
    %v1128 = vsel %vm278, %v1127, 0
    %1130 = vmatprep.subr.mxu0 0.0
    %1131 = vmatpush1.msra.mxu0 %v265
    %1132 = vmatprep.subr.mxu0 0.0
    %1133 = vmatpush1.msra.mxu0 %v266
    %1134 = vmatprep.subr.mxu0 0.0
    %1135 = vmatpush1.msra.mxu0 %v267
    %1136 = vmatprep.subr.mxu0 0.0
    %1137 = vmatpush1.msra.mxu0 %v268
    %1138 = vmatprep.subr.mxu0 0.0
    %1139 = vmatpush1.msra.mxu0 0.0
    %1140 = vmatprep.subr.mxu0 0.0
    %1141 = vmatpush1.msra.mxu0 0.0
    %1142 = vmatprep.subr.mxu0 0.0
    %1143 = vmatpush1.msra.mxu0 0.0
    %1144 = vmatprep.subr.mxu0 0.0
    %1145 = vmatpush1.msra.mxu0 0.0
    %1146 = vmatprep.subr.mxu0 0.0
    %1147 = vmatpush1.msra.mxu0 0.0
    %1148 = vmatprep.subr.mxu0 0.0
    %1149 = vmatpush1.msra.mxu0 0.0
    %1150 = vmatprep.subr.mxu0 0.0
    %1151 = vmatpush1.msra.mxu0 0.0
    %1152 = vmatprep.subr.mxu0 0.0
    %1153 = vmatpush1.msra.mxu0 0.0
    %1154 = vmatprep.subr.mxu0 0.0
    %1155 = vmatpush1.msra.mxu0 0.0
    %1156 = vmatprep.subr.mxu0 0.0
    %1157 = vmatpush1.msra.mxu0 0.0
    %1158 = vmatprep.subr.mxu0 0.0
    %1159 = vmatpush1.msra.mxu0 0.0
    %1160 = vmatprep.subr.mxu0 0.0
    %1161 = vmatpush1.msra.mxu0 0.0
    %1162 = vmatprep.subr.mxu0 0.0
    %1163 = vmatpush1.msra.mxu0 0.0
    %1164 = vmatprep.subr.mxu0 0.0
    %1165 = vmatpush1.msra.mxu0 0.0
    %1166 = vmatprep.subr.mxu0 0.0
    %1167 = vmatpush1.msra.mxu0 0.0
    %1168 = vmatprep.subr.mxu0 0.0
    %1169 = vmatpush1.msra.mxu0 0.0
    %1170 = vmatprep.subr.mxu0 0.0
    %1171 = vmatpush1.msra.mxu0 0.0
    %1172 = vmatprep.subr.mxu0 0.0
    %1173 = vmatpush1.msra.mxu0 0.0
    %1174 = vmatprep.subr.mxu0 0.0
    %1175 = vmatpush1.msra.mxu0 0.0
    %1176 = vmatprep.subr.mxu0 0.0
    %1177 = vmatpush1.msra.mxu0 0.0
    %1178 = vmatprep.subr.mxu0 0.0
    %1179 = vmatpush1.msra.mxu0 0.0
    %1180 = vmatprep.subr.mxu0 0.0
    %1181 = vmatpush1.msra.mxu0 0.0
    %1182 = vmatprep.subr.mxu0 0.0
    %1183 = vmatpush1.msra.mxu0 0.0
    %1184 = vmatprep.subr.mxu0 0.0
    %1185 = vmatpush1.msra.mxu0 0.0
    %1186 = vmatprep.subr.mxu0 0.0
    %1187 = vmatpush1.msra.mxu0 0.0
    %1188 = vmatprep.subr.mxu0 0.0
    %1189 = vmatpush1.msra.mxu0 0.0
    %1190 = vmatprep.subr.mxu0 0.0
    %1191 = vmatpush1.msra.mxu0 0.0
    %1192 = vmatprep.subr.mxu0 0.0
    %1193 = vmatpush1.msra.mxu0 0.0
    %1194 = vmatprep.mubr.f32.mxu0 0.0
    %1195 = vmatmul.mubr.f32.gmra.mrb[0].mxu0 %v1128
    %v1196 = vpop.f32.mrb[0].mxu0
    %v1197 = vadd.f32 0.0, %v1196
    %v1198 = vpop.f32.mrb[0].mxu0
    %1199 = vdwg.mxu0
    %v1200 = vadd.f32 %v262, %v1197
    %v1201 = vxor.u32 %v1200, 2147483648
    %v1202 = vmul.f32 %v1201, 1.442695
    %v1203 = vpow.pop %v1202
    %v1204 = vadd.f32 %v1203, 1.0
    %v1205 = vrcp.pop %v1204
    %v1206 = vmul.f32 1.0, %v1205
    %v1207 = vtanh.pop %v1200
    %v1209 = vrot.slane %v1010, 6
    %v1211 = vmul.f32 %v1206, %v1209
    %1213 = vrot.lane.b32.xlu0 %v1207, 64
    %v1214 = vpop.permute.xlu0 %1213
    %v1216 = vmul.f32 %v1206, %v1214
    %1218 = vrot.lane.b32.xlu0 %v1216, 32
    %v1219 = vpop.permute.xlu0 %1218
    %v1221 = vadd.f32 %v1211, %v1219
    %v1222 = vtanh.pop %v1221
    %1224 = vrot.lane.b32.xlu0 %v1222, 64
    %v1225 = vpop.permute.xlu0 %1224
    %v1227 = vmul.f32 %v1206, %v1225
    %1229 = vrot.lane.b32.xlu0 %v1227, 32
    %v1230 = vpop.permute.xlu0 %1229
    %1233 = vrot.lane.b32.xlu0 %v1124, 64
    %v1234 = vpop.permute.xlu0 %1233
    %v1236 = vsel %vm278, %v1230, %v1234
    %v1238 = vsel %vm388, %v1236, 0
    %1240 = vmatprep.subr.mxu0 0.0
    %1241 = vmatpush1.msra.mxu0 %v269
    %1242 = vmatprep.subr.mxu0 0.0
    %1243 = vmatpush1.msra.mxu0 %v270
    %1244 = vmatprep.subr.mxu0 0.0
    %1245 = vmatpush1.msra.mxu0 %v271
    %1246 = vmatprep.subr.mxu0 0.0
    %1247 = vmatpush1.msra.mxu0 %v272
    %1248 = vmatprep.subr.mxu0 0.0
    %1249 = vmatpush1.msra.mxu0 %v273
    %1250 = vmatprep.subr.mxu0 0.0
    %1251 = vmatpush1.msra.mxu0 %v274
    %1252 = vmatprep.subr.mxu0 0.0
    %1253 = vmatpush1.msra.mxu0 %v275
    %1254 = vmatprep.subr.mxu0 0.0
    %1255 = vmatpush1.msra.mxu0 %v276
    %1256 = vmatprep.subr.mxu0 0.0
    %1257 = vmatpush1.msra.mxu0 0.0
    %1258 = vmatprep.subr.mxu0 0.0
    %1259 = vmatpush1.msra.mxu0 0.0
    %1260 = vmatprep.subr.mxu0 0.0
    %1261 = vmatpush1.msra.mxu0 0.0
    %1262 = vmatprep.subr.mxu0 0.0
    %1263 = vmatpush1.msra.mxu0 0.0
    %1264 = vmatprep.subr.mxu0 0.0
    %1265 = vmatpush1.msra.mxu0 0.0
    %1266 = vmatprep.subr.mxu0 0.0
    %1267 = vmatpush1.msra.mxu0 0.0
    %1268 = vmatprep.subr.mxu0 0.0
    %1269 = vmatpush1.msra.mxu0 0.0
    %1270 = vmatprep.subr.mxu0 0.0
    %1271 = vmatpush1.msra.mxu0 0.0
    %1272 = vmatprep.subr.mxu0 0.0
    %1273 = vmatpush1.msra.mxu0 0.0
    %1274 = vmatprep.subr.mxu0 0.0
    %1275 = vmatpush1.msra.mxu0 0.0
    %1276 = vmatprep.subr.mxu0 0.0
    %1277 = vmatpush1.msra.mxu0 0.0
    %1278 = vmatprep.subr.mxu0 0.0
    %1279 = vmatpush1.msra.mxu0 0.0
    %1280 = vmatprep.subr.mxu0 0.0
    %1281 = vmatpush1.msra.mxu0 0.0
    %1282 = vmatprep.subr.mxu0 0.0
    %1283 = vmatpush1.msra.mxu0 0.0
    %1284 = vmatprep.subr.mxu0 0.0
    %1285 = vmatpush1.msra.mxu0 0.0
    %1286 = vmatprep.subr.mxu0 0.0
    %1287 = vmatpush1.msra.mxu0 0.0
    %1288 = vmatprep.subr.mxu0 0.0
    %1289 = vmatpush1.msra.mxu0 0.0
    %1290 = vmatprep.subr.mxu0 0.0
    %1291 = vmatpush1.msra.mxu0 0.0
    %1292 = vmatprep.subr.mxu0 0.0
    %1293 = vmatpush1.msra.mxu0 0.0
    %1294 = vmatprep.subr.mxu0 0.0
    %1295 = vmatpush1.msra.mxu0 0.0
    %1296 = vmatprep.subr.mxu0 0.0
    %1297 = vmatpush1.msra.mxu0 0.0
    %1298 = vmatprep.subr.mxu0 0.0
    %1299 = vmatpush1.msra.mxu0 0.0
    %1300 = vmatprep.subr.mxu0 0.0
    %1301 = vmatpush1.msra.mxu0 0.0
    %1302 = vmatprep.subr.mxu0 0.0
    %1303 = vmatpush1.msra.mxu0 0.0
    %1304 = vmatprep.mubr.f32.mxu0 0.0
    %1305 = vmatmul.mubr.f32.gmra.mrb[0].mxu0 %v1238
    %v1306 = vpop.f32.mrb[0].mxu0
    %v1307 = vadd.f32 %v386, %v1306
    %v1308 = vpop.f32.mrb[0].mxu0
    %1309 = vdwg.mxu0
    %v1310 = vxor.u32 %v1307, 2147483648
    %v1311 = vmul.f32 %v1310, 1.442695
    %v1312 = vpow.pop %v1311
    %v1313 = vadd.f32 %v1312, 1.0
    %v1314 = vrcp.pop %v1313
    %v1315 = vmul.f32 1.0, %v1314
    %v1316 = vtanh.pop %v1307
    %v1317 = vmul.f32 %v1315, %v1118
    %1319 = vrot.lane.b32.xlu0 %v1316, 64
    %v1320 = vpop.permute.xlu0 %1319
    %v1322 = vmul.f32 %v1315, %v1320
    %1324 = vrot.lane.b32.xlu0 %v1322, 32
    %v1325 = vpop.permute.xlu0 %1324
    %v1327 = vadd.f32 %v1317, %v1325
    %v1328 = vtanh.pop %v1327
    %1330 = vrot.lane.b32.xlu0 %v1328, 64
    %v1331 = vpop.permute.xlu0 %1330
    %v1333 = vmul.f32 %v1315, %v1331
    %v1334 = vsel %vm278, %v1230, 0
    %1336 = vmatprep.subr.mxu0 0.0
    %1337 = vmatpush1.msra.mxu0 %v265
    %1338 = vmatprep.subr.mxu0 0.0
    %1339 = vmatpush1.msra.mxu0 %v266
    %1340 = vmatprep.subr.mxu0 0.0
    %1341 = vmatpush1.msra.mxu0 %v267
    %1342 = vmatprep.subr.mxu0 0.0
    %1343 = vmatpush1.msra.mxu0 %v268
    %1344 = vmatprep.subr.mxu0 0.0
    %1345 = vmatpush1.msra.mxu0 0.0
    %1346 = vmatprep.subr.mxu0 0.0
    %1347 = vmatpush1.msra.mxu0 0.0
    %1348 = vmatprep.subr.mxu0 0.0
    %1349 = vmatpush1.msra.mxu0 0.0
    %1350 = vmatprep.subr.mxu0 0.0
    %1351 = vmatpush1.msra.mxu0 0.0
    %1352 = vmatprep.subr.mxu0 0.0
    %1353 = vmatpush1.msra.mxu0 0.0
    %1354 = vmatprep.subr.mxu0 0.0
    %1355 = vmatpush1.msra.mxu0 0.0
    %1356 = vmatprep.subr.mxu0 0.0
    %1357 = vmatpush1.msra.mxu0 0.0
    %1358 = vmatprep.subr.mxu0 0.0
    %1359 = vmatpush1.msra.mxu0 0.0
    %1360 = vmatprep.subr.mxu0 0.0
    %1361 = vmatpush1.msra.mxu0 0.0
    %1362 = vmatprep.subr.mxu0 0.0
    %1363 = vmatpush1.msra.mxu0 0.0
    %1364 = vmatprep.subr.mxu0 0.0
    %1365 = vmatpush1.msra.mxu0 0.0
    %1366 = vmatprep.subr.mxu0 0.0
    %1367 = vmatpush1.msra.mxu0 0.0
    %1368 = vmatprep.subr.mxu0 0.0
    %1369 = vmatpush1.msra.mxu0 0.0
    %1370 = vmatprep.subr.mxu0 0.0
    %1371 = vmatpush1.msra.mxu0 0.0
    %1372 = vmatprep.subr.mxu0 0.0
    %1373 = vmatpush1.msra.mxu0 0.0
    %1374 = vmatprep.subr.mxu0 0.0
    %1375 = vmatpush1.msra.mxu0 0.0
    %1376 = vmatprep.subr.mxu0 0.0
    %1377 = vmatpush1.msra.mxu0 0.0
    %1378 = vmatprep.subr.mxu0 0.0
    %1379 = vmatpush1.msra.mxu0 0.0
    %1380 = vmatprep.subr.mxu0 0.0
    %1381 = vmatpush1.msra.mxu0 0.0
    %1382 = vmatprep.subr.mxu0 0.0
    %1383 = vmatpush1.msra.mxu0 0.0
    %1384 = vmatprep.subr.mxu0 0.0
    %1385 = vmatpush1.msra.mxu0 0.0
    %1386 = vmatprep.subr.mxu0 0.0
    %1387 = vmatpush1.msra.mxu0 0.0
    %1388 = vmatprep.subr.mxu0 0.0
    %1389 = vmatpush1.msra.mxu0 0.0
    %1390 = vmatprep.subr.mxu0 0.0
    %1391 = vmatpush1.msra.mxu0 0.0
    %1392 = vmatprep.subr.mxu0 0.0
    %1393 = vmatpush1.msra.mxu0 0.0
    %1394 = vmatprep.subr.mxu0 0.0
    %1395 = vmatpush1.msra.mxu0 0.0
    %1396 = vmatprep.subr.mxu0 0.0
    %1397 = vmatpush1.msra.mxu0 0.0
    %1398 = vmatprep.subr.mxu0 0.0
    %1399 = vmatpush1.msra.mxu0 0.0
    %1400 = vmatprep.mubr.f32.mxu0 0.0
    %1401 = vmatmul.mubr.f32.gmra.mrb[0].mxu0 %v1334
    %v1402 = vpop.f32.mrb[0].mxu0
    %v1403 = vadd.f32 0.0, %v1402
    %v1404 = vpop.f32.mrb[0].mxu0
    %1405 = vdwg.mxu0
    %v1407 = vrot.slane %v1403, 6
    %v1409 = vadd.f32 %v262, %v1407
    %v1410 = vxor.u32 %v1409, 2147483648
    %v1411 = vmul.f32 %v1410, 1.442695
    %v1412 = vpow.pop %v1411
    %v1413 = vadd.f32 %v1412, 1.0
    %v1414 = vrcp.pop %v1413
    %v1415 = vmul.f32 1.0, %v1414
    %v1416 = vtanh.pop %v1409
    %v1418 = vrot.slane %v1221, 6
    %v1420 = vmul.f32 %v1415, %v1418
    %1422 = vrot.lane.b32.xlu0 %v1416, 64
    %v1423 = vpop.permute.xlu0 %1422
    %v1425 = vmul.f32 %v1415, %v1423
    %1427 = vrot.lane.b32.xlu0 %v1425, 32
    %v1428 = vpop.permute.xlu0 %1427
    %v1430 = vadd.f32 %v1420, %v1428
    %v1431 = vtanh.pop %v1430
    %1433 = vrot.lane.b32.xlu0 %v1431, 64
    %v1434 = vpop.permute.xlu0 %1433
    %v1436 = vmul.f32 %v1415, %v1434
    %1438 = vrot.lane.b32.xlu0 %v1436, 32
    %v1439 = vpop.permute.xlu0 %1438
    %v1442 = vrot.slane %v1333, 6
    %1443 = vrot.lane.b32.xlu0 %v1442, 64
    %v1444 = vpop.permute.xlu0 %1443
    %v1446 = vsel %vm278, %v1439, %v1444
    %v1448 = vrot.slane %v1446, 2
    %v1449 = vsel %vm388, %v1448, 0
    %1451 = vmatprep.subr.mxu0 0.0
    %1452 = vmatpush1.msra.mxu0 %v269
    %1453 = vmatprep.subr.mxu0 0.0
    %1454 = vmatpush1.msra.mxu0 %v270
    %1455 = vmatprep.subr.mxu0 0.0
    %1456 = vmatpush1.msra.mxu0 %v271
    %1457 = vmatprep.subr.mxu0 0.0
    %1458 = vmatpush1.msra.mxu0 %v272
    %1459 = vmatprep.subr.mxu0 0.0
    %1460 = vmatpush1.msra.mxu0 %v273
    %1461 = vmatprep.subr.mxu0 0.0
    %1462 = vmatpush1.msra.mxu0 %v274
    %1463 = vmatprep.subr.mxu0 0.0
    %1464 = vmatpush1.msra.mxu0 %v275
    %1465 = vmatprep.subr.mxu0 0.0
    %1466 = vmatpush1.msra.mxu0 %v276
    %1467 = vmatprep.subr.mxu0 0.0
    %1468 = vmatpush1.msra.mxu0 0.0
    %1469 = vmatprep.subr.mxu0 0.0
    %1470 = vmatpush1.msra.mxu0 0.0
    %1471 = vmatprep.subr.mxu0 0.0
    %1472 = vmatpush1.msra.mxu0 0.0
    %1473 = vmatprep.subr.mxu0 0.0
    %1474 = vmatpush1.msra.mxu0 0.0
    %1475 = vmatprep.subr.mxu0 0.0
    %1476 = vmatpush1.msra.mxu0 0.0
    %1477 = vmatprep.subr.mxu0 0.0
    %1478 = vmatpush1.msra.mxu0 0.0
    %1479 = vmatprep.subr.mxu0 0.0
    %1480 = vmatpush1.msra.mxu0 0.0
    %1481 = vmatprep.subr.mxu0 0.0
    %1482 = vmatpush1.msra.mxu0 0.0
    %1483 = vmatprep.subr.mxu0 0.0
    %1484 = vmatpush1.msra.mxu0 0.0
    %1485 = vmatprep.subr.mxu0 0.0
    %1486 = vmatpush1.msra.mxu0 0.0
    %1487 = vmatprep.subr.mxu0 0.0
    %1488 = vmatpush1.msra.mxu0 0.0
    %1489 = vmatprep.subr.mxu0 0.0
    %1490 = vmatpush1.msra.mxu0 0.0
    %1491 = vmatprep.subr.mxu0 0.0
    %1492 = vmatpush1.msra.mxu0 0.0
    %1493 = vmatprep.subr.mxu0 0.0
    %1494 = vmatpush1.msra.mxu0 0.0
    %1495 = vmatprep.subr.mxu0 0.0
    %1496 = vmatpush1.msra.mxu0 0.0
    %1497 = vmatprep.subr.mxu0 0.0
    %1498 = vmatpush1.msra.mxu0 0.0
    %1499 = vmatprep.subr.mxu0 0.0
    %1500 = vmatpush1.msra.mxu0 0.0
    %1501 = vmatprep.subr.mxu0 0.0
    %1502 = vmatpush1.msra.mxu0 0.0
    %1503 = vmatprep.subr.mxu0 0.0
    %1504 = vmatpush1.msra.mxu0 0.0
    %1505 = vmatprep.subr.mxu0 0.0
    %1506 = vmatpush1.msra.mxu0 0.0
    %1507 = vmatprep.subr.mxu0 0.0
    %1508 = vmatpush1.msra.mxu0 0.0
    %1509 = vmatprep.subr.mxu0 0.0
    %1510 = vmatpush1.msra.mxu0 0.0
    %1511 = vmatprep.subr.mxu0 0.0
    %1512 = vmatpush1.msra.mxu0 0.0
    %1513 = vmatprep.subr.mxu0 0.0
    %1514 = vmatpush1.msra.mxu0 0.0
    %1515 = vmatprep.mubr.f32.mxu0 0.0
    %1516 = vmatmul.mubr.f32.gmra.mrb[0].mxu0 %v1449
    %v1517 = vpop.f32.mrb[0].mxu0
    %v1518 = vadd.f32 %v386, %v1517
    %v1519 = vpop.f32.mrb[0].mxu0
    %1520 = vdwg.mxu0
    %v1521 = vxor.u32 %v1518, 2147483648
    %v1522 = vmul.f32 %v1521, 1.442695
    %v1523 = vpow.pop %v1522
    %v1524 = vadd.f32 %v1523, 1.0
    %v1525 = vrcp.pop %v1524
    %v1526 = vmul.f32 1.0, %v1525
    %v1527 = vtanh.pop %v1518
    %v1528 = vmul.f32 %v1526, %v1327
    %1530 = vrot.lane.b32.xlu0 %v1527, 64
    %v1531 = vpop.permute.xlu0 %1530
    %v1533 = vmul.f32 %v1526, %v1531
    %1535 = vrot.lane.b32.xlu0 %v1533, 32
    %v1536 = vpop.permute.xlu0 %1535
    %v1538 = vadd.f32 %v1528, %v1536
    %v1539 = vtanh.pop %v1538
    %1541 = vrot.lane.b32.xlu0 %v1539, 64
    %v1542 = vpop.permute.xlu0 %1541
    %v1544 = vmul.f32 %v1526, %v1542
    %v1545 = vrot.slane %v1436, 2
    %1546 = vrot.lane.b32.xlu0 %v1545, 32
    %v1547 = vpop.permute.xlu0 %1546
    %v1548 = vsel %vm278, %v1547, 0
    %1550 = vmatprep.subr.mxu0 0.0
    %1551 = vmatpush1.msra.mxu0 %v265
    %1552 = vmatprep.subr.mxu0 0.0
    %1553 = vmatpush1.msra.mxu0 %v266
    %1554 = vmatprep.subr.mxu0 0.0
    %1555 = vmatpush1.msra.mxu0 %v267
    %1556 = vmatprep.subr.mxu0 0.0
    %1557 = vmatpush1.msra.mxu0 %v268
    %1558 = vmatprep.subr.mxu0 0.0
    %1559 = vmatpush1.msra.mxu0 0.0
    %1560 = vmatprep.subr.mxu0 0.0
    %1561 = vmatpush1.msra.mxu0 0.0
    %1562 = vmatprep.subr.mxu0 0.0
    %1563 = vmatpush1.msra.mxu0 0.0
    %1564 = vmatprep.subr.mxu0 0.0
    %1565 = vmatpush1.msra.mxu0 0.0
    %1566 = vmatprep.subr.mxu0 0.0
    %1567 = vmatpush1.msra.mxu0 0.0
    %1568 = vmatprep.subr.mxu0 0.0
    %1569 = vmatpush1.msra.mxu0 0.0
    %1570 = vmatprep.subr.mxu0 0.0
    %1571 = vmatpush1.msra.mxu0 0.0
    %1572 = vmatprep.subr.mxu0 0.0
    %1573 = vmatpush1.msra.mxu0 0.0
    %1574 = vmatprep.subr.mxu0 0.0
    %1575 = vmatpush1.msra.mxu0 0.0
    %1576 = vmatprep.subr.mxu0 0.0
    %1577 = vmatpush1.msra.mxu0 0.0
    %1578 = vmatprep.subr.mxu0 0.0
    %1579 = vmatpush1.msra.mxu0 0.0
    %1580 = vmatprep.subr.mxu0 0.0
    %1581 = vmatpush1.msra.mxu0 0.0
    %1582 = vmatprep.subr.mxu0 0.0
    %1583 = vmatpush1.msra.mxu0 0.0
    %1584 = vmatprep.subr.mxu0 0.0
    %1585 = vmatpush1.msra.mxu0 0.0
    %1586 = vmatprep.subr.mxu0 0.0
    %1587 = vmatpush1.msra.mxu0 0.0
    %1588 = vmatprep.subr.mxu0 0.0
    %1589 = vmatpush1.msra.mxu0 0.0
    %1590 = vmatprep.subr.mxu0 0.0
    %1591 = vmatpush1.msra.mxu0 0.0
    %1592 = vmatprep.subr.mxu0 0.0
    %1593 = vmatpush1.msra.mxu0 0.0
    %1594 = vmatprep.subr.mxu0 0.0
    %1595 = vmatpush1.msra.mxu0 0.0
    %1596 = vmatprep.subr.mxu0 0.0
    %1597 = vmatpush1.msra.mxu0 0.0
    %1598 = vmatprep.subr.mxu0 0.0
    %1599 = vmatpush1.msra.mxu0 0.0
    %1600 = vmatprep.subr.mxu0 0.0
    %1601 = vmatpush1.msra.mxu0 0.0
    %1602 = vmatprep.subr.mxu0 0.0
    %1603 = vmatpush1.msra.mxu0 0.0
    %1604 = vmatprep.subr.mxu0 0.0
    %1605 = vmatpush1.msra.mxu0 0.0
    %1606 = vmatprep.subr.mxu0 0.0
    %1607 = vmatpush1.msra.mxu0 0.0
    %1608 = vmatprep.subr.mxu0 0.0
    %1609 = vmatpush1.msra.mxu0 0.0
    %1610 = vmatprep.subr.mxu0 0.0
    %1611 = vmatpush1.msra.mxu0 0.0
    %1612 = vmatprep.subr.mxu0 0.0
    %1613 = vmatpush1.msra.mxu0 0.0
    %1614 = vmatprep.mubr.f32.mxu0 0.0
    %1615 = vmatmul.mubr.f32.gmra.mrb[0].mxu0 %v1548
    %v1616 = vpop.f32.mrb[0].mxu0
    %v1617 = vadd.f32 0.0, %v1616
    %v1618 = vpop.f32.mrb[0].mxu0
    %1619 = vdwg.mxu0
    %v1621 = vrot.slane %v1617, 4
    %v1623 = vadd.f32 %v262, %v1621
    %v1624 = vxor.u32 %v1623, 2147483648
    %v1625 = vmul.f32 %v1624, 1.442695
    %v1626 = vpow.pop %v1625
    %v1627 = vadd.f32 %v1626, 1.0
    %v1628 = vrcp.pop %v1627
    %v1629 = vmul.f32 1.0, %v1628
    %v1630 = vtanh.pop %v1623
    %v1632 = vrot.slane %v1430, 6
    %v1634 = vmul.f32 %v1629, %v1632
    %1636 = vrot.lane.b32.xlu0 %v1630, 64
    %v1637 = vpop.permute.xlu0 %1636
    %v1639 = vmul.f32 %v1629, %v1637
    %1641 = vrot.lane.b32.xlu0 %v1639, 32
    %v1642 = vpop.permute.xlu0 %1641
    %v1644 = vadd.f32 %v1634, %v1642
    %v1645 = vtanh.pop %v1644
    %1647 = vrot.lane.b32.xlu0 %v1645, 64
    %v1648 = vpop.permute.xlu0 %1647
    %v1650 = vmul.f32 %v1629, %v1648
    %1652 = vrot.lane.b32.xlu0 %v1650, 32
    %v1653 = vpop.permute.xlu0 %1652
    %v1656 = vrot.slane %v1544, 4
    %1657 = vrot.lane.b32.xlu0 %v1656, 64
    %v1658 = vpop.permute.xlu0 %1657
    %v1660 = vsel %vm278, %v1653, %v1658
    %v1662 = vrot.slane %v1660, 4
    %v1663 = vsel %vm388, %v1662, 0
    %1665 = vmatprep.subr.mxu0 0.0
    %1666 = vmatpush1.msra.mxu0 %v269
    %1667 = vmatprep.subr.mxu0 0.0
    %1668 = vmatpush1.msra.mxu0 %v270
    %1669 = vmatprep.subr.mxu0 0.0
    %1670 = vmatpush1.msra.mxu0 %v271
    %1671 = vmatprep.subr.mxu0 0.0
    %1672 = vmatpush1.msra.mxu0 %v272
    %1673 = vmatprep.subr.mxu0 0.0
    %1674 = vmatpush1.msra.mxu0 %v273
    %1675 = vmatprep.subr.mxu0 0.0
    %1676 = vmatpush1.msra.mxu0 %v274
    %1677 = vmatprep.subr.mxu0 0.0
    %1678 = vmatpush1.msra.mxu0 %v275
    %1679 = vmatprep.subr.mxu0 0.0
    %1680 = vmatpush1.msra.mxu0 %v276
    %1681 = vmatprep.subr.mxu0 0.0
    %1682 = vmatpush1.msra.mxu0 0.0
    %1683 = vmatprep.subr.mxu0 0.0
    %1684 = vmatpush1.msra.mxu0 0.0
    %1685 = vmatprep.subr.mxu0 0.0
    %1686 = vmatpush1.msra.mxu0 0.0
    %1687 = vmatprep.subr.mxu0 0.0
    %1688 = vmatpush1.msra.mxu0 0.0
    %1689 = vmatprep.subr.mxu0 0.0
    %1690 = vmatpush1.msra.mxu0 0.0
    %1691 = vmatprep.subr.mxu0 0.0
    %1692 = vmatpush1.msra.mxu0 0.0
    %1693 = vmatprep.subr.mxu0 0.0
    %1694 = vmatpush1.msra.mxu0 0.0
    %1695 = vmatprep.subr.mxu0 0.0
    %1696 = vmatpush1.msra.mxu0 0.0
    %1697 = vmatprep.subr.mxu0 0.0
    %1698 = vmatpush1.msra.mxu0 0.0
    %1699 = vmatprep.subr.mxu0 0.0
    %1700 = vmatpush1.msra.mxu0 0.0
    %1701 = vmatprep.subr.mxu0 0.0
    %1702 = vmatpush1.msra.mxu0 0.0
    %1703 = vmatprep.subr.mxu0 0.0
    %1704 = vmatpush1.msra.mxu0 0.0
    %1705 = vmatprep.subr.mxu0 0.0
    %1706 = vmatpush1.msra.mxu0 0.0
    %1707 = vmatprep.subr.mxu0 0.0
    %1708 = vmatpush1.msra.mxu0 0.0
    %1709 = vmatprep.subr.mxu0 0.0
    %1710 = vmatpush1.msra.mxu0 0.0
    %1711 = vmatprep.subr.mxu0 0.0
    %1712 = vmatpush1.msra.mxu0 0.0
    %1713 = vmatprep.subr.mxu0 0.0
    %1714 = vmatpush1.msra.mxu0 0.0
    %1715 = vmatprep.subr.mxu0 0.0
    %1716 = vmatpush1.msra.mxu0 0.0
    %1717 = vmatprep.subr.mxu0 0.0
    %1718 = vmatpush1.msra.mxu0 0.0
    %1719 = vmatprep.subr.mxu0 0.0
    %1720 = vmatpush1.msra.mxu0 0.0
    %1721 = vmatprep.subr.mxu0 0.0
    %1722 = vmatpush1.msra.mxu0 0.0
    %1723 = vmatprep.subr.mxu0 0.0
    %1724 = vmatpush1.msra.mxu0 0.0
    %1725 = vmatprep.subr.mxu0 0.0
    %1726 = vmatpush1.msra.mxu0 0.0
    %1727 = vmatprep.subr.mxu0 0.0
    %1728 = vmatpush1.msra.mxu0 0.0
    %1729 = vmatprep.mubr.f32.mxu0 0.0
    %1730 = vmatmul.mubr.f32.gmra.mrb[0].mxu0 %v1663
    %v1731 = vpop.f32.mrb[0].mxu0
    %v1732 = vadd.f32 %v386, %v1731
    %v1733 = vpop.f32.mrb[0].mxu0
    %1734 = vdwg.mxu0
    %v1735 = vxor.u32 %v1732, 2147483648
    %v1736 = vmul.f32 %v1735, 1.442695
    %v1737 = vpow.pop %v1736
    %v1738 = vadd.f32 %v1737, 1.0
    %v1739 = vrcp.pop %v1738
    %v1740 = vmul.f32 1.0, %v1739
    %v1741 = vtanh.pop %v1732
    %v1742 = vmul.f32 %v1740, %v1538
    %1744 = vrot.lane.b32.xlu0 %v1741, 64
    %v1745 = vpop.permute.xlu0 %1744
    %v1747 = vmul.f32 %v1740, %v1745
    %1749 = vrot.lane.b32.xlu0 %v1747, 32
    %v1750 = vpop.permute.xlu0 %1749
    %v1752 = vadd.f32 %v1742, %v1750
    %v1753 = vtanh.pop %v1752
    %1755 = vrot.lane.b32.xlu0 %v1753, 64
    %v1756 = vpop.permute.xlu0 %1755
    %v1758 = vmul.f32 %v1740, %v1756
    %v1759 = vrot.slane %v1650, 4
    %1760 = vrot.lane.b32.xlu0 %v1759, 32
    %v1761 = vpop.permute.xlu0 %1760
    %v1762 = vsel %vm278, %v1761, 0
    %1764 = vmatprep.subr.mxu0 0.0
    %1765 = vmatpush1.msra.mxu0 %v265
    %1766 = vmatprep.subr.mxu0 0.0
    %1767 = vmatpush1.msra.mxu0 %v266
    %1768 = vmatprep.subr.mxu0 0.0
    %1769 = vmatpush1.msra.mxu0 %v267
    %1770 = vmatprep.subr.mxu0 0.0
    %1771 = vmatpush1.msra.mxu0 %v268
    %1772 = vmatprep.subr.mxu0 0.0
    %1773 = vmatpush1.msra.mxu0 0.0
    %1774 = vmatprep.subr.mxu0 0.0
    %1775 = vmatpush1.msra.mxu0 0.0
    %1776 = vmatprep.subr.mxu0 0.0
    %1777 = vmatpush1.msra.mxu0 0.0
    %1778 = vmatprep.subr.mxu0 0.0
    %1779 = vmatpush1.msra.mxu0 0.0
    %1780 = vmatprep.subr.mxu0 0.0
    %1781 = vmatpush1.msra.mxu0 0.0
    %1782 = vmatprep.subr.mxu0 0.0
    %1783 = vmatpush1.msra.mxu0 0.0
    %1784 = vmatprep.subr.mxu0 0.0
    %1785 = vmatpush1.msra.mxu0 0.0
    %1786 = vmatprep.subr.mxu0 0.0
    %1787 = vmatpush1.msra.mxu0 0.0
    %1788 = vmatprep.subr.mxu0 0.0
    %1789 = vmatpush1.msra.mxu0 0.0
    %1790 = vmatprep.subr.mxu0 0.0
    %1791 = vmatpush1.msra.mxu0 0.0
    %1792 = vmatprep.subr.mxu0 0.0
    %1793 = vmatpush1.msra.mxu0 0.0
    %1794 = vmatprep.subr.mxu0 0.0
    %1795 = vmatpush1.msra.mxu0 0.0
    %1796 = vmatprep.subr.mxu0 0.0
    %1797 = vmatpush1.msra.mxu0 0.0
    %1798 = vmatprep.subr.mxu0 0.0
    %1799 = vmatpush1.msra.mxu0 0.0
    %1800 = vmatprep.subr.mxu0 0.0
    %1801 = vmatpush1.msra.mxu0 0.0
    %1802 = vmatprep.subr.mxu0 0.0
    %1803 = vmatpush1.msra.mxu0 0.0
    %1804 = vmatprep.subr.mxu0 0.0
    %1805 = vmatpush1.msra.mxu0 0.0
    %1806 = vmatprep.subr.mxu0 0.0
    %1807 = vmatpush1.msra.mxu0 0.0
    %1808 = vmatprep.subr.mxu0 0.0
    %1809 = vmatpush1.msra.mxu0 0.0
    %1810 = vmatprep.subr.mxu0 0.0
    %1811 = vmatpush1.msra.mxu0 0.0
    %1812 = vmatprep.subr.mxu0 0.0
    %1813 = vmatpush1.msra.mxu0 0.0
    %1814 = vmatprep.subr.mxu0 0.0
    %1815 = vmatpush1.msra.mxu0 0.0
    %1816 = vmatprep.subr.mxu0 0.0
    %1817 = vmatpush1.msra.mxu0 0.0
    %1818 = vmatprep.subr.mxu0 0.0
    %1819 = vmatpush1.msra.mxu0 0.0
    %1820 = vmatprep.subr.mxu0 0.0
    %1821 = vmatpush1.msra.mxu0 0.0
    %1822 = vmatprep.subr.mxu0 0.0
    %1823 = vmatpush1.msra.mxu0 0.0
    %1824 = vmatprep.subr.mxu0 0.0
    %1825 = vmatpush1.msra.mxu0 0.0
    %1826 = vmatprep.subr.mxu0 0.0
    %1827 = vmatpush1.msra.mxu0 0.0
    %1828 = vmatprep.mubr.f32.mxu0 0.0
    %1829 = vmatmul.mubr.f32.gmra.mrb[0].mxu0 %v1762
    %v1830 = vpop.f32.mrb[0].mxu0
    %v1831 = vadd.f32 0.0, %v1830
    %v1832 = vpop.f32.mrb[0].mxu0
    %1833 = vdwg.mxu0
    %v1835 = vrot.slane %v1831, 2
    %v1837 = vadd.f32 %v262, %v1835
    %v1838 = vxor.u32 %v1837, 2147483648
    %v1839 = vmul.f32 %v1838, 1.442695
    %v1840 = vpow.pop %v1839
    %v1841 = vadd.f32 %v1840, 1.0
    %v1842 = vrcp.pop %v1841
    %v1843 = vmul.f32 1.0, %v1842
    %v1844 = vtanh.pop %v1837
    %v1846 = vrot.slane %v1644, 6
    %v1848 = vmul.f32 %v1843, %v1846
    %1850 = vrot.lane.b32.xlu0 %v1844, 64
    %v1851 = vpop.permute.xlu0 %1850
    %v1853 = vmul.f32 %v1843, %v1851
    %1855 = vrot.lane.b32.xlu0 %v1853, 32
    %v1856 = vpop.permute.xlu0 %1855
    %v1858 = vadd.f32 %v1848, %v1856
    %v1859 = vtanh.pop %v1858
    %1861 = vrot.lane.b32.xlu0 %v1859, 64
    %v1862 = vpop.permute.xlu0 %1861
    %v1864 = vmul.f32 %v1843, %v1862
    %1866 = vrot.lane.b32.xlu0 %v1864, 32
    %v1867 = vpop.permute.xlu0 %1866
    %v1870 = vrot.slane %v1758, 2
    %1871 = vrot.lane.b32.xlu0 %v1870, 64
    %v1872 = vpop.permute.xlu0 %1871
    %v1874 = vsel %vm278, %v1867, %v1872
    %v1876 = vrot.slane %v1874, 6
    %v1877 = vsel %vm388, %v1876, 0
    %1879 = vmatprep.subr.mxu0 0.0
    %1880 = vmatpush1.msra.mxu0 %v269
    %1881 = vmatprep.subr.mxu0 0.0
    %1882 = vmatpush1.msra.mxu0 %v270
    %1883 = vmatprep.subr.mxu0 0.0
    %1884 = vmatpush1.msra.mxu0 %v271
    %1885 = vmatprep.subr.mxu0 0.0
    %1886 = vmatpush1.msra.mxu0 %v272
    %1887 = vmatprep.subr.mxu0 0.0
    %1888 = vmatpush1.msra.mxu0 %v273
    %1889 = vmatprep.subr.mxu0 0.0
    %1890 = vmatpush1.msra.mxu0 %v274
    %1891 = vmatprep.subr.mxu0 0.0
    %1892 = vmatpush1.msra.mxu0 %v275
    %1893 = vmatprep.subr.mxu0 0.0
    %1894 = vmatpush1.msra.mxu0 %v276
    %1895 = vmatprep.subr.mxu0 0.0
    %1896 = vmatpush1.msra.mxu0 0.0
    %1897 = vmatprep.subr.mxu0 0.0
    %1898 = vmatpush1.msra.mxu0 0.0
    %1899 = vmatprep.subr.mxu0 0.0
    %1900 = vmatpush1.msra.mxu0 0.0
    %1901 = vmatprep.subr.mxu0 0.0
    %1902 = vmatpush1.msra.mxu0 0.0
    %1903 = vmatprep.subr.mxu0 0.0
    %1904 = vmatpush1.msra.mxu0 0.0
    %1905 = vmatprep.subr.mxu0 0.0
    %1906 = vmatpush1.msra.mxu0 0.0
    %1907 = vmatprep.subr.mxu0 0.0
    %1908 = vmatpush1.msra.mxu0 0.0
    %1909 = vmatprep.subr.mxu0 0.0
    %1910 = vmatpush1.msra.mxu0 0.0
    %1911 = vmatprep.subr.mxu0 0.0
    %1912 = vmatpush1.msra.mxu0 0.0
    %1913 = vmatprep.subr.mxu0 0.0
    %1914 = vmatpush1.msra.mxu0 0.0
    %1915 = vmatprep.subr.mxu0 0.0
    %1916 = vmatpush1.msra.mxu0 0.0
    %1917 = vmatprep.subr.mxu0 0.0
    %1918 = vmatpush1.msra.mxu0 0.0
    %1919 = vmatprep.subr.mxu0 0.0
    %1920 = vmatpush1.msra.mxu0 0.0
    %1921 = vmatprep.subr.mxu0 0.0
    %1922 = vmatpush1.msra.mxu0 0.0
    %1923 = vmatprep.subr.mxu0 0.0
    %1924 = vmatpush1.msra.mxu0 0.0
    %1925 = vmatprep.subr.mxu0 0.0
    %1926 = vmatpush1.msra.mxu0 0.0
    %1927 = vmatprep.subr.mxu0 0.0
    %1928 = vmatpush1.msra.mxu0 0.0
    %1929 = vmatprep.subr.mxu0 0.0
    %1930 = vmatpush1.msra.mxu0 0.0
    %1931 = vmatprep.subr.mxu0 0.0
    %1932 = vmatpush1.msra.mxu0 0.0
    %1933 = vmatprep.subr.mxu0 0.0
    %1934 = vmatpush1.msra.mxu0 0.0
    %1935 = vmatprep.subr.mxu0 0.0
    %1936 = vmatpush1.msra.mxu0 0.0
    %1937 = vmatprep.subr.mxu0 0.0
    %1938 = vmatpush1.msra.mxu0 0.0
    %1939 = vmatprep.subr.mxu0 0.0
    %1940 = vmatpush1.msra.mxu0 0.0
    %1941 = vmatprep.subr.mxu0 0.0
    %1942 = vmatpush1.msra.mxu0 0.0
    %1943 = vmatprep.mubr.f32.mxu0 0.0
    %1944 = vmatmul.mubr.f32.gmra.mrb[0].mxu0 %v1877
    %v1945 = vpop.f32.mrb[0].mxu0
    %v1946 = vadd.f32 %v386, %v1945
    %v1947 = vpop.f32.mrb[0].mxu0
    %1948 = vdwg.mxu0
    %v1949 = vxor.u32 %v1946, 2147483648
    %v1950 = vmul.f32 %v1949, 1.442695
    %v1951 = vpow.pop %v1950
    %v1952 = vadd.f32 %v1951, 1.0
    %v1953 = vrcp.pop %v1952
    %v1954 = vmul.f32 1.0, %v1953
    %v1955 = vtanh.pop %v1946
    %v1956 = vmul.f32 %v1954, %v1752
    %1958 = vrot.lane.b32.xlu0 %v1955, 64
    %v1959 = vpop.permute.xlu0 %1958
    %v1961 = vmul.f32 %v1954, %v1959
    %1963 = vrot.lane.b32.xlu0 %v1961, 32
    %v1964 = vpop.permute.xlu0 %1963
    %v1966 = vadd.f32 %v1956, %v1964
    %v1967 = vtanh.pop %v1966
    %1969 = vrot.lane.b32.xlu0 %v1967, 64
    %v1970 = vpop.permute.xlu0 %1969
    %v1972 = vmul.f32 %v1954, %v1970
    %v1973 = vld [vmem:[#allocation10] sm:$0xff]
    %v1974 = vld [vmem:[#allocation10 + $0x8] sm:$0xff]
    %v1975 = vld [vmem:[#allocation10 + $0x10] sm:$0xff]
    %v1976 = vld [vmem:[#allocation10 + $0x18] sm:$0xff]
    %v1977 = vld [vmem:[#allocation13] sm:$0x1]
    %v1979 = vlaneseq
    %v1980 = vshrl.u32 %v1979, 7
    %v1981 = vsub.s32 0, %v1980
    %v1982 = vrot.slane %v1977, %v1981
    %v1984 = vrot.slane %v1864, 6
    %1985 = vrot.lane.b32.xlu0 %v1984, 32
    %v1986 = vpop.permute.xlu0 %1985
    %v1987 = vsel %vm278, %v1986, 0
    %1989 = vmatprep.subr.mxu0 0.0
    %1990 = vmatpush1.msra.mxu0 %v1973
    %1991 = vmatprep.subr.mxu0 0.0
    %1992 = vmatpush1.msra.mxu0 %v1974
    %1993 = vmatprep.subr.mxu0 0.0
    %1994 = vmatpush1.msra.mxu0 %v1975
    %1995 = vmatprep.subr.mxu0 0.0
    %1996 = vmatpush1.msra.mxu0 %v1976
    %1997 = vmatprep.subr.mxu0 0.0
    %1998 = vmatpush1.msra.mxu0 0.0
    %1999 = vmatprep.subr.mxu0 0.0
    %2000 = vmatpush1.msra.mxu0 0.0
    %2001 = vmatprep.subr.mxu0 0.0
    %2002 = vmatpush1.msra.mxu0 0.0
    %2003 = vmatprep.subr.mxu0 0.0
    %2004 = vmatpush1.msra.mxu0 0.0
    %2005 = vmatprep.subr.mxu0 0.0
    %2006 = vmatpush1.msra.mxu0 0.0
    %2007 = vmatprep.subr.mxu0 0.0
    %2008 = vmatpush1.msra.mxu0 0.0
    %2009 = vmatprep.subr.mxu0 0.0
    %2010 = vmatpush1.msra.mxu0 0.0
    %2011 = vmatprep.subr.mxu0 0.0
    %2012 = vmatpush1.msra.mxu0 0.0
    %2013 = vmatprep.subr.mxu0 0.0
    %2014 = vmatpush1.msra.mxu0 0.0
    %2015 = vmatprep.subr.mxu0 0.0
    %2016 = vmatpush1.msra.mxu0 0.0
    %2017 = vmatprep.subr.mxu0 0.0
    %2018 = vmatpush1.msra.mxu0 0.0
    %2019 = vmatprep.subr.mxu0 0.0
    %2020 = vmatpush1.msra.mxu0 0.0
    %2021 = vmatprep.subr.mxu0 0.0
    %2022 = vmatpush1.msra.mxu0 0.0
    %2023 = vmatprep.subr.mxu0 0.0
    %2024 = vmatpush1.msra.mxu0 0.0
    %2025 = vmatprep.subr.mxu0 0.0
    %2026 = vmatpush1.msra.mxu0 0.0
    %2027 = vmatprep.subr.mxu0 0.0
    %2028 = vmatpush1.msra.mxu0 0.0
    %2029 = vmatprep.subr.mxu0 0.0
    %2030 = vmatpush1.msra.mxu0 0.0
    %2031 = vmatprep.subr.mxu0 0.0
    %2032 = vmatpush1.msra.mxu0 0.0
    %2033 = vmatprep.subr.mxu0 0.0
    %2034 = vmatpush1.msra.mxu0 0.0
    %2035 = vmatprep.subr.mxu0 0.0
    %2036 = vmatpush1.msra.mxu0 0.0
    %2037 = vmatprep.subr.mxu0 0.0
    %2038 = vmatpush1.msra.mxu0 0.0
    %2039 = vmatprep.subr.mxu0 0.0
    %2040 = vmatpush1.msra.mxu0 0.0
    %2041 = vmatprep.subr.mxu0 0.0
    %2042 = vmatpush1.msra.mxu0 0.0
    %2043 = vmatprep.subr.mxu0 0.0
    %2044 = vmatpush1.msra.mxu0 0.0
    %2045 = vmatprep.subr.mxu0 0.0
    %2046 = vmatpush1.msra.mxu0 0.0
    %2047 = vmatprep.subr.mxu0 0.0
    %2048 = vmatpush1.msra.mxu0 0.0
    %2049 = vmatprep.subr.mxu0 0.0
    %2050 = vmatpush1.msra.mxu0 0.0
    %2051 = vmatprep.subr.mxu0 0.0
    %2052 = vmatpush1.msra.mxu0 0.0
    %2053 = vmatprep.mubr.f32.mxu0 0.0
    %2054 = vmatmul.mubr.f32.gmra.mrb[0].mxu0 %v1987
    %v2055 = vpop.f32.mrb[0].mxu0
    %v2056 = vadd.f32 %v1982, %v2055
    %v2057 = vpop.f32.mrb[0].mxu0
    %2058 = vdwg.mxu0
    %2060 = vrot.lane.b32.xlu0 %v1972, 32
    %v2061 = vpop.permute.xlu0 %2060
    %v2062 = vsel %vm278, %v2061, 0
    %2064 = vmatprep.subr.mxu0 0.0
    %2065 = vmatpush1.msra.mxu0 %v1973
    %2066 = vmatprep.subr.mxu0 0.0
    %2067 = vmatpush1.msra.mxu0 %v1974
    %2068 = vmatprep.subr.mxu0 0.0
    %2069 = vmatpush1.msra.mxu0 %v1975
    %2070 = vmatprep.subr.mxu0 0.0
    %2071 = vmatpush1.msra.mxu0 %v1976
    %2072 = vmatprep.subr.mxu0 0.0
    %2073 = vmatpush1.msra.mxu0 0.0
    %2074 = vmatprep.subr.mxu0 0.0
    %2075 = vmatpush1.msra.mxu0 0.0
    %2076 = vmatprep.subr.mxu0 0.0
    %2077 = vmatpush1.msra.mxu0 0.0
    %2078 = vmatprep.subr.mxu0 0.0
    %2079 = vmatpush1.msra.mxu0 0.0
    %2080 = vmatprep.subr.mxu0 0.0
    %2081 = vmatpush1.msra.mxu0 0.0
    %2082 = vmatprep.subr.mxu0 0.0
    %2083 = vmatpush1.msra.mxu0 0.0
    %2084 = vmatprep.subr.mxu0 0.0
    %2085 = vmatpush1.msra.mxu0 0.0
    %2086 = vmatprep.subr.mxu0 0.0
    %2087 = vmatpush1.msra.mxu0 0.0
    %2088 = vmatprep.subr.mxu0 0.0
    %2089 = vmatpush1.msra.mxu0 0.0
    %2090 = vmatprep.subr.mxu0 0.0
    %2091 = vmatpush1.msra.mxu0 0.0
    %2092 = vmatprep.subr.mxu0 0.0
    %2093 = vmatpush1.msra.mxu0 0.0
    %2094 = vmatprep.subr.mxu0 0.0
    %2095 = vmatpush1.msra.mxu0 0.0
    %2096 = vmatprep.subr.mxu0 0.0
    %2097 = vmatpush1.msra.mxu0 0.0
    %2098 = vmatprep.subr.mxu0 0.0
    %2099 = vmatpush1.msra.mxu0 0.0
    %2100 = vmatprep.subr.mxu0 0.0
    %2101 = vmatpush1.msra.mxu0 0.0
    %2102 = vmatprep.subr.mxu0 0.0
    %2103 = vmatpush1.msra.mxu0 0.0
    %2104 = vmatprep.subr.mxu0 0.0
    %2105 = vmatpush1.msra.mxu0 0.0
    %2106 = vmatprep.subr.mxu0 0.0
    %2107 = vmatpush1.msra.mxu0 0.0
    %2108 = vmatprep.subr.mxu0 0.0
    %2109 = vmatpush1.msra.mxu0 0.0
    %2110 = vmatprep.subr.mxu0 0.0
    %2111 = vmatpush1.msra.mxu0 0.0
    %2112 = vmatprep.subr.mxu0 0.0
    %2113 = vmatpush1.msra.mxu0 0.0
    %2114 = vmatprep.subr.mxu0 0.0
    %2115 = vmatpush1.msra.mxu0 0.0
    %2116 = vmatprep.subr.mxu0 0.0
    %2117 = vmatpush1.msra.mxu0 0.0
    %2118 = vmatprep.subr.mxu0 0.0
    %2119 = vmatpush1.msra.mxu0 0.0
    %2120 = vmatprep.subr.mxu0 0.0
    %2121 = vmatpush1.msra.mxu0 0.0
    %2122 = vmatprep.subr.mxu0 0.0
    %2123 = vmatpush1.msra.mxu0 0.0
    %2124 = vmatprep.subr.mxu0 0.0
    %2125 = vmatpush1.msra.mxu0 0.0
    %2126 = vmatprep.subr.mxu0 0.0
    %2127 = vmatpush1.msra.mxu0 0.0
    %2128 = vmatprep.mubr.f32.mxu0 0.0
    %2129 = vmatmul.mubr.f32.gmra.mrb[0].mxu0 %v2062
    %v2130 = vpop.f32.mrb[0].mxu0
    %v2131 = vadd.f32 %v1982, %v2130
    %v2132 = vpop.f32.mrb[0].mxu0
    %2133 = vdwg.mxu0
    %v2134 = vld [vmem:[#allocation11] sm:$0xff]
    %v2135 = vld [vmem:[#allocation11 + $0x8] sm:$0xff]
    %v2136 = vld [vmem:[#allocation11 + $0x10] sm:$0xff]
    %v2137 = vld [vmem:[#allocation11 + $0x18] sm:$0xff]
    %v2138 = vld [vmem:[%s9] sm:$0xff]
    %v2139 = vld [vmem:[%s9 + $0x8] sm:$0xff]
    %v2140 = vld [vmem:[%s9 + $0x10] sm:$0xff]
    %v2141 = vld [vmem:[%s9 + $0x18] sm:$0xff]
    %v2142 = vld [vmem:[%s9 + $0x20] sm:$0xff]
    %v2143 = vld [vmem:[%s9 + $0x28] sm:$0xff]
    %v2144 = vld [vmem:[%s9 + $0x30] sm:$0xff]
    %v2145 = vld [vmem:[%s9 + $0x38] sm:$0xff]
    %v2146 = vld [vmem:[%s10] sm:$0x1]
    %v2147 = vld [vmem:[#allocation14] sm:$0xff]
    %v2148 = vld [vmem:[#allocation14 + $0x8] sm:$0xff]
    %v2149 = vld [vmem:[#allocation14 + $0x10] sm:$0xff]
    %v2150 = vld [vmem:[#allocation14 + $0x18] sm:$0xff]
    %v2151 = vld [vmem:[%s12] sm:$0x1]
    %2152 = vmatprep.subr.mxu0 0.0
    %2153 = vmatpush1.msra.mxu0 %v2134
    %2154 = vmatprep.subr.mxu0 0.0
    %2155 = vmatpush1.msra.mxu0 %v2135
    %2156 = vmatprep.subr.mxu0 0.0
    %2157 = vmatpush1.msra.mxu0 %v2136
    %2158 = vmatprep.subr.mxu0 0.0
    %2159 = vmatpush1.msra.mxu0 %v2137
    %2160 = vmatprep.subr.mxu0 0.0
    %2161 = vmatpush1.msra.mxu0 0.0
    %2162 = vmatprep.subr.mxu0 0.0
    %2163 = vmatpush1.msra.mxu0 0.0
    %2164 = vmatprep.subr.mxu0 0.0
    %2165 = vmatpush1.msra.mxu0 0.0
    %2166 = vmatprep.subr.mxu0 0.0
    %2167 = vmatpush1.msra.mxu0 0.0
    %2168 = vmatprep.subr.mxu0 0.0
    %2169 = vmatpush1.msra.mxu0 0.0
    %2170 = vmatprep.subr.mxu0 0.0
    %2171 = vmatpush1.msra.mxu0 0.0
    %2172 = vmatprep.subr.mxu0 0.0
    %2173 = vmatpush1.msra.mxu0 0.0
    %2174 = vmatprep.subr.mxu0 0.0
    %2175 = vmatpush1.msra.mxu0 0.0
    %2176 = vmatprep.subr.mxu0 0.0
    %2177 = vmatpush1.msra.mxu0 0.0
    %2178 = vmatprep.subr.mxu0 0.0
    %2179 = vmatpush1.msra.mxu0 0.0
    %2180 = vmatprep.subr.mxu0 0.0
    %2181 = vmatpush1.msra.mxu0 0.0
    %2182 = vmatprep.subr.mxu0 0.0
    %2183 = vmatpush1.msra.mxu0 0.0
    %2184 = vmatprep.subr.mxu0 0.0
    %2185 = vmatpush1.msra.mxu0 0.0
    %2186 = vmatprep.subr.mxu0 0.0
    %2187 = vmatpush1.msra.mxu0 0.0
    %2188 = vmatprep.subr.mxu0 0.0
    %2189 = vmatpush1.msra.mxu0 0.0
    %2190 = vmatprep.subr.mxu0 0.0
    %2191 = vmatpush1.msra.mxu0 0.0
    %2192 = vmatprep.subr.mxu0 0.0
    %2193 = vmatpush1.msra.mxu0 0.0
    %2194 = vmatprep.subr.mxu0 0.0
    %2195 = vmatpush1.msra.mxu0 0.0
    %2196 = vmatprep.subr.mxu0 0.0
    %2197 = vmatpush1.msra.mxu0 0.0
    %2198 = vmatprep.subr.mxu0 0.0
    %2199 = vmatpush1.msra.mxu0 0.0
    %2200 = vmatprep.subr.mxu0 0.0
    %2201 = vmatpush1.msra.mxu0 0.0
    %2202 = vmatprep.subr.mxu0 0.0
    %2203 = vmatpush1.msra.mxu0 0.0
    %2204 = vmatprep.subr.mxu0 0.0
    %2205 = vmatpush1.msra.mxu0 0.0
    %2206 = vmatprep.subr.mxu0 0.0
    %2207 = vmatpush1.msra.mxu0 0.0
    %2208 = vmatprep.subr.mxu0 0.0
    %2209 = vmatpush1.msra.mxu0 0.0
    %2210 = vmatprep.subr.mxu0 0.0
    %2211 = vmatpush1.msra.mxu0 0.0
    %2212 = vmatprep.subr.mxu0 0.0
    %2213 = vmatpush1.msra.mxu0 0.0
    %2214 = vmatprep.subr.mxu0 0.0
    %2215 = vmatpush1.msra.mxu0 0.0
    %2216 = vmatprep.mubr.f32.mxu0 0.0
    %2217 = vmatmul.mubr.f32.gmra.mrb[0].mxu0 %v280
    %v2218 = vpop.f32.mrb[0].mxu0
    %v2219 = vadd.f32 0.0, %v2218
    %v2220 = vpop.f32.mrb[0].mxu0
    %2221 = vdwg.mxu0
    %v2222 = vadd.f32 %v2056, %v2219
    %v2223 = vxor.u32 %v2222, 2147483648
    %v2224 = vmul.f32 %v2223, 1.442695
    %v2225 = vpow.pop %v2224
    %v2226 = vadd.f32 %v2225, 1.0
    %v2227 = vrcp.pop %v2226
    %v2228 = vmul.f32 1.0, %v2227
    %v2229 = vtanh.pop %v2222
    %v2230 = vmul.f32 %v2228, 0.0
    %2232 = vrot.lane.b32.xlu0 %v2229, 64
    %v2233 = vpop.permute.xlu0 %2232
    %v2235 = vmul.f32 %v2228, %v2233
    %2237 = vrot.lane.b32.xlu0 %v2235, 32
    %v2238 = vpop.permute.xlu0 %2237
    %v2240 = vadd.f32 %v2230, %v2238
    %v2241 = vtanh.pop %v2240
    %2243 = vrot.lane.b32.xlu0 %v2241, 64
    %v2244 = vpop.permute.xlu0 %2243
    %v2246 = vmul.f32 %v2228, %v2244
    %2248 = vrot.lane.b32.xlu0 %v2246, 32
    %v2249 = vpop.permute.xlu0 %2248
    %v2251 = vsel %vm278, %v2249, 0.0
    %v2253 = vlaneseq
    %v2254 = vshrl.u32 %v2253, 7
    %v2255 = vsub.s32 0, %v2254
    %v2256 = vrot.slane %v2146, %v2255
    %v2259 = vsel %vm388, %v2251, 0
    %2261 = vmatprep.subr.mxu0 0.0
    %2262 = vmatpush1.msra.mxu0 %v2138
    %2263 = vmatprep.subr.mxu0 0.0
    %2264 = vmatpush1.msra.mxu0 %v2139
    %2265 = vmatprep.subr.mxu0 0.0
    %2266 = vmatpush1.msra.mxu0 %v2140
    %2267 = vmatprep.subr.mxu0 0.0
    %2268 = vmatpush1.msra.mxu0 %v2141
    %2269 = vmatprep.subr.mxu0 0.0
    %2270 = vmatpush1.msra.mxu0 %v2142
    %2271 = vmatprep.subr.mxu0 0.0
    %2272 = vmatpush1.msra.mxu0 %v2143
    %2273 = vmatprep.subr.mxu0 0.0
    %2274 = vmatpush1.msra.mxu0 %v2144
    %2275 = vmatprep.subr.mxu0 0.0
    %2276 = vmatpush1.msra.mxu0 %v2145
    %2277 = vmatprep.subr.mxu0 0.0
    %2278 = vmatpush1.msra.mxu0 0.0
    %2279 = vmatprep.subr.mxu0 0.0
    %2280 = vmatpush1.msra.mxu0 0.0
    %2281 = vmatprep.subr.mxu0 0.0
    %2282 = vmatpush1.msra.mxu0 0.0
    %2283 = vmatprep.subr.mxu0 0.0
    %2284 = vmatpush1.msra.mxu0 0.0
    %2285 = vmatprep.subr.mxu0 0.0
    %2286 = vmatpush1.msra.mxu0 0.0
    %2287 = vmatprep.subr.mxu0 0.0
    %2288 = vmatpush1.msra.mxu0 0.0
    %2289 = vmatprep.subr.mxu0 0.0
    %2290 = vmatpush1.msra.mxu0 0.0
    %2291 = vmatprep.subr.mxu0 0.0
    %2292 = vmatpush1.msra.mxu0 0.0
    %2293 = vmatprep.subr.mxu0 0.0
    %2294 = vmatpush1.msra.mxu0 0.0
    %2295 = vmatprep.subr.mxu0 0.0
    %2296 = vmatpush1.msra.mxu0 0.0
    %2297 = vmatprep.subr.mxu0 0.0
    %2298 = vmatpush1.msra.mxu0 0.0
    %2299 = vmatprep.subr.mxu0 0.0
    %2300 = vmatpush1.msra.mxu0 0.0
    %2301 = vmatprep.subr.mxu0 0.0
    %2302 = vmatpush1.msra.mxu0 0.0
    %2303 = vmatprep.subr.mxu0 0.0
    %2304 = vmatpush1.msra.mxu0 0.0
    %2305 = vmatprep.subr.mxu0 0.0
    %2306 = vmatpush1.msra.mxu0 0.0
    %2307 = vmatprep.subr.mxu0 0.0
    %2308 = vmatpush1.msra.mxu0 0.0
    %2309 = vmatprep.subr.mxu0 0.0
    %2310 = vmatpush1.msra.mxu0 0.0
    %2311 = vmatprep.subr.mxu0 0.0
    %2312 = vmatpush1.msra.mxu0 0.0
    %2313 = vmatprep.subr.mxu0 0.0
    %2314 = vmatpush1.msra.mxu0 0.0
    %2315 = vmatprep.subr.mxu0 0.0
    %2316 = vmatpush1.msra.mxu0 0.0
    %2317 = vmatprep.subr.mxu0 0.0
    %2318 = vmatpush1.msra.mxu0 0.0
    %2319 = vmatprep.subr.mxu0 0.0
    %2320 = vmatpush1.msra.mxu0 0.0
    %2321 = vmatprep.subr.mxu0 0.0
    %2322 = vmatpush1.msra.mxu0 0.0
    %2323 = vmatprep.subr.mxu0 0.0
    %2324 = vmatpush1.msra.mxu0 0.0
    %2325 = vmatprep.mubr.f32.mxu0 0.0
    %2326 = vmatmul.mubr.f32.gmra.mrb[0].mxu0 %v2259
    %v2327 = vpop.f32.mrb[0].mxu0
    %v2328 = vadd.f32 %v2256, %v2327
    %v2329 = vpop.f32.mrb[0].mxu0
    %2330 = vdwg.mxu0
    %v2331 = vxor.u32 %v2328, 2147483648
    %v2332 = vmul.f32 %v2331, 1.442695
    %v2333 = vpow.pop %v2332
    %v2334 = vadd.f32 %v2333, 1.0
    %v2335 = vrcp.pop %v2334
    %v2336 = vmul.f32 1.0, %v2335
    %v2337 = vtanh.pop %v2328
    %v2338 = vmul.f32 %v2336, 0.0
    %2340 = vrot.lane.b32.xlu0 %v2337, 64
    %v2341 = vpop.permute.xlu0 %2340
    %v2343 = vmul.f32 %v2336, %v2341
    %2345 = vrot.lane.b32.xlu0 %v2343, 32
    %v2346 = vpop.permute.xlu0 %2345
    %v2348 = vadd.f32 %v2338, %v2346
    %v2349 = vtanh.pop %v2348
    %2351 = vrot.lane.b32.xlu0 %v2349, 64
    %v2352 = vpop.permute.xlu0 %2351
    %v2354 = vmul.f32 %v2336, %v2352
    %v2356 = vlaneseq
    %v2357 = vshrl.u32 %v2356, 7
    %v2358 = vsub.s32 0, %v2357
    %v2359 = vrot.slane %v2151, %v2358
    %2362 = vrot.lane.b32.xlu0 %v2354, 32
    %v2363 = vpop.permute.xlu0 %2362
    %v2364 = vsel %vm278, %v2363, 0
    %2366 = vmatprep.subr.mxu0 0.0
    %2367 = vmatpush1.msra.mxu0 %v2147
    %2368 = vmatprep.subr.mxu0 0.0
    %2369 = vmatpush1.msra.mxu0 %v2148
    %2370 = vmatprep.subr.mxu0 0.0
    %2371 = vmatpush1.msra.mxu0 %v2149
    %2372 = vmatprep.subr.mxu0 0.0
    %2373 = vmatpush1.msra.mxu0 %v2150
    %2374 = vmatprep.subr.mxu0 0.0
    %2375 = vmatpush1.msra.mxu0 0.0
    %2376 = vmatprep.subr.mxu0 0.0
    %2377 = vmatpush1.msra.mxu0 0.0
    %2378 = vmatprep.subr.mxu0 0.0
    %2379 = vmatpush1.msra.mxu0 0.0
    %2380 = vmatprep.subr.mxu0 0.0
    %2381 = vmatpush1.msra.mxu0 0.0
    %2382 = vmatprep.subr.mxu0 0.0
    %2383 = vmatpush1.msra.mxu0 0.0
    %2384 = vmatprep.subr.mxu0 0.0
    %2385 = vmatpush1.msra.mxu0 0.0
    %2386 = vmatprep.subr.mxu0 0.0
    %2387 = vmatpush1.msra.mxu0 0.0
    %2388 = vmatprep.subr.mxu0 0.0
    %2389 = vmatpush1.msra.mxu0 0.0
    %2390 = vmatprep.subr.mxu0 0.0
    %2391 = vmatpush1.msra.mxu0 0.0
    %2392 = vmatprep.subr.mxu0 0.0
    %2393 = vmatpush1.msra.mxu0 0.0
    %2394 = vmatprep.subr.mxu0 0.0
    %2395 = vmatpush1.msra.mxu0 0.0
    %2396 = vmatprep.subr.mxu0 0.0
    %2397 = vmatpush1.msra.mxu0 0.0
    %2398 = vmatprep.subr.mxu0 0.0
    %2399 = vmatpush1.msra.mxu0 0.0
    %2400 = vmatprep.subr.mxu0 0.0
    %2401 = vmatpush1.msra.mxu0 0.0
    %2402 = vmatprep.subr.mxu0 0.0
    %2403 = vmatpush1.msra.mxu0 0.0
    %2404 = vmatprep.subr.mxu0 0.0
    %2405 = vmatpush1.msra.mxu0 0.0
    %2406 = vmatprep.subr.mxu0 0.0
    %2407 = vmatpush1.msra.mxu0 0.0
    %2408 = vmatprep.subr.mxu0 0.0
    %2409 = vmatpush1.msra.mxu0 0.0
    %2410 = vmatprep.subr.mxu0 0.0
    %2411 = vmatpush1.msra.mxu0 0.0
    %2412 = vmatprep.subr.mxu0 0.0
    %2413 = vmatpush1.msra.mxu0 0.0
    %2414 = vmatprep.subr.mxu0 0.0
    %2415 = vmatpush1.msra.mxu0 0.0
    %2416 = vmatprep.subr.mxu0 0.0
    %2417 = vmatpush1.msra.mxu0 0.0
    %2418 = vmatprep.subr.mxu0 0.0
    %2419 = vmatpush1.msra.mxu0 0.0
    %2420 = vmatprep.subr.mxu0 0.0
    %2421 = vmatpush1.msra.mxu0 0.0
    %2422 = vmatprep.subr.mxu0 0.0
    %2423 = vmatpush1.msra.mxu0 0.0
    %2424 = vmatprep.subr.mxu0 0.0
    %2425 = vmatpush1.msra.mxu0 0.0
    %2426 = vmatprep.subr.mxu0 0.0
    %2427 = vmatpush1.msra.mxu0 0.0
    %2428 = vmatprep.subr.mxu0 0.0
    %2429 = vmatpush1.msra.mxu0 0.0
    %2430 = vmatprep.mubr.f32.mxu0 0.0
    %2431 = vmatmul.mubr.f32.gmra.mrb[0].mxu0 %v2364
    %v2432 = vpop.f32.mrb[0].mxu0
    %v2433 = vadd.f32 %v2359, %v2432
    %v2434 = vpop.f32.mrb[0].mxu0
    %2435 = vdwg.mxu0
    %2436 = vst [vmem:[%s15] sm:$0x3] %v2433
    %v2437 = vld [vmem:[#allocation16] sm:$0xff]
    %v2438 = vld [vmem:[#allocation16 + $0x8] sm:$0xff]
    %v2439 = vld [vmem:[#allocation16 + $0x10] sm:$0xff]
    %v2440 = vld [vmem:[#allocation16 + $0x18] sm:$0xff]
    %v2441 = vsel %vm278, %v2249, 0
    %2443 = vmatprep.subr.mxu0 0.0
    %2444 = vmatpush1.msra.mxu0 %v2134
    %2445 = vmatprep.subr.mxu0 0.0
    %2446 = vmatpush1.msra.mxu0 %v2135
    %2447 = vmatprep.subr.mxu0 0.0
    %2448 = vmatpush1.msra.mxu0 %v2136
    %2449 = vmatprep.subr.mxu0 0.0
    %2450 = vmatpush1.msra.mxu0 %v2137
    %2451 = vmatprep.subr.mxu0 0.0
    %2452 = vmatpush1.msra.mxu0 0.0
    %2453 = vmatprep.subr.mxu0 0.0
    %2454 = vmatpush1.msra.mxu0 0.0
    %2455 = vmatprep.subr.mxu0 0.0
    %2456 = vmatpush1.msra.mxu0 0.0
    %2457 = vmatprep.subr.mxu0 0.0
    %2458 = vmatpush1.msra.mxu0 0.0
    %2459 = vmatprep.subr.mxu0 0.0
    %2460 = vmatpush1.msra.mxu0 0.0
    %2461 = vmatprep.subr.mxu0 0.0
    %2462 = vmatpush1.msra.mxu0 0.0
    %2463 = vmatprep.subr.mxu0 0.0
    %2464 = vmatpush1.msra.mxu0 0.0
    %2465 = vmatprep.subr.mxu0 0.0
    %2466 = vmatpush1.msra.mxu0 0.0
    %2467 = vmatprep.subr.mxu0 0.0
    %2468 = vmatpush1.msra.mxu0 0.0
    %2469 = vmatprep.subr.mxu0 0.0
    %2470 = vmatpush1.msra.mxu0 0.0
    %2471 = vmatprep.subr.mxu0 0.0
    %2472 = vmatpush1.msra.mxu0 0.0
    %2473 = vmatprep.subr.mxu0 0.0
    %2474 = vmatpush1.msra.mxu0 0.0
    %2475 = vmatprep.subr.mxu0 0.0
    %2476 = vmatpush1.msra.mxu0 0.0
    %2477 = vmatprep.subr.mxu0 0.0
    %2478 = vmatpush1.msra.mxu0 0.0
    %2479 = vmatprep.subr.mxu0 0.0
    %2480 = vmatpush1.msra.mxu0 0.0
    %2481 = vmatprep.subr.mxu0 0.0
    %2482 = vmatpush1.msra.mxu0 0.0
    %2483 = vmatprep.subr.mxu0 0.0
    %2484 = vmatpush1.msra.mxu0 0.0
    %2485 = vmatprep.subr.mxu0 0.0
    %2486 = vmatpush1.msra.mxu0 0.0
    %2487 = vmatprep.subr.mxu0 0.0
    %2488 = vmatpush1.msra.mxu0 0.0
    %2489 = vmatprep.subr.mxu0 0.0
    %2490 = vmatpush1.msra.mxu0 0.0
    %2491 = vmatprep.subr.mxu0 0.0
    %2492 = vmatpush1.msra.mxu0 0.0
    %2493 = vmatprep.subr.mxu0 0.0
    %2494 = vmatpush1.msra.mxu0 0.0
    %2495 = vmatprep.subr.mxu0 0.0
    %2496 = vmatpush1.msra.mxu0 0.0
    %2497 = vmatprep.subr.mxu0 0.0
    %2498 = vmatpush1.msra.mxu0 0.0
    %2499 = vmatprep.subr.mxu0 0.0
    %2500 = vmatpush1.msra.mxu0 0.0
    %2501 = vmatprep.subr.mxu0 0.0
    %2502 = vmatpush1.msra.mxu0 0.0
    %2503 = vmatprep.subr.mxu0 0.0
    %2504 = vmatpush1.msra.mxu0 0.0
    %2505 = vmatprep.subr.mxu0 0.0
    %2506 = vmatpush1.msra.mxu0 0.0
    %2507 = vmatprep.mubr.f32.mxu0 0.0
    %2508 = vmatmul.mubr.f32.gmra.mrb[0].mxu0 %v2441
    %v2509 = vpop.f32.mrb[0].mxu0
    %v2510 = vadd.f32 0.0, %v2509
    %v2511 = vpop.f32.mrb[0].mxu0
    %2512 = vdwg.mxu0
    %v2513 = vadd.f32 %v2131, %v2510
    %v2514 = vxor.u32 %v2513, 2147483648
    %v2515 = vmul.f32 %v2514, 1.442695
    %v2516 = vpow.pop %v2515
    %v2517 = vadd.f32 %v2516, 1.0
    %v2518 = vrcp.pop %v2517
    %v2519 = vmul.f32 1.0, %v2518
    %v2520 = vtanh.pop %v2513
    %v2521 = vmul.f32 %v2519, %v2240
    %2523 = vrot.lane.b32.xlu0 %v2520, 64
    %v2524 = vpop.permute.xlu0 %2523
    %v2526 = vmul.f32 %v2519, %v2524
    %2528 = vrot.lane.b32.xlu0 %v2526, 32
    %v2529 = vpop.permute.xlu0 %2528
    %v2531 = vadd.f32 %v2521, %v2529
    %v2532 = vtanh.pop %v2531
    %2534 = vrot.lane.b32.xlu0 %v2532, 64
    %v2535 = vpop.permute.xlu0 %2534
    %v2537 = vmul.f32 %v2519, %v2535
    %2539 = vrot.lane.b32.xlu0 %v2537, 32
    %v2540 = vpop.permute.xlu0 %2539
    %2542 = vrot.lane.b32.xlu0 %v2354, 64
    %v2543 = vpop.permute.xlu0 %2542
    %v2545 = vsel %vm278, %v2540, %v2543
    %v2547 = vsel %vm388, %v2545, 0
    %2549 = vmatprep.subr.mxu0 0.0
    %2550 = vmatpush1.msra.mxu0 %v2138
    %2551 = vmatprep.subr.mxu0 0.0
    %2552 = vmatpush1.msra.mxu0 %v2139
    %2553 = vmatprep.subr.mxu0 0.0
    %2554 = vmatpush1.msra.mxu0 %v2140
    %2555 = vmatprep.subr.mxu0 0.0
    %2556 = vmatpush1.msra.mxu0 %v2141
    %2557 = vmatprep.subr.mxu0 0.0
    %2558 = vmatpush1.msra.mxu0 %v2142
    %2559 = vmatprep.subr.mxu0 0.0
    %2560 = vmatpush1.msra.mxu0 %v2143
    %2561 = vmatprep.subr.mxu0 0.0
    %2562 = vmatpush1.msra.mxu0 %v2144
    %2563 = vmatprep.subr.mxu0 0.0
    %2564 = vmatpush1.msra.mxu0 %v2145
    %2565 = vmatprep.subr.mxu0 0.0
    %2566 = vmatpush1.msra.mxu0 0.0
    %2567 = vmatprep.subr.mxu0 0.0
    %2568 = vmatpush1.msra.mxu0 0.0
    %2569 = vmatprep.subr.mxu0 0.0
    %2570 = vmatpush1.msra.mxu0 0.0
    %2571 = vmatprep.subr.mxu0 0.0
    %2572 = vmatpush1.msra.mxu0 0.0
    %2573 = vmatprep.subr.mxu0 0.0
    %2574 = vmatpush1.msra.mxu0 0.0
    %2575 = vmatprep.subr.mxu0 0.0
    %2576 = vmatpush1.msra.mxu0 0.0
    %2577 = vmatprep.subr.mxu0 0.0
    %2578 = vmatpush1.msra.mxu0 0.0
    %2579 = vmatprep.subr.mxu0 0.0
    %2580 = vmatpush1.msra.mxu0 0.0
    %2581 = vmatprep.subr.mxu0 0.0
    %2582 = vmatpush1.msra.mxu0 0.0
    %2583 = vmatprep.subr.mxu0 0.0
    %2584 = vmatpush1.msra.mxu0 0.0
    %2585 = vmatprep.subr.mxu0 0.0
    %2586 = vmatpush1.msra.mxu0 0.0
    %2587 = vmatprep.subr.mxu0 0.0
    %2588 = vmatpush1.msra.mxu0 0.0
    %2589 = vmatprep.subr.mxu0 0.0
    %2590 = vmatpush1.msra.mxu0 0.0
    %2591 = vmatprep.subr.mxu0 0.0
    %2592 = vmatpush1.msra.mxu0 0.0
    %2593 = vmatprep.subr.mxu0 0.0
    %2594 = vmatpush1.msra.mxu0 0.0
    %2595 = vmatprep.subr.mxu0 0.0
    %2596 = vmatpush1.msra.mxu0 0.0
    %2597 = vmatprep.subr.mxu0 0.0
    %2598 = vmatpush1.msra.mxu0 0.0
    %2599 = vmatprep.subr.mxu0 0.0
    %2600 = vmatpush1.msra.mxu0 0.0
    %2601 = vmatprep.subr.mxu0 0.0
    %2602 = vmatpush1.msra.mxu0 0.0
    %2603 = vmatprep.subr.mxu0 0.0
    %2604 = vmatpush1.msra.mxu0 0.0
    %2605 = vmatprep.subr.mxu0 0.0
    %2606 = vmatpush1.msra.mxu0 0.0
    %2607 = vmatprep.subr.mxu0 0.0
    %2608 = vmatpush1.msra.mxu0 0.0
    %2609 = vmatprep.subr.mxu0 0.0
    %2610 = vmatpush1.msra.mxu0 0.0
    %2611 = vmatprep.subr.mxu0 0.0
    %2612 = vmatpush1.msra.mxu0 0.0
    %2613 = vmatprep.mubr.f32.mxu0 0.0
    %2614 = vmatmul.mubr.f32.gmra.mrb[0].mxu0 %v2547
    %v2615 = vpop.f32.mrb[0].mxu0
    %v2616 = vadd.f32 %v2256, %v2615
    %v2617 = vpop.f32.mrb[0].mxu0
    %2618 = vdwg.mxu0
    %v2619 = vxor.u32 %v2616, 2147483648
    %v2620 = vmul.f32 %v2619, 1.442695
    %v2621 = vpow.pop %v2620
    %v2622 = vadd.f32 %v2621, 1.0
    %v2623 = vrcp.pop %v2622
    %v2624 = vmul.f32 1.0, %v2623
    %v2625 = vtanh.pop %v2616
    %v2626 = vmul.f32 %v2624, %v2348
    %2628 = vrot.lane.b32.xlu0 %v2625, 64
    %v2629 = vpop.permute.xlu0 %2628
    %v2631 = vmul.f32 %v2624, %v2629
    %2633 = vrot.lane.b32.xlu0 %v2631, 32
    %v2634 = vpop.permute.xlu0 %2633
    %v2636 = vadd.f32 %v2626, %v2634
    %v2637 = vtanh.pop %v2636
    %2639 = vrot.lane.b32.xlu0 %v2637, 64
    %v2640 = vpop.permute.xlu0 %2639
    %v2642 = vmul.f32 %v2624, %v2640
    %2644 = vrot.lane.b32.xlu0 %v2642, 32
    %v2645 = vpop.permute.xlu0 %2644
    %v2646 = vsel %vm278, %v2645, 0
    %2648 = vmatprep.subr.mxu0 0.0
    %2649 = vmatpush1.msra.mxu0 %v2147
    %2650 = vmatprep.subr.mxu0 0.0
    %2651 = vmatpush1.msra.mxu0 %v2148
    %2652 = vmatprep.subr.mxu0 0.0
    %2653 = vmatpush1.msra.mxu0 %v2149
    %2654 = vmatprep.subr.mxu0 0.0
    %2655 = vmatpush1.msra.mxu0 %v2150
    %2656 = vmatprep.subr.mxu0 0.0
    %2657 = vmatpush1.msra.mxu0 0.0
    %2658 = vmatprep.subr.mxu0 0.0
    %2659 = vmatpush1.msra.mxu0 0.0
    %2660 = vmatprep.subr.mxu0 0.0
    %2661 = vmatpush1.msra.mxu0 0.0
    %2662 = vmatprep.subr.mxu0 0.0
    %2663 = vmatpush1.msra.mxu0 0.0
    %2664 = vmatprep.subr.mxu0 0.0
    %2665 = vmatpush1.msra.mxu0 0.0
    %2666 = vmatprep.subr.mxu0 0.0
    %2667 = vmatpush1.msra.mxu0 0.0
    %2668 = vmatprep.subr.mxu0 0.0
    %2669 = vmatpush1.msra.mxu0 0.0
    %2670 = vmatprep.subr.mxu0 0.0
    %2671 = vmatpush1.msra.mxu0 0.0
    %2672 = vmatprep.subr.mxu0 0.0
    %2673 = vmatpush1.msra.mxu0 0.0
    %2674 = vmatprep.subr.mxu0 0.0
    %2675 = vmatpush1.msra.mxu0 0.0
    %2676 = vmatprep.subr.mxu0 0.0
    %2677 = vmatpush1.msra.mxu0 0.0
    %2678 = vmatprep.subr.mxu0 0.0
    %2679 = vmatpush1.msra.mxu0 0.0
    %2680 = vmatprep.subr.mxu0 0.0
    %2681 = vmatpush1.msra.mxu0 0.0
    %2682 = vmatprep.subr.mxu0 0.0
    %2683 = vmatpush1.msra.mxu0 0.0
    %2684 = vmatprep.subr.mxu0 0.0
    %2685 = vmatpush1.msra.mxu0 0.0
    %2686 = vmatprep.subr.mxu0 0.0
    %2687 = vmatpush1.msra.mxu0 0.0
    %2688 = vmatprep.subr.mxu0 0.0
    %2689 = vmatpush1.msra.mxu0 0.0
    %2690 = vmatprep.subr.mxu0 0.0
    %2691 = vmatpush1.msra.mxu0 0.0
    %2692 = vmatprep.subr.mxu0 0.0
    %2693 = vmatpush1.msra.mxu0 0.0
    %2694 = vmatprep.subr.mxu0 0.0
    %2695 = vmatpush1.msra.mxu0 0.0
    %2696 = vmatprep.subr.mxu0 0.0
    %2697 = vmatpush1.msra.mxu0 0.0
    %2698 = vmatprep.subr.mxu0 0.0
    %2699 = vmatpush1.msra.mxu0 0.0
    %2700 = vmatprep.subr.mxu0 0.0
    %2701 = vmatpush1.msra.mxu0 0.0
    %2702 = vmatprep.subr.mxu0 0.0
    %2703 = vmatpush1.msra.mxu0 0.0
    %2704 = vmatprep.subr.mxu0 0.0
    %2705 = vmatpush1.msra.mxu0 0.0
    %2706 = vmatprep.subr.mxu0 0.0
    %2707 = vmatpush1.msra.mxu0 0.0
    %2708 = vmatprep.subr.mxu0 0.0
    %2709 = vmatpush1.msra.mxu0 0.0
    %2710 = vmatprep.subr.mxu0 0.0
    %2711 = vmatpush1.msra.mxu0 0.0
    %2712 = vmatprep.mubr.f32.mxu0 0.0
    %2713 = vmatmul.mubr.f32.gmra.mrb[0].mxu0 %v2646
    %v2714 = vpop.f32.mrb[0].mxu0
    %v2715 = vadd.f32 %v2359, %v2714
    %v2716 = vpop.f32.mrb[0].mxu0
    %2717 = vdwg.mxu0
    %s2718 = scalar_lea.vmem %s15, 2
    %2719 = vst [vmem:[%s2718] sm:$0x3] %v2715
    %s2720 = scalar_lea.vmem [#allocation16], 32
    %v2721 = vld [vmem:[%s2720] sm:$0xff]
    %v2722 = vld [vmem:[%s2720 + $0x8] sm:$0xff]
    %v2723 = vld [vmem:[%s2720 + $0x10] sm:$0xff]
    %v2724 = vld [vmem:[%s2720 + $0x18] sm:$0xff]
    %2725 = vmatprep.subr.mxu0 0.0
    %2726 = vmatpush1.msra.mxu0 %v2721
    %2727 = vmatprep.subr.mxu0 0.0
    %2728 = vmatpush1.msra.mxu0 %v2722
    %2729 = vmatprep.subr.mxu0 0.0
    %2730 = vmatpush1.msra.mxu0 %v2723
    %2731 = vmatprep.subr.mxu0 0.0
    %2732 = vmatpush1.msra.mxu0 %v2724
    %2733 = vmatprep.subr.mxu0 0.0
    %2734 = vmatpush1.msra.mxu0 0.0
    %2735 = vmatprep.subr.mxu0 0.0
    %2736 = vmatpush1.msra.mxu0 0.0
    %2737 = vmatprep.subr.mxu0 0.0
    %2738 = vmatpush1.msra.mxu0 0.0
    %2739 = vmatprep.subr.mxu0 0.0
    %2740 = vmatpush1.msra.mxu0 0.0
    %2741 = vmatprep.subr.mxu0 0.0
    %2742 = vmatpush1.msra.mxu0 0.0
    %2743 = vmatprep.subr.mxu0 0.0
    %2744 = vmatpush1.msra.mxu0 0.0
    %2745 = vmatprep.subr.mxu0 0.0
    %2746 = vmatpush1.msra.mxu0 0.0
    %2747 = vmatprep.subr.mxu0 0.0
    %2748 = vmatpush1.msra.mxu0 0.0
    %2749 = vmatprep.subr.mxu0 0.0
    %2750 = vmatpush1.msra.mxu0 0.0
    %2751 = vmatprep.subr.mxu0 0.0
    %2752 = vmatpush1.msra.mxu0 0.0
    %2753 = vmatprep.subr.mxu0 0.0
    %2754 = vmatpush1.msra.mxu0 0.0
    %2755 = vmatprep.subr.mxu0 0.0
    %2756 = vmatpush1.msra.mxu0 0.0
    %2757 = vmatprep.subr.mxu0 0.0
    %2758 = vmatpush1.msra.mxu0 0.0
    %2759 = vmatprep.subr.mxu0 0.0
    %2760 = vmatpush1.msra.mxu0 0.0
    %2761 = vmatprep.subr.mxu0 0.0
    %2762 = vmatpush1.msra.mxu0 0.0
    %2763 = vmatprep.subr.mxu0 0.0
    %2764 = vmatpush1.msra.mxu0 0.0
    %2765 = vmatprep.subr.mxu0 0.0
    %2766 = vmatpush1.msra.mxu0 0.0
    %2767 = vmatprep.subr.mxu0 0.0
    %2768 = vmatpush1.msra.mxu0 0.0
    %2769 = vmatprep.subr.mxu0 0.0
    %2770 = vmatpush1.msra.mxu0 0.0
    %2771 = vmatprep.subr.mxu0 0.0
    %2772 = vmatpush1.msra.mxu0 0.0
    %2773 = vmatprep.subr.mxu0 0.0
    %2774 = vmatpush1.msra.mxu0 0.0
    %2775 = vmatprep.subr.mxu0 0.0
    %2776 = vmatpush1.msra.mxu0 0.0
    %2777 = vmatprep.subr.mxu0 0.0
    %2778 = vmatpush1.msra.mxu0 0.0
    %2779 = vmatprep.subr.mxu0 0.0
    %2780 = vmatpush1.msra.mxu0 0.0
    %2781 = vmatprep.subr.mxu0 0.0
    %2782 = vmatpush1.msra.mxu0 0.0
    %2783 = vmatprep.subr.mxu0 0.0
    %2784 = vmatpush1.msra.mxu0 0.0
    %2785 = vmatprep.subr.mxu0 0.0
    %2786 = vmatpush1.msra.mxu0 0.0
    %2787 = vmatprep.subr.mxu0 0.0
    %2788 = vmatpush1.msra.mxu0 0.0
    %2789 = vmatprep.mubr.f32.mxu0 0.0
    %2790 = vmatmul.mubr.f32.gmra.mrb[0].mxu0 %v2646
    %v2791 = vpop.f32.mrb[0].mxu0
    %v2792 = vadd.f32 0.0, %v2791
    %v2793 = vpop.f32.mrb[0].mxu0
    %2794 = vdwg.mxu0
    %2795 = vmatprep.subr.mxu0 0.0
    %2796 = vmatpush1.msra.mxu0 %v2437
    %2797 = vmatprep.subr.mxu0 0.0
    %2798 = vmatpush1.msra.mxu0 %v2438
    %2799 = vmatprep.subr.mxu0 0.0
    %2800 = vmatpush1.msra.mxu0 %v2439
    %2801 = vmatprep.subr.mxu0 0.0
    %2802 = vmatpush1.msra.mxu0 %v2440
    %2803 = vmatprep.subr.mxu0 0.0
    %2804 = vmatpush1.msra.mxu0 0.0
    %2805 = vmatprep.subr.mxu0 0.0
    %2806 = vmatpush1.msra.mxu0 0.0
    %2807 = vmatprep.subr.mxu0 0.0
    %2808 = vmatpush1.msra.mxu0 0.0
    %2809 = vmatprep.subr.mxu0 0.0
    %2810 = vmatpush1.msra.mxu0 0.0
    %2811 = vmatprep.subr.mxu0 0.0
    %2812 = vmatpush1.msra.mxu0 0.0
    %2813 = vmatprep.subr.mxu0 0.0
    %2814 = vmatpush1.msra.mxu0 0.0
    %2815 = vmatprep.subr.mxu0 0.0
    %2816 = vmatpush1.msra.mxu0 0.0
    %2817 = vmatprep.subr.mxu0 0.0
    %2818 = vmatpush1.msra.mxu0 0.0
    %2819 = vmatprep.subr.mxu0 0.0
    %2820 = vmatpush1.msra.mxu0 0.0
    %2821 = vmatprep.subr.mxu0 0.0
    %2822 = vmatpush1.msra.mxu0 0.0
    %2823 = vmatprep.subr.mxu0 0.0
    %2824 = vmatpush1.msra.mxu0 0.0
    %2825 = vmatprep.subr.mxu0 0.0
    %2826 = vmatpush1.msra.mxu0 0.0
    %2827 = vmatprep.subr.mxu0 0.0
    %2828 = vmatpush1.msra.mxu0 0.0
    %2829 = vmatprep.subr.mxu0 0.0
    %2830 = vmatpush1.msra.mxu0 0.0
    %2831 = vmatprep.subr.mxu0 0.0
    %2832 = vmatpush1.msra.mxu0 0.0
    %2833 = vmatprep.subr.mxu0 0.0
    %2834 = vmatpush1.msra.mxu0 0.0
    %2835 = vmatprep.subr.mxu0 0.0
    %2836 = vmatpush1.msra.mxu0 0.0
    %2837 = vmatprep.subr.mxu0 0.0
    %2838 = vmatpush1.msra.mxu0 0.0
    %2839 = vmatprep.subr.mxu0 0.0
    %2840 = vmatpush1.msra.mxu0 0.0
    %2841 = vmatprep.subr.mxu0 0.0
    %2842 = vmatpush1.msra.mxu0 0.0
    %2843 = vmatprep.subr.mxu0 0.0
    %2844 = vmatpush1.msra.mxu0 0.0
    %2845 = vmatprep.subr.mxu0 0.0
    %2846 = vmatpush1.msra.mxu0 0.0
    %2847 = vmatprep.subr.mxu0 0.0
    %2848 = vmatpush1.msra.mxu0 0.0
    %2849 = vmatprep.subr.mxu0 0.0
    %2850 = vmatpush1.msra.mxu0 0.0
    %2851 = vmatprep.subr.mxu0 0.0
    %2852 = vmatpush1.msra.mxu0 0.0
    %2853 = vmatprep.subr.mxu0 0.0
    %2854 = vmatpush1.msra.mxu0 0.0
    %2855 = vmatprep.subr.mxu0 0.0
    %2856 = vmatpush1.msra.mxu0 0.0
    %2857 = vmatprep.subr.mxu0 0.0
    %2858 = vmatpush1.msra.mxu0 0.0
    %2859 = vmatprep.mubr.f32.mxu0 0.0
    %2860 = vmatmul.mubr.f32.gmra.mrb[0].mxu0 %v2364
    %v2861 = vpop.f32.mrb[0].mxu0
    %v2862 = vadd.f32 %v2792, %v2861
    %v2863 = vpop.f32.mrb[0].mxu0
    %2864 = vdwg.mxu0
    %v2865 = vsel %vm278, %v2540, 0
    %2867 = vmatprep.subr.mxu0 0.0
    %2868 = vmatpush1.msra.mxu0 %v2134
    %2869 = vmatprep.subr.mxu0 0.0
    %2870 = vmatpush1.msra.mxu0 %v2135
    %2871 = vmatprep.subr.mxu0 0.0
    %2872 = vmatpush1.msra.mxu0 %v2136
    %2873 = vmatprep.subr.mxu0 0.0
    %2874 = vmatpush1.msra.mxu0 %v2137
    %2875 = vmatprep.subr.mxu0 0.0
    %2876 = vmatpush1.msra.mxu0 0.0
    %2877 = vmatprep.subr.mxu0 0.0
    %2878 = vmatpush1.msra.mxu0 0.0
    %2879 = vmatprep.subr.mxu0 0.0
    %2880 = vmatpush1.msra.mxu0 0.0
    %2881 = vmatprep.subr.mxu0 0.0
    %2882 = vmatpush1.msra.mxu0 0.0
    %2883 = vmatprep.subr.mxu0 0.0
    %2884 = vmatpush1.msra.mxu0 0.0
    %2885 = vmatprep.subr.mxu0 0.0
    %2886 = vmatpush1.msra.mxu0 0.0
    %2887 = vmatprep.subr.mxu0 0.0
    %2888 = vmatpush1.msra.mxu0 0.0
    %2889 = vmatprep.subr.mxu0 0.0
    %2890 = vmatpush1.msra.mxu0 0.0
    %2891 = vmatprep.subr.mxu0 0.0
    %2892 = vmatpush1.msra.mxu0 0.0
    %2893 = vmatprep.subr.mxu0 0.0
    %2894 = vmatpush1.msra.mxu0 0.0
    %2895 = vmatprep.subr.mxu0 0.0
    %2896 = vmatpush1.msra.mxu0 0.0
    %2897 = vmatprep.subr.mxu0 0.0
    %2898 = vmatpush1.msra.mxu0 0.0
    %2899 = vmatprep.subr.mxu0 0.0
    %2900 = vmatpush1.msra.mxu0 0.0
    %2901 = vmatprep.subr.mxu0 0.0
    %2902 = vmatpush1.msra.mxu0 0.0
    %2903 = vmatprep.subr.mxu0 0.0
    %2904 = vmatpush1.msra.mxu0 0.0
    %2905 = vmatprep.subr.mxu0 0.0
    %2906 = vmatpush1.msra.mxu0 0.0
    %2907 = vmatprep.subr.mxu0 0.0
    %2908 = vmatpush1.msra.mxu0 0.0
    %2909 = vmatprep.subr.mxu0 0.0
    %2910 = vmatpush1.msra.mxu0 0.0
    %2911 = vmatprep.subr.mxu0 0.0
    %2912 = vmatpush1.msra.mxu0 0.0
    %2913 = vmatprep.subr.mxu0 0.0
    %2914 = vmatpush1.msra.mxu0 0.0
    %2915 = vmatprep.subr.mxu0 0.0
    %2916 = vmatpush1.msra.mxu0 0.0
    %2917 = vmatprep.subr.mxu0 0.0
    %2918 = vmatpush1.msra.mxu0 0.0
    %2919 = vmatprep.subr.mxu0 0.0
    %2920 = vmatpush1.msra.mxu0 0.0
    %2921 = vmatprep.subr.mxu0 0.0
    %2922 = vmatpush1.msra.mxu0 0.0
    %2923 = vmatprep.subr.mxu0 0.0
    %2924 = vmatpush1.msra.mxu0 0.0
    %2925 = vmatprep.subr.mxu0 0.0
    %2926 = vmatpush1.msra.mxu0 0.0
    %2927 = vmatprep.subr.mxu0 0.0
    %2928 = vmatpush1.msra.mxu0 0.0
    %2929 = vmatprep.subr.mxu0 0.0
    %2930 = vmatpush1.msra.mxu0 0.0
    %2931 = vmatprep.mubr.f32.mxu0 0.0
    %2932 = vmatmul.mubr.f32.gmra.mrb[0].mxu0 %v2865
    %v2933 = vpop.f32.mrb[0].mxu0
    %v2934 = vadd.f32 0.0, %v2933
    %v2935 = vpop.f32.mrb[0].mxu0
    %2936 = vdwg.mxu0
    %v2937 = vadd.f32 %v2056, %v2934
    %v2938 = vxor.u32 %v2937, 2147483648
    %v2939 = vmul.f32 %v2938, 1.442695
    %v2940 = vpow.pop %v2939
    %v2941 = vadd.f32 %v2940, 1.0
    %v2942 = vrcp.pop %v2941
    %v2943 = vmul.f32 1.0, %v2942
    %v2944 = vtanh.pop %v2937
    %v2945 = vmul.f32 %v2943, %v2531
    %2947 = vrot.lane.b32.xlu0 %v2944, 64
    %v2948 = vpop.permute.xlu0 %2947
    %v2950 = vmul.f32 %v2943, %v2948
    %2952 = vrot.lane.b32.xlu0 %v2950, 32
    %v2953 = vpop.permute.xlu0 %2952
    %v2955 = vadd.f32 %v2945, %v2953
    %v2956 = vtanh.pop %v2955
    %2958 = vrot.lane.b32.xlu0 %v2956, 64
    %v2959 = vpop.permute.xlu0 %2958
    %v2961 = vmul.f32 %v2943, %v2959
    %2963 = vrot.lane.b32.xlu0 %v2961, 32
    %v2964 = vpop.permute.xlu0 %2963
    %2966 = vrot.lane.b32.xlu0 %v2642, 64
    %v2967 = vpop.permute.xlu0 %2966
    %v2969 = vsel %vm278, %v2964, %v2967
    %v2971 = vsel %vm388, %v2969, 0
    %2973 = vmatprep.subr.mxu0 0.0
    %2974 = vmatpush1.msra.mxu0 %v2138
    %2975 = vmatprep.subr.mxu0 0.0
    %2976 = vmatpush1.msra.mxu0 %v2139
    %2977 = vmatprep.subr.mxu0 0.0
    %2978 = vmatpush1.msra.mxu0 %v2140
    %2979 = vmatprep.subr.mxu0 0.0
    %2980 = vmatpush1.msra.mxu0 %v2141
    %2981 = vmatprep.subr.mxu0 0.0
    %2982 = vmatpush1.msra.mxu0 %v2142
    %2983 = vmatprep.subr.mxu0 0.0
    %2984 = vmatpush1.msra.mxu0 %v2143
    %2985 = vmatprep.subr.mxu0 0.0
    %2986 = vmatpush1.msra.mxu0 %v2144
    %2987 = vmatprep.subr.mxu0 0.0
    %2988 = vmatpush1.msra.mxu0 %v2145
    %2989 = vmatprep.subr.mxu0 0.0
    %2990 = vmatpush1.msra.mxu0 0.0
    %2991 = vmatprep.subr.mxu0 0.0
    %2992 = vmatpush1.msra.mxu0 0.0
    %2993 = vmatprep.subr.mxu0 0.0
    %2994 = vmatpush1.msra.mxu0 0.0
    %2995 = vmatprep.subr.mxu0 0.0
    %2996 = vmatpush1.msra.mxu0 0.0
    %2997 = vmatprep.subr.mxu0 0.0
    %2998 = vmatpush1.msra.mxu0 0.0
    %2999 = vmatprep.subr.mxu0 0.0
    %3000 = vmatpush1.msra.mxu0 0.0
    %3001 = vmatprep.subr.mxu0 0.0
    %3002 = vmatpush1.msra.mxu0 0.0
    %3003 = vmatprep.subr.mxu0 0.0
    %3004 = vmatpush1.msra.mxu0 0.0
    %3005 = vmatprep.subr.mxu0 0.0
    %3006 = vmatpush1.msra.mxu0 0.0
    %3007 = vmatprep.subr.mxu0 0.0
    %3008 = vmatpush1.msra.mxu0 0.0
    %3009 = vmatprep.subr.mxu0 0.0
    %3010 = vmatpush1.msra.mxu0 0.0
    %3011 = vmatprep.subr.mxu0 0.0
    %3012 = vmatpush1.msra.mxu0 0.0
    %3013 = vmatprep.subr.mxu0 0.0
    %3014 = vmatpush1.msra.mxu0 0.0
    %3015 = vmatprep.subr.mxu0 0.0
    %3016 = vmatpush1.msra.mxu0 0.0
    %3017 = vmatprep.subr.mxu0 0.0
    %3018 = vmatpush1.msra.mxu0 0.0
    %3019 = vmatprep.subr.mxu0 0.0
    %3020 = vmatpush1.msra.mxu0 0.0
    %3021 = vmatprep.subr.mxu0 0.0
    %3022 = vmatpush1.msra.mxu0 0.0
    %3023 = vmatprep.subr.mxu0 0.0
    %3024 = vmatpush1.msra.mxu0 0.0
    %3025 = vmatprep.subr.mxu0 0.0
    %3026 = vmatpush1.msra.mxu0 0.0
    %3027 = vmatprep.subr.mxu0 0.0
    %3028 = vmatpush1.msra.mxu0 0.0
    %3029 = vmatprep.subr.mxu0 0.0
    %3030 = vmatpush1.msra.mxu0 0.0
    %3031 = vmatprep.subr.mxu0 0.0
    %3032 = vmatpush1.msra.mxu0 0.0
    %3033 = vmatprep.subr.mxu0 0.0
    %3034 = vmatpush1.msra.mxu0 0.0
    %3035 = vmatprep.subr.mxu0 0.0
    %3036 = vmatpush1.msra.mxu0 0.0
    %3037 = vmatprep.mubr.f32.mxu0 0.0
    %3038 = vmatmul.mubr.f32.gmra.mrb[0].mxu0 %v2971
    %v3039 = vpop.f32.mrb[0].mxu0
    %v3040 = vadd.f32 %v2256, %v3039
    %v3041 = vpop.f32.mrb[0].mxu0
    %3042 = vdwg.mxu0
    %v3043 = vxor.u32 %v3040, 2147483648
    %v3044 = vmul.f32 %v3043, 1.442695
    %v3045 = vpow.pop %v3044
    %v3046 = vadd.f32 %v3045, 1.0
    %v3047 = vrcp.pop %v3046
    %v3048 = vmul.f32 1.0, %v3047
    %v3049 = vtanh.pop %v3040
    %v3050 = vmul.f32 %v3048, %v2636
    %3052 = vrot.lane.b32.xlu0 %v3049, 64
    %v3053 = vpop.permute.xlu0 %3052
    %v3055 = vmul.f32 %v3048, %v3053
    %3057 = vrot.lane.b32.xlu0 %v3055, 32
    %v3058 = vpop.permute.xlu0 %3057
    %v3060 = vadd.f32 %v3050, %v3058
    %v3061 = vtanh.pop %v3060
    %3063 = vrot.lane.b32.xlu0 %v3061, 64
    %v3064 = vpop.permute.xlu0 %3063
    %v3066 = vmul.f32 %v3048, %v3064
    %3068 = vrot.lane.b32.xlu0 %v3066, 32
    %v3069 = vpop.permute.xlu0 %3068
    %v3070 = vsel %vm278, %v3069, 0
    %3072 = vmatprep.subr.mxu0 0.0
    %3073 = vmatpush1.msra.mxu0 %v2147
    %3074 = vmatprep.subr.mxu0 0.0
    %3075 = vmatpush1.msra.mxu0 %v2148
    %3076 = vmatprep.subr.mxu0 0.0
    %3077 = vmatpush1.msra.mxu0 %v2149
    %3078 = vmatprep.subr.mxu0 0.0
    %3079 = vmatpush1.msra.mxu0 %v2150
    %3080 = vmatprep.subr.mxu0 0.0
    %3081 = vmatpush1.msra.mxu0 0.0
    %3082 = vmatprep.subr.mxu0 0.0
    %3083 = vmatpush1.msra.mxu0 0.0
    %3084 = vmatprep.subr.mxu0 0.0
    %3085 = vmatpush1.msra.mxu0 0.0
    %3086 = vmatprep.subr.mxu0 0.0
    %3087 = vmatpush1.msra.mxu0 0.0
    %3088 = vmatprep.subr.mxu0 0.0
    %3089 = vmatpush1.msra.mxu0 0.0
    %3090 = vmatprep.subr.mxu0 0.0
    %3091 = vmatpush1.msra.mxu0 0.0
    %3092 = vmatprep.subr.mxu0 0.0
    %3093 = vmatpush1.msra.mxu0 0.0
    %3094 = vmatprep.subr.mxu0 0.0
    %3095 = vmatpush1.msra.mxu0 0.0
    %3096 = vmatprep.subr.mxu0 0.0
    %3097 = vmatpush1.msra.mxu0 0.0
    %3098 = vmatprep.subr.mxu0 0.0
    %3099 = vmatpush1.msra.mxu0 0.0
    %3100 = vmatprep.subr.mxu0 0.0
    %3101 = vmatpush1.msra.mxu0 0.0
    %3102 = vmatprep.subr.mxu0 0.0
    %3103 = vmatpush1.msra.mxu0 0.0
    %3104 = vmatprep.subr.mxu0 0.0
    %3105 = vmatpush1.msra.mxu0 0.0
    %3106 = vmatprep.subr.mxu0 0.0
    %3107 = vmatpush1.msra.mxu0 0.0
    %3108 = vmatprep.subr.mxu0 0.0
    %3109 = vmatpush1.msra.mxu0 0.0
    %3110 = vmatprep.subr.mxu0 0.0
    %3111 = vmatpush1.msra.mxu0 0.0
    %3112 = vmatprep.subr.mxu0 0.0
    %3113 = vmatpush1.msra.mxu0 0.0
    %3114 = vmatprep.subr.mxu0 0.0
    %3115 = vmatpush1.msra.mxu0 0.0
    %3116 = vmatprep.subr.mxu0 0.0
    %3117 = vmatpush1.msra.mxu0 0.0
    %3118 = vmatprep.subr.mxu0 0.0
    %3119 = vmatpush1.msra.mxu0 0.0
    %3120 = vmatprep.subr.mxu0 0.0
    %3121 = vmatpush1.msra.mxu0 0.0
    %3122 = vmatprep.subr.mxu0 0.0
    %3123 = vmatpush1.msra.mxu0 0.0
    %3124 = vmatprep.subr.mxu0 0.0
    %3125 = vmatpush1.msra.mxu0 0.0
    %3126 = vmatprep.subr.mxu0 0.0
    %3127 = vmatpush1.msra.mxu0 0.0
    %3128 = vmatprep.subr.mxu0 0.0
    %3129 = vmatpush1.msra.mxu0 0.0
    %3130 = vmatprep.subr.mxu0 0.0
    %3131 = vmatpush1.msra.mxu0 0.0
    %3132 = vmatprep.subr.mxu0 0.0
    %3133 = vmatpush1.msra.mxu0 0.0
    %3134 = vmatprep.subr.mxu0 0.0
    %3135 = vmatpush1.msra.mxu0 0.0
    %3136 = vmatprep.mubr.f32.mxu0 0.0
    %3137 = vmatmul.mubr.f32.gmra.mrb[0].mxu0 %v3070
    %v3138 = vpop.f32.mrb[0].mxu0
    %v3139 = vadd.f32 %v2359, %v3138
    %v3140 = vpop.f32.mrb[0].mxu0
    %3141 = vdwg.mxu0
    %s3142 = scalar_lea.vmem %s15, 4
    %3143 = vst [vmem:[%s3142] sm:$0x3] %v3139
    %s3144 = scalar_lea.vmem [#allocation16], 64
    %v3145 = vld [vmem:[%s3144] sm:$0xff]
    %v3146 = vld [vmem:[%s3144 + $0x8] sm:$0xff]
    %v3147 = vld [vmem:[%s3144 + $0x10] sm:$0xff]
    %v3148 = vld [vmem:[%s3144 + $0x18] sm:$0xff]
    %3149 = vmatprep.subr.mxu0 0.0
    %3150 = vmatpush1.msra.mxu0 %v3145
    %3151 = vmatprep.subr.mxu0 0.0
    %3152 = vmatpush1.msra.mxu0 %v3146
    %3153 = vmatprep.subr.mxu0 0.0
    %3154 = vmatpush1.msra.mxu0 %v3147
    %3155 = vmatprep.subr.mxu0 0.0
    %3156 = vmatpush1.msra.mxu0 %v3148
    %3157 = vmatprep.subr.mxu0 0.0
    %3158 = vmatpush1.msra.mxu0 0.0
    %3159 = vmatprep.subr.mxu0 0.0
    %3160 = vmatpush1.msra.mxu0 0.0
    %3161 = vmatprep.subr.mxu0 0.0
    %3162 = vmatpush1.msra.mxu0 0.0
    %3163 = vmatprep.subr.mxu0 0.0
    %3164 = vmatpush1.msra.mxu0 0.0
    %3165 = vmatprep.subr.mxu0 0.0
    %3166 = vmatpush1.msra.mxu0 0.0
    %3167 = vmatprep.subr.mxu0 0.0
    %3168 = vmatpush1.msra.mxu0 0.0
    %3169 = vmatprep.subr.mxu0 0.0
    %3170 = vmatpush1.msra.mxu0 0.0
    %3171 = vmatprep.subr.mxu0 0.0
    %3172 = vmatpush1.msra.mxu0 0.0
    %3173 = vmatprep.subr.mxu0 0.0
    %3174 = vmatpush1.msra.mxu0 0.0
    %3175 = vmatprep.subr.mxu0 0.0
    %3176 = vmatpush1.msra.mxu0 0.0
    %3177 = vmatprep.subr.mxu0 0.0
    %3178 = vmatpush1.msra.mxu0 0.0
    %3179 = vmatprep.subr.mxu0 0.0
    %3180 = vmatpush1.msra.mxu0 0.0
    %3181 = vmatprep.subr.mxu0 0.0
    %3182 = vmatpush1.msra.mxu0 0.0
    %3183 = vmatprep.subr.mxu0 0.0
    %3184 = vmatpush1.msra.mxu0 0.0
    %3185 = vmatprep.subr.mxu0 0.0
    %3186 = vmatpush1.msra.mxu0 0.0
    %3187 = vmatprep.subr.mxu0 0.0
    %3188 = vmatpush1.msra.mxu0 0.0
    %3189 = vmatprep.subr.mxu0 0.0
    %3190 = vmatpush1.msra.mxu0 0.0
    %3191 = vmatprep.subr.mxu0 0.0
    %3192 = vmatpush1.msra.mxu0 0.0
    %3193 = vmatprep.subr.mxu0 0.0
    %3194 = vmatpush1.msra.mxu0 0.0
    %3195 = vmatprep.subr.mxu0 0.0
    %3196 = vmatpush1.msra.mxu0 0.0
    %3197 = vmatprep.subr.mxu0 0.0
    %3198 = vmatpush1.msra.mxu0 0.0
    %3199 = vmatprep.subr.mxu0 0.0
    %3200 = vmatpush1.msra.mxu0 0.0
    %3201 = vmatprep.subr.mxu0 0.0
    %3202 = vmatpush1.msra.mxu0 0.0
    %3203 = vmatprep.subr.mxu0 0.0
    %3204 = vmatpush1.msra.mxu0 0.0
    %3205 = vmatprep.subr.mxu0 0.0
    %3206 = vmatpush1.msra.mxu0 0.0
    %3207 = vmatprep.subr.mxu0 0.0
    %3208 = vmatpush1.msra.mxu0 0.0
    %3209 = vmatprep.subr.mxu0 0.0
    %3210 = vmatpush1.msra.mxu0 0.0
    %3211 = vmatprep.subr.mxu0 0.0
    %3212 = vmatpush1.msra.mxu0 0.0
    %3213 = vmatprep.mubr.f32.mxu0 0.0
    %3214 = vmatmul.mubr.f32.gmra.mrb[0].mxu0 %v3070
    %v3215 = vpop.f32.mrb[0].mxu0
    %v3216 = vadd.f32 0.0, %v3215
    %v3217 = vpop.f32.mrb[0].mxu0
    %3218 = vdwg.mxu0
    %v3219 = vadd.f32 %v2862, %v3216
    %v3220 = vsel %vm278, %v2964, 0
    %3222 = vmatprep.subr.mxu0 0.0
    %3223 = vmatpush1.msra.mxu0 %v2134
    %3224 = vmatprep.subr.mxu0 0.0
    %3225 = vmatpush1.msra.mxu0 %v2135
    %3226 = vmatprep.subr.mxu0 0.0
    %3227 = vmatpush1.msra.mxu0 %v2136
    %3228 = vmatprep.subr.mxu0 0.0
    %3229 = vmatpush1.msra.mxu0 %v2137
    %3230 = vmatprep.subr.mxu0 0.0
    %3231 = vmatpush1.msra.mxu0 0.0
    %3232 = vmatprep.subr.mxu0 0.0
    %3233 = vmatpush1.msra.mxu0 0.0
    %3234 = vmatprep.subr.mxu0 0.0
    %3235 = vmatpush1.msra.mxu0 0.0
    %3236 = vmatprep.subr.mxu0 0.0
    %3237 = vmatpush1.msra.mxu0 0.0
    %3238 = vmatprep.subr.mxu0 0.0
    %3239 = vmatpush1.msra.mxu0 0.0
    %3240 = vmatprep.subr.mxu0 0.0
    %3241 = vmatpush1.msra.mxu0 0.0
    %3242 = vmatprep.subr.mxu0 0.0
    %3243 = vmatpush1.msra.mxu0 0.0
    %3244 = vmatprep.subr.mxu0 0.0
    %3245 = vmatpush1.msra.mxu0 0.0
    %3246 = vmatprep.subr.mxu0 0.0
    %3247 = vmatpush1.msra.mxu0 0.0
    %3248 = vmatprep.subr.mxu0 0.0
    %3249 = vmatpush1.msra.mxu0 0.0
    %3250 = vmatprep.subr.mxu0 0.0
    %3251 = vmatpush1.msra.mxu0 0.0
    %3252 = vmatprep.subr.mxu0 0.0
    %3253 = vmatpush1.msra.mxu0 0.0
    %3254 = vmatprep.subr.mxu0 0.0
    %3255 = vmatpush1.msra.mxu0 0.0
    %3256 = vmatprep.subr.mxu0 0.0
    %3257 = vmatpush1.msra.mxu0 0.0
    %3258 = vmatprep.subr.mxu0 0.0
    %3259 = vmatpush1.msra.mxu0 0.0
    %3260 = vmatprep.subr.mxu0 0.0
    %3261 = vmatpush1.msra.mxu0 0.0
    %3262 = vmatprep.subr.mxu0 0.0
    %3263 = vmatpush1.msra.mxu0 0.0
    %3264 = vmatprep.subr.mxu0 0.0
    %3265 = vmatpush1.msra.mxu0 0.0
    %3266 = vmatprep.subr.mxu0 0.0
    %3267 = vmatpush1.msra.mxu0 0.0
    %3268 = vmatprep.subr.mxu0 0.0
    %3269 = vmatpush1.msra.mxu0 0.0
    %3270 = vmatprep.subr.mxu0 0.0
    %3271 = vmatpush1.msra.mxu0 0.0
    %3272 = vmatprep.subr.mxu0 0.0
    %3273 = vmatpush1.msra.mxu0 0.0
    %3274 = vmatprep.subr.mxu0 0.0
    %3275 = vmatpush1.msra.mxu0 0.0
    %3276 = vmatprep.subr.mxu0 0.0
    %3277 = vmatpush1.msra.mxu0 0.0
    %3278 = vmatprep.subr.mxu0 0.0
    %3279 = vmatpush1.msra.mxu0 0.0
    %3280 = vmatprep.subr.mxu0 0.0
    %3281 = vmatpush1.msra.mxu0 0.0
    %3282 = vmatprep.subr.mxu0 0.0
    %3283 = vmatpush1.msra.mxu0 0.0
    %3284 = vmatprep.subr.mxu0 0.0
    %3285 = vmatpush1.msra.mxu0 0.0
    %3286 = vmatprep.mubr.f32.mxu0 0.0
    %3287 = vmatmul.mubr.f32.gmra.mrb[0].mxu0 %v3220
    %v3288 = vpop.f32.mrb[0].mxu0
    %v3289 = vadd.f32 0.0, %v3288
    %v3290 = vpop.f32.mrb[0].mxu0
    %3291 = vdwg.mxu0
    %v3292 = vadd.f32 %v2131, %v3289
    %v3293 = vxor.u32 %v3292, 2147483648
    %v3294 = vmul.f32 %v3293, 1.442695
    %v3295 = vpow.pop %v3294
    %v3296 = vadd.f32 %v3295, 1.0
    %v3297 = vrcp.pop %v3296
    %v3298 = vmul.f32 1.0, %v3297
    %v3299 = vtanh.pop %v3292
    %v3300 = vmul.f32 %v3298, %v2955
    %3302 = vrot.lane.b32.xlu0 %v3299, 64
    %v3303 = vpop.permute.xlu0 %3302
    %v3305 = vmul.f32 %v3298, %v3303
    %3307 = vrot.lane.b32.xlu0 %v3305, 32
    %v3308 = vpop.permute.xlu0 %3307
    %v3310 = vadd.f32 %v3300, %v3308
    %v3311 = vtanh.pop %v3310
    %3313 = vrot.lane.b32.xlu0 %v3311, 64
    %v3314 = vpop.permute.xlu0 %3313
    %v3316 = vmul.f32 %v3298, %v3314
    %3318 = vrot.lane.b32.xlu0 %v3316, 32
    %v3319 = vpop.permute.xlu0 %3318
    %3321 = vrot.lane.b32.xlu0 %v3066, 64
    %v3322 = vpop.permute.xlu0 %3321
    %v3324 = vsel %vm278, %v3319, %v3322
    %v3326 = vsel %vm388, %v3324, 0
    %3328 = vmatprep.subr.mxu0 0.0
    %3329 = vmatpush1.msra.mxu0 %v2138
    %3330 = vmatprep.subr.mxu0 0.0
    %3331 = vmatpush1.msra.mxu0 %v2139
    %3332 = vmatprep.subr.mxu0 0.0
    %3333 = vmatpush1.msra.mxu0 %v2140
    %3334 = vmatprep.subr.mxu0 0.0
    %3335 = vmatpush1.msra.mxu0 %v2141
    %3336 = vmatprep.subr.mxu0 0.0
    %3337 = vmatpush1.msra.mxu0 %v2142
    %3338 = vmatprep.subr.mxu0 0.0
    %3339 = vmatpush1.msra.mxu0 %v2143
    %3340 = vmatprep.subr.mxu0 0.0
    %3341 = vmatpush1.msra.mxu0 %v2144
    %3342 = vmatprep.subr.mxu0 0.0
    %3343 = vmatpush1.msra.mxu0 %v2145
    %3344 = vmatprep.subr.mxu0 0.0
    %3345 = vmatpush1.msra.mxu0 0.0
    %3346 = vmatprep.subr.mxu0 0.0
    %3347 = vmatpush1.msra.mxu0 0.0
    %3348 = vmatprep.subr.mxu0 0.0
    %3349 = vmatpush1.msra.mxu0 0.0
    %3350 = vmatprep.subr.mxu0 0.0
    %3351 = vmatpush1.msra.mxu0 0.0
    %3352 = vmatprep.subr.mxu0 0.0
    %3353 = vmatpush1.msra.mxu0 0.0
    %3354 = vmatprep.subr.mxu0 0.0
    %3355 = vmatpush1.msra.mxu0 0.0
    %3356 = vmatprep.subr.mxu0 0.0
    %3357 = vmatpush1.msra.mxu0 0.0
    %3358 = vmatprep.subr.mxu0 0.0
    %3359 = vmatpush1.msra.mxu0 0.0
    %3360 = vmatprep.subr.mxu0 0.0
    %3361 = vmatpush1.msra.mxu0 0.0
    %3362 = vmatprep.subr.mxu0 0.0
    %3363 = vmatpush1.msra.mxu0 0.0
    %3364 = vmatprep.subr.mxu0 0.0
    %3365 = vmatpush1.msra.mxu0 0.0
    %3366 = vmatprep.subr.mxu0 0.0
    %3367 = vmatpush1.msra.mxu0 0.0
    %3368 = vmatprep.subr.mxu0 0.0
    %3369 = vmatpush1.msra.mxu0 0.0
    %3370 = vmatprep.subr.mxu0 0.0
    %3371 = vmatpush1.msra.mxu0 0.0
    %3372 = vmatprep.subr.mxu0 0.0
    %3373 = vmatpush1.msra.mxu0 0.0
    %3374 = vmatprep.subr.mxu0 0.0
    %3375 = vmatpush1.msra.mxu0 0.0
    %3376 = vmatprep.subr.mxu0 0.0
    %3377 = vmatpush1.msra.mxu0 0.0
    %3378 = vmatprep.subr.mxu0 0.0
    %3379 = vmatpush1.msra.mxu0 0.0
    %3380 = vmatprep.subr.mxu0 0.0
    %3381 = vmatpush1.msra.mxu0 0.0
    %3382 = vmatprep.subr.mxu0 0.0
    %3383 = vmatpush1.msra.mxu0 0.0
    %3384 = vmatprep.subr.mxu0 0.0
    %3385 = vmatpush1.msra.mxu0 0.0
    %3386 = vmatprep.subr.mxu0 0.0
    %3387 = vmatpush1.msra.mxu0 0.0
    %3388 = vmatprep.subr.mxu0 0.0
    %3389 = vmatpush1.msra.mxu0 0.0
    %3390 = vmatprep.subr.mxu0 0.0
    %3391 = vmatpush1.msra.mxu0 0.0
    %3392 = vmatprep.mubr.f32.mxu0 0.0
    %3393 = vmatmul.mubr.f32.gmra.mrb[0].mxu0 %v3326
    %v3394 = vpop.f32.mrb[0].mxu0
    %v3395 = vadd.f32 %v2256, %v3394
    %v3396 = vpop.f32.mrb[0].mxu0
    %3397 = vdwg.mxu0
    %v3398 = vxor.u32 %v3395, 2147483648
    %v3399 = vmul.f32 %v3398, 1.442695
    %v3400 = vpow.pop %v3399
    %v3401 = vadd.f32 %v3400, 1.0
    %v3402 = vrcp.pop %v3401
    %v3403 = vmul.f32 1.0, %v3402
    %v3404 = vtanh.pop %v3395
    %v3405 = vmul.f32 %v3403, %v3060
    %3407 = vrot.lane.b32.xlu0 %v3404, 64
    %v3408 = vpop.permute.xlu0 %3407
    %v3410 = vmul.f32 %v3403, %v3408
    %3412 = vrot.lane.b32.xlu0 %v3410, 32
    %v3413 = vpop.permute.xlu0 %3412
    %v3415 = vadd.f32 %v3405, %v3413
    %v3416 = vtanh.pop %v3415
    %3418 = vrot.lane.b32.xlu0 %v3416, 64
    %v3419 = vpop.permute.xlu0 %3418
    %v3421 = vmul.f32 %v3403, %v3419
    %3423 = vrot.lane.b32.xlu0 %v3421, 32
    %v3424 = vpop.permute.xlu0 %3423
    %v3425 = vsel %vm278, %v3424, 0
    %3427 = vmatprep.subr.mxu0 0.0
    %3428 = vmatpush1.msra.mxu0 %v2147
    %3429 = vmatprep.subr.mxu0 0.0
    %3430 = vmatpush1.msra.mxu0 %v2148
    %3431 = vmatprep.subr.mxu0 0.0
    %3432 = vmatpush1.msra.mxu0 %v2149
    %3433 = vmatprep.subr.mxu0 0.0
    %3434 = vmatpush1.msra.mxu0 %v2150
    %3435 = vmatprep.subr.mxu0 0.0
    %3436 = vmatpush1.msra.mxu0 0.0
    %3437 = vmatprep.subr.mxu0 0.0
    %3438 = vmatpush1.msra.mxu0 0.0
    %3439 = vmatprep.subr.mxu0 0.0
    %3440 = vmatpush1.msra.mxu0 0.0
    %3441 = vmatprep.subr.mxu0 0.0
    %3442 = vmatpush1.msra.mxu0 0.0
    %3443 = vmatprep.subr.mxu0 0.0
    %3444 = vmatpush1.msra.mxu0 0.0
    %3445 = vmatprep.subr.mxu0 0.0
    %3446 = vmatpush1.msra.mxu0 0.0
    %3447 = vmatprep.subr.mxu0 0.0
    %3448 = vmatpush1.msra.mxu0 0.0
    %3449 = vmatprep.subr.mxu0 0.0
    %3450 = vmatpush1.msra.mxu0 0.0
    %3451 = vmatprep.subr.mxu0 0.0
    %3452 = vmatpush1.msra.mxu0 0.0
    %3453 = vmatprep.subr.mxu0 0.0
    %3454 = vmatpush1.msra.mxu0 0.0
    %3455 = vmatprep.subr.mxu0 0.0
    %3456 = vmatpush1.msra.mxu0 0.0
    %3457 = vmatprep.subr.mxu0 0.0
    %3458 = vmatpush1.msra.mxu0 0.0
    %3459 = vmatprep.subr.mxu0 0.0
    %3460 = vmatpush1.msra.mxu0 0.0
    %3461 = vmatprep.subr.mxu0 0.0
    %3462 = vmatpush1.msra.mxu0 0.0
    %3463 = vmatprep.subr.mxu0 0.0
    %3464 = vmatpush1.msra.mxu0 0.0
    %3465 = vmatprep.subr.mxu0 0.0
    %3466 = vmatpush1.msra.mxu0 0.0
    %3467 = vmatprep.subr.mxu0 0.0
    %3468 = vmatpush1.msra.mxu0 0.0
    %3469 = vmatprep.subr.mxu0 0.0
    %3470 = vmatpush1.msra.mxu0 0.0
    %3471 = vmatprep.subr.mxu0 0.0
    %3472 = vmatpush1.msra.mxu0 0.0
    %3473 = vmatprep.subr.mxu0 0.0
    %3474 = vmatpush1.msra.mxu0 0.0
    %3475 = vmatprep.subr.mxu0 0.0
    %3476 = vmatpush1.msra.mxu0 0.0
    %3477 = vmatprep.subr.mxu0 0.0
    %3478 = vmatpush1.msra.mxu0 0.0
    %3479 = vmatprep.subr.mxu0 0.0
    %3480 = vmatpush1.msra.mxu0 0.0
    %3481 = vmatprep.subr.mxu0 0.0
    %3482 = vmatpush1.msra.mxu0 0.0
    %3483 = vmatprep.subr.mxu0 0.0
    %3484 = vmatpush1.msra.mxu0 0.0
    %3485 = vmatprep.subr.mxu0 0.0
    %3486 = vmatpush1.msra.mxu0 0.0
    %3487 = vmatprep.subr.mxu0 0.0
    %3488 = vmatpush1.msra.mxu0 0.0
    %3489 = vmatprep.subr.mxu0 0.0
    %3490 = vmatpush1.msra.mxu0 0.0
    %3491 = vmatprep.mubr.f32.mxu0 0.0
    %3492 = vmatmul.mubr.f32.gmra.mrb[0].mxu0 %v3425
    %v3493 = vpop.f32.mrb[0].mxu0
    %v3494 = vadd.f32 %v2359, %v3493
    %v3495 = vpop.f32.mrb[0].mxu0
    %3496 = vdwg.mxu0
    %s3497 = scalar_lea.vmem %s15, 6
    %3498 = vst [vmem:[%s3497] sm:$0x3] %v3494
    %s3499 = scalar_lea.vmem [#allocation16], 96
    %v3500 = vld [vmem:[%s3499] sm:$0xff]
    %v3501 = vld [vmem:[%s3499 + $0x8] sm:$0xff]
    %v3502 = vld [vmem:[%s3499 + $0x10] sm:$0xff]
    %v3503 = vld [vmem:[%s3499 + $0x18] sm:$0xff]
    %3504 = vmatprep.subr.mxu0 0.0
    %3505 = vmatpush1.msra.mxu0 %v3500
    %3506 = vmatprep.subr.mxu0 0.0
    %3507 = vmatpush1.msra.mxu0 %v3501
    %3508 = vmatprep.subr.mxu0 0.0
    %3509 = vmatpush1.msra.mxu0 %v3502
    %3510 = vmatprep.subr.mxu0 0.0
    %3511 = vmatpush1.msra.mxu0 %v3503
    %3512 = vmatprep.subr.mxu0 0.0
    %3513 = vmatpush1.msra.mxu0 0.0
    %3514 = vmatprep.subr.mxu0 0.0
    %3515 = vmatpush1.msra.mxu0 0.0
    %3516 = vmatprep.subr.mxu0 0.0
    %3517 = vmatpush1.msra.mxu0 0.0
    %3518 = vmatprep.subr.mxu0 0.0
    %3519 = vmatpush1.msra.mxu0 0.0
    %3520 = vmatprep.subr.mxu0 0.0
    %3521 = vmatpush1.msra.mxu0 0.0
    %3522 = vmatprep.subr.mxu0 0.0
    %3523 = vmatpush1.msra.mxu0 0.0
    %3524 = vmatprep.subr.mxu0 0.0
    %3525 = vmatpush1.msra.mxu0 0.0
    %3526 = vmatprep.subr.mxu0 0.0
    %3527 = vmatpush1.msra.mxu0 0.0
    %3528 = vmatprep.subr.mxu0 0.0
    %3529 = vmatpush1.msra.mxu0 0.0
    %3530 = vmatprep.subr.mxu0 0.0
    %3531 = vmatpush1.msra.mxu0 0.0
    %3532 = vmatprep.subr.mxu0 0.0
    %3533 = vmatpush1.msra.mxu0 0.0
    %3534 = vmatprep.subr.mxu0 0.0
    %3535 = vmatpush1.msra.mxu0 0.0
    %3536 = vmatprep.subr.mxu0 0.0
    %3537 = vmatpush1.msra.mxu0 0.0
    %3538 = vmatprep.subr.mxu0 0.0
    %3539 = vmatpush1.msra.mxu0 0.0
    %3540 = vmatprep.subr.mxu0 0.0
    %3541 = vmatpush1.msra.mxu0 0.0
    %3542 = vmatprep.subr.mxu0 0.0
    %3543 = vmatpush1.msra.mxu0 0.0
    %3544 = vmatprep.subr.mxu0 0.0
    %3545 = vmatpush1.msra.mxu0 0.0
    %3546 = vmatprep.subr.mxu0 0.0
    %3547 = vmatpush1.msra.mxu0 0.0
    %3548 = vmatprep.subr.mxu0 0.0
    %3549 = vmatpush1.msra.mxu0 0.0
    %3550 = vmatprep.subr.mxu0 0.0
    %3551 = vmatpush1.msra.mxu0 0.0
    %3552 = vmatprep.subr.mxu0 0.0
    %3553 = vmatpush1.msra.mxu0 0.0
    %3554 = vmatprep.subr.mxu0 0.0
    %3555 = vmatpush1.msra.mxu0 0.0
    %3556 = vmatprep.subr.mxu0 0.0
    %3557 = vmatpush1.msra.mxu0 0.0
    %3558 = vmatprep.subr.mxu0 0.0
    %3559 = vmatpush1.msra.mxu0 0.0
    %3560 = vmatprep.subr.mxu0 0.0
    %3561 = vmatpush1.msra.mxu0 0.0
    %3562 = vmatprep.subr.mxu0 0.0
    %3563 = vmatpush1.msra.mxu0 0.0
    %3564 = vmatprep.subr.mxu0 0.0
    %3565 = vmatpush1.msra.mxu0 0.0
    %3566 = vmatprep.subr.mxu0 0.0
    %3567 = vmatpush1.msra.mxu0 0.0
    %3568 = vmatprep.mubr.f32.mxu0 0.0
    %3569 = vmatmul.mubr.f32.gmra.mrb[0].mxu0 %v3425
    %v3570 = vpop.f32.mrb[0].mxu0
    %v3571 = vadd.f32 0.0, %v3570
    %v3572 = vpop.f32.mrb[0].mxu0
    %3573 = vdwg.mxu0
    %v3574 = vadd.f32 %v3219, %v3571
    %v3575 = vsel %vm278, %v3319, 0
    %3577 = vmatprep.subr.mxu0 0.0
    %3578 = vmatpush1.msra.mxu0 %v2134
    %3579 = vmatprep.subr.mxu0 0.0
    %3580 = vmatpush1.msra.mxu0 %v2135
    %3581 = vmatprep.subr.mxu0 0.0
    %3582 = vmatpush1.msra.mxu0 %v2136
    %3583 = vmatprep.subr.mxu0 0.0
    %3584 = vmatpush1.msra.mxu0 %v2137
    %3585 = vmatprep.subr.mxu0 0.0
    %3586 = vmatpush1.msra.mxu0 0.0
    %3587 = vmatprep.subr.mxu0 0.0
    %3588 = vmatpush1.msra.mxu0 0.0
    %3589 = vmatprep.subr.mxu0 0.0
    %3590 = vmatpush1.msra.mxu0 0.0
    %3591 = vmatprep.subr.mxu0 0.0
    %3592 = vmatpush1.msra.mxu0 0.0
    %3593 = vmatprep.subr.mxu0 0.0
    %3594 = vmatpush1.msra.mxu0 0.0
    %3595 = vmatprep.subr.mxu0 0.0
    %3596 = vmatpush1.msra.mxu0 0.0
    %3597 = vmatprep.subr.mxu0 0.0
    %3598 = vmatpush1.msra.mxu0 0.0
    %3599 = vmatprep.subr.mxu0 0.0
    %3600 = vmatpush1.msra.mxu0 0.0
    %3601 = vmatprep.subr.mxu0 0.0
    %3602 = vmatpush1.msra.mxu0 0.0
    %3603 = vmatprep.subr.mxu0 0.0
    %3604 = vmatpush1.msra.mxu0 0.0
    %3605 = vmatprep.subr.mxu0 0.0
    %3606 = vmatpush1.msra.mxu0 0.0
    %3607 = vmatprep.subr.mxu0 0.0
    %3608 = vmatpush1.msra.mxu0 0.0
    %3609 = vmatprep.subr.mxu0 0.0
    %3610 = vmatpush1.msra.mxu0 0.0
    %3611 = vmatprep.subr.mxu0 0.0
    %3612 = vmatpush1.msra.mxu0 0.0
    %3613 = vmatprep.subr.mxu0 0.0
    %3614 = vmatpush1.msra.mxu0 0.0
    %3615 = vmatprep.subr.mxu0 0.0
    %3616 = vmatpush1.msra.mxu0 0.0
    %3617 = vmatprep.subr.mxu0 0.0
    %3618 = vmatpush1.msra.mxu0 0.0
    %3619 = vmatprep.subr.mxu0 0.0
    %3620 = vmatpush1.msra.mxu0 0.0
    %3621 = vmatprep.subr.mxu0 0.0
    %3622 = vmatpush1.msra.mxu0 0.0
    %3623 = vmatprep.subr.mxu0 0.0
    %3624 = vmatpush1.msra.mxu0 0.0
    %3625 = vmatprep.subr.mxu0 0.0
    %3626 = vmatpush1.msra.mxu0 0.0
    %3627 = vmatprep.subr.mxu0 0.0
    %3628 = vmatpush1.msra.mxu0 0.0
    %3629 = vmatprep.subr.mxu0 0.0
    %3630 = vmatpush1.msra.mxu0 0.0
    %3631 = vmatprep.subr.mxu0 0.0
    %3632 = vmatpush1.msra.mxu0 0.0
    %3633 = vmatprep.subr.mxu0 0.0
    %3634 = vmatpush1.msra.mxu0 0.0
    %3635 = vmatprep.subr.mxu0 0.0
    %3636 = vmatpush1.msra.mxu0 0.0
    %3637 = vmatprep.subr.mxu0 0.0
    %3638 = vmatpush1.msra.mxu0 0.0
    %3639 = vmatprep.subr.mxu0 0.0
    %3640 = vmatpush1.msra.mxu0 0.0
    %3641 = vmatprep.mubr.f32.mxu0 0.0
    %3642 = vmatmul.mubr.f32.gmra.mrb[0].mxu0 %v3575
    %v3643 = vpop.f32.mrb[0].mxu0
    %v3644 = vadd.f32 0.0, %v3643
    %v3645 = vpop.f32.mrb[0].mxu0
    %3646 = vdwg.mxu0
    %v3647 = vadd.f32 %v2056, %v3644
    %v3648 = vxor.u32 %v3647, 2147483648
    %v3649 = vmul.f32 %v3648, 1.442695
    %v3650 = vpow.pop %v3649
    %v3651 = vadd.f32 %v3650, 1.0
    %v3652 = vrcp.pop %v3651
    %v3653 = vmul.f32 1.0, %v3652
    %v3654 = vtanh.pop %v3647
    %v3655 = vmul.f32 %v3653, %v3310
    %3657 = vrot.lane.b32.xlu0 %v3654, 64
    %v3658 = vpop.permute.xlu0 %3657
    %v3660 = vmul.f32 %v3653, %v3658
    %3662 = vrot.lane.b32.xlu0 %v3660, 32
    %v3663 = vpop.permute.xlu0 %3662
    %v3665 = vadd.f32 %v3655, %v3663
    %v3666 = vtanh.pop %v3665
    %3668 = vrot.lane.b32.xlu0 %v3666, 64
    %v3669 = vpop.permute.xlu0 %3668
    %v3671 = vmul.f32 %v3653, %v3669
    %3673 = vrot.lane.b32.xlu0 %v3671, 32
    %v3674 = vpop.permute.xlu0 %3673
    %3676 = vrot.lane.b32.xlu0 %v3421, 64
    %v3677 = vpop.permute.xlu0 %3676
    %v3679 = vsel %vm278, %v3674, %v3677
    %v3681 = vsel %vm388, %v3679, 0
    %3683 = vmatprep.subr.mxu0 0.0
    %3684 = vmatpush1.msra.mxu0 %v2138
    %3685 = vmatprep.subr.mxu0 0.0
    %3686 = vmatpush1.msra.mxu0 %v2139
    %3687 = vmatprep.subr.mxu0 0.0
    %3688 = vmatpush1.msra.mxu0 %v2140
    %3689 = vmatprep.subr.mxu0 0.0
    %3690 = vmatpush1.msra.mxu0 %v2141
    %3691 = vmatprep.subr.mxu0 0.0
    %3692 = vmatpush1.msra.mxu0 %v2142
    %3693 = vmatprep.subr.mxu0 0.0
    %3694 = vmatpush1.msra.mxu0 %v2143
    %3695 = vmatprep.subr.mxu0 0.0
    %3696 = vmatpush1.msra.mxu0 %v2144
    %3697 = vmatprep.subr.mxu0 0.0
    %3698 = vmatpush1.msra.mxu0 %v2145
    %3699 = vmatprep.subr.mxu0 0.0
    %3700 = vmatpush1.msra.mxu0 0.0
    %3701 = vmatprep.subr.mxu0 0.0
    %3702 = vmatpush1.msra.mxu0 0.0
    %3703 = vmatprep.subr.mxu0 0.0
    %3704 = vmatpush1.msra.mxu0 0.0
    %3705 = vmatprep.subr.mxu0 0.0
    %3706 = vmatpush1.msra.mxu0 0.0
    %3707 = vmatprep.subr.mxu0 0.0
    %3708 = vmatpush1.msra.mxu0 0.0
    %3709 = vmatprep.subr.mxu0 0.0
    %3710 = vmatpush1.msra.mxu0 0.0
    %3711 = vmatprep.subr.mxu0 0.0
    %3712 = vmatpush1.msra.mxu0 0.0
    %3713 = vmatprep.subr.mxu0 0.0
    %3714 = vmatpush1.msra.mxu0 0.0
    %3715 = vmatprep.subr.mxu0 0.0
    %3716 = vmatpush1.msra.mxu0 0.0
    %3717 = vmatprep.subr.mxu0 0.0
    %3718 = vmatpush1.msra.mxu0 0.0
    %3719 = vmatprep.subr.mxu0 0.0
    %3720 = vmatpush1.msra.mxu0 0.0
    %3721 = vmatprep.subr.mxu0 0.0
    %3722 = vmatpush1.msra.mxu0 0.0
    %3723 = vmatprep.subr.mxu0 0.0
    %3724 = vmatpush1.msra.mxu0 0.0
    %3725 = vmatprep.subr.mxu0 0.0
    %3726 = vmatpush1.msra.mxu0 0.0
    %3727 = vmatprep.subr.mxu0 0.0
    %3728 = vmatpush1.msra.mxu0 0.0
    %3729 = vmatprep.subr.mxu0 0.0
    %3730 = vmatpush1.msra.mxu0 0.0
    %3731 = vmatprep.subr.mxu0 0.0
    %3732 = vmatpush1.msra.mxu0 0.0
    %3733 = vmatprep.subr.mxu0 0.0
    %3734 = vmatpush1.msra.mxu0 0.0
    %3735 = vmatprep.subr.mxu0 0.0
    %3736 = vmatpush1.msra.mxu0 0.0
    %3737 = vmatprep.subr.mxu0 0.0
    %3738 = vmatpush1.msra.mxu0 0.0
    %3739 = vmatprep.subr.mxu0 0.0
    %3740 = vmatpush1.msra.mxu0 0.0
    %3741 = vmatprep.subr.mxu0 0.0
    %3742 = vmatpush1.msra.mxu0 0.0
    %3743 = vmatprep.subr.mxu0 0.0
    %3744 = vmatpush1.msra.mxu0 0.0
    %3745 = vmatprep.subr.mxu0 0.0
    %3746 = vmatpush1.msra.mxu0 0.0
    %3747 = vmatprep.mubr.f32.mxu0 0.0
    %3748 = vmatmul.mubr.f32.gmra.mrb[0].mxu0 %v3681
    %v3749 = vpop.f32.mrb[0].mxu0
    %v3750 = vadd.f32 %v2256, %v3749
    %v3751 = vpop.f32.mrb[0].mxu0
    %3752 = vdwg.mxu0
    %v3753 = vxor.u32 %v3750, 2147483648
    %v3754 = vmul.f32 %v3753, 1.442695
    %v3755 = vpow.pop %v3754
    %v3756 = vadd.f32 %v3755, 1.0
    %v3757 = vrcp.pop %v3756
    %v3758 = vmul.f32 1.0, %v3757
    %v3759 = vtanh.pop %v3750
    %v3760 = vmul.f32 %v3758, %v3415
    %3762 = vrot.lane.b32.xlu0 %v3759, 64
    %v3763 = vpop.permute.xlu0 %3762
    %v3765 = vmul.f32 %v3758, %v3763
    %3767 = vrot.lane.b32.xlu0 %v3765, 32
    %v3768 = vpop.permute.xlu0 %3767
    %v3770 = vadd.f32 %v3760, %v3768
    %v3771 = vtanh.pop %v3770
    %3773 = vrot.lane.b32.xlu0 %v3771, 64
    %v3774 = vpop.permute.xlu0 %3773
    %v3776 = vmul.f32 %v3758, %v3774
    %3778 = vrot.lane.b32.xlu0 %v3776, 32
    %v3779 = vpop.permute.xlu0 %3778
    %v3780 = vsel %vm278, %v3779, 0
    %3782 = vmatprep.subr.mxu0 0.0
    %3783 = vmatpush1.msra.mxu0 %v2147
    %3784 = vmatprep.subr.mxu0 0.0
    %3785 = vmatpush1.msra.mxu0 %v2148
    %3786 = vmatprep.subr.mxu0 0.0
    %3787 = vmatpush1.msra.mxu0 %v2149
    %3788 = vmatprep.subr.mxu0 0.0
    %3789 = vmatpush1.msra.mxu0 %v2150
    %3790 = vmatprep.subr.mxu0 0.0
    %3791 = vmatpush1.msra.mxu0 0.0
    %3792 = vmatprep.subr.mxu0 0.0
    %3793 = vmatpush1.msra.mxu0 0.0
    %3794 = vmatprep.subr.mxu0 0.0
    %3795 = vmatpush1.msra.mxu0 0.0
    %3796 = vmatprep.subr.mxu0 0.0
    %3797 = vmatpush1.msra.mxu0 0.0
    %3798 = vmatprep.subr.mxu0 0.0
    %3799 = vmatpush1.msra.mxu0 0.0
    %3800 = vmatprep.subr.mxu0 0.0
    %3801 = vmatpush1.msra.mxu0 0.0
    %3802 = vmatprep.subr.mxu0 0.0
    %3803 = vmatpush1.msra.mxu0 0.0
    %3804 = vmatprep.subr.mxu0 0.0
    %3805 = vmatpush1.msra.mxu0 0.0
    %3806 = vmatprep.subr.mxu0 0.0
    %3807 = vmatpush1.msra.mxu0 0.0
    %3808 = vmatprep.subr.mxu0 0.0
    %3809 = vmatpush1.msra.mxu0 0.0
    %3810 = vmatprep.subr.mxu0 0.0
    %3811 = vmatpush1.msra.mxu0 0.0
    %3812 = vmatprep.subr.mxu0 0.0
    %3813 = vmatpush1.msra.mxu0 0.0
    %3814 = vmatprep.subr.mxu0 0.0
    %3815 = vmatpush1.msra.mxu0 0.0
    %3816 = vmatprep.subr.mxu0 0.0
    %3817 = vmatpush1.msra.mxu0 0.0
    %3818 = vmatprep.subr.mxu0 0.0
    %3819 = vmatpush1.msra.mxu0 0.0
    %3820 = vmatprep.subr.mxu0 0.0
    %3821 = vmatpush1.msra.mxu0 0.0
    %3822 = vmatprep.subr.mxu0 0.0
    %3823 = vmatpush1.msra.mxu0 0.0
    %3824 = vmatprep.subr.mxu0 0.0
    %3825 = vmatpush1.msra.mxu0 0.0
    %3826 = vmatprep.subr.mxu0 0.0
    %3827 = vmatpush1.msra.mxu0 0.0
    %3828 = vmatprep.subr.mxu0 0.0
    %3829 = vmatpush1.msra.mxu0 0.0
    %3830 = vmatprep.subr.mxu0 0.0
    %3831 = vmatpush1.msra.mxu0 0.0
    %3832 = vmatprep.subr.mxu0 0.0
    %3833 = vmatpush1.msra.mxu0 0.0
    %3834 = vmatprep.subr.mxu0 0.0
    %3835 = vmatpush1.msra.mxu0 0.0
    %3836 = vmatprep.subr.mxu0 0.0
    %3837 = vmatpush1.msra.mxu0 0.0
    %3838 = vmatprep.subr.mxu0 0.0
    %3839 = vmatpush1.msra.mxu0 0.0
    %3840 = vmatprep.subr.mxu0 0.0
    %3841 = vmatpush1.msra.mxu0 0.0
    %3842 = vmatprep.subr.mxu0 0.0
    %3843 = vmatpush1.msra.mxu0 0.0
    %3844 = vmatprep.subr.mxu0 0.0
    %3845 = vmatpush1.msra.mxu0 0.0
    %3846 = vmatprep.mubr.f32.mxu0 0.0
    %3847 = vmatmul.mubr.f32.gmra.mrb[0].mxu0 %v3780
    %v3848 = vpop.f32.mrb[0].mxu0
    %v3849 = vadd.f32 %v2359, %v3848
    %v3850 = vpop.f32.mrb[0].mxu0
    %3851 = vdwg.mxu0
    %s3852 = scalar_lea.vmem %s15, 8
    %3853 = vst [vmem:[%s3852] sm:$0x3] %v3849
    %s3854 = scalar_lea.vmem [#allocation16], 128
    %v3855 = vld [vmem:[%s3854] sm:$0xff]
    %v3856 = vld [vmem:[%s3854 + $0x8] sm:$0xff]
    %v3857 = vld [vmem:[%s3854 + $0x10] sm:$0xff]
    %v3858 = vld [vmem:[%s3854 + $0x18] sm:$0xff]
    %3859 = vmatprep.subr.mxu0 0.0
    %3860 = vmatpush1.msra.mxu0 %v3855
    %3861 = vmatprep.subr.mxu0 0.0
    %3862 = vmatpush1.msra.mxu0 %v3856
    %3863 = vmatprep.subr.mxu0 0.0
    %3864 = vmatpush1.msra.mxu0 %v3857
    %3865 = vmatprep.subr.mxu0 0.0
    %3866 = vmatpush1.msra.mxu0 %v3858
    %3867 = vmatprep.subr.mxu0 0.0
    %3868 = vmatpush1.msra.mxu0 0.0
    %3869 = vmatprep.subr.mxu0 0.0
    %3870 = vmatpush1.msra.mxu0 0.0
    %3871 = vmatprep.subr.mxu0 0.0
    %3872 = vmatpush1.msra.mxu0 0.0
    %3873 = vmatprep.subr.mxu0 0.0
    %3874 = vmatpush1.msra.mxu0 0.0
    %3875 = vmatprep.subr.mxu0 0.0
    %3876 = vmatpush1.msra.mxu0 0.0
    %3877 = vmatprep.subr.mxu0 0.0
    %3878 = vmatpush1.msra.mxu0 0.0
    %3879 = vmatprep.subr.mxu0 0.0
    %3880 = vmatpush1.msra.mxu0 0.0
    %3881 = vmatprep.subr.mxu0 0.0
    %3882 = vmatpush1.msra.mxu0 0.0
    %3883 = vmatprep.subr.mxu0 0.0
    %3884 = vmatpush1.msra.mxu0 0.0
    %3885 = vmatprep.subr.mxu0 0.0
    %3886 = vmatpush1.msra.mxu0 0.0
    %3887 = vmatprep.subr.mxu0 0.0
    %3888 = vmatpush1.msra.mxu0 0.0
    %3889 = vmatprep.subr.mxu0 0.0
    %3890 = vmatpush1.msra.mxu0 0.0
    %3891 = vmatprep.subr.mxu0 0.0
    %3892 = vmatpush1.msra.mxu0 0.0
    %3893 = vmatprep.subr.mxu0 0.0
    %3894 = vmatpush1.msra.mxu0 0.0
    %3895 = vmatprep.subr.mxu0 0.0
    %3896 = vmatpush1.msra.mxu0 0.0
    %3897 = vmatprep.subr.mxu0 0.0
    %3898 = vmatpush1.msra.mxu0 0.0
    %3899 = vmatprep.subr.mxu0 0.0
    %3900 = vmatpush1.msra.mxu0 0.0
    %3901 = vmatprep.subr.mxu0 0.0
    %3902 = vmatpush1.msra.mxu0 0.0
    %3903 = vmatprep.subr.mxu0 0.0
    %3904 = vmatpush1.msra.mxu0 0.0
    %3905 = vmatprep.subr.mxu0 0.0
    %3906 = vmatpush1.msra.mxu0 0.0
    %3907 = vmatprep.subr.mxu0 0.0
    %3908 = vmatpush1.msra.mxu0 0.0
    %3909 = vmatprep.subr.mxu0 0.0
    %3910 = vmatpush1.msra.mxu0 0.0
    %3911 = vmatprep.subr.mxu0 0.0
    %3912 = vmatpush1.msra.mxu0 0.0
    %3913 = vmatprep.subr.mxu0 0.0
    %3914 = vmatpush1.msra.mxu0 0.0
    %3915 = vmatprep.subr.mxu0 0.0
    %3916 = vmatpush1.msra.mxu0 0.0
    %3917 = vmatprep.subr.mxu0 0.0
    %3918 = vmatpush1.msra.mxu0 0.0
    %3919 = vmatprep.subr.mxu0 0.0
    %3920 = vmatpush1.msra.mxu0 0.0
    %3921 = vmatprep.subr.mxu0 0.0
    %3922 = vmatpush1.msra.mxu0 0.0
    %3923 = vmatprep.mubr.f32.mxu0 0.0
    %3924 = vmatmul.mubr.f32.gmra.mrb[0].mxu0 %v3780
    %v3925 = vpop.f32.mrb[0].mxu0
    %v3926 = vadd.f32 0.0, %v3925
    %v3927 = vpop.f32.mrb[0].mxu0
    %3928 = vdwg.mxu0
    %v3929 = vadd.f32 %v3574, %v3926
    %v3930 = vsel %vm278, %v3674, 0
    %3932 = vmatprep.subr.mxu0 0.0
    %3933 = vmatpush1.msra.mxu0 %v2134
    %3934 = vmatprep.subr.mxu0 0.0
    %3935 = vmatpush1.msra.mxu0 %v2135
    %3936 = vmatprep.subr.mxu0 0.0
    %3937 = vmatpush1.msra.mxu0 %v2136
    %3938 = vmatprep.subr.mxu0 0.0
    %3939 = vmatpush1.msra.mxu0 %v2137
    %3940 = vmatprep.subr.mxu0 0.0
    %3941 = vmatpush1.msra.mxu0 0.0
    %3942 = vmatprep.subr.mxu0 0.0
    %3943 = vmatpush1.msra.mxu0 0.0
    %3944 = vmatprep.subr.mxu0 0.0
    %3945 = vmatpush1.msra.mxu0 0.0
    %3946 = vmatprep.subr.mxu0 0.0
    %3947 = vmatpush1.msra.mxu0 0.0
    %3948 = vmatprep.subr.mxu0 0.0
    %3949 = vmatpush1.msra.mxu0 0.0
    %3950 = vmatprep.subr.mxu0 0.0
    %3951 = vmatpush1.msra.mxu0 0.0
    %3952 = vmatprep.subr.mxu0 0.0
    %3953 = vmatpush1.msra.mxu0 0.0
    %3954 = vmatprep.subr.mxu0 0.0
    %3955 = vmatpush1.msra.mxu0 0.0
    %3956 = vmatprep.subr.mxu0 0.0
    %3957 = vmatpush1.msra.mxu0 0.0
    %3958 = vmatprep.subr.mxu0 0.0
    %3959 = vmatpush1.msra.mxu0 0.0
    %3960 = vmatprep.subr.mxu0 0.0
    %3961 = vmatpush1.msra.mxu0 0.0
    %3962 = vmatprep.subr.mxu0 0.0
    %3963 = vmatpush1.msra.mxu0 0.0
    %3964 = vmatprep.subr.mxu0 0.0
    %3965 = vmatpush1.msra.mxu0 0.0
    %3966 = vmatprep.subr.mxu0 0.0
    %3967 = vmatpush1.msra.mxu0 0.0
    %3968 = vmatprep.subr.mxu0 0.0
    %3969 = vmatpush1.msra.mxu0 0.0
    %3970 = vmatprep.subr.mxu0 0.0
    %3971 = vmatpush1.msra.mxu0 0.0
    %3972 = vmatprep.subr.mxu0 0.0
    %3973 = vmatpush1.msra.mxu0 0.0
    %3974 = vmatprep.subr.mxu0 0.0
    %3975 = vmatpush1.msra.mxu0 0.0
    %3976 = vmatprep.subr.mxu0 0.0
    %3977 = vmatpush1.msra.mxu0 0.0
    %3978 = vmatprep.subr.mxu0 0.0
    %3979 = vmatpush1.msra.mxu0 0.0
    %3980 = vmatprep.subr.mxu0 0.0
    %3981 = vmatpush1.msra.mxu0 0.0
    %3982 = vmatprep.subr.mxu0 0.0
    %3983 = vmatpush1.msra.mxu0 0.0
    %3984 = vmatprep.subr.mxu0 0.0
    %3985 = vmatpush1.msra.mxu0 0.0
    %3986 = vmatprep.subr.mxu0 0.0
    %3987 = vmatpush1.msra.mxu0 0.0
    %3988 = vmatprep.subr.mxu0 0.0
    %3989 = vmatpush1.msra.mxu0 0.0
    %3990 = vmatprep.subr.mxu0 0.0
    %3991 = vmatpush1.msra.mxu0 0.0
    %3992 = vmatprep.subr.mxu0 0.0
    %3993 = vmatpush1.msra.mxu0 0.0
    %3994 = vmatprep.subr.mxu0 0.0
    %3995 = vmatpush1.msra.mxu0 0.0
    %3996 = vmatprep.mubr.f32.mxu0 0.0
    %3997 = vmatmul.mubr.f32.gmra.mrb[0].mxu0 %v3930
    %v3998 = vpop.f32.mrb[0].mxu0
    %v3999 = vadd.f32 0.0, %v3998
    %v4000 = vpop.f32.mrb[0].mxu0
    %4001 = vdwg.mxu0
    %v4002 = vadd.f32 %v2131, %v3999
    %v4003 = vxor.u32 %v4002, 2147483648
    %v4004 = vmul.f32 %v4003, 1.442695
    %v4005 = vpow.pop %v4004
    %v4006 = vadd.f32 %v4005, 1.0
    %v4007 = vrcp.pop %v4006
    %v4008 = vmul.f32 1.0, %v4007
    %v4009 = vtanh.pop %v4002
    %v4010 = vmul.f32 %v4008, %v3665
    %4012 = vrot.lane.b32.xlu0 %v4009, 64
    %v4013 = vpop.permute.xlu0 %4012
    %v4015 = vmul.f32 %v4008, %v4013
    %4017 = vrot.lane.b32.xlu0 %v4015, 32
    %v4018 = vpop.permute.xlu0 %4017
    %v4020 = vadd.f32 %v4010, %v4018
    %v4021 = vtanh.pop %v4020
    %4023 = vrot.lane.b32.xlu0 %v4021, 64
    %v4024 = vpop.permute.xlu0 %4023
    %v4026 = vmul.f32 %v4008, %v4024
    %4028 = vrot.lane.b32.xlu0 %v4026, 32
    %v4029 = vpop.permute.xlu0 %4028
    %4031 = vrot.lane.b32.xlu0 %v3776, 64
    %v4032 = vpop.permute.xlu0 %4031
    %v4034 = vsel %vm278, %v4029, %v4032
    %v4036 = vsel %vm388, %v4034, 0
    %4038 = vmatprep.subr.mxu0 0.0
    %4039 = vmatpush1.msra.mxu0 %v2138
    %4040 = vmatprep.subr.mxu0 0.0
    %4041 = vmatpush1.msra.mxu0 %v2139
    %4042 = vmatprep.subr.mxu0 0.0
    %4043 = vmatpush1.msra.mxu0 %v2140
    %4044 = vmatprep.subr.mxu0 0.0
    %4045 = vmatpush1.msra.mxu0 %v2141
    %4046 = vmatprep.subr.mxu0 0.0
    %4047 = vmatpush1.msra.mxu0 %v2142
    %4048 = vmatprep.subr.mxu0 0.0
    %4049 = vmatpush1.msra.mxu0 %v2143
    %4050 = vmatprep.subr.mxu0 0.0
    %4051 = vmatpush1.msra.mxu0 %v2144
    %4052 = vmatprep.subr.mxu0 0.0
    %4053 = vmatpush1.msra.mxu0 %v2145
    %4054 = vmatprep.subr.mxu0 0.0
    %4055 = vmatpush1.msra.mxu0 0.0
    %4056 = vmatprep.subr.mxu0 0.0
    %4057 = vmatpush1.msra.mxu0 0.0
    %4058 = vmatprep.subr.mxu0 0.0
    %4059 = vmatpush1.msra.mxu0 0.0
    %4060 = vmatprep.subr.mxu0 0.0
    %4061 = vmatpush1.msra.mxu0 0.0
    %4062 = vmatprep.subr.mxu0 0.0
    %4063 = vmatpush1.msra.mxu0 0.0
    %4064 = vmatprep.subr.mxu0 0.0
    %4065 = vmatpush1.msra.mxu0 0.0
    %4066 = vmatprep.subr.mxu0 0.0
    %4067 = vmatpush1.msra.mxu0 0.0
    %4068 = vmatprep.subr.mxu0 0.0
    %4069 = vmatpush1.msra.mxu0 0.0
    %4070 = vmatprep.subr.mxu0 0.0
    %4071 = vmatpush1.msra.mxu0 0.0
    %4072 = vmatprep.subr.mxu0 0.0
    %4073 = vmatpush1.msra.mxu0 0.0
    %4074 = vmatprep.subr.mxu0 0.0
    %4075 = vmatpush1.msra.mxu0 0.0
    %4076 = vmatprep.subr.mxu0 0.0
    %4077 = vmatpush1.msra.mxu0 0.0
    %4078 = vmatprep.subr.mxu0 0.0
    %4079 = vmatpush1.msra.mxu0 0.0
    %4080 = vmatprep.subr.mxu0 0.0
    %4081 = vmatpush1.msra.mxu0 0.0
    %4082 = vmatprep.subr.mxu0 0.0
    %4083 = vmatpush1.msra.mxu0 0.0
    %4084 = vmatprep.subr.mxu0 0.0
    %4085 = vmatpush1.msra.mxu0 0.0
    %4086 = vmatprep.subr.mxu0 0.0
    %4087 = vmatpush1.msra.mxu0 0.0
    %4088 = vmatprep.subr.mxu0 0.0
    %4089 = vmatpush1.msra.mxu0 0.0
    %4090 = vmatprep.subr.mxu0 0.0
    %4091 = vmatpush1.msra.mxu0 0.0
    %4092 = vmatprep.subr.mxu0 0.0
    %4093 = vmatpush1.msra.mxu0 0.0
    %4094 = vmatprep.subr.mxu0 0.0
    %4095 = vmatpush1.msra.mxu0 0.0
    %4096 = vmatprep.subr.mxu0 0.0
    %4097 = vmatpush1.msra.mxu0 0.0
    %4098 = vmatprep.subr.mxu0 0.0
    %4099 = vmatpush1.msra.mxu0 0.0
    %4100 = vmatprep.subr.mxu0 0.0
    %4101 = vmatpush1.msra.mxu0 0.0
    %4102 = vmatprep.mubr.f32.mxu0 0.0
    %4103 = vmatmul.mubr.f32.gmra.mrb[0].mxu0 %v4036
    %v4104 = vpop.f32.mrb[0].mxu0
    %v4105 = vadd.f32 %v2256, %v4104
    %v4106 = vpop.f32.mrb[0].mxu0
    %4107 = vdwg.mxu0
    %v4108 = vxor.u32 %v4105, 2147483648
    %v4109 = vmul.f32 %v4108, 1.442695
    %v4110 = vpow.pop %v4109
    %v4111 = vadd.f32 %v4110, 1.0
    %v4112 = vrcp.pop %v4111
    %v4113 = vmul.f32 1.0, %v4112
    %v4114 = vtanh.pop %v4105
    %v4115 = vmul.f32 %v4113, %v3770
    %4117 = vrot.lane.b32.xlu0 %v4114, 64
    %v4118 = vpop.permute.xlu0 %4117
    %v4120 = vmul.f32 %v4113, %v4118
    %4122 = vrot.lane.b32.xlu0 %v4120, 32
    %v4123 = vpop.permute.xlu0 %4122
    %v4125 = vadd.f32 %v4115, %v4123
    %v4126 = vtanh.pop %v4125
    %4128 = vrot.lane.b32.xlu0 %v4126, 64
    %v4129 = vpop.permute.xlu0 %4128
    %v4131 = vmul.f32 %v4113, %v4129
    %4133 = vrot.lane.b32.xlu0 %v4131, 32
    %v4134 = vpop.permute.xlu0 %4133
    %v4135 = vsel %vm278, %v4134, 0
    %4137 = vmatprep.subr.mxu0 0.0
    %4138 = vmatpush1.msra.mxu0 %v2147
    %4139 = vmatprep.subr.mxu0 0.0
    %4140 = vmatpush1.msra.mxu0 %v2148
    %4141 = vmatprep.subr.mxu0 0.0
    %4142 = vmatpush1.msra.mxu0 %v2149
    %4143 = vmatprep.subr.mxu0 0.0
    %4144 = vmatpush1.msra.mxu0 %v2150
    %4145 = vmatprep.subr.mxu0 0.0
    %4146 = vmatpush1.msra.mxu0 0.0
    %4147 = vmatprep.subr.mxu0 0.0
    %4148 = vmatpush1.msra.mxu0 0.0
    %4149 = vmatprep.subr.mxu0 0.0
    %4150 = vmatpush1.msra.mxu0 0.0
    %4151 = vmatprep.subr.mxu0 0.0
    %4152 = vmatpush1.msra.mxu0 0.0
    %4153 = vmatprep.subr.mxu0 0.0
    %4154 = vmatpush1.msra.mxu0 0.0
    %4155 = vmatprep.subr.mxu0 0.0
    %4156 = vmatpush1.msra.mxu0 0.0
    %4157 = vmatprep.subr.mxu0 0.0
    %4158 = vmatpush1.msra.mxu0 0.0
    %4159 = vmatprep.subr.mxu0 0.0
    %4160 = vmatpush1.msra.mxu0 0.0
    %4161 = vmatprep.subr.mxu0 0.0
    %4162 = vmatpush1.msra.mxu0 0.0
    %4163 = vmatprep.subr.mxu0 0.0
    %4164 = vmatpush1.msra.mxu0 0.0
    %4165 = vmatprep.subr.mxu0 0.0
    %4166 = vmatpush1.msra.mxu0 0.0
    %4167 = vmatprep.subr.mxu0 0.0
    %4168 = vmatpush1.msra.mxu0 0.0
    %4169 = vmatprep.subr.mxu0 0.0
    %4170 = vmatpush1.msra.mxu0 0.0
    %4171 = vmatprep.subr.mxu0 0.0
    %4172 = vmatpush1.msra.mxu0 0.0
    %4173 = vmatprep.subr.mxu0 0.0
    %4174 = vmatpush1.msra.mxu0 0.0
    %4175 = vmatprep.subr.mxu0 0.0
    %4176 = vmatpush1.msra.mxu0 0.0
    %4177 = vmatprep.subr.mxu0 0.0
    %4178 = vmatpush1.msra.mxu0 0.0
    %4179 = vmatprep.subr.mxu0 0.0
    %4180 = vmatpush1.msra.mxu0 0.0
    %4181 = vmatprep.subr.mxu0 0.0
    %4182 = vmatpush1.msra.mxu0 0.0
    %4183 = vmatprep.subr.mxu0 0.0
    %4184 = vmatpush1.msra.mxu0 0.0
    %4185 = vmatprep.subr.mxu0 0.0
    %4186 = vmatpush1.msra.mxu0 0.0
    %4187 = vmatprep.subr.mxu0 0.0
    %4188 = vmatpush1.msra.mxu0 0.0
    %4189 = vmatprep.subr.mxu0 0.0
    %4190 = vmatpush1.msra.mxu0 0.0
    %4191 = vmatprep.subr.mxu0 0.0
    %4192 = vmatpush1.msra.mxu0 0.0
    %4193 = vmatprep.subr.mxu0 0.0
    %4194 = vmatpush1.msra.mxu0 0.0
    %4195 = vmatprep.subr.mxu0 0.0
    %4196 = vmatpush1.msra.mxu0 0.0
    %4197 = vmatprep.subr.mxu0 0.0
    %4198 = vmatpush1.msra.mxu0 0.0
    %4199 = vmatprep.subr.mxu0 0.0
    %4200 = vmatpush1.msra.mxu0 0.0
    %4201 = vmatprep.mubr.f32.mxu0 0.0
    %4202 = vmatmul.mubr.f32.gmra.mrb[0].mxu0 %v4135
    %v4203 = vpop.f32.mrb[0].mxu0
    %v4204 = vadd.f32 %v2359, %v4203
    %v4205 = vpop.f32.mrb[0].mxu0
    %4206 = vdwg.mxu0
    %s4207 = scalar_lea.vmem %s15, 10
    %4208 = vst [vmem:[%s4207] sm:$0x3] %v4204
    %s4209 = scalar_lea.vmem [#allocation16], 160
    %v4210 = vld [vmem:[%s4209] sm:$0xff]
    %v4211 = vld [vmem:[%s4209 + $0x8] sm:$0xff]
    %v4212 = vld [vmem:[%s4209 + $0x10] sm:$0xff]
    %v4213 = vld [vmem:[%s4209 + $0x18] sm:$0xff]
    %4214 = vmatprep.subr.mxu0 0.0
    %4215 = vmatpush1.msra.mxu0 %v4210
    %4216 = vmatprep.subr.mxu0 0.0
    %4217 = vmatpush1.msra.mxu0 %v4211
    %4218 = vmatprep.subr.mxu0 0.0
    %4219 = vmatpush1.msra.mxu0 %v4212
    %4220 = vmatprep.subr.mxu0 0.0
    %4221 = vmatpush1.msra.mxu0 %v4213
    %4222 = vmatprep.subr.mxu0 0.0
    %4223 = vmatpush1.msra.mxu0 0.0
    %4224 = vmatprep.subr.mxu0 0.0
    %4225 = vmatpush1.msra.mxu0 0.0
    %4226 = vmatprep.subr.mxu0 0.0
    %4227 = vmatpush1.msra.mxu0 0.0
    %4228 = vmatprep.subr.mxu0 0.0
    %4229 = vmatpush1.msra.mxu0 0.0
    %4230 = vmatprep.subr.mxu0 0.0
    %4231 = vmatpush1.msra.mxu0 0.0
    %4232 = vmatprep.subr.mxu0 0.0
    %4233 = vmatpush1.msra.mxu0 0.0
    %4234 = vmatprep.subr.mxu0 0.0
    %4235 = vmatpush1.msra.mxu0 0.0
    %4236 = vmatprep.subr.mxu0 0.0
    %4237 = vmatpush1.msra.mxu0 0.0
    %4238 = vmatprep.subr.mxu0 0.0
    %4239 = vmatpush1.msra.mxu0 0.0
    %4240 = vmatprep.subr.mxu0 0.0
    %4241 = vmatpush1.msra.mxu0 0.0
    %4242 = vmatprep.subr.mxu0 0.0
    %4243 = vmatpush1.msra.mxu0 0.0
    %4244 = vmatprep.subr.mxu0 0.0
    %4245 = vmatpush1.msra.mxu0 0.0
    %4246 = vmatprep.subr.mxu0 0.0
    %4247 = vmatpush1.msra.mxu0 0.0
    %4248 = vmatprep.subr.mxu0 0.0
    %4249 = vmatpush1.msra.mxu0 0.0
    %4250 = vmatprep.subr.mxu0 0.0
    %4251 = vmatpush1.msra.mxu0 0.0
    %4252 = vmatprep.subr.mxu0 0.0
    %4253 = vmatpush1.msra.mxu0 0.0
    %4254 = vmatprep.subr.mxu0 0.0
    %4255 = vmatpush1.msra.mxu0 0.0
    %4256 = vmatprep.subr.mxu0 0.0
    %4257 = vmatpush1.msra.mxu0 0.0
    %4258 = vmatprep.subr.mxu0 0.0
    %4259 = vmatpush1.msra.mxu0 0.0
    %4260 = vmatprep.subr.mxu0 0.0
    %4261 = vmatpush1.msra.mxu0 0.0
    %4262 = vmatprep.subr.mxu0 0.0
    %4263 = vmatpush1.msra.mxu0 0.0
    %4264 = vmatprep.subr.mxu0 0.0
    %4265 = vmatpush1.msra.mxu0 0.0
    %4266 = vmatprep.subr.mxu0 0.0
    %4267 = vmatpush1.msra.mxu0 0.0
    %4268 = vmatprep.subr.mxu0 0.0
    %4269 = vmatpush1.msra.mxu0 0.0
    %4270 = vmatprep.subr.mxu0 0.0
    %4271 = vmatpush1.msra.mxu0 0.0
    %4272 = vmatprep.subr.mxu0 0.0
    %4273 = vmatpush1.msra.mxu0 0.0
    %4274 = vmatprep.subr.mxu0 0.0
    %4275 = vmatpush1.msra.mxu0 0.0
    %4276 = vmatprep.subr.mxu0 0.0
    %4277 = vmatpush1.msra.mxu0 0.0
    %4278 = vmatprep.mubr.f32.mxu0 0.0
    %4279 = vmatmul.mubr.f32.gmra.mrb[0].mxu0 %v4135
    %v4280 = vpop.f32.mrb[0].mxu0
    %v4281 = vadd.f32 0.0, %v4280
    %v4282 = vpop.f32.mrb[0].mxu0
    %4283 = vdwg.mxu0
    %v4284 = vadd.f32 %v3929, %v4281
    %v4285 = vsel %vm278, %v4029, 0
    %4287 = vmatprep.subr.mxu0 0.0
    %4288 = vmatpush1.msra.mxu0 %v2134
    %4289 = vmatprep.subr.mxu0 0.0
    %4290 = vmatpush1.msra.mxu0 %v2135
    %4291 = vmatprep.subr.mxu0 0.0
    %4292 = vmatpush1.msra.mxu0 %v2136
    %4293 = vmatprep.subr.mxu0 0.0
    %4294 = vmatpush1.msra.mxu0 %v2137
    %4295 = vmatprep.subr.mxu0 0.0
    %4296 = vmatpush1.msra.mxu0 0.0
    %4297 = vmatprep.subr.mxu0 0.0
    %4298 = vmatpush1.msra.mxu0 0.0
    %4299 = vmatprep.subr.mxu0 0.0
    %4300 = vmatpush1.msra.mxu0 0.0
    %4301 = vmatprep.subr.mxu0 0.0
    %4302 = vmatpush1.msra.mxu0 0.0
    %4303 = vmatprep.subr.mxu0 0.0
    %4304 = vmatpush1.msra.mxu0 0.0
    %4305 = vmatprep.subr.mxu0 0.0
    %4306 = vmatpush1.msra.mxu0 0.0
    %4307 = vmatprep.subr.mxu0 0.0
    %4308 = vmatpush1.msra.mxu0 0.0
    %4309 = vmatprep.subr.mxu0 0.0
    %4310 = vmatpush1.msra.mxu0 0.0
    %4311 = vmatprep.subr.mxu0 0.0
    %4312 = vmatpush1.msra.mxu0 0.0
    %4313 = vmatprep.subr.mxu0 0.0
    %4314 = vmatpush1.msra.mxu0 0.0
    %4315 = vmatprep.subr.mxu0 0.0
    %4316 = vmatpush1.msra.mxu0 0.0
    %4317 = vmatprep.subr.mxu0 0.0
    %4318 = vmatpush1.msra.mxu0 0.0
    %4319 = vmatprep.subr.mxu0 0.0
    %4320 = vmatpush1.msra.mxu0 0.0
    %4321 = vmatprep.subr.mxu0 0.0
    %4322 = vmatpush1.msra.mxu0 0.0
    %4323 = vmatprep.subr.mxu0 0.0
    %4324 = vmatpush1.msra.mxu0 0.0
    %4325 = vmatprep.subr.mxu0 0.0
    %4326 = vmatpush1.msra.mxu0 0.0
    %4327 = vmatprep.subr.mxu0 0.0
    %4328 = vmatpush1.msra.mxu0 0.0
    %4329 = vmatprep.subr.mxu0 0.0
    %4330 = vmatpush1.msra.mxu0 0.0
    %4331 = vmatprep.subr.mxu0 0.0
    %4332 = vmatpush1.msra.mxu0 0.0
    %4333 = vmatprep.subr.mxu0 0.0
    %4334 = vmatpush1.msra.mxu0 0.0
    %4335 = vmatprep.subr.mxu0 0.0
    %4336 = vmatpush1.msra.mxu0 0.0
    %4337 = vmatprep.subr.mxu0 0.0
    %4338 = vmatpush1.msra.mxu0 0.0
    %4339 = vmatprep.subr.mxu0 0.0
    %4340 = vmatpush1.msra.mxu0 0.0
    %4341 = vmatprep.subr.mxu0 0.0
    %4342 = vmatpush1.msra.mxu0 0.0
    %4343 = vmatprep.subr.mxu0 0.0
    %4344 = vmatpush1.msra.mxu0 0.0
    %4345 = vmatprep.subr.mxu0 0.0
    %4346 = vmatpush1.msra.mxu0 0.0
    %4347 = vmatprep.subr.mxu0 0.0
    %4348 = vmatpush1.msra.mxu0 0.0
    %4349 = vmatprep.subr.mxu0 0.0
    %4350 = vmatpush1.msra.mxu0 0.0
    %4351 = vmatprep.mubr.f32.mxu0 0.0
    %4352 = vmatmul.mubr.f32.gmra.mrb[0].mxu0 %v4285
    %v4353 = vpop.f32.mrb[0].mxu0
    %v4354 = vadd.f32 0.0, %v4353
    %v4355 = vpop.f32.mrb[0].mxu0
    %4356 = vdwg.mxu0
    %v4357 = vadd.f32 %v2056, %v4354
    %v4358 = vxor.u32 %v4357, 2147483648
    %v4359 = vmul.f32 %v4358, 1.442695
    %v4360 = vpow.pop %v4359
    %v4361 = vadd.f32 %v4360, 1.0
    %v4362 = vrcp.pop %v4361
    %v4363 = vmul.f32 1.0, %v4362
    %v4364 = vtanh.pop %v4357
    %v4365 = vmul.f32 %v4363, %v4020
    %4367 = vrot.lane.b32.xlu0 %v4364, 64
    %v4368 = vpop.permute.xlu0 %4367
    %v4370 = vmul.f32 %v4363, %v4368
    %4372 = vrot.lane.b32.xlu0 %v4370, 32
    %v4373 = vpop.permute.xlu0 %4372
    %v4375 = vadd.f32 %v4365, %v4373
    %v4376 = vtanh.pop %v4375
    %4378 = vrot.lane.b32.xlu0 %v4376, 64
    %v4379 = vpop.permute.xlu0 %4378
    %v4381 = vmul.f32 %v4363, %v4379
    %4383 = vrot.lane.b32.xlu0 %v4381, 32
    %v4384 = vpop.permute.xlu0 %4383
    %4386 = vrot.lane.b32.xlu0 %v4131, 64
    %v4387 = vpop.permute.xlu0 %4386
    %v4389 = vsel %vm278, %v4384, %v4387
    %v4391 = vsel %vm388, %v4389, 0
    %4393 = vmatprep.subr.mxu0 0.0
    %4394 = vmatpush1.msra.mxu0 %v2138
    %4395 = vmatprep.subr.mxu0 0.0
    %4396 = vmatpush1.msra.mxu0 %v2139
    %4397 = vmatprep.subr.mxu0 0.0
    %4398 = vmatpush1.msra.mxu0 %v2140
    %4399 = vmatprep.subr.mxu0 0.0
    %4400 = vmatpush1.msra.mxu0 %v2141
    %4401 = vmatprep.subr.mxu0 0.0
    %4402 = vmatpush1.msra.mxu0 %v2142
    %4403 = vmatprep.subr.mxu0 0.0
    %4404 = vmatpush1.msra.mxu0 %v2143
    %4405 = vmatprep.subr.mxu0 0.0
    %4406 = vmatpush1.msra.mxu0 %v2144
    %4407 = vmatprep.subr.mxu0 0.0
    %4408 = vmatpush1.msra.mxu0 %v2145
    %4409 = vmatprep.subr.mxu0 0.0
    %4410 = vmatpush1.msra.mxu0 0.0
    %4411 = vmatprep.subr.mxu0 0.0
    %4412 = vmatpush1.msra.mxu0 0.0
    %4413 = vmatprep.subr.mxu0 0.0
    %4414 = vmatpush1.msra.mxu0 0.0
    %4415 = vmatprep.subr.mxu0 0.0
    %4416 = vmatpush1.msra.mxu0 0.0
    %4417 = vmatprep.subr.mxu0 0.0
    %4418 = vmatpush1.msra.mxu0 0.0
    %4419 = vmatprep.subr.mxu0 0.0
    %4420 = vmatpush1.msra.mxu0 0.0
    %4421 = vmatprep.subr.mxu0 0.0
    %4422 = vmatpush1.msra.mxu0 0.0
    %4423 = vmatprep.subr.mxu0 0.0
    %4424 = vmatpush1.msra.mxu0 0.0
    %4425 = vmatprep.subr.mxu0 0.0
    %4426 = vmatpush1.msra.mxu0 0.0
    %4427 = vmatprep.subr.mxu0 0.0
    %4428 = vmatpush1.msra.mxu0 0.0
    %4429 = vmatprep.subr.mxu0 0.0
    %4430 = vmatpush1.msra.mxu0 0.0
    %4431 = vmatprep.subr.mxu0 0.0
    %4432 = vmatpush1.msra.mxu0 0.0
    %4433 = vmatprep.subr.mxu0 0.0
    %4434 = vmatpush1.msra.mxu0 0.0
    %4435 = vmatprep.subr.mxu0 0.0
    %4436 = vmatpush1.msra.mxu0 0.0
    %4437 = vmatprep.subr.mxu0 0.0
    %4438 = vmatpush1.msra.mxu0 0.0
    %4439 = vmatprep.subr.mxu0 0.0
    %4440 = vmatpush1.msra.mxu0 0.0
    %4441 = vmatprep.subr.mxu0 0.0
    %4442 = vmatpush1.msra.mxu0 0.0
    %4443 = vmatprep.subr.mxu0 0.0
    %4444 = vmatpush1.msra.mxu0 0.0
    %4445 = vmatprep.subr.mxu0 0.0
    %4446 = vmatpush1.msra.mxu0 0.0
    %4447 = vmatprep.subr.mxu0 0.0
    %4448 = vmatpush1.msra.mxu0 0.0
    %4449 = vmatprep.subr.mxu0 0.0
    %4450 = vmatpush1.msra.mxu0 0.0
    %4451 = vmatprep.subr.mxu0 0.0
    %4452 = vmatpush1.msra.mxu0 0.0
    %4453 = vmatprep.subr.mxu0 0.0
    %4454 = vmatpush1.msra.mxu0 0.0
    %4455 = vmatprep.subr.mxu0 0.0
    %4456 = vmatpush1.msra.mxu0 0.0
    %4457 = vmatprep.mubr.f32.mxu0 0.0
    %4458 = vmatmul.mubr.f32.gmra.mrb[0].mxu0 %v4391
    %v4459 = vpop.f32.mrb[0].mxu0
    %v4460 = vadd.f32 %v2256, %v4459
    %v4461 = vpop.f32.mrb[0].mxu0
    %4462 = vdwg.mxu0
    %v4463 = vxor.u32 %v4460, 2147483648
    %v4464 = vmul.f32 %v4463, 1.442695
    %v4465 = vpow.pop %v4464
    %v4466 = vadd.f32 %v4465, 1.0
    %v4467 = vrcp.pop %v4466
    %v4468 = vmul.f32 1.0, %v4467
    %v4469 = vtanh.pop %v4460
    %v4470 = vmul.f32 %v4468, %v4125
    %4472 = vrot.lane.b32.xlu0 %v4469, 64
    %v4473 = vpop.permute.xlu0 %4472
    %v4475 = vmul.f32 %v4468, %v4473
    %4477 = vrot.lane.b32.xlu0 %v4475, 32
    %v4478 = vpop.permute.xlu0 %4477
    %v4480 = vadd.f32 %v4470, %v4478
    %v4481 = vtanh.pop %v4480
    %4483 = vrot.lane.b32.xlu0 %v4481, 64
    %v4484 = vpop.permute.xlu0 %4483
    %v4486 = vmul.f32 %v4468, %v4484
    %4488 = vrot.lane.b32.xlu0 %v4486, 32
    %v4489 = vpop.permute.xlu0 %4488
    %v4490 = vsel %vm278, %v4489, 0
    %4492 = vmatprep.subr.mxu0 0.0
    %4493 = vmatpush1.msra.mxu0 %v2147
    %4494 = vmatprep.subr.mxu0 0.0
    %4495 = vmatpush1.msra.mxu0 %v2148
    %4496 = vmatprep.subr.mxu0 0.0
    %4497 = vmatpush1.msra.mxu0 %v2149
    %4498 = vmatprep.subr.mxu0 0.0
    %4499 = vmatpush1.msra.mxu0 %v2150
    %4500 = vmatprep.subr.mxu0 0.0
    %4501 = vmatpush1.msra.mxu0 0.0
    %4502 = vmatprep.subr.mxu0 0.0
    %4503 = vmatpush1.msra.mxu0 0.0
    %4504 = vmatprep.subr.mxu0 0.0
    %4505 = vmatpush1.msra.mxu0 0.0
    %4506 = vmatprep.subr.mxu0 0.0
    %4507 = vmatpush1.msra.mxu0 0.0
    %4508 = vmatprep.subr.mxu0 0.0
    %4509 = vmatpush1.msra.mxu0 0.0
    %4510 = vmatprep.subr.mxu0 0.0
    %4511 = vmatpush1.msra.mxu0 0.0
    %4512 = vmatprep.subr.mxu0 0.0
    %4513 = vmatpush1.msra.mxu0 0.0
    %4514 = vmatprep.subr.mxu0 0.0
    %4515 = vmatpush1.msra.mxu0 0.0
    %4516 = vmatprep.subr.mxu0 0.0
    %4517 = vmatpush1.msra.mxu0 0.0
    %4518 = vmatprep.subr.mxu0 0.0
    %4519 = vmatpush1.msra.mxu0 0.0
    %4520 = vmatprep.subr.mxu0 0.0
    %4521 = vmatpush1.msra.mxu0 0.0
    %4522 = vmatprep.subr.mxu0 0.0
    %4523 = vmatpush1.msra.mxu0 0.0
    %4524 = vmatprep.subr.mxu0 0.0
    %4525 = vmatpush1.msra.mxu0 0.0
    %4526 = vmatprep.subr.mxu0 0.0
    %4527 = vmatpush1.msra.mxu0 0.0
    %4528 = vmatprep.subr.mxu0 0.0
    %4529 = vmatpush1.msra.mxu0 0.0
    %4530 = vmatprep.subr.mxu0 0.0
    %4531 = vmatpush1.msra.mxu0 0.0
    %4532 = vmatprep.subr.mxu0 0.0
    %4533 = vmatpush1.msra.mxu0 0.0
    %4534 = vmatprep.subr.mxu0 0.0
    %4535 = vmatpush1.msra.mxu0 0.0
    %4536 = vmatprep.subr.mxu0 0.0
    %4537 = vmatpush1.msra.mxu0 0.0
    %4538 = vmatprep.subr.mxu0 0.0
    %4539 = vmatpush1.msra.mxu0 0.0
    %4540 = vmatprep.subr.mxu0 0.0
    %4541 = vmatpush1.msra.mxu0 0.0
    %4542 = vmatprep.subr.mxu0 0.0
    %4543 = vmatpush1.msra.mxu0 0.0
    %4544 = vmatprep.subr.mxu0 0.0
    %4545 = vmatpush1.msra.mxu0 0.0
    %4546 = vmatprep.subr.mxu0 0.0
    %4547 = vmatpush1.msra.mxu0 0.0
    %4548 = vmatprep.subr.mxu0 0.0
    %4549 = vmatpush1.msra.mxu0 0.0
    %4550 = vmatprep.subr.mxu0 0.0
    %4551 = vmatpush1.msra.mxu0 0.0
    %4552 = vmatprep.subr.mxu0 0.0
    %4553 = vmatpush1.msra.mxu0 0.0
    %4554 = vmatprep.subr.mxu0 0.0
    %4555 = vmatpush1.msra.mxu0 0.0
    %4556 = vmatprep.mubr.f32.mxu0 0.0
    %4557 = vmatmul.mubr.f32.gmra.mrb[0].mxu0 %v4490
    %v4558 = vpop.f32.mrb[0].mxu0
    %v4559 = vadd.f32 %v2359, %v4558
    %v4560 = vpop.f32.mrb[0].mxu0
    %4561 = vdwg.mxu0
    %s4562 = scalar_lea.vmem %s15, 12
    %4563 = vst [vmem:[%s4562] sm:$0x3] %v4559
    %s4564 = scalar_lea.vmem [#allocation16], 192
    %v4565 = vld [vmem:[%s4564] sm:$0xff]
    %v4566 = vld [vmem:[%s4564 + $0x8] sm:$0xff]
    %v4567 = vld [vmem:[%s4564 + $0x10] sm:$0xff]
    %v4568 = vld [vmem:[%s4564 + $0x18] sm:$0xff]
    %4569 = vmatprep.subr.mxu0 0.0
    %4570 = vmatpush1.msra.mxu0 %v4565
    %4571 = vmatprep.subr.mxu0 0.0
    %4572 = vmatpush1.msra.mxu0 %v4566
    %4573 = vmatprep.subr.mxu0 0.0
    %4574 = vmatpush1.msra.mxu0 %v4567
    %4575 = vmatprep.subr.mxu0 0.0
    %4576 = vmatpush1.msra.mxu0 %v4568
    %4577 = vmatprep.subr.mxu0 0.0
    %4578 = vmatpush1.msra.mxu0 0.0
    %4579 = vmatprep.subr.mxu0 0.0
    %4580 = vmatpush1.msra.mxu0 0.0
    %4581 = vmatprep.subr.mxu0 0.0
    %4582 = vmatpush1.msra.mxu0 0.0
    %4583 = vmatprep.subr.mxu0 0.0
    %4584 = vmatpush1.msra.mxu0 0.0
    %4585 = vmatprep.subr.mxu0 0.0
    %4586 = vmatpush1.msra.mxu0 0.0
    %4587 = vmatprep.subr.mxu0 0.0
    %4588 = vmatpush1.msra.mxu0 0.0
    %4589 = vmatprep.subr.mxu0 0.0
    %4590 = vmatpush1.msra.mxu0 0.0
    %4591 = vmatprep.subr.mxu0 0.0
    %4592 = vmatpush1.msra.mxu0 0.0
    %4593 = vmatprep.subr.mxu0 0.0
    %4594 = vmatpush1.msra.mxu0 0.0
    %4595 = vmatprep.subr.mxu0 0.0
    %4596 = vmatpush1.msra.mxu0 0.0
    %4597 = vmatprep.subr.mxu0 0.0
    %4598 = vmatpush1.msra.mxu0 0.0
    %4599 = vmatprep.subr.mxu0 0.0
    %4600 = vmatpush1.msra.mxu0 0.0
    %4601 = vmatprep.subr.mxu0 0.0
    %4602 = vmatpush1.msra.mxu0 0.0
    %4603 = vmatprep.subr.mxu0 0.0
    %4604 = vmatpush1.msra.mxu0 0.0
    %4605 = vmatprep.subr.mxu0 0.0
    %4606 = vmatpush1.msra.mxu0 0.0
    %4607 = vmatprep.subr.mxu0 0.0
    %4608 = vmatpush1.msra.mxu0 0.0
    %4609 = vmatprep.subr.mxu0 0.0
    %4610 = vmatpush1.msra.mxu0 0.0
    %4611 = vmatprep.subr.mxu0 0.0
    %4612 = vmatpush1.msra.mxu0 0.0
    %4613 = vmatprep.subr.mxu0 0.0
    %4614 = vmatpush1.msra.mxu0 0.0
    %4615 = vmatprep.subr.mxu0 0.0
    %4616 = vmatpush1.msra.mxu0 0.0
    %4617 = vmatprep.subr.mxu0 0.0
    %4618 = vmatpush1.msra.mxu0 0.0
    %4619 = vmatprep.subr.mxu0 0.0
    %4620 = vmatpush1.msra.mxu0 0.0
    %4621 = vmatprep.subr.mxu0 0.0
    %4622 = vmatpush1.msra.mxu0 0.0
    %4623 = vmatprep.subr.mxu0 0.0
    %4624 = vmatpush1.msra.mxu0 0.0
    %4625 = vmatprep.subr.mxu0 0.0
    %4626 = vmatpush1.msra.mxu0 0.0
    %4627 = vmatprep.subr.mxu0 0.0
    %4628 = vmatpush1.msra.mxu0 0.0
    %4629 = vmatprep.subr.mxu0 0.0
    %4630 = vmatpush1.msra.mxu0 0.0
    %4631 = vmatprep.subr.mxu0 0.0
    %4632 = vmatpush1.msra.mxu0 0.0
    %4633 = vmatprep.mubr.f32.mxu0 0.0
    %4634 = vmatmul.mubr.f32.gmra.mrb[0].mxu0 %v4490
    %v4635 = vpop.f32.mrb[0].mxu0
    %v4636 = vadd.f32 0.0, %v4635
    %v4637 = vpop.f32.mrb[0].mxu0
    %4638 = vdwg.mxu0
    %v4639 = vadd.f32 %v4284, %v4636
    %v4640 = vsel %vm278, %v4384, 0
    %4642 = vmatprep.subr.mxu0 0.0
    %4643 = vmatpush1.msra.mxu0 %v2134
    %4644 = vmatprep.subr.mxu0 0.0
    %4645 = vmatpush1.msra.mxu0 %v2135
    %4646 = vmatprep.subr.mxu0 0.0
    %4647 = vmatpush1.msra.mxu0 %v2136
    %4648 = vmatprep.subr.mxu0 0.0
    %4649 = vmatpush1.msra.mxu0 %v2137
    %4650 = vmatprep.subr.mxu0 0.0
    %4651 = vmatpush1.msra.mxu0 0.0
    %4652 = vmatprep.subr.mxu0 0.0
    %4653 = vmatpush1.msra.mxu0 0.0
    %4654 = vmatprep.subr.mxu0 0.0
    %4655 = vmatpush1.msra.mxu0 0.0
    %4656 = vmatprep.subr.mxu0 0.0
    %4657 = vmatpush1.msra.mxu0 0.0
    %4658 = vmatprep.subr.mxu0 0.0
    %4659 = vmatpush1.msra.mxu0 0.0
    %4660 = vmatprep.subr.mxu0 0.0
    %4661 = vmatpush1.msra.mxu0 0.0
    %4662 = vmatprep.subr.mxu0 0.0
    %4663 = vmatpush1.msra.mxu0 0.0
    %4664 = vmatprep.subr.mxu0 0.0
    %4665 = vmatpush1.msra.mxu0 0.0
    %4666 = vmatprep.subr.mxu0 0.0
    %4667 = vmatpush1.msra.mxu0 0.0
    %4668 = vmatprep.subr.mxu0 0.0
    %4669 = vmatpush1.msra.mxu0 0.0
    %4670 = vmatprep.subr.mxu0 0.0
    %4671 = vmatpush1.msra.mxu0 0.0
    %4672 = vmatprep.subr.mxu0 0.0
    %4673 = vmatpush1.msra.mxu0 0.0
    %4674 = vmatprep.subr.mxu0 0.0
    %4675 = vmatpush1.msra.mxu0 0.0
    %4676 = vmatprep.subr.mxu0 0.0
    %4677 = vmatpush1.msra.mxu0 0.0
    %4678 = vmatprep.subr.mxu0 0.0
    %4679 = vmatpush1.msra.mxu0 0.0
    %4680 = vmatprep.subr.mxu0 0.0
    %4681 = vmatpush1.msra.mxu0 0.0
    %4682 = vmatprep.subr.mxu0 0.0
    %4683 = vmatpush1.msra.mxu0 0.0
    %4684 = vmatprep.subr.mxu0 0.0
    %4685 = vmatpush1.msra.mxu0 0.0
    %4686 = vmatprep.subr.mxu0 0.0
    %4687 = vmatpush1.msra.mxu0 0.0
    %4688 = vmatprep.subr.mxu0 0.0
    %4689 = vmatpush1.msra.mxu0 0.0
    %4690 = vmatprep.subr.mxu0 0.0
    %4691 = vmatpush1.msra.mxu0 0.0
    %4692 = vmatprep.subr.mxu0 0.0
    %4693 = vmatpush1.msra.mxu0 0.0
    %4694 = vmatprep.subr.mxu0 0.0
    %4695 = vmatpush1.msra.mxu0 0.0
    %4696 = vmatprep.subr.mxu0 0.0
    %4697 = vmatpush1.msra.mxu0 0.0
    %4698 = vmatprep.subr.mxu0 0.0
    %4699 = vmatpush1.msra.mxu0 0.0
    %4700 = vmatprep.subr.mxu0 0.0
    %4701 = vmatpush1.msra.mxu0 0.0
    %4702 = vmatprep.subr.mxu0 0.0
    %4703 = vmatpush1.msra.mxu0 0.0
    %4704 = vmatprep.subr.mxu0 0.0
    %4705 = vmatpush1.msra.mxu0 0.0
    %4706 = vmatprep.mubr.f32.mxu0 0.0
    %4707 = vmatmul.mubr.f32.gmra.mrb[0].mxu0 %v4640
    %v4708 = vpop.f32.mrb[0].mxu0
    %v4709 = vadd.f32 0.0, %v4708
    %v4710 = vpop.f32.mrb[0].mxu0
    %4711 = vdwg.mxu0
    %v4712 = vadd.f32 %v2131, %v4709
    %v4713 = vxor.u32 %v4712, 2147483648
    %v4714 = vmul.f32 %v4713, 1.442695
    %v4715 = vpow.pop %v4714
    %v4716 = vadd.f32 %v4715, 1.0
    %v4717 = vrcp.pop %v4716
    %v4718 = vmul.f32 1.0, %v4717
    %v4719 = vtanh.pop %v4712
    %v4720 = vmul.f32 %v4718, %v4375
    %4722 = vrot.lane.b32.xlu0 %v4719, 64
    %v4723 = vpop.permute.xlu0 %4722
    %v4725 = vmul.f32 %v4718, %v4723
    %4727 = vrot.lane.b32.xlu0 %v4725, 32
    %v4728 = vpop.permute.xlu0 %4727
    %v4730 = vadd.f32 %v4720, %v4728
    %v4731 = vtanh.pop %v4730
    %4733 = vrot.lane.b32.xlu0 %v4731, 64
    %v4734 = vpop.permute.xlu0 %4733
    %v4736 = vmul.f32 %v4718, %v4734
    %4738 = vrot.lane.b32.xlu0 %v4736, 32
    %v4739 = vpop.permute.xlu0 %4738
    %4741 = vrot.lane.b32.xlu0 %v4486, 64
    %v4742 = vpop.permute.xlu0 %4741
    %v4744 = vsel %vm278, %v4739, %v4742
    %v4746 = vsel %vm388, %v4744, 0
    %4748 = vmatprep.subr.mxu0 0.0
    %4749 = vmatpush1.msra.mxu0 %v2138
    %4750 = vmatprep.subr.mxu0 0.0
    %4751 = vmatpush1.msra.mxu0 %v2139
    %4752 = vmatprep.subr.mxu0 0.0
    %4753 = vmatpush1.msra.mxu0 %v2140
    %4754 = vmatprep.subr.mxu0 0.0
    %4755 = vmatpush1.msra.mxu0 %v2141
    %4756 = vmatprep.subr.mxu0 0.0
    %4757 = vmatpush1.msra.mxu0 %v2142
    %4758 = vmatprep.subr.mxu0 0.0
    %4759 = vmatpush1.msra.mxu0 %v2143
    %4760 = vmatprep.subr.mxu0 0.0
    %4761 = vmatpush1.msra.mxu0 %v2144
    %4762 = vmatprep.subr.mxu0 0.0
    %4763 = vmatpush1.msra.mxu0 %v2145
    %4764 = vmatprep.subr.mxu0 0.0
    %4765 = vmatpush1.msra.mxu0 0.0
    %4766 = vmatprep.subr.mxu0 0.0
    %4767 = vmatpush1.msra.mxu0 0.0
    %4768 = vmatprep.subr.mxu0 0.0
    %4769 = vmatpush1.msra.mxu0 0.0
    %4770 = vmatprep.subr.mxu0 0.0
    %4771 = vmatpush1.msra.mxu0 0.0
    %4772 = vmatprep.subr.mxu0 0.0
    %4773 = vmatpush1.msra.mxu0 0.0
    %4774 = vmatprep.subr.mxu0 0.0
    %4775 = vmatpush1.msra.mxu0 0.0
    %4776 = vmatprep.subr.mxu0 0.0
    %4777 = vmatpush1.msra.mxu0 0.0
    %4778 = vmatprep.subr.mxu0 0.0
    %4779 = vmatpush1.msra.mxu0 0.0
    %4780 = vmatprep.subr.mxu0 0.0
    %4781 = vmatpush1.msra.mxu0 0.0
    %4782 = vmatprep.subr.mxu0 0.0
    %4783 = vmatpush1.msra.mxu0 0.0
    %4784 = vmatprep.subr.mxu0 0.0
    %4785 = vmatpush1.msra.mxu0 0.0
    %4786 = vmatprep.subr.mxu0 0.0
    %4787 = vmatpush1.msra.mxu0 0.0
    %4788 = vmatprep.subr.mxu0 0.0
    %4789 = vmatpush1.msra.mxu0 0.0
    %4790 = vmatprep.subr.mxu0 0.0
    %4791 = vmatpush1.msra.mxu0 0.0
    %4792 = vmatprep.subr.mxu0 0.0
    %4793 = vmatpush1.msra.mxu0 0.0
    %4794 = vmatprep.subr.mxu0 0.0
    %4795 = vmatpush1.msra.mxu0 0.0
    %4796 = vmatprep.subr.mxu0 0.0
    %4797 = vmatpush1.msra.mxu0 0.0
    %4798 = vmatprep.subr.mxu0 0.0
    %4799 = vmatpush1.msra.mxu0 0.0
    %4800 = vmatprep.subr.mxu0 0.0
    %4801 = vmatpush1.msra.mxu0 0.0
    %4802 = vmatprep.subr.mxu0 0.0
    %4803 = vmatpush1.msra.mxu0 0.0
    %4804 = vmatprep.subr.mxu0 0.0
    %4805 = vmatpush1.msra.mxu0 0.0
    %4806 = vmatprep.subr.mxu0 0.0
    %4807 = vmatpush1.msra.mxu0 0.0
    %4808 = vmatprep.subr.mxu0 0.0
    %4809 = vmatpush1.msra.mxu0 0.0
    %4810 = vmatprep.subr.mxu0 0.0
    %4811 = vmatpush1.msra.mxu0 0.0
    %4812 = vmatprep.mubr.f32.mxu0 0.0
    %4813 = vmatmul.mubr.f32.gmra.mrb[0].mxu0 %v4746
    %v4814 = vpop.f32.mrb[0].mxu0
    %v4815 = vadd.f32 %v2256, %v4814
    %v4816 = vpop.f32.mrb[0].mxu0
    %4817 = vdwg.mxu0
    %v4818 = vxor.u32 %v4815, 2147483648
    %v4819 = vmul.f32 %v4818, 1.442695
    %v4820 = vpow.pop %v4819
    %v4821 = vadd.f32 %v4820, 1.0
    %v4822 = vrcp.pop %v4821
    %v4823 = vmul.f32 1.0, %v4822
    %v4824 = vtanh.pop %v4815
    %v4825 = vmul.f32 %v4823, %v4480
    %4827 = vrot.lane.b32.xlu0 %v4824, 64
    %v4828 = vpop.permute.xlu0 %4827
    %v4830 = vmul.f32 %v4823, %v4828
    %4832 = vrot.lane.b32.xlu0 %v4830, 32
    %v4833 = vpop.permute.xlu0 %4832
    %v4835 = vadd.f32 %v4825, %v4833
    %v4836 = vtanh.pop %v4835
    %4838 = vrot.lane.b32.xlu0 %v4836, 64
    %v4839 = vpop.permute.xlu0 %4838
    %v4841 = vmul.f32 %v4823, %v4839
    %4843 = vrot.lane.b32.xlu0 %v4841, 32
    %v4844 = vpop.permute.xlu0 %4843
    %v4845 = vsel %vm278, %v4844, 0
    %4847 = vmatprep.subr.mxu0 0.0
    %4848 = vmatpush1.msra.mxu0 %v2147
    %4849 = vmatprep.subr.mxu0 0.0
    %4850 = vmatpush1.msra.mxu0 %v2148
    %4851 = vmatprep.subr.mxu0 0.0
    %4852 = vmatpush1.msra.mxu0 %v2149
    %4853 = vmatprep.subr.mxu0 0.0
    %4854 = vmatpush1.msra.mxu0 %v2150
    %4855 = vmatprep.subr.mxu0 0.0
    %4856 = vmatpush1.msra.mxu0 0.0
    %4857 = vmatprep.subr.mxu0 0.0
    %4858 = vmatpush1.msra.mxu0 0.0
    %4859 = vmatprep.subr.mxu0 0.0
    %4860 = vmatpush1.msra.mxu0 0.0
    %4861 = vmatprep.subr.mxu0 0.0
    %4862 = vmatpush1.msra.mxu0 0.0
    %4863 = vmatprep.subr.mxu0 0.0
    %4864 = vmatpush1.msra.mxu0 0.0
    %4865 = vmatprep.subr.mxu0 0.0
    %4866 = vmatpush1.msra.mxu0 0.0
    %4867 = vmatprep.subr.mxu0 0.0
    %4868 = vmatpush1.msra.mxu0 0.0
    %4869 = vmatprep.subr.mxu0 0.0
    %4870 = vmatpush1.msra.mxu0 0.0
    %4871 = vmatprep.subr.mxu0 0.0
    %4872 = vmatpush1.msra.mxu0 0.0
    %4873 = vmatprep.subr.mxu0 0.0
    %4874 = vmatpush1.msra.mxu0 0.0
    %4875 = vmatprep.subr.mxu0 0.0
    %4876 = vmatpush1.msra.mxu0 0.0
    %4877 = vmatprep.subr.mxu0 0.0
    %4878 = vmatpush1.msra.mxu0 0.0
    %4879 = vmatprep.subr.mxu0 0.0
    %4880 = vmatpush1.msra.mxu0 0.0
    %4881 = vmatprep.subr.mxu0 0.0
    %4882 = vmatpush1.msra.mxu0 0.0
    %4883 = vmatprep.subr.mxu0 0.0
    %4884 = vmatpush1.msra.mxu0 0.0
    %4885 = vmatprep.subr.mxu0 0.0
    %4886 = vmatpush1.msra.mxu0 0.0
    %4887 = vmatprep.subr.mxu0 0.0
    %4888 = vmatpush1.msra.mxu0 0.0
    %4889 = vmatprep.subr.mxu0 0.0
    %4890 = vmatpush1.msra.mxu0 0.0
    %4891 = vmatprep.subr.mxu0 0.0
    %4892 = vmatpush1.msra.mxu0 0.0
    %4893 = vmatprep.subr.mxu0 0.0
    %4894 = vmatpush1.msra.mxu0 0.0
    %4895 = vmatprep.subr.mxu0 0.0
    %4896 = vmatpush1.msra.mxu0 0.0
    %4897 = vmatprep.subr.mxu0 0.0
    %4898 = vmatpush1.msra.mxu0 0.0
    %4899 = vmatprep.subr.mxu0 0.0
    %4900 = vmatpush1.msra.mxu0 0.0
    %4901 = vmatprep.subr.mxu0 0.0
    %4902 = vmatpush1.msra.mxu0 0.0
    %4903 = vmatprep.subr.mxu0 0.0
    %4904 = vmatpush1.msra.mxu0 0.0
    %4905 = vmatprep.subr.mxu0 0.0
    %4906 = vmatpush1.msra.mxu0 0.0
    %4907 = vmatprep.subr.mxu0 0.0
    %4908 = vmatpush1.msra.mxu0 0.0
    %4909 = vmatprep.subr.mxu0 0.0
    %4910 = vmatpush1.msra.mxu0 0.0
    %4911 = vmatprep.mubr.f32.mxu0 0.0
    %4912 = vmatmul.mubr.f32.gmra.mrb[0].mxu0 %v4845
    %v4913 = vpop.f32.mrb[0].mxu0
    %v4914 = vadd.f32 %v2359, %v4913
    %v4915 = vpop.f32.mrb[0].mxu0
    %4916 = vdwg.mxu0
    %s4917 = scalar_lea.vmem %s15, 14
    %4918 = vst [vmem:[%s4917] sm:$0x3] %v4914
    %s4919 = scalar_lea.vmem [#allocation16], 224
    %v4920 = vld [vmem:[%s4919] sm:$0xff]
    %v4921 = vld [vmem:[%s4919 + $0x8] sm:$0xff]
    %v4922 = vld [vmem:[%s4919 + $0x10] sm:$0xff]
    %v4923 = vld [vmem:[%s4919 + $0x18] sm:$0xff]
    %4924 = vmatprep.subr.mxu0 0.0
    %4925 = vmatpush1.msra.mxu0 %v4920
    %4926 = vmatprep.subr.mxu0 0.0
    %4927 = vmatpush1.msra.mxu0 %v4921
    %4928 = vmatprep.subr.mxu0 0.0
    %4929 = vmatpush1.msra.mxu0 %v4922
    %4930 = vmatprep.subr.mxu0 0.0
    %4931 = vmatpush1.msra.mxu0 %v4923
    %4932 = vmatprep.subr.mxu0 0.0
    %4933 = vmatpush1.msra.mxu0 0.0
    %4934 = vmatprep.subr.mxu0 0.0
    %4935 = vmatpush1.msra.mxu0 0.0
    %4936 = vmatprep.subr.mxu0 0.0
    %4937 = vmatpush1.msra.mxu0 0.0
    %4938 = vmatprep.subr.mxu0 0.0
    %4939 = vmatpush1.msra.mxu0 0.0
    %4940 = vmatprep.subr.mxu0 0.0
    %4941 = vmatpush1.msra.mxu0 0.0
    %4942 = vmatprep.subr.mxu0 0.0
    %4943 = vmatpush1.msra.mxu0 0.0
    %4944 = vmatprep.subr.mxu0 0.0
    %4945 = vmatpush1.msra.mxu0 0.0
    %4946 = vmatprep.subr.mxu0 0.0
    %4947 = vmatpush1.msra.mxu0 0.0
    %4948 = vmatprep.subr.mxu0 0.0
    %4949 = vmatpush1.msra.mxu0 0.0
    %4950 = vmatprep.subr.mxu0 0.0
    %4951 = vmatpush1.msra.mxu0 0.0
    %4952 = vmatprep.subr.mxu0 0.0
    %4953 = vmatpush1.msra.mxu0 0.0
    %4954 = vmatprep.subr.mxu0 0.0
    %4955 = vmatpush1.msra.mxu0 0.0
    %4956 = vmatprep.subr.mxu0 0.0
    %4957 = vmatpush1.msra.mxu0 0.0
    %4958 = vmatprep.subr.mxu0 0.0
    %4959 = vmatpush1.msra.mxu0 0.0
    %4960 = vmatprep.subr.mxu0 0.0
    %4961 = vmatpush1.msra.mxu0 0.0
    %4962 = vmatprep.subr.mxu0 0.0
    %4963 = vmatpush1.msra.mxu0 0.0
    %4964 = vmatprep.subr.mxu0 0.0
    %4965 = vmatpush1.msra.mxu0 0.0
    %4966 = vmatprep.subr.mxu0 0.0
    %4967 = vmatpush1.msra.mxu0 0.0
    %4968 = vmatprep.subr.mxu0 0.0
    %4969 = vmatpush1.msra.mxu0 0.0
    %4970 = vmatprep.subr.mxu0 0.0
    %4971 = vmatpush1.msra.mxu0 0.0
    %4972 = vmatprep.subr.mxu0 0.0
    %4973 = vmatpush1.msra.mxu0 0.0
    %4974 = vmatprep.subr.mxu0 0.0
    %4975 = vmatpush1.msra.mxu0 0.0
    %4976 = vmatprep.subr.mxu0 0.0
    %4977 = vmatpush1.msra.mxu0 0.0
    %4978 = vmatprep.subr.mxu0 0.0
    %4979 = vmatpush1.msra.mxu0 0.0
    %4980 = vmatprep.subr.mxu0 0.0
    %4981 = vmatpush1.msra.mxu0 0.0
    %4982 = vmatprep.subr.mxu0 0.0
    %4983 = vmatpush1.msra.mxu0 0.0
    %4984 = vmatprep.subr.mxu0 0.0
    %4985 = vmatpush1.msra.mxu0 0.0
    %4986 = vmatprep.subr.mxu0 0.0
    %4987 = vmatpush1.msra.mxu0 0.0
    %4988 = vmatprep.mubr.f32.mxu0 0.0
    %4989 = vmatmul.mubr.f32.gmra.mrb[0].mxu0 %v4845
    %v4990 = vpop.f32.mrb[0].mxu0
    %v4991 = vadd.f32 0.0, %v4990
    %v4992 = vpop.f32.mrb[0].mxu0
    %4993 = vdwg.mxu0
    %v4994 = vadd.f32 %v4639, %v4991
    %v4995 = vsel %vm278, %v4739, 0
    %4997 = vmatprep.subr.mxu0 0.0
    %4998 = vmatpush1.msra.mxu0 %v2134
    %4999 = vmatprep.subr.mxu0 0.0
    %5000 = vmatpush1.msra.mxu0 %v2135
    %5001 = vmatprep.subr.mxu0 0.0
    %5002 = vmatpush1.msra.mxu0 %v2136
    %5003 = vmatprep.subr.mxu0 0.0
    %5004 = vmatpush1.msra.mxu0 %v2137
    %5005 = vmatprep.subr.mxu0 0.0
    %5006 = vmatpush1.msra.mxu0 0.0
    %5007 = vmatprep.subr.mxu0 0.0
    %5008 = vmatpush1.msra.mxu0 0.0
    %5009 = vmatprep.subr.mxu0 0.0
    %5010 = vmatpush1.msra.mxu0 0.0
    %5011 = vmatprep.subr.mxu0 0.0
    %5012 = vmatpush1.msra.mxu0 0.0
    %5013 = vmatprep.subr.mxu0 0.0
    %5014 = vmatpush1.msra.mxu0 0.0
    %5015 = vmatprep.subr.mxu0 0.0
    %5016 = vmatpush1.msra.mxu0 0.0
    %5017 = vmatprep.subr.mxu0 0.0
    %5018 = vmatpush1.msra.mxu0 0.0
    %5019 = vmatprep.subr.mxu0 0.0
    %5020 = vmatpush1.msra.mxu0 0.0
    %5021 = vmatprep.subr.mxu0 0.0
    %5022 = vmatpush1.msra.mxu0 0.0
    %5023 = vmatprep.subr.mxu0 0.0
    %5024 = vmatpush1.msra.mxu0 0.0
    %5025 = vmatprep.subr.mxu0 0.0
    %5026 = vmatpush1.msra.mxu0 0.0
    %5027 = vmatprep.subr.mxu0 0.0
    %5028 = vmatpush1.msra.mxu0 0.0
    %5029 = vmatprep.subr.mxu0 0.0
    %5030 = vmatpush1.msra.mxu0 0.0
    %5031 = vmatprep.subr.mxu0 0.0
    %5032 = vmatpush1.msra.mxu0 0.0
    %5033 = vmatprep.subr.mxu0 0.0
    %5034 = vmatpush1.msra.mxu0 0.0
    %5035 = vmatprep.subr.mxu0 0.0
    %5036 = vmatpush1.msra.mxu0 0.0
    %5037 = vmatprep.subr.mxu0 0.0
    %5038 = vmatpush1.msra.mxu0 0.0
    %5039 = vmatprep.subr.mxu0 0.0
    %5040 = vmatpush1.msra.mxu0 0.0
    %5041 = vmatprep.subr.mxu0 0.0
    %5042 = vmatpush1.msra.mxu0 0.0
    %5043 = vmatprep.subr.mxu0 0.0
    %5044 = vmatpush1.msra.mxu0 0.0
    %5045 = vmatprep.subr.mxu0 0.0
    %5046 = vmatpush1.msra.mxu0 0.0
    %5047 = vmatprep.subr.mxu0 0.0
    %5048 = vmatpush1.msra.mxu0 0.0
    %5049 = vmatprep.subr.mxu0 0.0
    %5050 = vmatpush1.msra.mxu0 0.0
    %5051 = vmatprep.subr.mxu0 0.0
    %5052 = vmatpush1.msra.mxu0 0.0
    %5053 = vmatprep.subr.mxu0 0.0
    %5054 = vmatpush1.msra.mxu0 0.0
    %5055 = vmatprep.subr.mxu0 0.0
    %5056 = vmatpush1.msra.mxu0 0.0
    %5057 = vmatprep.subr.mxu0 0.0
    %5058 = vmatpush1.msra.mxu0 0.0
    %5059 = vmatprep.subr.mxu0 0.0
    %5060 = vmatpush1.msra.mxu0 0.0
    %5061 = vmatprep.mubr.f32.mxu0 0.0
    %5062 = vmatmul.mubr.f32.gmra.mrb[0].mxu0 %v4995
    %v5063 = vpop.f32.mrb[0].mxu0
    %v5064 = vadd.f32 0.0, %v5063
    %v5065 = vpop.f32.mrb[0].mxu0
    %5066 = vdwg.mxu0
    %v5067 = vadd.f32 %v2056, %v5064
    %v5068 = vxor.u32 %v5067, 2147483648
    %v5069 = vmul.f32 %v5068, 1.442695
    %v5070 = vpow.pop %v5069
    %v5071 = vadd.f32 %v5070, 1.0
    %v5072 = vrcp.pop %v5071
    %v5073 = vmul.f32 1.0, %v5072
    %v5074 = vtanh.pop %v5067
    %v5075 = vmul.f32 %v5073, %v4730
    %5077 = vrot.lane.b32.xlu0 %v5074, 64
    %v5078 = vpop.permute.xlu0 %5077
    %v5080 = vmul.f32 %v5073, %v5078
    %5082 = vrot.lane.b32.xlu0 %v5080, 32
    %v5083 = vpop.permute.xlu0 %5082
    %v5085 = vadd.f32 %v5075, %v5083
    %v5086 = vtanh.pop %v5085
    %5088 = vrot.lane.b32.xlu0 %v5086, 64
    %v5089 = vpop.permute.xlu0 %5088
    %v5091 = vmul.f32 %v5073, %v5089
    %5093 = vrot.lane.b32.xlu0 %v5091, 32
    %v5094 = vpop.permute.xlu0 %5093
    %5096 = vrot.lane.b32.xlu0 %v4841, 64
    %v5097 = vpop.permute.xlu0 %5096
    %v5099 = vsel %vm278, %v5094, %v5097
    %v5101 = vsel %vm388, %v5099, 0
    %5103 = vmatprep.subr.mxu0 0.0
    %5104 = vmatpush1.msra.mxu0 %v2138
    %5105 = vmatprep.subr.mxu0 0.0
    %5106 = vmatpush1.msra.mxu0 %v2139
    %5107 = vmatprep.subr.mxu0 0.0
    %5108 = vmatpush1.msra.mxu0 %v2140
    %5109 = vmatprep.subr.mxu0 0.0
    %5110 = vmatpush1.msra.mxu0 %v2141
    %5111 = vmatprep.subr.mxu0 0.0
    %5112 = vmatpush1.msra.mxu0 %v2142
    %5113 = vmatprep.subr.mxu0 0.0
    %5114 = vmatpush1.msra.mxu0 %v2143
    %5115 = vmatprep.subr.mxu0 0.0
    %5116 = vmatpush1.msra.mxu0 %v2144
    %5117 = vmatprep.subr.mxu0 0.0
    %5118 = vmatpush1.msra.mxu0 %v2145
    %5119 = vmatprep.subr.mxu0 0.0
    %5120 = vmatpush1.msra.mxu0 0.0
    %5121 = vmatprep.subr.mxu0 0.0
    %5122 = vmatpush1.msra.mxu0 0.0
    %5123 = vmatprep.subr.mxu0 0.0
    %5124 = vmatpush1.msra.mxu0 0.0
    %5125 = vmatprep.subr.mxu0 0.0
    %5126 = vmatpush1.msra.mxu0 0.0
    %5127 = vmatprep.subr.mxu0 0.0
    %5128 = vmatpush1.msra.mxu0 0.0
    %5129 = vmatprep.subr.mxu0 0.0
    %5130 = vmatpush1.msra.mxu0 0.0
    %5131 = vmatprep.subr.mxu0 0.0
    %5132 = vmatpush1.msra.mxu0 0.0
    %5133 = vmatprep.subr.mxu0 0.0
    %5134 = vmatpush1.msra.mxu0 0.0
    %5135 = vmatprep.subr.mxu0 0.0
    %5136 = vmatpush1.msra.mxu0 0.0
    %5137 = vmatprep.subr.mxu0 0.0
    %5138 = vmatpush1.msra.mxu0 0.0
    %5139 = vmatprep.subr.mxu0 0.0
    %5140 = vmatpush1.msra.mxu0 0.0
    %5141 = vmatprep.subr.mxu0 0.0
    %5142 = vmatpush1.msra.mxu0 0.0
    %5143 = vmatprep.subr.mxu0 0.0
    %5144 = vmatpush1.msra.mxu0 0.0
    %5145 = vmatprep.subr.mxu0 0.0
    %5146 = vmatpush1.msra.mxu0 0.0
    %5147 = vmatprep.subr.mxu0 0.0
    %5148 = vmatpush1.msra.mxu0 0.0
    %5149 = vmatprep.subr.mxu0 0.0
    %5150 = vmatpush1.msra.mxu0 0.0
    %5151 = vmatprep.subr.mxu0 0.0
    %5152 = vmatpush1.msra.mxu0 0.0
    %5153 = vmatprep.subr.mxu0 0.0
    %5154 = vmatpush1.msra.mxu0 0.0
    %5155 = vmatprep.subr.mxu0 0.0
    %5156 = vmatpush1.msra.mxu0 0.0
    %5157 = vmatprep.subr.mxu0 0.0
    %5158 = vmatpush1.msra.mxu0 0.0
    %5159 = vmatprep.subr.mxu0 0.0
    %5160 = vmatpush1.msra.mxu0 0.0
    %5161 = vmatprep.subr.mxu0 0.0
    %5162 = vmatpush1.msra.mxu0 0.0
    %5163 = vmatprep.subr.mxu0 0.0
    %5164 = vmatpush1.msra.mxu0 0.0
    %5165 = vmatprep.subr.mxu0 0.0
    %5166 = vmatpush1.msra.mxu0 0.0
    %5167 = vmatprep.mubr.f32.mxu0 0.0
    %5168 = vmatmul.mubr.f32.gmra.mrb[0].mxu0 %v5101
    %v5169 = vpop.f32.mrb[0].mxu0
    %v5170 = vadd.f32 %v2256, %v5169
    %v5171 = vpop.f32.mrb[0].mxu0
    %5172 = vdwg.mxu0
    %v5173 = vxor.u32 %v5170, 2147483648
    %v5174 = vmul.f32 %v5173, 1.442695
    %v5175 = vpow.pop %v5174
    %v5176 = vadd.f32 %v5175, 1.0
    %v5177 = vrcp.pop %v5176
    %v5178 = vmul.f32 1.0, %v5177
    %v5179 = vtanh.pop %v5170
    %v5180 = vmul.f32 %v5178, %v4835
    %5182 = vrot.lane.b32.xlu0 %v5179, 64
    %v5183 = vpop.permute.xlu0 %5182
    %v5185 = vmul.f32 %v5178, %v5183
    %5187 = vrot.lane.b32.xlu0 %v5185, 32
    %v5188 = vpop.permute.xlu0 %5187
    %v5190 = vadd.f32 %v5180, %v5188
    %v5191 = vtanh.pop %v5190
    %5193 = vrot.lane.b32.xlu0 %v5191, 64
    %v5194 = vpop.permute.xlu0 %5193
    %v5196 = vmul.f32 %v5178, %v5194
    %5198 = vrot.lane.b32.xlu0 %v5196, 32
    %v5199 = vpop.permute.xlu0 %5198
    %v5200 = vsel %vm278, %v5199, 0
    %5202 = vmatprep.subr.mxu0 0.0
    %5203 = vmatpush1.msra.mxu0 %v2147
    %5204 = vmatprep.subr.mxu0 0.0
    %5205 = vmatpush1.msra.mxu0 %v2148
    %5206 = vmatprep.subr.mxu0 0.0
    %5207 = vmatpush1.msra.mxu0 %v2149
    %5208 = vmatprep.subr.mxu0 0.0
    %5209 = vmatpush1.msra.mxu0 %v2150
    %5210 = vmatprep.subr.mxu0 0.0
    %5211 = vmatpush1.msra.mxu0 0.0
    %5212 = vmatprep.subr.mxu0 0.0
    %5213 = vmatpush1.msra.mxu0 0.0
    %5214 = vmatprep.subr.mxu0 0.0
    %5215 = vmatpush1.msra.mxu0 0.0
    %5216 = vmatprep.subr.mxu0 0.0
    %5217 = vmatpush1.msra.mxu0 0.0
    %5218 = vmatprep.subr.mxu0 0.0
    %5219 = vmatpush1.msra.mxu0 0.0
    %5220 = vmatprep.subr.mxu0 0.0
    %5221 = vmatpush1.msra.mxu0 0.0
    %5222 = vmatprep.subr.mxu0 0.0
    %5223 = vmatpush1.msra.mxu0 0.0
    %5224 = vmatprep.subr.mxu0 0.0
    %5225 = vmatpush1.msra.mxu0 0.0
    %5226 = vmatprep.subr.mxu0 0.0
    %5227 = vmatpush1.msra.mxu0 0.0
    %5228 = vmatprep.subr.mxu0 0.0
    %5229 = vmatpush1.msra.mxu0 0.0
    %5230 = vmatprep.subr.mxu0 0.0
    %5231 = vmatpush1.msra.mxu0 0.0
    %5232 = vmatprep.subr.mxu0 0.0
    %5233 = vmatpush1.msra.mxu0 0.0
    %5234 = vmatprep.subr.mxu0 0.0
    %5235 = vmatpush1.msra.mxu0 0.0
    %5236 = vmatprep.subr.mxu0 0.0
    %5237 = vmatpush1.msra.mxu0 0.0
    %5238 = vmatprep.subr.mxu0 0.0
    %5239 = vmatpush1.msra.mxu0 0.0
    %5240 = vmatprep.subr.mxu0 0.0
    %5241 = vmatpush1.msra.mxu0 0.0
    %5242 = vmatprep.subr.mxu0 0.0
    %5243 = vmatpush1.msra.mxu0 0.0
    %5244 = vmatprep.subr.mxu0 0.0
    %5245 = vmatpush1.msra.mxu0 0.0
    %5246 = vmatprep.subr.mxu0 0.0
    %5247 = vmatpush1.msra.mxu0 0.0
    %5248 = vmatprep.subr.mxu0 0.0
    %5249 = vmatpush1.msra.mxu0 0.0
    %5250 = vmatprep.subr.mxu0 0.0
    %5251 = vmatpush1.msra.mxu0 0.0
    %5252 = vmatprep.subr.mxu0 0.0
    %5253 = vmatpush1.msra.mxu0 0.0
    %5254 = vmatprep.subr.mxu0 0.0
    %5255 = vmatpush1.msra.mxu0 0.0
    %5256 = vmatprep.subr.mxu0 0.0
    %5257 = vmatpush1.msra.mxu0 0.0
    %5258 = vmatprep.subr.mxu0 0.0
    %5259 = vmatpush1.msra.mxu0 0.0
    %5260 = vmatprep.subr.mxu0 0.0
    %5261 = vmatpush1.msra.mxu0 0.0
    %5262 = vmatprep.subr.mxu0 0.0
    %5263 = vmatpush1.msra.mxu0 0.0
    %5264 = vmatprep.subr.mxu0 0.0
    %5265 = vmatpush1.msra.mxu0 0.0
    %5266 = vmatprep.mubr.f32.mxu0 0.0
    %5267 = vmatmul.mubr.f32.gmra.mrb[0].mxu0 %v5200
    %v5268 = vpop.f32.mrb[0].mxu0
    %v5269 = vadd.f32 %v2359, %v5268
    %v5270 = vpop.f32.mrb[0].mxu0
    %5271 = vdwg.mxu0
    %s5272 = scalar_lea.vmem %s15, 16
    %5273 = vst [vmem:[%s5272] sm:$0x3] %v5269
    %s5274 = scalar_lea.vmem [#allocation16], 256
    %v5275 = vld [vmem:[%s5274] sm:$0xff]
    %v5276 = vld [vmem:[%s5274 + $0x8] sm:$0xff]
    %v5277 = vld [vmem:[%s5274 + $0x10] sm:$0xff]
    %v5278 = vld [vmem:[%s5274 + $0x18] sm:$0xff]
    %5279 = vmatprep.subr.mxu0 0.0
    %5280 = vmatpush1.msra.mxu0 %v5275
    %5281 = vmatprep.subr.mxu0 0.0
    %5282 = vmatpush1.msra.mxu0 %v5276
    %5283 = vmatprep.subr.mxu0 0.0
    %5284 = vmatpush1.msra.mxu0 %v5277
    %5285 = vmatprep.subr.mxu0 0.0
    %5286 = vmatpush1.msra.mxu0 %v5278
    %5287 = vmatprep.subr.mxu0 0.0
    %5288 = vmatpush1.msra.mxu0 0.0
    %5289 = vmatprep.subr.mxu0 0.0
    %5290 = vmatpush1.msra.mxu0 0.0
    %5291 = vmatprep.subr.mxu0 0.0
    %5292 = vmatpush1.msra.mxu0 0.0
    %5293 = vmatprep.subr.mxu0 0.0
    %5294 = vmatpush1.msra.mxu0 0.0
    %5295 = vmatprep.subr.mxu0 0.0
    %5296 = vmatpush1.msra.mxu0 0.0
    %5297 = vmatprep.subr.mxu0 0.0
    %5298 = vmatpush1.msra.mxu0 0.0
    %5299 = vmatprep.subr.mxu0 0.0
    %5300 = vmatpush1.msra.mxu0 0.0
    %5301 = vmatprep.subr.mxu0 0.0
    %5302 = vmatpush1.msra.mxu0 0.0
    %5303 = vmatprep.subr.mxu0 0.0
    %5304 = vmatpush1.msra.mxu0 0.0
    %5305 = vmatprep.subr.mxu0 0.0
    %5306 = vmatpush1.msra.mxu0 0.0
    %5307 = vmatprep.subr.mxu0 0.0
    %5308 = vmatpush1.msra.mxu0 0.0
    %5309 = vmatprep.subr.mxu0 0.0
    %5310 = vmatpush1.msra.mxu0 0.0
    %5311 = vmatprep.subr.mxu0 0.0
    %5312 = vmatpush1.msra.mxu0 0.0
    %5313 = vmatprep.subr.mxu0 0.0
    %5314 = vmatpush1.msra.mxu0 0.0
    %5315 = vmatprep.subr.mxu0 0.0
    %5316 = vmatpush1.msra.mxu0 0.0
    %5317 = vmatprep.subr.mxu0 0.0
    %5318 = vmatpush1.msra.mxu0 0.0
    %5319 = vmatprep.subr.mxu0 0.0
    %5320 = vmatpush1.msra.mxu0 0.0
    %5321 = vmatprep.subr.mxu0 0.0
    %5322 = vmatpush1.msra.mxu0 0.0
    %5323 = vmatprep.subr.mxu0 0.0
    %5324 = vmatpush1.msra.mxu0 0.0
    %5325 = vmatprep.subr.mxu0 0.0
    %5326 = vmatpush1.msra.mxu0 0.0
    %5327 = vmatprep.subr.mxu0 0.0
    %5328 = vmatpush1.msra.mxu0 0.0
    %5329 = vmatprep.subr.mxu0 0.0
    %5330 = vmatpush1.msra.mxu0 0.0
    %5331 = vmatprep.subr.mxu0 0.0
    %5332 = vmatpush1.msra.mxu0 0.0
    %5333 = vmatprep.subr.mxu0 0.0
    %5334 = vmatpush1.msra.mxu0 0.0
    %5335 = vmatprep.subr.mxu0 0.0
    %5336 = vmatpush1.msra.mxu0 0.0
    %5337 = vmatprep.subr.mxu0 0.0
    %5338 = vmatpush1.msra.mxu0 0.0
    %5339 = vmatprep.subr.mxu0 0.0
    %5340 = vmatpush1.msra.mxu0 0.0
    %5341 = vmatprep.subr.mxu0 0.0
    %5342 = vmatpush1.msra.mxu0 0.0
    %5343 = vmatprep.mubr.f32.mxu0 0.0
    %5344 = vmatmul.mubr.f32.gmra.mrb[0].mxu0 %v5200
    %v5345 = vpop.f32.mrb[0].mxu0
    %v5346 = vadd.f32 0.0, %v5345
    %v5347 = vpop.f32.mrb[0].mxu0
    %5348 = vdwg.mxu0
    %v5349 = vadd.f32 %v4994, %v5346
    %v5350 = vsel %vm278, %v5094, 0
    %5352 = vmatprep.subr.mxu0 0.0
    %5353 = vmatpush1.msra.mxu0 %v2134
    %5354 = vmatprep.subr.mxu0 0.0
    %5355 = vmatpush1.msra.mxu0 %v2135
    %5356 = vmatprep.subr.mxu0 0.0
    %5357 = vmatpush1.msra.mxu0 %v2136
    %5358 = vmatprep.subr.mxu0 0.0
    %5359 = vmatpush1.msra.mxu0 %v2137
    %5360 = vmatprep.subr.mxu0 0.0
    %5361 = vmatpush1.msra.mxu0 0.0
    %5362 = vmatprep.subr.mxu0 0.0
    %5363 = vmatpush1.msra.mxu0 0.0
    %5364 = vmatprep.subr.mxu0 0.0
    %5365 = vmatpush1.msra.mxu0 0.0
    %5366 = vmatprep.subr.mxu0 0.0
    %5367 = vmatpush1.msra.mxu0 0.0
    %5368 = vmatprep.subr.mxu0 0.0
    %5369 = vmatpush1.msra.mxu0 0.0
    %5370 = vmatprep.subr.mxu0 0.0
    %5371 = vmatpush1.msra.mxu0 0.0
    %5372 = vmatprep.subr.mxu0 0.0
    %5373 = vmatpush1.msra.mxu0 0.0
    %5374 = vmatprep.subr.mxu0 0.0
    %5375 = vmatpush1.msra.mxu0 0.0
    %5376 = vmatprep.subr.mxu0 0.0
    %5377 = vmatpush1.msra.mxu0 0.0
    %5378 = vmatprep.subr.mxu0 0.0
    %5379 = vmatpush1.msra.mxu0 0.0
    %5380 = vmatprep.subr.mxu0 0.0
    %5381 = vmatpush1.msra.mxu0 0.0
    %5382 = vmatprep.subr.mxu0 0.0
    %5383 = vmatpush1.msra.mxu0 0.0
    %5384 = vmatprep.subr.mxu0 0.0
    %5385 = vmatpush1.msra.mxu0 0.0
    %5386 = vmatprep.subr.mxu0 0.0
    %5387 = vmatpush1.msra.mxu0 0.0
    %5388 = vmatprep.subr.mxu0 0.0
    %5389 = vmatpush1.msra.mxu0 0.0
    %5390 = vmatprep.subr.mxu0 0.0
    %5391 = vmatpush1.msra.mxu0 0.0
    %5392 = vmatprep.subr.mxu0 0.0
    %5393 = vmatpush1.msra.mxu0 0.0
    %5394 = vmatprep.subr.mxu0 0.0
    %5395 = vmatpush1.msra.mxu0 0.0
    %5396 = vmatprep.subr.mxu0 0.0
    %5397 = vmatpush1.msra.mxu0 0.0
    %5398 = vmatprep.subr.mxu0 0.0
    %5399 = vmatpush1.msra.mxu0 0.0
    %5400 = vmatprep.subr.mxu0 0.0
    %5401 = vmatpush1.msra.mxu0 0.0
    %5402 = vmatprep.subr.mxu0 0.0
    %5403 = vmatpush1.msra.mxu0 0.0
    %5404 = vmatprep.subr.mxu0 0.0
    %5405 = vmatpush1.msra.mxu0 0.0
    %5406 = vmatprep.subr.mxu0 0.0
    %5407 = vmatpush1.msra.mxu0 0.0
    %5408 = vmatprep.subr.mxu0 0.0
    %5409 = vmatpush1.msra.mxu0 0.0
    %5410 = vmatprep.subr.mxu0 0.0
    %5411 = vmatpush1.msra.mxu0 0.0
    %5412 = vmatprep.subr.mxu0 0.0
    %5413 = vmatpush1.msra.mxu0 0.0
    %5414 = vmatprep.subr.mxu0 0.0
    %5415 = vmatpush1.msra.mxu0 0.0
    %5416 = vmatprep.mubr.f32.mxu0 0.0
    %5417 = vmatmul.mubr.f32.gmra.mrb[0].mxu0 %v5350
    %v5418 = vpop.f32.mrb[0].mxu0
    %v5419 = vadd.f32 0.0, %v5418
    %v5420 = vpop.f32.mrb[0].mxu0
    %5421 = vdwg.mxu0
    %v5422 = vadd.f32 %v2131, %v5419
    %v5423 = vxor.u32 %v5422, 2147483648
    %v5424 = vmul.f32 %v5423, 1.442695
    %v5425 = vpow.pop %v5424
    %v5426 = vadd.f32 %v5425, 1.0
    %v5427 = vrcp.pop %v5426
    %v5428 = vmul.f32 1.0, %v5427
    %v5429 = vtanh.pop %v5422
    %v5430 = vmul.f32 %v5428, %v5085
    %5432 = vrot.lane.b32.xlu0 %v5429, 64
    %v5433 = vpop.permute.xlu0 %5432
    %v5435 = vmul.f32 %v5428, %v5433
    %5437 = vrot.lane.b32.xlu0 %v5435, 32
    %v5438 = vpop.permute.xlu0 %5437
    %v5440 = vadd.f32 %v5430, %v5438
    %v5441 = vtanh.pop %v5440
    %5443 = vrot.lane.b32.xlu0 %v5441, 64
    %v5444 = vpop.permute.xlu0 %5443
    %v5446 = vmul.f32 %v5428, %v5444
    %5448 = vrot.lane.b32.xlu0 %v5446, 32
    %v5449 = vpop.permute.xlu0 %5448
    %5451 = vrot.lane.b32.xlu0 %v5196, 64
    %v5452 = vpop.permute.xlu0 %5451
    %v5454 = vsel %vm278, %v5449, %v5452
    %v5456 = vsel %vm388, %v5454, 0
    %5458 = vmatprep.subr.mxu0 0.0
    %5459 = vmatpush1.msra.mxu0 %v2138
    %5460 = vmatprep.subr.mxu0 0.0
    %5461 = vmatpush1.msra.mxu0 %v2139
    %5462 = vmatprep.subr.mxu0 0.0
    %5463 = vmatpush1.msra.mxu0 %v2140
    %5464 = vmatprep.subr.mxu0 0.0
    %5465 = vmatpush1.msra.mxu0 %v2141
    %5466 = vmatprep.subr.mxu0 0.0
    %5467 = vmatpush1.msra.mxu0 %v2142
    %5468 = vmatprep.subr.mxu0 0.0
    %5469 = vmatpush1.msra.mxu0 %v2143
    %5470 = vmatprep.subr.mxu0 0.0
    %5471 = vmatpush1.msra.mxu0 %v2144
    %5472 = vmatprep.subr.mxu0 0.0
    %5473 = vmatpush1.msra.mxu0 %v2145
    %5474 = vmatprep.subr.mxu0 0.0
    %5475 = vmatpush1.msra.mxu0 0.0
    %5476 = vmatprep.subr.mxu0 0.0
    %5477 = vmatpush1.msra.mxu0 0.0
    %5478 = vmatprep.subr.mxu0 0.0
    %5479 = vmatpush1.msra.mxu0 0.0
    %5480 = vmatprep.subr.mxu0 0.0
    %5481 = vmatpush1.msra.mxu0 0.0
    %5482 = vmatprep.subr.mxu0 0.0
    %5483 = vmatpush1.msra.mxu0 0.0
    %5484 = vmatprep.subr.mxu0 0.0
    %5485 = vmatpush1.msra.mxu0 0.0
    %5486 = vmatprep.subr.mxu0 0.0
    %5487 = vmatpush1.msra.mxu0 0.0
    %5488 = vmatprep.subr.mxu0 0.0
    %5489 = vmatpush1.msra.mxu0 0.0
    %5490 = vmatprep.subr.mxu0 0.0
    %5491 = vmatpush1.msra.mxu0 0.0
    %5492 = vmatprep.subr.mxu0 0.0
    %5493 = vmatpush1.msra.mxu0 0.0
    %5494 = vmatprep.subr.mxu0 0.0
    %5495 = vmatpush1.msra.mxu0 0.0
    %5496 = vmatprep.subr.mxu0 0.0
    %5497 = vmatpush1.msra.mxu0 0.0
    %5498 = vmatprep.subr.mxu0 0.0
    %5499 = vmatpush1.msra.mxu0 0.0
    %5500 = vmatprep.subr.mxu0 0.0
    %5501 = vmatpush1.msra.mxu0 0.0
    %5502 = vmatprep.subr.mxu0 0.0
    %5503 = vmatpush1.msra.mxu0 0.0
    %5504 = vmatprep.subr.mxu0 0.0
    %5505 = vmatpush1.msra.mxu0 0.0
    %5506 = vmatprep.subr.mxu0 0.0
    %5507 = vmatpush1.msra.mxu0 0.0
    %5508 = vmatprep.subr.mxu0 0.0
    %5509 = vmatpush1.msra.mxu0 0.0
    %5510 = vmatprep.subr.mxu0 0.0
    %5511 = vmatpush1.msra.mxu0 0.0
    %5512 = vmatprep.subr.mxu0 0.0
    %5513 = vmatpush1.msra.mxu0 0.0
    %5514 = vmatprep.subr.mxu0 0.0
    %5515 = vmatpush1.msra.mxu0 0.0
    %5516 = vmatprep.subr.mxu0 0.0
    %5517 = vmatpush1.msra.mxu0 0.0
    %5518 = vmatprep.subr.mxu0 0.0
    %5519 = vmatpush1.msra.mxu0 0.0
    %5520 = vmatprep.subr.mxu0 0.0
    %5521 = vmatpush1.msra.mxu0 0.0
    %5522 = vmatprep.mubr.f32.mxu0 0.0
    %5523 = vmatmul.mubr.f32.gmra.mrb[0].mxu0 %v5456
    %v5524 = vpop.f32.mrb[0].mxu0
    %v5525 = vadd.f32 %v2256, %v5524
    %v5526 = vpop.f32.mrb[0].mxu0
    %5527 = vdwg.mxu0
    %v5528 = vxor.u32 %v5525, 2147483648
    %v5529 = vmul.f32 %v5528, 1.442695
    %v5530 = vpow.pop %v5529
    %v5531 = vadd.f32 %v5530, 1.0
    %v5532 = vrcp.pop %v5531
    %v5533 = vmul.f32 1.0, %v5532
    %v5534 = vtanh.pop %v5525
    %v5535 = vmul.f32 %v5533, %v5190
    %5537 = vrot.lane.b32.xlu0 %v5534, 64
    %v5538 = vpop.permute.xlu0 %5537
    %v5540 = vmul.f32 %v5533, %v5538
    %5542 = vrot.lane.b32.xlu0 %v5540, 32
    %v5543 = vpop.permute.xlu0 %5542
    %v5545 = vadd.f32 %v5535, %v5543
    %v5546 = vtanh.pop %v5545
    %5548 = vrot.lane.b32.xlu0 %v5546, 64
    %v5549 = vpop.permute.xlu0 %5548
    %v5551 = vmul.f32 %v5533, %v5549
    %5553 = vrot.lane.b32.xlu0 %v5551, 32
    %v5554 = vpop.permute.xlu0 %5553
    %v5555 = vsel %vm278, %v5554, 0
    %5557 = vmatprep.subr.mxu0 0.0
    %5558 = vmatpush1.msra.mxu0 %v2147
    %5559 = vmatprep.subr.mxu0 0.0
    %5560 = vmatpush1.msra.mxu0 %v2148
    %5561 = vmatprep.subr.mxu0 0.0
    %5562 = vmatpush1.msra.mxu0 %v2149
    %5563 = vmatprep.subr.mxu0 0.0
    %5564 = vmatpush1.msra.mxu0 %v2150
    %5565 = vmatprep.subr.mxu0 0.0
    %5566 = vmatpush1.msra.mxu0 0.0
    %5567 = vmatprep.subr.mxu0 0.0
    %5568 = vmatpush1.msra.mxu0 0.0
    %5569 = vmatprep.subr.mxu0 0.0
    %5570 = vmatpush1.msra.mxu0 0.0
    %5571 = vmatprep.subr.mxu0 0.0
    %5572 = vmatpush1.msra.mxu0 0.0
    %5573 = vmatprep.subr.mxu0 0.0
    %5574 = vmatpush1.msra.mxu0 0.0
    %5575 = vmatprep.subr.mxu0 0.0
    %5576 = vmatpush1.msra.mxu0 0.0
    %5577 = vmatprep.subr.mxu0 0.0
    %5578 = vmatpush1.msra.mxu0 0.0
    %5579 = vmatprep.subr.mxu0 0.0
    %5580 = vmatpush1.msra.mxu0 0.0
    %5581 = vmatprep.subr.mxu0 0.0
    %5582 = vmatpush1.msra.mxu0 0.0
    %5583 = vmatprep.subr.mxu0 0.0
    %5584 = vmatpush1.msra.mxu0 0.0
    %5585 = vmatprep.subr.mxu0 0.0
    %5586 = vmatpush1.msra.mxu0 0.0
    %5587 = vmatprep.subr.mxu0 0.0
    %5588 = vmatpush1.msra.mxu0 0.0
    %5589 = vmatprep.subr.mxu0 0.0
    %5590 = vmatpush1.msra.mxu0 0.0
    %5591 = vmatprep.subr.mxu0 0.0
    %5592 = vmatpush1.msra.mxu0 0.0
    %5593 = vmatprep.subr.mxu0 0.0
    %5594 = vmatpush1.msra.mxu0 0.0
    %5595 = vmatprep.subr.mxu0 0.0
    %5596 = vmatpush1.msra.mxu0 0.0
    %5597 = vmatprep.subr.mxu0 0.0
    %5598 = vmatpush1.msra.mxu0 0.0
    %5599 = vmatprep.subr.mxu0 0.0
    %5600 = vmatpush1.msra.mxu0 0.0
    %5601 = vmatprep.subr.mxu0 0.0
    %5602 = vmatpush1.msra.mxu0 0.0
    %5603 = vmatprep.subr.mxu0 0.0
    %5604 = vmatpush1.msra.mxu0 0.0
    %5605 = vmatprep.subr.mxu0 0.0
    %5606 = vmatpush1.msra.mxu0 0.0
    %5607 = vmatprep.subr.mxu0 0.0
    %5608 = vmatpush1.msra.mxu0 0.0
    %5609 = vmatprep.subr.mxu0 0.0
    %5610 = vmatpush1.msra.mxu0 0.0
    %5611 = vmatprep.subr.mxu0 0.0
    %5612 = vmatpush1.msra.mxu0 0.0
    %5613 = vmatprep.subr.mxu0 0.0
    %5614 = vmatpush1.msra.mxu0 0.0
    %5615 = vmatprep.subr.mxu0 0.0
    %5616 = vmatpush1.msra.mxu0 0.0
    %5617 = vmatprep.subr.mxu0 0.0
    %5618 = vmatpush1.msra.mxu0 0.0
    %5619 = vmatprep.subr.mxu0 0.0
    %5620 = vmatpush1.msra.mxu0 0.0
    %5621 = vmatprep.mubr.f32.mxu0 0.0
    %5622 = vmatmul.mubr.f32.gmra.mrb[0].mxu0 %v5555
    %v5623 = vpop.f32.mrb[0].mxu0
    %v5624 = vadd.f32 %v2359, %v5623
    %v5625 = vpop.f32.mrb[0].mxu0
    %5626 = vdwg.mxu0
    %s5627 = scalar_lea.vmem %s15, 18
    %5628 = vst [vmem:[%s5627] sm:$0x3] %v5624
    %s5629 = scalar_lea.vmem [#allocation16], 288
    %v5630 = vld [vmem:[%s5629] sm:$0xff]
    %v5631 = vld [vmem:[%s5629 + $0x8] sm:$0xff]
    %v5632 = vld [vmem:[%s5629 + $0x10] sm:$0xff]
    %v5633 = vld [vmem:[%s5629 + $0x18] sm:$0xff]
    %5634 = vmatprep.subr.mxu0 0.0
    %5635 = vmatpush1.msra.mxu0 %v5630
    %5636 = vmatprep.subr.mxu0 0.0
    %5637 = vmatpush1.msra.mxu0 %v5631
    %5638 = vmatprep.subr.mxu0 0.0
    %5639 = vmatpush1.msra.mxu0 %v5632
    %5640 = vmatprep.subr.mxu0 0.0
    %5641 = vmatpush1.msra.mxu0 %v5633
    %5642 = vmatprep.subr.mxu0 0.0
    %5643 = vmatpush1.msra.mxu0 0.0
    %5644 = vmatprep.subr.mxu0 0.0
    %5645 = vmatpush1.msra.mxu0 0.0
    %5646 = vmatprep.subr.mxu0 0.0
    %5647 = vmatpush1.msra.mxu0 0.0
    %5648 = vmatprep.subr.mxu0 0.0
    %5649 = vmatpush1.msra.mxu0 0.0
    %5650 = vmatprep.subr.mxu0 0.0
    %5651 = vmatpush1.msra.mxu0 0.0
    %5652 = vmatprep.subr.mxu0 0.0
    %5653 = vmatpush1.msra.mxu0 0.0
    %5654 = vmatprep.subr.mxu0 0.0
    %5655 = vmatpush1.msra.mxu0 0.0
    %5656 = vmatprep.subr.mxu0 0.0
    %5657 = vmatpush1.msra.mxu0 0.0
    %5658 = vmatprep.subr.mxu0 0.0
    %5659 = vmatpush1.msra.mxu0 0.0
    %5660 = vmatprep.subr.mxu0 0.0
    %5661 = vmatpush1.msra.mxu0 0.0
    %5662 = vmatprep.subr.mxu0 0.0
    %5663 = vmatpush1.msra.mxu0 0.0
    %5664 = vmatprep.subr.mxu0 0.0
    %5665 = vmatpush1.msra.mxu0 0.0
    %5666 = vmatprep.subr.mxu0 0.0
    %5667 = vmatpush1.msra.mxu0 0.0
    %5668 = vmatprep.subr.mxu0 0.0
    %5669 = vmatpush1.msra.mxu0 0.0
    %5670 = vmatprep.subr.mxu0 0.0
    %5671 = vmatpush1.msra.mxu0 0.0
    %5672 = vmatprep.subr.mxu0 0.0
    %5673 = vmatpush1.msra.mxu0 0.0
    %5674 = vmatprep.subr.mxu0 0.0
    %5675 = vmatpush1.msra.mxu0 0.0
    %5676 = vmatprep.subr.mxu0 0.0
    %5677 = vmatpush1.msra.mxu0 0.0
    %5678 = vmatprep.subr.mxu0 0.0
    %5679 = vmatpush1.msra.mxu0 0.0
    %5680 = vmatprep.subr.mxu0 0.0
    %5681 = vmatpush1.msra.mxu0 0.0
    %5682 = vmatprep.subr.mxu0 0.0
    %5683 = vmatpush1.msra.mxu0 0.0
    %5684 = vmatprep.subr.mxu0 0.0
    %5685 = vmatpush1.msra.mxu0 0.0
    %5686 = vmatprep.subr.mxu0 0.0
    %5687 = vmatpush1.msra.mxu0 0.0
    %5688 = vmatprep.subr.mxu0 0.0
    %5689 = vmatpush1.msra.mxu0 0.0
    %5690 = vmatprep.subr.mxu0 0.0
    %5691 = vmatpush1.msra.mxu0 0.0
    %5692 = vmatprep.subr.mxu0 0.0
    %5693 = vmatpush1.msra.mxu0 0.0
    %5694 = vmatprep.subr.mxu0 0.0
    %5695 = vmatpush1.msra.mxu0 0.0
    %5696 = vmatprep.subr.mxu0 0.0
    %5697 = vmatpush1.msra.mxu0 0.0
    %5698 = vmatprep.mubr.f32.mxu0 0.0
    %5699 = vmatmul.mubr.f32.gmra.mrb[0].mxu0 %v5555
    %v5700 = vpop.f32.mrb[0].mxu0
    %v5701 = vadd.f32 0.0, %v5700
    %v5702 = vpop.f32.mrb[0].mxu0
    %5703 = vdwg.mxu0
    %v5704 = vadd.f32 %v5349, %v5701
    %v5705 = vsel %vm278, %v5449, 0
    %5707 = vmatprep.subr.mxu0 0.0
    %5708 = vmatpush1.msra.mxu0 %v2134
    %5709 = vmatprep.subr.mxu0 0.0
    %5710 = vmatpush1.msra.mxu0 %v2135
    %5711 = vmatprep.subr.mxu0 0.0
    %5712 = vmatpush1.msra.mxu0 %v2136
    %5713 = vmatprep.subr.mxu0 0.0
    %5714 = vmatpush1.msra.mxu0 %v2137
    %5715 = vmatprep.subr.mxu0 0.0
    %5716 = vmatpush1.msra.mxu0 0.0
    %5717 = vmatprep.subr.mxu0 0.0
    %5718 = vmatpush1.msra.mxu0 0.0
    %5719 = vmatprep.subr.mxu0 0.0
    %5720 = vmatpush1.msra.mxu0 0.0
    %5721 = vmatprep.subr.mxu0 0.0
    %5722 = vmatpush1.msra.mxu0 0.0
    %5723 = vmatprep.subr.mxu0 0.0
    %5724 = vmatpush1.msra.mxu0 0.0
    %5725 = vmatprep.subr.mxu0 0.0
    %5726 = vmatpush1.msra.mxu0 0.0
    %5727 = vmatprep.subr.mxu0 0.0
    %5728 = vmatpush1.msra.mxu0 0.0
    %5729 = vmatprep.subr.mxu0 0.0
    %5730 = vmatpush1.msra.mxu0 0.0
    %5731 = vmatprep.subr.mxu0 0.0
    %5732 = vmatpush1.msra.mxu0 0.0
    %5733 = vmatprep.subr.mxu0 0.0
    %5734 = vmatpush1.msra.mxu0 0.0
    %5735 = vmatprep.subr.mxu0 0.0
    %5736 = vmatpush1.msra.mxu0 0.0
    %5737 = vmatprep.subr.mxu0 0.0
    %5738 = vmatpush1.msra.mxu0 0.0
    %5739 = vmatprep.subr.mxu0 0.0
    %5740 = vmatpush1.msra.mxu0 0.0
    %5741 = vmatprep.subr.mxu0 0.0
    %5742 = vmatpush1.msra.mxu0 0.0
    %5743 = vmatprep.subr.mxu0 0.0
    %5744 = vmatpush1.msra.mxu0 0.0
    %5745 = vmatprep.subr.mxu0 0.0
    %5746 = vmatpush1.msra.mxu0 0.0
    %5747 = vmatprep.subr.mxu0 0.0
    %5748 = vmatpush1.msra.mxu0 0.0
    %5749 = vmatprep.subr.mxu0 0.0
    %5750 = vmatpush1.msra.mxu0 0.0
    %5751 = vmatprep.subr.mxu0 0.0
    %5752 = vmatpush1.msra.mxu0 0.0
    %5753 = vmatprep.subr.mxu0 0.0
    %5754 = vmatpush1.msra.mxu0 0.0
    %5755 = vmatprep.subr.mxu0 0.0
    %5756 = vmatpush1.msra.mxu0 0.0
    %5757 = vmatprep.subr.mxu0 0.0
    %5758 = vmatpush1.msra.mxu0 0.0
    %5759 = vmatprep.subr.mxu0 0.0
    %5760 = vmatpush1.msra.mxu0 0.0
    %5761 = vmatprep.subr.mxu0 0.0
    %5762 = vmatpush1.msra.mxu0 0.0
    %5763 = vmatprep.subr.mxu0 0.0
    %5764 = vmatpush1.msra.mxu0 0.0
    %5765 = vmatprep.subr.mxu0 0.0
    %5766 = vmatpush1.msra.mxu0 0.0
    %5767 = vmatprep.subr.mxu0 0.0
    %5768 = vmatpush1.msra.mxu0 0.0
    %5769 = vmatprep.subr.mxu0 0.0
    %5770 = vmatpush1.msra.mxu0 0.0
    %5771 = vmatprep.mubr.f32.mxu0 0.0
    %5772 = vmatmul.mubr.f32.gmra.mrb[0].mxu0 %v5705
    %v5773 = vpop.f32.mrb[0].mxu0
    %v5774 = vadd.f32 0.0, %v5773
    %v5775 = vpop.f32.mrb[0].mxu0
    %5776 = vdwg.mxu0
    %v5777 = vadd.f32 %v2056, %v5774
    %v5778 = vxor.u32 %v5777, 2147483648
    %v5779 = vmul.f32 %v5778, 1.442695
    %v5780 = vpow.pop %v5779
    %v5781 = vadd.f32 %v5780, 1.0
    %v5782 = vrcp.pop %v5781
    %v5783 = vmul.f32 1.0, %v5782
    %v5784 = vtanh.pop %v5777
    %v5785 = vmul.f32 %v5783, %v5440
    %5787 = vrot.lane.b32.xlu0 %v5784, 64
    %v5788 = vpop.permute.xlu0 %5787
    %v5790 = vmul.f32 %v5783, %v5788
    %5792 = vrot.lane.b32.xlu0 %v5790, 32
    %v5793 = vpop.permute.xlu0 %5792
    %v5795 = vadd.f32 %v5785, %v5793
    %v5796 = vtanh.pop %v5795
    %5798 = vrot.lane.b32.xlu0 %v5796, 64
    %v5799 = vpop.permute.xlu0 %5798
    %v5801 = vmul.f32 %v5783, %v5799
    %5803 = vrot.lane.b32.xlu0 %v5801, 32
    %v5804 = vpop.permute.xlu0 %5803
    %5806 = vrot.lane.b32.xlu0 %v5551, 64
    %v5807 = vpop.permute.xlu0 %5806
    %v5809 = vsel %vm278, %v5804, %v5807
    %v5811 = vsel %vm388, %v5809, 0
    %5813 = vmatprep.subr.mxu0 0.0
    %5814 = vmatpush1.msra.mxu0 %v2138
    %5815 = vmatprep.subr.mxu0 0.0
    %5816 = vmatpush1.msra.mxu0 %v2139
    %5817 = vmatprep.subr.mxu0 0.0
    %5818 = vmatpush1.msra.mxu0 %v2140
    %5819 = vmatprep.subr.mxu0 0.0
    %5820 = vmatpush1.msra.mxu0 %v2141
    %5821 = vmatprep.subr.mxu0 0.0
    %5822 = vmatpush1.msra.mxu0 %v2142
    %5823 = vmatprep.subr.mxu0 0.0
    %5824 = vmatpush1.msra.mxu0 %v2143
    %5825 = vmatprep.subr.mxu0 0.0
    %5826 = vmatpush1.msra.mxu0 %v2144
    %5827 = vmatprep.subr.mxu0 0.0
    %5828 = vmatpush1.msra.mxu0 %v2145
    %5829 = vmatprep.subr.mxu0 0.0
    %5830 = vmatpush1.msra.mxu0 0.0
    %5831 = vmatprep.subr.mxu0 0.0
    %5832 = vmatpush1.msra.mxu0 0.0
    %5833 = vmatprep.subr.mxu0 0.0
    %5834 = vmatpush1.msra.mxu0 0.0
    %5835 = vmatprep.subr.mxu0 0.0
    %5836 = vmatpush1.msra.mxu0 0.0
    %5837 = vmatprep.subr.mxu0 0.0
    %5838 = vmatpush1.msra.mxu0 0.0
    %5839 = vmatprep.subr.mxu0 0.0
    %5840 = vmatpush1.msra.mxu0 0.0
    %5841 = vmatprep.subr.mxu0 0.0
    %5842 = vmatpush1.msra.mxu0 0.0
    %5843 = vmatprep.subr.mxu0 0.0
    %5844 = vmatpush1.msra.mxu0 0.0
    %5845 = vmatprep.subr.mxu0 0.0
    %5846 = vmatpush1.msra.mxu0 0.0
    %5847 = vmatprep.subr.mxu0 0.0
    %5848 = vmatpush1.msra.mxu0 0.0
    %5849 = vmatprep.subr.mxu0 0.0
    %5850 = vmatpush1.msra.mxu0 0.0
    %5851 = vmatprep.subr.mxu0 0.0
    %5852 = vmatpush1.msra.mxu0 0.0
    %5853 = vmatprep.subr.mxu0 0.0
    %5854 = vmatpush1.msra.mxu0 0.0
    %5855 = vmatprep.subr.mxu0 0.0
    %5856 = vmatpush1.msra.mxu0 0.0
    %5857 = vmatprep.subr.mxu0 0.0
    %5858 = vmatpush1.msra.mxu0 0.0
    %5859 = vmatprep.subr.mxu0 0.0
    %5860 = vmatpush1.msra.mxu0 0.0
    %5861 = vmatprep.subr.mxu0 0.0
    %5862 = vmatpush1.msra.mxu0 0.0
    %5863 = vmatprep.subr.mxu0 0.0
    %5864 = vmatpush1.msra.mxu0 0.0
    %5865 = vmatprep.subr.mxu0 0.0
    %5866 = vmatpush1.msra.mxu0 0.0
    %5867 = vmatprep.subr.mxu0 0.0
    %5868 = vmatpush1.msra.mxu0 0.0
    %5869 = vmatprep.subr.mxu0 0.0
    %5870 = vmatpush1.msra.mxu0 0.0
    %5871 = vmatprep.subr.mxu0 0.0
    %5872 = vmatpush1.msra.mxu0 0.0
    %5873 = vmatprep.subr.mxu0 0.0
    %5874 = vmatpush1.msra.mxu0 0.0
    %5875 = vmatprep.subr.mxu0 0.0
    %5876 = vmatpush1.msra.mxu0 0.0
    %5877 = vmatprep.mubr.f32.mxu0 0.0
    %5878 = vmatmul.mubr.f32.gmra.mrb[0].mxu0 %v5811
    %v5879 = vpop.f32.mrb[0].mxu0
    %v5880 = vadd.f32 %v2256, %v5879
    %v5881 = vpop.f32.mrb[0].mxu0
    %5882 = vdwg.mxu0
    %v5883 = vxor.u32 %v5880, 2147483648
    %v5884 = vmul.f32 %v5883, 1.442695
    %v5885 = vpow.pop %v5884
    %v5886 = vadd.f32 %v5885, 1.0
    %v5887 = vrcp.pop %v5886
    %v5888 = vmul.f32 1.0, %v5887
    %v5889 = vtanh.pop %v5880
    %v5890 = vmul.f32 %v5888, %v5545
    %5892 = vrot.lane.b32.xlu0 %v5889, 64
    %v5893 = vpop.permute.xlu0 %5892
    %v5895 = vmul.f32 %v5888, %v5893
    %5897 = vrot.lane.b32.xlu0 %v5895, 32
    %v5898 = vpop.permute.xlu0 %5897
    %v5900 = vadd.f32 %v5890, %v5898
    %v5901 = vtanh.pop %v5900
    %5903 = vrot.lane.b32.xlu0 %v5901, 64
    %v5904 = vpop.permute.xlu0 %5903
    %v5906 = vmul.f32 %v5888, %v5904
    %5908 = vrot.lane.b32.xlu0 %v5906, 32
    %v5909 = vpop.permute.xlu0 %5908
    %v5910 = vsel %vm278, %v5909, 0
    %5912 = vmatprep.subr.mxu0 0.0
    %5913 = vmatpush1.msra.mxu0 %v2147
    %5914 = vmatprep.subr.mxu0 0.0
    %5915 = vmatpush1.msra.mxu0 %v2148
    %5916 = vmatprep.subr.mxu0 0.0
    %5917 = vmatpush1.msra.mxu0 %v2149
    %5918 = vmatprep.subr.mxu0 0.0
    %5919 = vmatpush1.msra.mxu0 %v2150
    %5920 = vmatprep.subr.mxu0 0.0
    %5921 = vmatpush1.msra.mxu0 0.0
    %5922 = vmatprep.subr.mxu0 0.0
    %5923 = vmatpush1.msra.mxu0 0.0
    %5924 = vmatprep.subr.mxu0 0.0
    %5925 = vmatpush1.msra.mxu0 0.0
    %5926 = vmatprep.subr.mxu0 0.0
    %5927 = vmatpush1.msra.mxu0 0.0
    %5928 = vmatprep.subr.mxu0 0.0
    %5929 = vmatpush1.msra.mxu0 0.0
    %5930 = vmatprep.subr.mxu0 0.0
    %5931 = vmatpush1.msra.mxu0 0.0
    %5932 = vmatprep.subr.mxu0 0.0
    %5933 = vmatpush1.msra.mxu0 0.0
    %5934 = vmatprep.subr.mxu0 0.0
    %5935 = vmatpush1.msra.mxu0 0.0
    %5936 = vmatprep.subr.mxu0 0.0
    %5937 = vmatpush1.msra.mxu0 0.0
    %5938 = vmatprep.subr.mxu0 0.0
    %5939 = vmatpush1.msra.mxu0 0.0
    %5940 = vmatprep.subr.mxu0 0.0
    %5941 = vmatpush1.msra.mxu0 0.0
    %5942 = vmatprep.subr.mxu0 0.0
    %5943 = vmatpush1.msra.mxu0 0.0
    %5944 = vmatprep.subr.mxu0 0.0
    %5945 = vmatpush1.msra.mxu0 0.0
    %5946 = vmatprep.subr.mxu0 0.0
    %5947 = vmatpush1.msra.mxu0 0.0
    %5948 = vmatprep.subr.mxu0 0.0
    %5949 = vmatpush1.msra.mxu0 0.0
    %5950 = vmatprep.subr.mxu0 0.0
    %5951 = vmatpush1.msra.mxu0 0.0
    %5952 = vmatprep.subr.mxu0 0.0
    %5953 = vmatpush1.msra.mxu0 0.0
    %5954 = vmatprep.subr.mxu0 0.0
    %5955 = vmatpush1.msra.mxu0 0.0
    %5956 = vmatprep.subr.mxu0 0.0
    %5957 = vmatpush1.msra.mxu0 0.0
    %5958 = vmatprep.subr.mxu0 0.0
    %5959 = vmatpush1.msra.mxu0 0.0
    %5960 = vmatprep.subr.mxu0 0.0
    %5961 = vmatpush1.msra.mxu0 0.0
    %5962 = vmatprep.subr.mxu0 0.0
    %5963 = vmatpush1.msra.mxu0 0.0
    %5964 = vmatprep.subr.mxu0 0.0
    %5965 = vmatpush1.msra.mxu0 0.0
    %5966 = vmatprep.subr.mxu0 0.0
    %5967 = vmatpush1.msra.mxu0 0.0
    %5968 = vmatprep.subr.mxu0 0.0
    %5969 = vmatpush1.msra.mxu0 0.0
    %5970 = vmatprep.subr.mxu0 0.0
    %5971 = vmatpush1.msra.mxu0 0.0
    %5972 = vmatprep.subr.mxu0 0.0
    %5973 = vmatpush1.msra.mxu0 0.0
    %5974 = vmatprep.subr.mxu0 0.0
    %5975 = vmatpush1.msra.mxu0 0.0
    %5976 = vmatprep.mubr.f32.mxu0 0.0
    %5977 = vmatmul.mubr.f32.gmra.mrb[0].mxu0 %v5910
    %v5978 = vpop.f32.mrb[0].mxu0
    %v5979 = vadd.f32 %v2359, %v5978
    %v5980 = vpop.f32.mrb[0].mxu0
    %5981 = vdwg.mxu0
    %s5982 = scalar_lea.vmem %s15, 20
    %5983 = vst [vmem:[%s5982] sm:$0x3] %v5979
    %s5984 = scalar_lea.vmem [#allocation16], 320
    %v5985 = vld [vmem:[%s5984] sm:$0xff]
    %v5986 = vld [vmem:[%s5984 + $0x8] sm:$0xff]
    %v5987 = vld [vmem:[%s5984 + $0x10] sm:$0xff]
    %v5988 = vld [vmem:[%s5984 + $0x18] sm:$0xff]
    %5989 = vmatprep.subr.mxu0 0.0
    %5990 = vmatpush1.msra.mxu0 %v5985
    %5991 = vmatprep.subr.mxu0 0.0
    %5992 = vmatpush1.msra.mxu0 %v5986
    %5993 = vmatprep.subr.mxu0 0.0
    %5994 = vmatpush1.msra.mxu0 %v5987
    %5995 = vmatprep.subr.mxu0 0.0
    %5996 = vmatpush1.msra.mxu0 %v5988
    %5997 = vmatprep.subr.mxu0 0.0
    %5998 = vmatpush1.msra.mxu0 0.0
    %5999 = vmatprep.subr.mxu0 0.0
    %6000 = vmatpush1.msra.mxu0 0.0
    %6001 = vmatprep.subr.mxu0 0.0
    %6002 = vmatpush1.msra.mxu0 0.0
    %6003 = vmatprep.subr.mxu0 0.0
    %6004 = vmatpush1.msra.mxu0 0.0
    %6005 = vmatprep.subr.mxu0 0.0
    %6006 = vmatpush1.msra.mxu0 0.0
    %6007 = vmatprep.subr.mxu0 0.0
    %6008 = vmatpush1.msra.mxu0 0.0
    %6009 = vmatprep.subr.mxu0 0.0
    %6010 = vmatpush1.msra.mxu0 0.0
    %6011 = vmatprep.subr.mxu0 0.0
    %6012 = vmatpush1.msra.mxu0 0.0
    %6013 = vmatprep.subr.mxu0 0.0
    %6014 = vmatpush1.msra.mxu0 0.0
    %6015 = vmatprep.subr.mxu0 0.0
    %6016 = vmatpush1.msra.mxu0 0.0
    %6017 = vmatprep.subr.mxu0 0.0
    %6018 = vmatpush1.msra.mxu0 0.0
    %6019 = vmatprep.subr.mxu0 0.0
    %6020 = vmatpush1.msra.mxu0 0.0
    %6021 = vmatprep.subr.mxu0 0.0
    %6022 = vmatpush1.msra.mxu0 0.0
    %6023 = vmatprep.subr.mxu0 0.0
    %6024 = vmatpush1.msra.mxu0 0.0
    %6025 = vmatprep.subr.mxu0 0.0
    %6026 = vmatpush1.msra.mxu0 0.0
    %6027 = vmatprep.subr.mxu0 0.0
    %6028 = vmatpush1.msra.mxu0 0.0
    %6029 = vmatprep.subr.mxu0 0.0
    %6030 = vmatpush1.msra.mxu0 0.0
    %6031 = vmatprep.subr.mxu0 0.0
    %6032 = vmatpush1.msra.mxu0 0.0
    %6033 = vmatprep.subr.mxu0 0.0
    %6034 = vmatpush1.msra.mxu0 0.0
    %6035 = vmatprep.subr.mxu0 0.0
    %6036 = vmatpush1.msra.mxu0 0.0
    %6037 = vmatprep.subr.mxu0 0.0
    %6038 = vmatpush1.msra.mxu0 0.0
    %6039 = vmatprep.subr.mxu0 0.0
    %6040 = vmatpush1.msra.mxu0 0.0
    %6041 = vmatprep.subr.mxu0 0.0
    %6042 = vmatpush1.msra.mxu0 0.0
    %6043 = vmatprep.subr.mxu0 0.0
    %6044 = vmatpush1.msra.mxu0 0.0
    %6045 = vmatprep.subr.mxu0 0.0
    %6046 = vmatpush1.msra.mxu0 0.0
    %6047 = vmatprep.subr.mxu0 0.0
    %6048 = vmatpush1.msra.mxu0 0.0
    %6049 = vmatprep.subr.mxu0 0.0
    %6050 = vmatpush1.msra.mxu0 0.0
    %6051 = vmatprep.subr.mxu0 0.0
    %6052 = vmatpush1.msra.mxu0 0.0
    %6053 = vmatprep.mubr.f32.mxu0 0.0
    %6054 = vmatmul.mubr.f32.gmra.mrb[0].mxu0 %v5910
    %v6055 = vpop.f32.mrb[0].mxu0
    %v6056 = vadd.f32 0.0, %v6055
    %v6057 = vpop.f32.mrb[0].mxu0
    %6058 = vdwg.mxu0
    %v6059 = vadd.f32 %v5704, %v6056
    %v6060 = vsel %vm278, %v5804, 0
    %6062 = vmatprep.subr.mxu0 0.0
    %6063 = vmatpush1.msra.mxu0 %v2134
    %6064 = vmatprep.subr.mxu0 0.0
    %6065 = vmatpush1.msra.mxu0 %v2135
    %6066 = vmatprep.subr.mxu0 0.0
    %6067 = vmatpush1.msra.mxu0 %v2136
    %6068 = vmatprep.subr.mxu0 0.0
    %6069 = vmatpush1.msra.mxu0 %v2137
    %6070 = vmatprep.subr.mxu0 0.0
    %6071 = vmatpush1.msra.mxu0 0.0
    %6072 = vmatprep.subr.mxu0 0.0
    %6073 = vmatpush1.msra.mxu0 0.0
    %6074 = vmatprep.subr.mxu0 0.0
    %6075 = vmatpush1.msra.mxu0 0.0
    %6076 = vmatprep.subr.mxu0 0.0
    %6077 = vmatpush1.msra.mxu0 0.0
    %6078 = vmatprep.subr.mxu0 0.0
    %6079 = vmatpush1.msra.mxu0 0.0
    %6080 = vmatprep.subr.mxu0 0.0
    %6081 = vmatpush1.msra.mxu0 0.0
    %6082 = vmatprep.subr.mxu0 0.0
    %6083 = vmatpush1.msra.mxu0 0.0
    %6084 = vmatprep.subr.mxu0 0.0
    %6085 = vmatpush1.msra.mxu0 0.0
    %6086 = vmatprep.subr.mxu0 0.0
    %6087 = vmatpush1.msra.mxu0 0.0
    %6088 = vmatprep.subr.mxu0 0.0
    %6089 = vmatpush1.msra.mxu0 0.0
    %6090 = vmatprep.subr.mxu0 0.0
    %6091 = vmatpush1.msra.mxu0 0.0
    %6092 = vmatprep.subr.mxu0 0.0
    %6093 = vmatpush1.msra.mxu0 0.0
    %6094 = vmatprep.subr.mxu0 0.0
    %6095 = vmatpush1.msra.mxu0 0.0
    %6096 = vmatprep.subr.mxu0 0.0
    %6097 = vmatpush1.msra.mxu0 0.0
    %6098 = vmatprep.subr.mxu0 0.0
    %6099 = vmatpush1.msra.mxu0 0.0
    %6100 = vmatprep.subr.mxu0 0.0
    %6101 = vmatpush1.msra.mxu0 0.0
    %6102 = vmatprep.subr.mxu0 0.0
    %6103 = vmatpush1.msra.mxu0 0.0
    %6104 = vmatprep.subr.mxu0 0.0
    %6105 = vmatpush1.msra.mxu0 0.0
    %6106 = vmatprep.subr.mxu0 0.0
    %6107 = vmatpush1.msra.mxu0 0.0
    %6108 = vmatprep.subr.mxu0 0.0
    %6109 = vmatpush1.msra.mxu0 0.0
    %6110 = vmatprep.subr.mxu0 0.0
    %6111 = vmatpush1.msra.mxu0 0.0
    %6112 = vmatprep.subr.mxu0 0.0
    %6113 = vmatpush1.msra.mxu0 0.0
    %6114 = vmatprep.subr.mxu0 0.0
    %6115 = vmatpush1.msra.mxu0 0.0
    %6116 = vmatprep.subr.mxu0 0.0
    %6117 = vmatpush1.msra.mxu0 0.0
    %6118 = vmatprep.subr.mxu0 0.0
    %6119 = vmatpush1.msra.mxu0 0.0
    %6120 = vmatprep.subr.mxu0 0.0
    %6121 = vmatpush1.msra.mxu0 0.0
    %6122 = vmatprep.subr.mxu0 0.0
    %6123 = vmatpush1.msra.mxu0 0.0
    %6124 = vmatprep.subr.mxu0 0.0
    %6125 = vmatpush1.msra.mxu0 0.0
    %6126 = vmatprep.mubr.f32.mxu0 0.0
    %6127 = vmatmul.mubr.f32.gmra.mrb[0].mxu0 %v6060
    %v6128 = vpop.f32.mrb[0].mxu0
    %v6129 = vadd.f32 0.0, %v6128
    %v6130 = vpop.f32.mrb[0].mxu0
    %6131 = vdwg.mxu0
    %v6132 = vadd.f32 %v2131, %v6129
    %v6133 = vxor.u32 %v6132, 2147483648
    %v6134 = vmul.f32 %v6133, 1.442695
    %v6135 = vpow.pop %v6134
    %v6136 = vadd.f32 %v6135, 1.0
    %v6137 = vrcp.pop %v6136
    %v6138 = vmul.f32 1.0, %v6137
    %v6139 = vtanh.pop %v6132
    %v6140 = vmul.f32 %v6138, %v5795
    %6142 = vrot.lane.b32.xlu0 %v6139, 64
    %v6143 = vpop.permute.xlu0 %6142
    %v6145 = vmul.f32 %v6138, %v6143
    %6147 = vrot.lane.b32.xlu0 %v6145, 32
    %v6148 = vpop.permute.xlu0 %6147
    %v6150 = vadd.f32 %v6140, %v6148
    %v6151 = vtanh.pop %v6150
    %6153 = vrot.lane.b32.xlu0 %v6151, 64
    %v6154 = vpop.permute.xlu0 %6153
    %v6156 = vmul.f32 %v6138, %v6154
    %6158 = vrot.lane.b32.xlu0 %v6156, 32
    %v6159 = vpop.permute.xlu0 %6158
    %6161 = vrot.lane.b32.xlu0 %v5906, 64
    %v6162 = vpop.permute.xlu0 %6161
    %v6164 = vsel %vm278, %v6159, %v6162
    %v6166 = vsel %vm388, %v6164, 0
    %6168 = vmatprep.subr.mxu0 0.0
    %6169 = vmatpush1.msra.mxu0 %v2138
    %6170 = vmatprep.subr.mxu0 0.0
    %6171 = vmatpush1.msra.mxu0 %v2139
    %6172 = vmatprep.subr.mxu0 0.0
    %6173 = vmatpush1.msra.mxu0 %v2140
    %6174 = vmatprep.subr.mxu0 0.0
    %6175 = vmatpush1.msra.mxu0 %v2141
    %6176 = vmatprep.subr.mxu0 0.0
    %6177 = vmatpush1.msra.mxu0 %v2142
    %6178 = vmatprep.subr.mxu0 0.0
    %6179 = vmatpush1.msra.mxu0 %v2143
    %6180 = vmatprep.subr.mxu0 0.0
    %6181 = vmatpush1.msra.mxu0 %v2144
    %6182 = vmatprep.subr.mxu0 0.0
    %6183 = vmatpush1.msra.mxu0 %v2145
    %6184 = vmatprep.subr.mxu0 0.0
    %6185 = vmatpush1.msra.mxu0 0.0
    %6186 = vmatprep.subr.mxu0 0.0
    %6187 = vmatpush1.msra.mxu0 0.0
    %6188 = vmatprep.subr.mxu0 0.0
    %6189 = vmatpush1.msra.mxu0 0.0
    %6190 = vmatprep.subr.mxu0 0.0
    %6191 = vmatpush1.msra.mxu0 0.0
    %6192 = vmatprep.subr.mxu0 0.0
    %6193 = vmatpush1.msra.mxu0 0.0
    %6194 = vmatprep.subr.mxu0 0.0
    %6195 = vmatpush1.msra.mxu0 0.0
    %6196 = vmatprep.subr.mxu0 0.0
    %6197 = vmatpush1.msra.mxu0 0.0
    %6198 = vmatprep.subr.mxu0 0.0
    %6199 = vmatpush1.msra.mxu0 0.0
    %6200 = vmatprep.subr.mxu0 0.0
    %6201 = vmatpush1.msra.mxu0 0.0
    %6202 = vmatprep.subr.mxu0 0.0
    %6203 = vmatpush1.msra.mxu0 0.0
    %6204 = vmatprep.subr.mxu0 0.0
    %6205 = vmatpush1.msra.mxu0 0.0
    %6206 = vmatprep.subr.mxu0 0.0
    %6207 = vmatpush1.msra.mxu0 0.0
    %6208 = vmatprep.subr.mxu0 0.0
    %6209 = vmatpush1.msra.mxu0 0.0
    %6210 = vmatprep.subr.mxu0 0.0
    %6211 = vmatpush1.msra.mxu0 0.0
    %6212 = vmatprep.subr.mxu0 0.0
    %6213 = vmatpush1.msra.mxu0 0.0
    %6214 = vmatprep.subr.mxu0 0.0
    %6215 = vmatpush1.msra.mxu0 0.0
    %6216 = vmatprep.subr.mxu0 0.0
    %6217 = vmatpush1.msra.mxu0 0.0
    %6218 = vmatprep.subr.mxu0 0.0
    %6219 = vmatpush1.msra.mxu0 0.0
    %6220 = vmatprep.subr.mxu0 0.0
    %6221 = vmatpush1.msra.mxu0 0.0
    %6222 = vmatprep.subr.mxu0 0.0
    %6223 = vmatpush1.msra.mxu0 0.0
    %6224 = vmatprep.subr.mxu0 0.0
    %6225 = vmatpush1.msra.mxu0 0.0
    %6226 = vmatprep.subr.mxu0 0.0
    %6227 = vmatpush1.msra.mxu0 0.0
    %6228 = vmatprep.subr.mxu0 0.0
    %6229 = vmatpush1.msra.mxu0 0.0
    %6230 = vmatprep.subr.mxu0 0.0
    %6231 = vmatpush1.msra.mxu0 0.0
    %6232 = vmatprep.mubr.f32.mxu0 0.0
    %6233 = vmatmul.mubr.f32.gmra.mrb[0].mxu0 %v6166
    %v6234 = vpop.f32.mrb[0].mxu0
    %v6235 = vadd.f32 %v2256, %v6234
    %v6236 = vpop.f32.mrb[0].mxu0
    %6237 = vdwg.mxu0
    %v6238 = vxor.u32 %v6235, 2147483648
    %v6239 = vmul.f32 %v6238, 1.442695
    %v6240 = vpow.pop %v6239
    %v6241 = vadd.f32 %v6240, 1.0
    %v6242 = vrcp.pop %v6241
    %v6243 = vmul.f32 1.0, %v6242
    %v6244 = vtanh.pop %v6235
    %v6245 = vmul.f32 %v6243, %v5900
    %6247 = vrot.lane.b32.xlu0 %v6244, 64
    %v6248 = vpop.permute.xlu0 %6247
    %v6250 = vmul.f32 %v6243, %v6248
    %6252 = vrot.lane.b32.xlu0 %v6250, 32
    %v6253 = vpop.permute.xlu0 %6252
    %v6255 = vadd.f32 %v6245, %v6253
    %v6256 = vtanh.pop %v6255
    %6258 = vrot.lane.b32.xlu0 %v6256, 64
    %v6259 = vpop.permute.xlu0 %6258
    %v6261 = vmul.f32 %v6243, %v6259
    %6263 = vrot.lane.b32.xlu0 %v6261, 32
    %v6264 = vpop.permute.xlu0 %6263
    %v6265 = vsel %vm278, %v6264, 0
    %6267 = vmatprep.subr.mxu0 0.0
    %6268 = vmatpush1.msra.mxu0 %v2147
    %6269 = vmatprep.subr.mxu0 0.0
    %6270 = vmatpush1.msra.mxu0 %v2148
    %6271 = vmatprep.subr.mxu0 0.0
    %6272 = vmatpush1.msra.mxu0 %v2149
    %6273 = vmatprep.subr.mxu0 0.0
    %6274 = vmatpush1.msra.mxu0 %v2150
    %6275 = vmatprep.subr.mxu0 0.0
    %6276 = vmatpush1.msra.mxu0 0.0
    %6277 = vmatprep.subr.mxu0 0.0
    %6278 = vmatpush1.msra.mxu0 0.0
    %6279 = vmatprep.subr.mxu0 0.0
    %6280 = vmatpush1.msra.mxu0 0.0
    %6281 = vmatprep.subr.mxu0 0.0
    %6282 = vmatpush1.msra.mxu0 0.0
    %6283 = vmatprep.subr.mxu0 0.0
    %6284 = vmatpush1.msra.mxu0 0.0
    %6285 = vmatprep.subr.mxu0 0.0
    %6286 = vmatpush1.msra.mxu0 0.0
    %6287 = vmatprep.subr.mxu0 0.0
    %6288 = vmatpush1.msra.mxu0 0.0
    %6289 = vmatprep.subr.mxu0 0.0
    %6290 = vmatpush1.msra.mxu0 0.0
    %6291 = vmatprep.subr.mxu0 0.0
    %6292 = vmatpush1.msra.mxu0 0.0
    %6293 = vmatprep.subr.mxu0 0.0
    %6294 = vmatpush1.msra.mxu0 0.0
    %6295 = vmatprep.subr.mxu0 0.0
    %6296 = vmatpush1.msra.mxu0 0.0
    %6297 = vmatprep.subr.mxu0 0.0
    %6298 = vmatpush1.msra.mxu0 0.0
    %6299 = vmatprep.subr.mxu0 0.0
    %6300 = vmatpush1.msra.mxu0 0.0
    %6301 = vmatprep.subr.mxu0 0.0
    %6302 = vmatpush1.msra.mxu0 0.0
    %6303 = vmatprep.subr.mxu0 0.0
    %6304 = vmatpush1.msra.mxu0 0.0
    %6305 = vmatprep.subr.mxu0 0.0
    %6306 = vmatpush1.msra.mxu0 0.0
    %6307 = vmatprep.subr.mxu0 0.0
    %6308 = vmatpush1.msra.mxu0 0.0
    %6309 = vmatprep.subr.mxu0 0.0
    %6310 = vmatpush1.msra.mxu0 0.0
    %6311 = vmatprep.subr.mxu0 0.0
    %6312 = vmatpush1.msra.mxu0 0.0
    %6313 = vmatprep.subr.mxu0 0.0
    %6314 = vmatpush1.msra.mxu0 0.0
    %6315 = vmatprep.subr.mxu0 0.0
    %6316 = vmatpush1.msra.mxu0 0.0
    %6317 = vmatprep.subr.mxu0 0.0
    %6318 = vmatpush1.msra.mxu0 0.0
    %6319 = vmatprep.subr.mxu0 0.0
    %6320 = vmatpush1.msra.mxu0 0.0
    %6321 = vmatprep.subr.mxu0 0.0
    %6322 = vmatpush1.msra.mxu0 0.0
    %6323 = vmatprep.subr.mxu0 0.0
    %6324 = vmatpush1.msra.mxu0 0.0
    %6325 = vmatprep.subr.mxu0 0.0
    %6326 = vmatpush1.msra.mxu0 0.0
    %6327 = vmatprep.subr.mxu0 0.0
    %6328 = vmatpush1.msra.mxu0 0.0
    %6329 = vmatprep.subr.mxu0 0.0
    %6330 = vmatpush1.msra.mxu0 0.0
    %6331 = vmatprep.mubr.f32.mxu0 0.0
    %6332 = vmatmul.mubr.f32.gmra.mrb[0].mxu0 %v6265
    %v6333 = vpop.f32.mrb[0].mxu0
    %v6334 = vadd.f32 %v2359, %v6333
    %v6335 = vpop.f32.mrb[0].mxu0
    %6336 = vdwg.mxu0
    %s6337 = scalar_lea.vmem %s15, 22
    %6338 = vst [vmem:[%s6337] sm:$0x3] %v6334
    %s6339 = scalar_lea.vmem [#allocation16], 352
    %v6340 = vld [vmem:[%s6339] sm:$0xff]
    %v6341 = vld [vmem:[%s6339 + $0x8] sm:$0xff]
    %v6342 = vld [vmem:[%s6339 + $0x10] sm:$0xff]
    %v6343 = vld [vmem:[%s6339 + $0x18] sm:$0xff]
    %6344 = vmatprep.subr.mxu0 0.0
    %6345 = vmatpush1.msra.mxu0 %v6340
    %6346 = vmatprep.subr.mxu0 0.0
    %6347 = vmatpush1.msra.mxu0 %v6341
    %6348 = vmatprep.subr.mxu0 0.0
    %6349 = vmatpush1.msra.mxu0 %v6342
    %6350 = vmatprep.subr.mxu0 0.0
    %6351 = vmatpush1.msra.mxu0 %v6343
    %6352 = vmatprep.subr.mxu0 0.0
    %6353 = vmatpush1.msra.mxu0 0.0
    %6354 = vmatprep.subr.mxu0 0.0
    %6355 = vmatpush1.msra.mxu0 0.0
    %6356 = vmatprep.subr.mxu0 0.0
    %6357 = vmatpush1.msra.mxu0 0.0
    %6358 = vmatprep.subr.mxu0 0.0
    %6359 = vmatpush1.msra.mxu0 0.0
    %6360 = vmatprep.subr.mxu0 0.0
    %6361 = vmatpush1.msra.mxu0 0.0
    %6362 = vmatprep.subr.mxu0 0.0
    %6363 = vmatpush1.msra.mxu0 0.0
    %6364 = vmatprep.subr.mxu0 0.0
    %6365 = vmatpush1.msra.mxu0 0.0
    %6366 = vmatprep.subr.mxu0 0.0
    %6367 = vmatpush1.msra.mxu0 0.0
    %6368 = vmatprep.subr.mxu0 0.0
    %6369 = vmatpush1.msra.mxu0 0.0
    %6370 = vmatprep.subr.mxu0 0.0
    %6371 = vmatpush1.msra.mxu0 0.0
    %6372 = vmatprep.subr.mxu0 0.0
    %6373 = vmatpush1.msra.mxu0 0.0
    %6374 = vmatprep.subr.mxu0 0.0
    %6375 = vmatpush1.msra.mxu0 0.0
    %6376 = vmatprep.subr.mxu0 0.0
    %6377 = vmatpush1.msra.mxu0 0.0
    %6378 = vmatprep.subr.mxu0 0.0
    %6379 = vmatpush1.msra.mxu0 0.0
    %6380 = vmatprep.subr.mxu0 0.0
    %6381 = vmatpush1.msra.mxu0 0.0
    %6382 = vmatprep.subr.mxu0 0.0
    %6383 = vmatpush1.msra.mxu0 0.0
    %6384 = vmatprep.subr.mxu0 0.0
    %6385 = vmatpush1.msra.mxu0 0.0
    %6386 = vmatprep.subr.mxu0 0.0
    %6387 = vmatpush1.msra.mxu0 0.0
    %6388 = vmatprep.subr.mxu0 0.0
    %6389 = vmatpush1.msra.mxu0 0.0
    %6390 = vmatprep.subr.mxu0 0.0
    %6391 = vmatpush1.msra.mxu0 0.0
    %6392 = vmatprep.subr.mxu0 0.0
    %6393 = vmatpush1.msra.mxu0 0.0
    %6394 = vmatprep.subr.mxu0 0.0
    %6395 = vmatpush1.msra.mxu0 0.0
    %6396 = vmatprep.subr.mxu0 0.0
    %6397 = vmatpush1.msra.mxu0 0.0
    %6398 = vmatprep.subr.mxu0 0.0
    %6399 = vmatpush1.msra.mxu0 0.0
    %6400 = vmatprep.subr.mxu0 0.0
    %6401 = vmatpush1.msra.mxu0 0.0
    %6402 = vmatprep.subr.mxu0 0.0
    %6403 = vmatpush1.msra.mxu0 0.0
    %6404 = vmatprep.subr.mxu0 0.0
    %6405 = vmatpush1.msra.mxu0 0.0
    %6406 = vmatprep.subr.mxu0 0.0
    %6407 = vmatpush1.msra.mxu0 0.0
    %6408 = vmatprep.mubr.f32.mxu0 0.0
    %6409 = vmatmul.mubr.f32.gmra.mrb[0].mxu0 %v6265
    %v6410 = vpop.f32.mrb[0].mxu0
    %v6411 = vadd.f32 0.0, %v6410
    %v6412 = vpop.f32.mrb[0].mxu0
    %6413 = vdwg.mxu0
    %v6414 = vadd.f32 %v6059, %v6411
    %v6415 = vsel %vm278, %v6159, 0
    %6417 = vmatprep.subr.mxu0 0.0
    %6418 = vmatpush1.msra.mxu0 %v2134
    %6419 = vmatprep.subr.mxu0 0.0
    %6420 = vmatpush1.msra.mxu0 %v2135
    %6421 = vmatprep.subr.mxu0 0.0
    %6422 = vmatpush1.msra.mxu0 %v2136
    %6423 = vmatprep.subr.mxu0 0.0
    %6424 = vmatpush1.msra.mxu0 %v2137
    %6425 = vmatprep.subr.mxu0 0.0
    %6426 = vmatpush1.msra.mxu0 0.0
    %6427 = vmatprep.subr.mxu0 0.0
    %6428 = vmatpush1.msra.mxu0 0.0
    %6429 = vmatprep.subr.mxu0 0.0
    %6430 = vmatpush1.msra.mxu0 0.0
    %6431 = vmatprep.subr.mxu0 0.0
    %6432 = vmatpush1.msra.mxu0 0.0
    %6433 = vmatprep.subr.mxu0 0.0
    %6434 = vmatpush1.msra.mxu0 0.0
    %6435 = vmatprep.subr.mxu0 0.0
    %6436 = vmatpush1.msra.mxu0 0.0
    %6437 = vmatprep.subr.mxu0 0.0
    %6438 = vmatpush1.msra.mxu0 0.0
    %6439 = vmatprep.subr.mxu0 0.0
    %6440 = vmatpush1.msra.mxu0 0.0
    %6441 = vmatprep.subr.mxu0 0.0
    %6442 = vmatpush1.msra.mxu0 0.0
    %6443 = vmatprep.subr.mxu0 0.0
    %6444 = vmatpush1.msra.mxu0 0.0
    %6445 = vmatprep.subr.mxu0 0.0
    %6446 = vmatpush1.msra.mxu0 0.0
    %6447 = vmatprep.subr.mxu0 0.0
    %6448 = vmatpush1.msra.mxu0 0.0
    %6449 = vmatprep.subr.mxu0 0.0
    %6450 = vmatpush1.msra.mxu0 0.0
    %6451 = vmatprep.subr.mxu0 0.0
    %6452 = vmatpush1.msra.mxu0 0.0
    %6453 = vmatprep.subr.mxu0 0.0
    %6454 = vmatpush1.msra.mxu0 0.0
    %6455 = vmatprep.subr.mxu0 0.0
    %6456 = vmatpush1.msra.mxu0 0.0
    %6457 = vmatprep.subr.mxu0 0.0
    %6458 = vmatpush1.msra.mxu0 0.0
    %6459 = vmatprep.subr.mxu0 0.0
    %6460 = vmatpush1.msra.mxu0 0.0
    %6461 = vmatprep.subr.mxu0 0.0
    %6462 = vmatpush1.msra.mxu0 0.0
    %6463 = vmatprep.subr.mxu0 0.0
    %6464 = vmatpush1.msra.mxu0 0.0
    %6465 = vmatprep.subr.mxu0 0.0
    %6466 = vmatpush1.msra.mxu0 0.0
    %6467 = vmatprep.subr.mxu0 0.0
    %6468 = vmatpush1.msra.mxu0 0.0
    %6469 = vmatprep.subr.mxu0 0.0
    %6470 = vmatpush1.msra.mxu0 0.0
    %6471 = vmatprep.subr.mxu0 0.0
    %6472 = vmatpush1.msra.mxu0 0.0
    %6473 = vmatprep.subr.mxu0 0.0
    %6474 = vmatpush1.msra.mxu0 0.0
    %6475 = vmatprep.subr.mxu0 0.0
    %6476 = vmatpush1.msra.mxu0 0.0
    %6477 = vmatprep.subr.mxu0 0.0
    %6478 = vmatpush1.msra.mxu0 0.0
    %6479 = vmatprep.subr.mxu0 0.0
    %6480 = vmatpush1.msra.mxu0 0.0
    %6481 = vmatprep.mubr.f32.mxu0 0.0
    %6482 = vmatmul.mubr.f32.gmra.mrb[0].mxu0 %v6415
    %v6483 = vpop.f32.mrb[0].mxu0
    %v6484 = vadd.f32 0.0, %v6483
    %v6485 = vpop.f32.mrb[0].mxu0
    %6486 = vdwg.mxu0
    %v6487 = vadd.f32 %v2056, %v6484
    %v6488 = vxor.u32 %v6487, 2147483648
    %v6489 = vmul.f32 %v6488, 1.442695
    %v6490 = vpow.pop %v6489
    %v6491 = vadd.f32 %v6490, 1.0
    %v6492 = vrcp.pop %v6491
    %v6493 = vmul.f32 1.0, %v6492
    %v6494 = vtanh.pop %v6487
    %v6495 = vmul.f32 %v6493, %v6150
    %6497 = vrot.lane.b32.xlu0 %v6494, 64
    %v6498 = vpop.permute.xlu0 %6497
    %v6500 = vmul.f32 %v6493, %v6498
    %6502 = vrot.lane.b32.xlu0 %v6500, 32
    %v6503 = vpop.permute.xlu0 %6502
    %v6505 = vadd.f32 %v6495, %v6503
    %v6506 = vtanh.pop %v6505
    %6508 = vrot.lane.b32.xlu0 %v6506, 64
    %v6509 = vpop.permute.xlu0 %6508
    %v6511 = vmul.f32 %v6493, %v6509
    %6513 = vrot.lane.b32.xlu0 %v6511, 32
    %v6514 = vpop.permute.xlu0 %6513
    %6516 = vrot.lane.b32.xlu0 %v6261, 64
    %v6517 = vpop.permute.xlu0 %6516
    %v6519 = vsel %vm278, %v6514, %v6517
    %v6521 = vsel %vm388, %v6519, 0
    %6523 = vmatprep.subr.mxu0 0.0
    %6524 = vmatpush1.msra.mxu0 %v2138
    %6525 = vmatprep.subr.mxu0 0.0
    %6526 = vmatpush1.msra.mxu0 %v2139
    %6527 = vmatprep.subr.mxu0 0.0
    %6528 = vmatpush1.msra.mxu0 %v2140
    %6529 = vmatprep.subr.mxu0 0.0
    %6530 = vmatpush1.msra.mxu0 %v2141
    %6531 = vmatprep.subr.mxu0 0.0
    %6532 = vmatpush1.msra.mxu0 %v2142
    %6533 = vmatprep.subr.mxu0 0.0
    %6534 = vmatpush1.msra.mxu0 %v2143
    %6535 = vmatprep.subr.mxu0 0.0
    %6536 = vmatpush1.msra.mxu0 %v2144
    %6537 = vmatprep.subr.mxu0 0.0
    %6538 = vmatpush1.msra.mxu0 %v2145
    %6539 = vmatprep.subr.mxu0 0.0
    %6540 = vmatpush1.msra.mxu0 0.0
    %6541 = vmatprep.subr.mxu0 0.0
    %6542 = vmatpush1.msra.mxu0 0.0
    %6543 = vmatprep.subr.mxu0 0.0
    %6544 = vmatpush1.msra.mxu0 0.0
    %6545 = vmatprep.subr.mxu0 0.0
    %6546 = vmatpush1.msra.mxu0 0.0
    %6547 = vmatprep.subr.mxu0 0.0
    %6548 = vmatpush1.msra.mxu0 0.0
    %6549 = vmatprep.subr.mxu0 0.0
    %6550 = vmatpush1.msra.mxu0 0.0
    %6551 = vmatprep.subr.mxu0 0.0
    %6552 = vmatpush1.msra.mxu0 0.0
    %6553 = vmatprep.subr.mxu0 0.0
    %6554 = vmatpush1.msra.mxu0 0.0
    %6555 = vmatprep.subr.mxu0 0.0
    %6556 = vmatpush1.msra.mxu0 0.0
    %6557 = vmatprep.subr.mxu0 0.0
    %6558 = vmatpush1.msra.mxu0 0.0
    %6559 = vmatprep.subr.mxu0 0.0
    %6560 = vmatpush1.msra.mxu0 0.0
    %6561 = vmatprep.subr.mxu0 0.0
    %6562 = vmatpush1.msra.mxu0 0.0
    %6563 = vmatprep.subr.mxu0 0.0
    %6564 = vmatpush1.msra.mxu0 0.0
    %6565 = vmatprep.subr.mxu0 0.0
    %6566 = vmatpush1.msra.mxu0 0.0
    %6567 = vmatprep.subr.mxu0 0.0
    %6568 = vmatpush1.msra.mxu0 0.0
    %6569 = vmatprep.subr.mxu0 0.0
    %6570 = vmatpush1.msra.mxu0 0.0
    %6571 = vmatprep.subr.mxu0 0.0
    %6572 = vmatpush1.msra.mxu0 0.0
    %6573 = vmatprep.subr.mxu0 0.0
    %6574 = vmatpush1.msra.mxu0 0.0
    %6575 = vmatprep.subr.mxu0 0.0
    %6576 = vmatpush1.msra.mxu0 0.0
    %6577 = vmatprep.subr.mxu0 0.0
    %6578 = vmatpush1.msra.mxu0 0.0
    %6579 = vmatprep.subr.mxu0 0.0
    %6580 = vmatpush1.msra.mxu0 0.0
    %6581 = vmatprep.subr.mxu0 0.0
    %6582 = vmatpush1.msra.mxu0 0.0
    %6583 = vmatprep.subr.mxu0 0.0
    %6584 = vmatpush1.msra.mxu0 0.0
    %6585 = vmatprep.subr.mxu0 0.0
    %6586 = vmatpush1.msra.mxu0 0.0
    %6587 = vmatprep.mubr.f32.mxu0 0.0
    %6588 = vmatmul.mubr.f32.gmra.mrb[0].mxu0 %v6521
    %v6589 = vpop.f32.mrb[0].mxu0
    %v6590 = vadd.f32 %v2256, %v6589
    %v6591 = vpop.f32.mrb[0].mxu0
    %6592 = vdwg.mxu0
    %v6593 = vxor.u32 %v6590, 2147483648
    %v6594 = vmul.f32 %v6593, 1.442695
    %v6595 = vpow.pop %v6594
    %v6596 = vadd.f32 %v6595, 1.0
    %v6597 = vrcp.pop %v6596
    %v6598 = vmul.f32 1.0, %v6597
    %v6599 = vtanh.pop %v6590
    %v6600 = vmul.f32 %v6598, %v6255
    %6602 = vrot.lane.b32.xlu0 %v6599, 64
    %v6603 = vpop.permute.xlu0 %6602
    %v6605 = vmul.f32 %v6598, %v6603
    %6607 = vrot.lane.b32.xlu0 %v6605, 32
    %v6608 = vpop.permute.xlu0 %6607
    %v6610 = vadd.f32 %v6600, %v6608
    %v6611 = vtanh.pop %v6610
    %6613 = vrot.lane.b32.xlu0 %v6611, 64
    %v6614 = vpop.permute.xlu0 %6613
    %v6616 = vmul.f32 %v6598, %v6614
    %6618 = vrot.lane.b32.xlu0 %v6616, 32
    %v6619 = vpop.permute.xlu0 %6618
    %v6620 = vsel %vm278, %v6619, 0
    %6622 = vmatprep.subr.mxu0 0.0
    %6623 = vmatpush1.msra.mxu0 %v2147
    %6624 = vmatprep.subr.mxu0 0.0
    %6625 = vmatpush1.msra.mxu0 %v2148
    %6626 = vmatprep.subr.mxu0 0.0
    %6627 = vmatpush1.msra.mxu0 %v2149
    %6628 = vmatprep.subr.mxu0 0.0
    %6629 = vmatpush1.msra.mxu0 %v2150
    %6630 = vmatprep.subr.mxu0 0.0
    %6631 = vmatpush1.msra.mxu0 0.0
    %6632 = vmatprep.subr.mxu0 0.0
    %6633 = vmatpush1.msra.mxu0 0.0
    %6634 = vmatprep.subr.mxu0 0.0
    %6635 = vmatpush1.msra.mxu0 0.0
    %6636 = vmatprep.subr.mxu0 0.0
    %6637 = vmatpush1.msra.mxu0 0.0
    %6638 = vmatprep.subr.mxu0 0.0
    %6639 = vmatpush1.msra.mxu0 0.0
    %6640 = vmatprep.subr.mxu0 0.0
    %6641 = vmatpush1.msra.mxu0 0.0
    %6642 = vmatprep.subr.mxu0 0.0
    %6643 = vmatpush1.msra.mxu0 0.0
    %6644 = vmatprep.subr.mxu0 0.0
    %6645 = vmatpush1.msra.mxu0 0.0
    %6646 = vmatprep.subr.mxu0 0.0
    %6647 = vmatpush1.msra.mxu0 0.0
    %6648 = vmatprep.subr.mxu0 0.0
    %6649 = vmatpush1.msra.mxu0 0.0
    %6650 = vmatprep.subr.mxu0 0.0
    %6651 = vmatpush1.msra.mxu0 0.0
    %6652 = vmatprep.subr.mxu0 0.0
    %6653 = vmatpush1.msra.mxu0 0.0
    %6654 = vmatprep.subr.mxu0 0.0
    %6655 = vmatpush1.msra.mxu0 0.0
    %6656 = vmatprep.subr.mxu0 0.0
    %6657 = vmatpush1.msra.mxu0 0.0
    %6658 = vmatprep.subr.mxu0 0.0
    %6659 = vmatpush1.msra.mxu0 0.0
    %6660 = vmatprep.subr.mxu0 0.0
    %6661 = vmatpush1.msra.mxu0 0.0
    %6662 = vmatprep.subr.mxu0 0.0
    %6663 = vmatpush1.msra.mxu0 0.0
    %6664 = vmatprep.subr.mxu0 0.0
    %6665 = vmatpush1.msra.mxu0 0.0
    %6666 = vmatprep.subr.mxu0 0.0
    %6667 = vmatpush1.msra.mxu0 0.0
    %6668 = vmatprep.subr.mxu0 0.0
    %6669 = vmatpush1.msra.mxu0 0.0
    %6670 = vmatprep.subr.mxu0 0.0
    %6671 = vmatpush1.msra.mxu0 0.0
    %6672 = vmatprep.subr.mxu0 0.0
    %6673 = vmatpush1.msra.mxu0 0.0
    %6674 = vmatprep.subr.mxu0 0.0
    %6675 = vmatpush1.msra.mxu0 0.0
    %6676 = vmatprep.subr.mxu0 0.0
    %6677 = vmatpush1.msra.mxu0 0.0
    %6678 = vmatprep.subr.mxu0 0.0
    %6679 = vmatpush1.msra.mxu0 0.0
    %6680 = vmatprep.subr.mxu0 0.0
    %6681 = vmatpush1.msra.mxu0 0.0
    %6682 = vmatprep.subr.mxu0 0.0
    %6683 = vmatpush1.msra.mxu0 0.0
    %6684 = vmatprep.subr.mxu0 0.0
    %6685 = vmatpush1.msra.mxu0 0.0
    %6686 = vmatprep.mubr.f32.mxu0 0.0
    %6687 = vmatmul.mubr.f32.gmra.mrb[0].mxu0 %v6620
    %v6688 = vpop.f32.mrb[0].mxu0
    %v6689 = vadd.f32 %v2359, %v6688
    %v6690 = vpop.f32.mrb[0].mxu0
    %6691 = vdwg.mxu0
    %s6692 = scalar_lea.vmem %s15, 24
    %6693 = vst [vmem:[%s6692] sm:$0x3] %v6689
    %s6694 = scalar_lea.vmem [#allocation16], 384
    %v6695 = vld [vmem:[%s6694] sm:$0xff]
    %v6696 = vld [vmem:[%s6694 + $0x8] sm:$0xff]
    %v6697 = vld [vmem:[%s6694 + $0x10] sm:$0xff]
    %v6698 = vld [vmem:[%s6694 + $0x18] sm:$0xff]
    %6699 = vmatprep.subr.mxu0 0.0
    %6700 = vmatpush1.msra.mxu0 %v6695
    %6701 = vmatprep.subr.mxu0 0.0
    %6702 = vmatpush1.msra.mxu0 %v6696
    %6703 = vmatprep.subr.mxu0 0.0
    %6704 = vmatpush1.msra.mxu0 %v6697
    %6705 = vmatprep.subr.mxu0 0.0
    %6706 = vmatpush1.msra.mxu0 %v6698
    %6707 = vmatprep.subr.mxu0 0.0
    %6708 = vmatpush1.msra.mxu0 0.0
    %6709 = vmatprep.subr.mxu0 0.0
    %6710 = vmatpush1.msra.mxu0 0.0
    %6711 = vmatprep.subr.mxu0 0.0
    %6712 = vmatpush1.msra.mxu0 0.0
    %6713 = vmatprep.subr.mxu0 0.0
    %6714 = vmatpush1.msra.mxu0 0.0
    %6715 = vmatprep.subr.mxu0 0.0
    %6716 = vmatpush1.msra.mxu0 0.0
    %6717 = vmatprep.subr.mxu0 0.0
    %6718 = vmatpush1.msra.mxu0 0.0
    %6719 = vmatprep.subr.mxu0 0.0
    %6720 = vmatpush1.msra.mxu0 0.0
    %6721 = vmatprep.subr.mxu0 0.0
    %6722 = vmatpush1.msra.mxu0 0.0
    %6723 = vmatprep.subr.mxu0 0.0
    %6724 = vmatpush1.msra.mxu0 0.0
    %6725 = vmatprep.subr.mxu0 0.0
    %6726 = vmatpush1.msra.mxu0 0.0
    %6727 = vmatprep.subr.mxu0 0.0
    %6728 = vmatpush1.msra.mxu0 0.0
    %6729 = vmatprep.subr.mxu0 0.0
    %6730 = vmatpush1.msra.mxu0 0.0
    %6731 = vmatprep.subr.mxu0 0.0
    %6732 = vmatpush1.msra.mxu0 0.0
    %6733 = vmatprep.subr.mxu0 0.0
    %6734 = vmatpush1.msra.mxu0 0.0
    %6735 = vmatprep.subr.mxu0 0.0
    %6736 = vmatpush1.msra.mxu0 0.0
    %6737 = vmatprep.subr.mxu0 0.0
    %6738 = vmatpush1.msra.mxu0 0.0
    %6739 = vmatprep.subr.mxu0 0.0
    %6740 = vmatpush1.msra.mxu0 0.0
    %6741 = vmatprep.subr.mxu0 0.0
    %6742 = vmatpush1.msra.mxu0 0.0
    %6743 = vmatprep.subr.mxu0 0.0
    %6744 = vmatpush1.msra.mxu0 0.0
    %6745 = vmatprep.subr.mxu0 0.0
    %6746 = vmatpush1.msra.mxu0 0.0
    %6747 = vmatprep.subr.mxu0 0.0
    %6748 = vmatpush1.msra.mxu0 0.0
    %6749 = vmatprep.subr.mxu0 0.0
    %6750 = vmatpush1.msra.mxu0 0.0
    %6751 = vmatprep.subr.mxu0 0.0
    %6752 = vmatpush1.msra.mxu0 0.0
    %6753 = vmatprep.subr.mxu0 0.0
    %6754 = vmatpush1.msra.mxu0 0.0
    %6755 = vmatprep.subr.mxu0 0.0
    %6756 = vmatpush1.msra.mxu0 0.0
    %6757 = vmatprep.subr.mxu0 0.0
    %6758 = vmatpush1.msra.mxu0 0.0
    %6759 = vmatprep.subr.mxu0 0.0
    %6760 = vmatpush1.msra.mxu0 0.0
    %6761 = vmatprep.subr.mxu0 0.0
    %6762 = vmatpush1.msra.mxu0 0.0
    %6763 = vmatprep.mubr.f32.mxu0 0.0
    %6764 = vmatmul.mubr.f32.gmra.mrb[0].mxu0 %v6620
    %v6765 = vpop.f32.mrb[0].mxu0
    %v6766 = vadd.f32 0.0, %v6765
    %v6767 = vpop.f32.mrb[0].mxu0
    %6768 = vdwg.mxu0
    %v6769 = vadd.f32 %v6414, %v6766
    %v6770 = vsel %vm278, %v6514, 0
    %6772 = vmatprep.subr.mxu0 0.0
    %6773 = vmatpush1.msra.mxu0 %v2134
    %6774 = vmatprep.subr.mxu0 0.0
    %6775 = vmatpush1.msra.mxu0 %v2135
    %6776 = vmatprep.subr.mxu0 0.0
    %6777 = vmatpush1.msra.mxu0 %v2136
    %6778 = vmatprep.subr.mxu0 0.0
    %6779 = vmatpush1.msra.mxu0 %v2137
    %6780 = vmatprep.subr.mxu0 0.0
    %6781 = vmatpush1.msra.mxu0 0.0
    %6782 = vmatprep.subr.mxu0 0.0
    %6783 = vmatpush1.msra.mxu0 0.0
    %6784 = vmatprep.subr.mxu0 0.0
    %6785 = vmatpush1.msra.mxu0 0.0
    %6786 = vmatprep.subr.mxu0 0.0
    %6787 = vmatpush1.msra.mxu0 0.0
    %6788 = vmatprep.subr.mxu0 0.0
    %6789 = vmatpush1.msra.mxu0 0.0
    %6790 = vmatprep.subr.mxu0 0.0
    %6791 = vmatpush1.msra.mxu0 0.0
    %6792 = vmatprep.subr.mxu0 0.0
    %6793 = vmatpush1.msra.mxu0 0.0
    %6794 = vmatprep.subr.mxu0 0.0
    %6795 = vmatpush1.msra.mxu0 0.0
    %6796 = vmatprep.subr.mxu0 0.0
    %6797 = vmatpush1.msra.mxu0 0.0
    %6798 = vmatprep.subr.mxu0 0.0
    %6799 = vmatpush1.msra.mxu0 0.0
    %6800 = vmatprep.subr.mxu0 0.0
    %6801 = vmatpush1.msra.mxu0 0.0
    %6802 = vmatprep.subr.mxu0 0.0
    %6803 = vmatpush1.msra.mxu0 0.0
    %6804 = vmatprep.subr.mxu0 0.0
    %6805 = vmatpush1.msra.mxu0 0.0
    %6806 = vmatprep.subr.mxu0 0.0
    %6807 = vmatpush1.msra.mxu0 0.0
    %6808 = vmatprep.subr.mxu0 0.0
    %6809 = vmatpush1.msra.mxu0 0.0
    %6810 = vmatprep.subr.mxu0 0.0
    %6811 = vmatpush1.msra.mxu0 0.0
    %6812 = vmatprep.subr.mxu0 0.0
    %6813 = vmatpush1.msra.mxu0 0.0
    %6814 = vmatprep.subr.mxu0 0.0
    %6815 = vmatpush1.msra.mxu0 0.0
    %6816 = vmatprep.subr.mxu0 0.0
    %6817 = vmatpush1.msra.mxu0 0.0
    %6818 = vmatprep.subr.mxu0 0.0
    %6819 = vmatpush1.msra.mxu0 0.0
    %6820 = vmatprep.subr.mxu0 0.0
    %6821 = vmatpush1.msra.mxu0 0.0
    %6822 = vmatprep.subr.mxu0 0.0
    %6823 = vmatpush1.msra.mxu0 0.0
    %6824 = vmatprep.subr.mxu0 0.0
    %6825 = vmatpush1.msra.mxu0 0.0
    %6826 = vmatprep.subr.mxu0 0.0
    %6827 = vmatpush1.msra.mxu0 0.0
    %6828 = vmatprep.subr.mxu0 0.0
    %6829 = vmatpush1.msra.mxu0 0.0
    %6830 = vmatprep.subr.mxu0 0.0
    %6831 = vmatpush1.msra.mxu0 0.0
    %6832 = vmatprep.subr.mxu0 0.0
    %6833 = vmatpush1.msra.mxu0 0.0
    %6834 = vmatprep.subr.mxu0 0.0
    %6835 = vmatpush1.msra.mxu0 0.0
    %6836 = vmatprep.mubr.f32.mxu0 0.0
    %6837 = vmatmul.mubr.f32.gmra.mrb[0].mxu0 %v6770
    %v6838 = vpop.f32.mrb[0].mxu0
    %v6839 = vadd.f32 0.0, %v6838
    %v6840 = vpop.f32.mrb[0].mxu0
    %6841 = vdwg.mxu0
    %v6842 = vadd.f32 %v2131, %v6839
    %v6843 = vxor.u32 %v6842, 2147483648
    %v6844 = vmul.f32 %v6843, 1.442695
    %v6845 = vpow.pop %v6844
    %v6846 = vadd.f32 %v6845, 1.0
    %v6847 = vrcp.pop %v6846
    %v6848 = vmul.f32 1.0, %v6847
    %v6849 = vtanh.pop %v6842
    %v6850 = vmul.f32 %v6848, %v6505
    %6852 = vrot.lane.b32.xlu0 %v6849, 64
    %v6853 = vpop.permute.xlu0 %6852
    %v6855 = vmul.f32 %v6848, %v6853
    %6857 = vrot.lane.b32.xlu0 %v6855, 32
    %v6858 = vpop.permute.xlu0 %6857
    %v6860 = vadd.f32 %v6850, %v6858
    %v6861 = vtanh.pop %v6860
    %6863 = vrot.lane.b32.xlu0 %v6861, 64
    %v6864 = vpop.permute.xlu0 %6863
    %v6866 = vmul.f32 %v6848, %v6864
    %6868 = vrot.lane.b32.xlu0 %v6866, 32
    %v6869 = vpop.permute.xlu0 %6868
    %6871 = vrot.lane.b32.xlu0 %v6616, 64
    %v6872 = vpop.permute.xlu0 %6871
    %v6874 = vsel %vm278, %v6869, %v6872
    %v6876 = vsel %vm388, %v6874, 0
    %6878 = vmatprep.subr.mxu0 0.0
    %6879 = vmatpush1.msra.mxu0 %v2138
    %6880 = vmatprep.subr.mxu0 0.0
    %6881 = vmatpush1.msra.mxu0 %v2139
    %6882 = vmatprep.subr.mxu0 0.0
    %6883 = vmatpush1.msra.mxu0 %v2140
    %6884 = vmatprep.subr.mxu0 0.0
    %6885 = vmatpush1.msra.mxu0 %v2141
    %6886 = vmatprep.subr.mxu0 0.0
    %6887 = vmatpush1.msra.mxu0 %v2142
    %6888 = vmatprep.subr.mxu0 0.0
    %6889 = vmatpush1.msra.mxu0 %v2143
    %6890 = vmatprep.subr.mxu0 0.0
    %6891 = vmatpush1.msra.mxu0 %v2144
    %6892 = vmatprep.subr.mxu0 0.0
    %6893 = vmatpush1.msra.mxu0 %v2145
    %6894 = vmatprep.subr.mxu0 0.0
    %6895 = vmatpush1.msra.mxu0 0.0
    %6896 = vmatprep.subr.mxu0 0.0
    %6897 = vmatpush1.msra.mxu0 0.0
    %6898 = vmatprep.subr.mxu0 0.0
    %6899 = vmatpush1.msra.mxu0 0.0
    %6900 = vmatprep.subr.mxu0 0.0
    %6901 = vmatpush1.msra.mxu0 0.0
    %6902 = vmatprep.subr.mxu0 0.0
    %6903 = vmatpush1.msra.mxu0 0.0
    %6904 = vmatprep.subr.mxu0 0.0
    %6905 = vmatpush1.msra.mxu0 0.0
    %6906 = vmatprep.subr.mxu0 0.0
    %6907 = vmatpush1.msra.mxu0 0.0
    %6908 = vmatprep.subr.mxu0 0.0
    %6909 = vmatpush1.msra.mxu0 0.0
    %6910 = vmatprep.subr.mxu0 0.0
    %6911 = vmatpush1.msra.mxu0 0.0
    %6912 = vmatprep.subr.mxu0 0.0
    %6913 = vmatpush1.msra.mxu0 0.0
    %6914 = vmatprep.subr.mxu0 0.0
    %6915 = vmatpush1.msra.mxu0 0.0
    %6916 = vmatprep.subr.mxu0 0.0
    %6917 = vmatpush1.msra.mxu0 0.0
    %6918 = vmatprep.subr.mxu0 0.0
    %6919 = vmatpush1.msra.mxu0 0.0
    %6920 = vmatprep.subr.mxu0 0.0
    %6921 = vmatpush1.msra.mxu0 0.0
    %6922 = vmatprep.subr.mxu0 0.0
    %6923 = vmatpush1.msra.mxu0 0.0
    %6924 = vmatprep.subr.mxu0 0.0
    %6925 = vmatpush1.msra.mxu0 0.0
    %6926 = vmatprep.subr.mxu0 0.0
    %6927 = vmatpush1.msra.mxu0 0.0
    %6928 = vmatprep.subr.mxu0 0.0
    %6929 = vmatpush1.msra.mxu0 0.0
    %6930 = vmatprep.subr.mxu0 0.0
    %6931 = vmatpush1.msra.mxu0 0.0
    %6932 = vmatprep.subr.mxu0 0.0
    %6933 = vmatpush1.msra.mxu0 0.0
    %6934 = vmatprep.subr.mxu0 0.0
    %6935 = vmatpush1.msra.mxu0 0.0
    %6936 = vmatprep.subr.mxu0 0.0
    %6937 = vmatpush1.msra.mxu0 0.0
    %6938 = vmatprep.subr.mxu0 0.0
    %6939 = vmatpush1.msra.mxu0 0.0
    %6940 = vmatprep.subr.mxu0 0.0
    %6941 = vmatpush1.msra.mxu0 0.0
    %6942 = vmatprep.mubr.f32.mxu0 0.0
    %6943 = vmatmul.mubr.f32.gmra.mrb[0].mxu0 %v6876
    %v6944 = vpop.f32.mrb[0].mxu0
    %v6945 = vadd.f32 %v2256, %v6944
    %v6946 = vpop.f32.mrb[0].mxu0
    %6947 = vdwg.mxu0
    %v6948 = vxor.u32 %v6945, 2147483648
    %v6949 = vmul.f32 %v6948, 1.442695
    %v6950 = vpow.pop %v6949
    %v6951 = vadd.f32 %v6950, 1.0
    %v6952 = vrcp.pop %v6951
    %v6953 = vmul.f32 1.0, %v6952
    %v6954 = vtanh.pop %v6945
    %v6955 = vmul.f32 %v6953, %v6610
    %6957 = vrot.lane.b32.xlu0 %v6954, 64
    %v6958 = vpop.permute.xlu0 %6957
    %v6960 = vmul.f32 %v6953, %v6958
    %6962 = vrot.lane.b32.xlu0 %v6960, 32
    %v6963 = vpop.permute.xlu0 %6962
    %v6965 = vadd.f32 %v6955, %v6963
    %v6966 = vtanh.pop %v6965
    %6968 = vrot.lane.b32.xlu0 %v6966, 64
    %v6969 = vpop.permute.xlu0 %6968
    %v6971 = vmul.f32 %v6953, %v6969
    %6973 = vrot.lane.b32.xlu0 %v6971, 32
    %v6974 = vpop.permute.xlu0 %6973
    %v6975 = vsel %vm278, %v6974, 0
    %6977 = vmatprep.subr.mxu0 0.0
    %6978 = vmatpush1.msra.mxu0 %v2147
    %6979 = vmatprep.subr.mxu0 0.0
    %6980 = vmatpush1.msra.mxu0 %v2148
    %6981 = vmatprep.subr.mxu0 0.0
    %6982 = vmatpush1.msra.mxu0 %v2149
    %6983 = vmatprep.subr.mxu0 0.0
    %6984 = vmatpush1.msra.mxu0 %v2150
    %6985 = vmatprep.subr.mxu0 0.0
    %6986 = vmatpush1.msra.mxu0 0.0
    %6987 = vmatprep.subr.mxu0 0.0
    %6988 = vmatpush1.msra.mxu0 0.0
    %6989 = vmatprep.subr.mxu0 0.0
    %6990 = vmatpush1.msra.mxu0 0.0
    %6991 = vmatprep.subr.mxu0 0.0
    %6992 = vmatpush1.msra.mxu0 0.0
    %6993 = vmatprep.subr.mxu0 0.0
    %6994 = vmatpush1.msra.mxu0 0.0
    %6995 = vmatprep.subr.mxu0 0.0
    %6996 = vmatpush1.msra.mxu0 0.0
    %6997 = vmatprep.subr.mxu0 0.0
    %6998 = vmatpush1.msra.mxu0 0.0
    %6999 = vmatprep.subr.mxu0 0.0
    %7000 = vmatpush1.msra.mxu0 0.0
    %7001 = vmatprep.subr.mxu0 0.0
    %7002 = vmatpush1.msra.mxu0 0.0
    %7003 = vmatprep.subr.mxu0 0.0
    %7004 = vmatpush1.msra.mxu0 0.0
    %7005 = vmatprep.subr.mxu0 0.0
    %7006 = vmatpush1.msra.mxu0 0.0
    %7007 = vmatprep.subr.mxu0 0.0
    %7008 = vmatpush1.msra.mxu0 0.0
    %7009 = vmatprep.subr.mxu0 0.0
    %7010 = vmatpush1.msra.mxu0 0.0
    %7011 = vmatprep.subr.mxu0 0.0
    %7012 = vmatpush1.msra.mxu0 0.0
    %7013 = vmatprep.subr.mxu0 0.0
    %7014 = vmatpush1.msra.mxu0 0.0
    %7015 = vmatprep.subr.mxu0 0.0
    %7016 = vmatpush1.msra.mxu0 0.0
    %7017 = vmatprep.subr.mxu0 0.0
    %7018 = vmatpush1.msra.mxu0 0.0
    %7019 = vmatprep.subr.mxu0 0.0
    %7020 = vmatpush1.msra.mxu0 0.0
    %7021 = vmatprep.subr.mxu0 0.0
    %7022 = vmatpush1.msra.mxu0 0.0
    %7023 = vmatprep.subr.mxu0 0.0
    %7024 = vmatpush1.msra.mxu0 0.0
    %7025 = vmatprep.subr.mxu0 0.0
    %7026 = vmatpush1.msra.mxu0 0.0
    %7027 = vmatprep.subr.mxu0 0.0
    %7028 = vmatpush1.msra.mxu0 0.0
    %7029 = vmatprep.subr.mxu0 0.0
    %7030 = vmatpush1.msra.mxu0 0.0
    %7031 = vmatprep.subr.mxu0 0.0
    %7032 = vmatpush1.msra.mxu0 0.0
    %7033 = vmatprep.subr.mxu0 0.0
    %7034 = vmatpush1.msra.mxu0 0.0
    %7035 = vmatprep.subr.mxu0 0.0
    %7036 = vmatpush1.msra.mxu0 0.0
    %7037 = vmatprep.subr.mxu0 0.0
    %7038 = vmatpush1.msra.mxu0 0.0
    %7039 = vmatprep.subr.mxu0 0.0
    %7040 = vmatpush1.msra.mxu0 0.0
    %7041 = vmatprep.mubr.f32.mxu0 0.0
    %7042 = vmatmul.mubr.f32.gmra.mrb[0].mxu0 %v6975
    %v7043 = vpop.f32.mrb[0].mxu0
    %v7044 = vadd.f32 %v2359, %v7043
    %v7045 = vpop.f32.mrb[0].mxu0
    %7046 = vdwg.mxu0
    %s7047 = scalar_lea.vmem %s15, 26
    %7048 = vst [vmem:[%s7047] sm:$0x3] %v7044
    %s7049 = scalar_lea.vmem [#allocation16], 416
    %v7050 = vld [vmem:[%s7049] sm:$0xff]
    %v7051 = vld [vmem:[%s7049 + $0x8] sm:$0xff]
    %v7052 = vld [vmem:[%s7049 + $0x10] sm:$0xff]
    %v7053 = vld [vmem:[%s7049 + $0x18] sm:$0xff]
    %7054 = vmatprep.subr.mxu0 0.0
    %7055 = vmatpush1.msra.mxu0 %v7050
    %7056 = vmatprep.subr.mxu0 0.0
    %7057 = vmatpush1.msra.mxu0 %v7051
    %7058 = vmatprep.subr.mxu0 0.0
    %7059 = vmatpush1.msra.mxu0 %v7052
    %7060 = vmatprep.subr.mxu0 0.0
    %7061 = vmatpush1.msra.mxu0 %v7053
    %7062 = vmatprep.subr.mxu0 0.0
    %7063 = vmatpush1.msra.mxu0 0.0
    %7064 = vmatprep.subr.mxu0 0.0
    %7065 = vmatpush1.msra.mxu0 0.0
    %7066 = vmatprep.subr.mxu0 0.0
    %7067 = vmatpush1.msra.mxu0 0.0
    %7068 = vmatprep.subr.mxu0 0.0
    %7069 = vmatpush1.msra.mxu0 0.0
    %7070 = vmatprep.subr.mxu0 0.0
    %7071 = vmatpush1.msra.mxu0 0.0
    %7072 = vmatprep.subr.mxu0 0.0
    %7073 = vmatpush1.msra.mxu0 0.0
    %7074 = vmatprep.subr.mxu0 0.0
    %7075 = vmatpush1.msra.mxu0 0.0
    %7076 = vmatprep.subr.mxu0 0.0
    %7077 = vmatpush1.msra.mxu0 0.0
    %7078 = vmatprep.subr.mxu0 0.0
    %7079 = vmatpush1.msra.mxu0 0.0
    %7080 = vmatprep.subr.mxu0 0.0
    %7081 = vmatpush1.msra.mxu0 0.0
    %7082 = vmatprep.subr.mxu0 0.0
    %7083 = vmatpush1.msra.mxu0 0.0
    %7084 = vmatprep.subr.mxu0 0.0
    %7085 = vmatpush1.msra.mxu0 0.0
    %7086 = vmatprep.subr.mxu0 0.0
    %7087 = vmatpush1.msra.mxu0 0.0
    %7088 = vmatprep.subr.mxu0 0.0
    %7089 = vmatpush1.msra.mxu0 0.0
    %7090 = vmatprep.subr.mxu0 0.0
    %7091 = vmatpush1.msra.mxu0 0.0
    %7092 = vmatprep.subr.mxu0 0.0
    %7093 = vmatpush1.msra.mxu0 0.0
    %7094 = vmatprep.subr.mxu0 0.0
    %7095 = vmatpush1.msra.mxu0 0.0
    %7096 = vmatprep.subr.mxu0 0.0
    %7097 = vmatpush1.msra.mxu0 0.0
    %7098 = vmatprep.subr.mxu0 0.0
    %7099 = vmatpush1.msra.mxu0 0.0
    %7100 = vmatprep.subr.mxu0 0.0
    %7101 = vmatpush1.msra.mxu0 0.0
    %7102 = vmatprep.subr.mxu0 0.0
    %7103 = vmatpush1.msra.mxu0 0.0
    %7104 = vmatprep.subr.mxu0 0.0
    %7105 = vmatpush1.msra.mxu0 0.0
    %7106 = vmatprep.subr.mxu0 0.0
    %7107 = vmatpush1.msra.mxu0 0.0
    %7108 = vmatprep.subr.mxu0 0.0
    %7109 = vmatpush1.msra.mxu0 0.0
    %7110 = vmatprep.subr.mxu0 0.0
    %7111 = vmatpush1.msra.mxu0 0.0
    %7112 = vmatprep.subr.mxu0 0.0
    %7113 = vmatpush1.msra.mxu0 0.0
    %7114 = vmatprep.subr.mxu0 0.0
    %7115 = vmatpush1.msra.mxu0 0.0
    %7116 = vmatprep.subr.mxu0 0.0
    %7117 = vmatpush1.msra.mxu0 0.0
    %7118 = vmatprep.mubr.f32.mxu0 0.0
    %7119 = vmatmul.mubr.f32.gmra.mrb[0].mxu0 %v6975
    %v7120 = vpop.f32.mrb[0].mxu0
    %v7121 = vadd.f32 0.0, %v7120
    %v7122 = vpop.f32.mrb[0].mxu0
    %7123 = vdwg.mxu0
    %v7124 = vadd.f32 %v6769, %v7121
    %v7125 = vsel %vm278, %v6869, 0
    %7127 = vmatprep.subr.mxu0 0.0
    %7128 = vmatpush1.msra.mxu0 %v2134
    %7129 = vmatprep.subr.mxu0 0.0
    %7130 = vmatpush1.msra.mxu0 %v2135
    %7131 = vmatprep.subr.mxu0 0.0
    %7132 = vmatpush1.msra.mxu0 %v2136
    %7133 = vmatprep.subr.mxu0 0.0
    %7134 = vmatpush1.msra.mxu0 %v2137
    %7135 = vmatprep.subr.mxu0 0.0
    %7136 = vmatpush1.msra.mxu0 0.0
    %7137 = vmatprep.subr.mxu0 0.0
    %7138 = vmatpush1.msra.mxu0 0.0
    %7139 = vmatprep.subr.mxu0 0.0
    %7140 = vmatpush1.msra.mxu0 0.0
    %7141 = vmatprep.subr.mxu0 0.0
    %7142 = vmatpush1.msra.mxu0 0.0
    %7143 = vmatprep.subr.mxu0 0.0
    %7144 = vmatpush1.msra.mxu0 0.0
    %7145 = vmatprep.subr.mxu0 0.0
    %7146 = vmatpush1.msra.mxu0 0.0
    %7147 = vmatprep.subr.mxu0 0.0
    %7148 = vmatpush1.msra.mxu0 0.0
    %7149 = vmatprep.subr.mxu0 0.0
    %7150 = vmatpush1.msra.mxu0 0.0
    %7151 = vmatprep.subr.mxu0 0.0
    %7152 = vmatpush1.msra.mxu0 0.0
    %7153 = vmatprep.subr.mxu0 0.0
    %7154 = vmatpush1.msra.mxu0 0.0
    %7155 = vmatprep.subr.mxu0 0.0
    %7156 = vmatpush1.msra.mxu0 0.0
    %7157 = vmatprep.subr.mxu0 0.0
    %7158 = vmatpush1.msra.mxu0 0.0
    %7159 = vmatprep.subr.mxu0 0.0
    %7160 = vmatpush1.msra.mxu0 0.0
    %7161 = vmatprep.subr.mxu0 0.0
    %7162 = vmatpush1.msra.mxu0 0.0
    %7163 = vmatprep.subr.mxu0 0.0
    %7164 = vmatpush1.msra.mxu0 0.0
    %7165 = vmatprep.subr.mxu0 0.0
    %7166 = vmatpush1.msra.mxu0 0.0
    %7167 = vmatprep.subr.mxu0 0.0
    %7168 = vmatpush1.msra.mxu0 0.0
    %7169 = vmatprep.subr.mxu0 0.0
    %7170 = vmatpush1.msra.mxu0 0.0
    %7171 = vmatprep.subr.mxu0 0.0
    %7172 = vmatpush1.msra.mxu0 0.0
    %7173 = vmatprep.subr.mxu0 0.0
    %7174 = vmatpush1.msra.mxu0 0.0
    %7175 = vmatprep.subr.mxu0 0.0
    %7176 = vmatpush1.msra.mxu0 0.0
    %7177 = vmatprep.subr.mxu0 0.0
    %7178 = vmatpush1.msra.mxu0 0.0
    %7179 = vmatprep.subr.mxu0 0.0
    %7180 = vmatpush1.msra.mxu0 0.0
    %7181 = vmatprep.subr.mxu0 0.0
    %7182 = vmatpush1.msra.mxu0 0.0
    %7183 = vmatprep.subr.mxu0 0.0
    %7184 = vmatpush1.msra.mxu0 0.0
    %7185 = vmatprep.subr.mxu0 0.0
    %7186 = vmatpush1.msra.mxu0 0.0
    %7187 = vmatprep.subr.mxu0 0.0
    %7188 = vmatpush1.msra.mxu0 0.0
    %7189 = vmatprep.subr.mxu0 0.0
    %7190 = vmatpush1.msra.mxu0 0.0
    %7191 = vmatprep.mubr.f32.mxu0 0.0
    %7192 = vmatmul.mubr.f32.gmra.mrb[0].mxu0 %v7125
    %v7193 = vpop.f32.mrb[0].mxu0
    %v7194 = vadd.f32 0.0, %v7193
    %v7195 = vpop.f32.mrb[0].mxu0
    %7196 = vdwg.mxu0
    %v7197 = vadd.f32 %v2056, %v7194
    %v7198 = vxor.u32 %v7197, 2147483648
    %v7199 = vmul.f32 %v7198, 1.442695
    %v7200 = vpow.pop %v7199
    %v7201 = vadd.f32 %v7200, 1.0
    %v7202 = vrcp.pop %v7201
    %v7203 = vmul.f32 1.0, %v7202
    %v7204 = vtanh.pop %v7197
    %v7205 = vmul.f32 %v7203, %v6860
    %7207 = vrot.lane.b32.xlu0 %v7204, 64
    %v7208 = vpop.permute.xlu0 %7207
    %v7210 = vmul.f32 %v7203, %v7208
    %7212 = vrot.lane.b32.xlu0 %v7210, 32
    %v7213 = vpop.permute.xlu0 %7212
    %v7215 = vadd.f32 %v7205, %v7213
    %v7216 = vtanh.pop %v7215
    %7218 = vrot.lane.b32.xlu0 %v7216, 64
    %v7219 = vpop.permute.xlu0 %7218
    %v7221 = vmul.f32 %v7203, %v7219
    %7223 = vrot.lane.b32.xlu0 %v7221, 32
    %v7224 = vpop.permute.xlu0 %7223
    %7226 = vrot.lane.b32.xlu0 %v6971, 64
    %v7227 = vpop.permute.xlu0 %7226
    %v7229 = vsel %vm278, %v7224, %v7227
    %v7231 = vsel %vm388, %v7229, 0
    %7233 = vmatprep.subr.mxu0 0.0
    %7234 = vmatpush1.msra.mxu0 %v2138
    %7235 = vmatprep.subr.mxu0 0.0
    %7236 = vmatpush1.msra.mxu0 %v2139
    %7237 = vmatprep.subr.mxu0 0.0
    %7238 = vmatpush1.msra.mxu0 %v2140
    %7239 = vmatprep.subr.mxu0 0.0
    %7240 = vmatpush1.msra.mxu0 %v2141
    %7241 = vmatprep.subr.mxu0 0.0
    %7242 = vmatpush1.msra.mxu0 %v2142
    %7243 = vmatprep.subr.mxu0 0.0
    %7244 = vmatpush1.msra.mxu0 %v2143
    %7245 = vmatprep.subr.mxu0 0.0
    %7246 = vmatpush1.msra.mxu0 %v2144
    %7247 = vmatprep.subr.mxu0 0.0
    %7248 = vmatpush1.msra.mxu0 %v2145
    %7249 = vmatprep.subr.mxu0 0.0
    %7250 = vmatpush1.msra.mxu0 0.0
    %7251 = vmatprep.subr.mxu0 0.0
    %7252 = vmatpush1.msra.mxu0 0.0
    %7253 = vmatprep.subr.mxu0 0.0
    %7254 = vmatpush1.msra.mxu0 0.0
    %7255 = vmatprep.subr.mxu0 0.0
    %7256 = vmatpush1.msra.mxu0 0.0
    %7257 = vmatprep.subr.mxu0 0.0
    %7258 = vmatpush1.msra.mxu0 0.0
    %7259 = vmatprep.subr.mxu0 0.0
    %7260 = vmatpush1.msra.mxu0 0.0
    %7261 = vmatprep.subr.mxu0 0.0
    %7262 = vmatpush1.msra.mxu0 0.0
    %7263 = vmatprep.subr.mxu0 0.0
    %7264 = vmatpush1.msra.mxu0 0.0
    %7265 = vmatprep.subr.mxu0 0.0
    %7266 = vmatpush1.msra.mxu0 0.0
    %7267 = vmatprep.subr.mxu0 0.0
    %7268 = vmatpush1.msra.mxu0 0.0
    %7269 = vmatprep.subr.mxu0 0.0
    %7270 = vmatpush1.msra.mxu0 0.0
    %7271 = vmatprep.subr.mxu0 0.0
    %7272 = vmatpush1.msra.mxu0 0.0
    %7273 = vmatprep.subr.mxu0 0.0
    %7274 = vmatpush1.msra.mxu0 0.0
    %7275 = vmatprep.subr.mxu0 0.0
    %7276 = vmatpush1.msra.mxu0 0.0
    %7277 = vmatprep.subr.mxu0 0.0
    %7278 = vmatpush1.msra.mxu0 0.0
    %7279 = vmatprep.subr.mxu0 0.0
    %7280 = vmatpush1.msra.mxu0 0.0
    %7281 = vmatprep.subr.mxu0 0.0
    %7282 = vmatpush1.msra.mxu0 0.0
    %7283 = vmatprep.subr.mxu0 0.0
    %7284 = vmatpush1.msra.mxu0 0.0
    %7285 = vmatprep.subr.mxu0 0.0
    %7286 = vmatpush1.msra.mxu0 0.0
    %7287 = vmatprep.subr.mxu0 0.0
    %7288 = vmatpush1.msra.mxu0 0.0
    %7289 = vmatprep.subr.mxu0 0.0
    %7290 = vmatpush1.msra.mxu0 0.0
    %7291 = vmatprep.subr.mxu0 0.0
    %7292 = vmatpush1.msra.mxu0 0.0
    %7293 = vmatprep.subr.mxu0 0.0
    %7294 = vmatpush1.msra.mxu0 0.0
    %7295 = vmatprep.subr.mxu0 0.0
    %7296 = vmatpush1.msra.mxu0 0.0
    %7297 = vmatprep.mubr.f32.mxu0 0.0
    %7298 = vmatmul.mubr.f32.gmra.mrb[0].mxu0 %v7231
    %v7299 = vpop.f32.mrb[0].mxu0
    %v7300 = vadd.f32 %v2256, %v7299
    %v7301 = vpop.f32.mrb[0].mxu0
    %7302 = vdwg.mxu0
    %v7303 = vxor.u32 %v7300, 2147483648
    %v7304 = vmul.f32 %v7303, 1.442695
    %v7305 = vpow.pop %v7304
    %v7306 = vadd.f32 %v7305, 1.0
    %v7307 = vrcp.pop %v7306
    %v7308 = vmul.f32 1.0, %v7307
    %v7309 = vtanh.pop %v7300
    %v7310 = vmul.f32 %v7308, %v6965
    %7312 = vrot.lane.b32.xlu0 %v7309, 64
    %v7313 = vpop.permute.xlu0 %7312
    %v7315 = vmul.f32 %v7308, %v7313
    %7317 = vrot.lane.b32.xlu0 %v7315, 32
    %v7318 = vpop.permute.xlu0 %7317
    %v7320 = vadd.f32 %v7310, %v7318
    %v7321 = vtanh.pop %v7320
    %7323 = vrot.lane.b32.xlu0 %v7321, 64
    %v7324 = vpop.permute.xlu0 %7323
    %v7326 = vmul.f32 %v7308, %v7324
    %7328 = vrot.lane.b32.xlu0 %v7326, 32
    %v7329 = vpop.permute.xlu0 %7328
    %v7330 = vsel %vm278, %v7329, 0
    %7332 = vmatprep.subr.mxu0 0.0
    %7333 = vmatpush1.msra.mxu0 %v2147
    %7334 = vmatprep.subr.mxu0 0.0
    %7335 = vmatpush1.msra.mxu0 %v2148
    %7336 = vmatprep.subr.mxu0 0.0
    %7337 = vmatpush1.msra.mxu0 %v2149
    %7338 = vmatprep.subr.mxu0 0.0
    %7339 = vmatpush1.msra.mxu0 %v2150
    %7340 = vmatprep.subr.mxu0 0.0
    %7341 = vmatpush1.msra.mxu0 0.0
    %7342 = vmatprep.subr.mxu0 0.0
    %7343 = vmatpush1.msra.mxu0 0.0
    %7344 = vmatprep.subr.mxu0 0.0
    %7345 = vmatpush1.msra.mxu0 0.0
    %7346 = vmatprep.subr.mxu0 0.0
    %7347 = vmatpush1.msra.mxu0 0.0
    %7348 = vmatprep.subr.mxu0 0.0
    %7349 = vmatpush1.msra.mxu0 0.0
    %7350 = vmatprep.subr.mxu0 0.0
    %7351 = vmatpush1.msra.mxu0 0.0
    %7352 = vmatprep.subr.mxu0 0.0
    %7353 = vmatpush1.msra.mxu0 0.0
    %7354 = vmatprep.subr.mxu0 0.0
    %7355 = vmatpush1.msra.mxu0 0.0
    %7356 = vmatprep.subr.mxu0 0.0
    %7357 = vmatpush1.msra.mxu0 0.0
    %7358 = vmatprep.subr.mxu0 0.0
    %7359 = vmatpush1.msra.mxu0 0.0
    %7360 = vmatprep.subr.mxu0 0.0
    %7361 = vmatpush1.msra.mxu0 0.0
    %7362 = vmatprep.subr.mxu0 0.0
    %7363 = vmatpush1.msra.mxu0 0.0
    %7364 = vmatprep.subr.mxu0 0.0
    %7365 = vmatpush1.msra.mxu0 0.0
    %7366 = vmatprep.subr.mxu0 0.0
    %7367 = vmatpush1.msra.mxu0 0.0
    %7368 = vmatprep.subr.mxu0 0.0
    %7369 = vmatpush1.msra.mxu0 0.0
    %7370 = vmatprep.subr.mxu0 0.0
    %7371 = vmatpush1.msra.mxu0 0.0
    %7372 = vmatprep.subr.mxu0 0.0
    %7373 = vmatpush1.msra.mxu0 0.0
    %7374 = vmatprep.subr.mxu0 0.0
    %7375 = vmatpush1.msra.mxu0 0.0
    %7376 = vmatprep.subr.mxu0 0.0
    %7377 = vmatpush1.msra.mxu0 0.0
    %7378 = vmatprep.subr.mxu0 0.0
    %7379 = vmatpush1.msra.mxu0 0.0
    %7380 = vmatprep.subr.mxu0 0.0
    %7381 = vmatpush1.msra.mxu0 0.0
    %7382 = vmatprep.subr.mxu0 0.0
    %7383 = vmatpush1.msra.mxu0 0.0
    %7384 = vmatprep.subr.mxu0 0.0
    %7385 = vmatpush1.msra.mxu0 0.0
    %7386 = vmatprep.subr.mxu0 0.0
    %7387 = vmatpush1.msra.mxu0 0.0
    %7388 = vmatprep.subr.mxu0 0.0
    %7389 = vmatpush1.msra.mxu0 0.0
    %7390 = vmatprep.subr.mxu0 0.0
    %7391 = vmatpush1.msra.mxu0 0.0
    %7392 = vmatprep.subr.mxu0 0.0
    %7393 = vmatpush1.msra.mxu0 0.0
    %7394 = vmatprep.subr.mxu0 0.0
    %7395 = vmatpush1.msra.mxu0 0.0
    %7396 = vmatprep.mubr.f32.mxu0 0.0
    %7397 = vmatmul.mubr.f32.gmra.mrb[0].mxu0 %v7330
    %v7398 = vpop.f32.mrb[0].mxu0
    %v7399 = vadd.f32 %v2359, %v7398
    %v7400 = vpop.f32.mrb[0].mxu0
    %7401 = vdwg.mxu0
    %s7402 = scalar_lea.vmem %s15, 28
    %7403 = vst [vmem:[%s7402] sm:$0x3] %v7399
    %s7404 = scalar_lea.vmem [#allocation16], 448
    %v7405 = vld [vmem:[%s7404] sm:$0xff]
    %v7406 = vld [vmem:[%s7404 + $0x8] sm:$0xff]
    %v7407 = vld [vmem:[%s7404 + $0x10] sm:$0xff]
    %v7408 = vld [vmem:[%s7404 + $0x18] sm:$0xff]
    %7409 = vmatprep.subr.mxu0 0.0
    %7410 = vmatpush1.msra.mxu0 %v7405
    %7411 = vmatprep.subr.mxu0 0.0
    %7412 = vmatpush1.msra.mxu0 %v7406
    %7413 = vmatprep.subr.mxu0 0.0
    %7414 = vmatpush1.msra.mxu0 %v7407
    %7415 = vmatprep.subr.mxu0 0.0
    %7416 = vmatpush1.msra.mxu0 %v7408
    %7417 = vmatprep.subr.mxu0 0.0
    %7418 = vmatpush1.msra.mxu0 0.0
    %7419 = vmatprep.subr.mxu0 0.0
    %7420 = vmatpush1.msra.mxu0 0.0
    %7421 = vmatprep.subr.mxu0 0.0
    %7422 = vmatpush1.msra.mxu0 0.0
    %7423 = vmatprep.subr.mxu0 0.0
    %7424 = vmatpush1.msra.mxu0 0.0
    %7425 = vmatprep.subr.mxu0 0.0
    %7426 = vmatpush1.msra.mxu0 0.0
    %7427 = vmatprep.subr.mxu0 0.0
    %7428 = vmatpush1.msra.mxu0 0.0
    %7429 = vmatprep.subr.mxu0 0.0
    %7430 = vmatpush1.msra.mxu0 0.0
    %7431 = vmatprep.subr.mxu0 0.0
    %7432 = vmatpush1.msra.mxu0 0.0
    %7433 = vmatprep.subr.mxu0 0.0
    %7434 = vmatpush1.msra.mxu0 0.0
    %7435 = vmatprep.subr.mxu0 0.0
    %7436 = vmatpush1.msra.mxu0 0.0
    %7437 = vmatprep.subr.mxu0 0.0
    %7438 = vmatpush1.msra.mxu0 0.0
    %7439 = vmatprep.subr.mxu0 0.0
    %7440 = vmatpush1.msra.mxu0 0.0
    %7441 = vmatprep.subr.mxu0 0.0
    %7442 = vmatpush1.msra.mxu0 0.0
    %7443 = vmatprep.subr.mxu0 0.0
    %7444 = vmatpush1.msra.mxu0 0.0
    %7445 = vmatprep.subr.mxu0 0.0
    %7446 = vmatpush1.msra.mxu0 0.0
    %7447 = vmatprep.subr.mxu0 0.0
    %7448 = vmatpush1.msra.mxu0 0.0
    %7449 = vmatprep.subr.mxu0 0.0
    %7450 = vmatpush1.msra.mxu0 0.0
    %7451 = vmatprep.subr.mxu0 0.0
    %7452 = vmatpush1.msra.mxu0 0.0
    %7453 = vmatprep.subr.mxu0 0.0
    %7454 = vmatpush1.msra.mxu0 0.0
    %7455 = vmatprep.subr.mxu0 0.0
    %7456 = vmatpush1.msra.mxu0 0.0
    %7457 = vmatprep.subr.mxu0 0.0
    %7458 = vmatpush1.msra.mxu0 0.0
    %7459 = vmatprep.subr.mxu0 0.0
    %7460 = vmatpush1.msra.mxu0 0.0
    %7461 = vmatprep.subr.mxu0 0.0
    %7462 = vmatpush1.msra.mxu0 0.0
    %7463 = vmatprep.subr.mxu0 0.0
    %7464 = vmatpush1.msra.mxu0 0.0
    %7465 = vmatprep.subr.mxu0 0.0
    %7466 = vmatpush1.msra.mxu0 0.0
    %7467 = vmatprep.subr.mxu0 0.0
    %7468 = vmatpush1.msra.mxu0 0.0
    %7469 = vmatprep.subr.mxu0 0.0
    %7470 = vmatpush1.msra.mxu0 0.0
    %7471 = vmatprep.subr.mxu0 0.0
    %7472 = vmatpush1.msra.mxu0 0.0
    %7473 = vmatprep.mubr.f32.mxu0 0.0
    %7474 = vmatmul.mubr.f32.gmra.mrb[0].mxu0 %v7330
    %v7475 = vpop.f32.mrb[0].mxu0
    %v7476 = vadd.f32 0.0, %v7475
    %v7477 = vpop.f32.mrb[0].mxu0
    %7478 = vdwg.mxu0
    %v7479 = vadd.f32 %v7124, %v7476
    %v7480 = vsel %vm278, %v7224, 0
    %7482 = vmatprep.subr.mxu0 0.0
    %7483 = vmatpush1.msra.mxu0 %v2134
    %7484 = vmatprep.subr.mxu0 0.0
    %7485 = vmatpush1.msra.mxu0 %v2135
    %7486 = vmatprep.subr.mxu0 0.0
    %7487 = vmatpush1.msra.mxu0 %v2136
    %7488 = vmatprep.subr.mxu0 0.0
    %7489 = vmatpush1.msra.mxu0 %v2137
    %7490 = vmatprep.subr.mxu0 0.0
    %7491 = vmatpush1.msra.mxu0 0.0
    %7492 = vmatprep.subr.mxu0 0.0
    %7493 = vmatpush1.msra.mxu0 0.0
    %7494 = vmatprep.subr.mxu0 0.0
    %7495 = vmatpush1.msra.mxu0 0.0
    %7496 = vmatprep.subr.mxu0 0.0
    %7497 = vmatpush1.msra.mxu0 0.0
    %7498 = vmatprep.subr.mxu0 0.0
    %7499 = vmatpush1.msra.mxu0 0.0
    %7500 = vmatprep.subr.mxu0 0.0
    %7501 = vmatpush1.msra.mxu0 0.0
    %7502 = vmatprep.subr.mxu0 0.0
    %7503 = vmatpush1.msra.mxu0 0.0
    %7504 = vmatprep.subr.mxu0 0.0
    %7505 = vmatpush1.msra.mxu0 0.0
    %7506 = vmatprep.subr.mxu0 0.0
    %7507 = vmatpush1.msra.mxu0 0.0
    %7508 = vmatprep.subr.mxu0 0.0
    %7509 = vmatpush1.msra.mxu0 0.0
    %7510 = vmatprep.subr.mxu0 0.0
    %7511 = vmatpush1.msra.mxu0 0.0
    %7512 = vmatprep.subr.mxu0 0.0
    %7513 = vmatpush1.msra.mxu0 0.0
    %7514 = vmatprep.subr.mxu0 0.0
    %7515 = vmatpush1.msra.mxu0 0.0
    %7516 = vmatprep.subr.mxu0 0.0
    %7517 = vmatpush1.msra.mxu0 0.0
    %7518 = vmatprep.subr.mxu0 0.0
    %7519 = vmatpush1.msra.mxu0 0.0
    %7520 = vmatprep.subr.mxu0 0.0
    %7521 = vmatpush1.msra.mxu0 0.0
    %7522 = vmatprep.subr.mxu0 0.0
    %7523 = vmatpush1.msra.mxu0 0.0
    %7524 = vmatprep.subr.mxu0 0.0
    %7525 = vmatpush1.msra.mxu0 0.0
    %7526 = vmatprep.subr.mxu0 0.0
    %7527 = vmatpush1.msra.mxu0 0.0
    %7528 = vmatprep.subr.mxu0 0.0
    %7529 = vmatpush1.msra.mxu0 0.0
    %7530 = vmatprep.subr.mxu0 0.0
    %7531 = vmatpush1.msra.mxu0 0.0
    %7532 = vmatprep.subr.mxu0 0.0
    %7533 = vmatpush1.msra.mxu0 0.0
    %7534 = vmatprep.subr.mxu0 0.0
    %7535 = vmatpush1.msra.mxu0 0.0
    %7536 = vmatprep.subr.mxu0 0.0
    %7537 = vmatpush1.msra.mxu0 0.0
    %7538 = vmatprep.subr.mxu0 0.0
    %7539 = vmatpush1.msra.mxu0 0.0
    %7540 = vmatprep.subr.mxu0 0.0
    %7541 = vmatpush1.msra.mxu0 0.0
    %7542 = vmatprep.subr.mxu0 0.0
    %7543 = vmatpush1.msra.mxu0 0.0
    %7544 = vmatprep.subr.mxu0 0.0
    %7545 = vmatpush1.msra.mxu0 0.0
    %7546 = vmatprep.mubr.f32.mxu0 0.0
    %7547 = vmatmul.mubr.f32.gmra.mrb[0].mxu0 %v7480
    %v7548 = vpop.f32.mrb[0].mxu0
    %v7549 = vadd.f32 0.0, %v7548
    %v7550 = vpop.f32.mrb[0].mxu0
    %7551 = vdwg.mxu0
    %v7552 = vadd.f32 %v2131, %v7549
    %v7553 = vxor.u32 %v7552, 2147483648
    %v7554 = vmul.f32 %v7553, 1.442695
    %v7555 = vpow.pop %v7554
    %v7556 = vadd.f32 %v7555, 1.0
    %v7557 = vrcp.pop %v7556
    %v7558 = vmul.f32 1.0, %v7557
    %v7559 = vtanh.pop %v7552
    %v7560 = vmul.f32 %v7558, %v7215
    %7562 = vrot.lane.b32.xlu0 %v7559, 64
    %v7563 = vpop.permute.xlu0 %7562
    %v7565 = vmul.f32 %v7558, %v7563
    %7567 = vrot.lane.b32.xlu0 %v7565, 32
    %v7568 = vpop.permute.xlu0 %7567
    %v7570 = vadd.f32 %v7560, %v7568
    %v7571 = vtanh.pop %v7570
    %7573 = vrot.lane.b32.xlu0 %v7571, 64
    %v7574 = vpop.permute.xlu0 %7573
    %v7576 = vmul.f32 %v7558, %v7574
    %7578 = vrot.lane.b32.xlu0 %v7576, 32
    %v7579 = vpop.permute.xlu0 %7578
    %7581 = vrot.lane.b32.xlu0 %v7326, 64
    %v7582 = vpop.permute.xlu0 %7581
    %v7584 = vsel %vm278, %v7579, %v7582
    %v7586 = vsel %vm388, %v7584, 0
    %7588 = vmatprep.subr.mxu0 0.0
    %7589 = vmatpush1.msra.mxu0 %v2138
    %7590 = vmatprep.subr.mxu0 0.0
    %7591 = vmatpush1.msra.mxu0 %v2139
    %7592 = vmatprep.subr.mxu0 0.0
    %7593 = vmatpush1.msra.mxu0 %v2140
    %7594 = vmatprep.subr.mxu0 0.0
    %7595 = vmatpush1.msra.mxu0 %v2141
    %7596 = vmatprep.subr.mxu0 0.0
    %7597 = vmatpush1.msra.mxu0 %v2142
    %7598 = vmatprep.subr.mxu0 0.0
    %7599 = vmatpush1.msra.mxu0 %v2143
    %7600 = vmatprep.subr.mxu0 0.0
    %7601 = vmatpush1.msra.mxu0 %v2144
    %7602 = vmatprep.subr.mxu0 0.0
    %7603 = vmatpush1.msra.mxu0 %v2145
    %7604 = vmatprep.subr.mxu0 0.0
    %7605 = vmatpush1.msra.mxu0 0.0
    %7606 = vmatprep.subr.mxu0 0.0
    %7607 = vmatpush1.msra.mxu0 0.0
    %7608 = vmatprep.subr.mxu0 0.0
    %7609 = vmatpush1.msra.mxu0 0.0
    %7610 = vmatprep.subr.mxu0 0.0
    %7611 = vmatpush1.msra.mxu0 0.0
    %7612 = vmatprep.subr.mxu0 0.0
    %7613 = vmatpush1.msra.mxu0 0.0
    %7614 = vmatprep.subr.mxu0 0.0
    %7615 = vmatpush1.msra.mxu0 0.0
    %7616 = vmatprep.subr.mxu0 0.0
    %7617 = vmatpush1.msra.mxu0 0.0
    %7618 = vmatprep.subr.mxu0 0.0
    %7619 = vmatpush1.msra.mxu0 0.0
    %7620 = vmatprep.subr.mxu0 0.0
    %7621 = vmatpush1.msra.mxu0 0.0
    %7622 = vmatprep.subr.mxu0 0.0
    %7623 = vmatpush1.msra.mxu0 0.0
    %7624 = vmatprep.subr.mxu0 0.0
    %7625 = vmatpush1.msra.mxu0 0.0
    %7626 = vmatprep.subr.mxu0 0.0
    %7627 = vmatpush1.msra.mxu0 0.0
    %7628 = vmatprep.subr.mxu0 0.0
    %7629 = vmatpush1.msra.mxu0 0.0
    %7630 = vmatprep.subr.mxu0 0.0
    %7631 = vmatpush1.msra.mxu0 0.0
    %7632 = vmatprep.subr.mxu0 0.0
    %7633 = vmatpush1.msra.mxu0 0.0
    %7634 = vmatprep.subr.mxu0 0.0
    %7635 = vmatpush1.msra.mxu0 0.0
    %7636 = vmatprep.subr.mxu0 0.0
    %7637 = vmatpush1.msra.mxu0 0.0
    %7638 = vmatprep.subr.mxu0 0.0
    %7639 = vmatpush1.msra.mxu0 0.0
    %7640 = vmatprep.subr.mxu0 0.0
    %7641 = vmatpush1.msra.mxu0 0.0
    %7642 = vmatprep.subr.mxu0 0.0
    %7643 = vmatpush1.msra.mxu0 0.0
    %7644 = vmatprep.subr.mxu0 0.0
    %7645 = vmatpush1.msra.mxu0 0.0
    %7646 = vmatprep.subr.mxu0 0.0
    %7647 = vmatpush1.msra.mxu0 0.0
    %7648 = vmatprep.subr.mxu0 0.0
    %7649 = vmatpush1.msra.mxu0 0.0
    %7650 = vmatprep.subr.mxu0 0.0
    %7651 = vmatpush1.msra.mxu0 0.0
    %7652 = vmatprep.mubr.f32.mxu0 0.0
    %7653 = vmatmul.mubr.f32.gmra.mrb[0].mxu0 %v7586
    %v7654 = vpop.f32.mrb[0].mxu0
    %v7655 = vadd.f32 %v2256, %v7654
    %v7656 = vpop.f32.mrb[0].mxu0
    %7657 = vdwg.mxu0
    %v7658 = vxor.u32 %v7655, 2147483648
    %v7659 = vmul.f32 %v7658, 1.442695
    %v7660 = vpow.pop %v7659
    %v7661 = vadd.f32 %v7660, 1.0
    %v7662 = vrcp.pop %v7661
    %v7663 = vmul.f32 1.0, %v7662
    %v7664 = vtanh.pop %v7655
    %v7665 = vmul.f32 %v7663, %v7320
    %7667 = vrot.lane.b32.xlu0 %v7664, 64
    %v7668 = vpop.permute.xlu0 %7667
    %v7670 = vmul.f32 %v7663, %v7668
    %7672 = vrot.lane.b32.xlu0 %v7670, 32
    %v7673 = vpop.permute.xlu0 %7672
    %v7675 = vadd.f32 %v7665, %v7673
    %v7676 = vtanh.pop %v7675
    %7678 = vrot.lane.b32.xlu0 %v7676, 64
    %v7679 = vpop.permute.xlu0 %7678
    %v7681 = vmul.f32 %v7663, %v7679
    %7683 = vrot.lane.b32.xlu0 %v7681, 32
    %v7684 = vpop.permute.xlu0 %7683
    %v7685 = vsel %vm278, %v7684, 0
    %7687 = vmatprep.subr.mxu0 0.0
    %7688 = vmatpush1.msra.mxu0 %v2147
    %7689 = vmatprep.subr.mxu0 0.0
    %7690 = vmatpush1.msra.mxu0 %v2148
    %7691 = vmatprep.subr.mxu0 0.0
    %7692 = vmatpush1.msra.mxu0 %v2149
    %7693 = vmatprep.subr.mxu0 0.0
    %7694 = vmatpush1.msra.mxu0 %v2150
    %7695 = vmatprep.subr.mxu0 0.0
    %7696 = vmatpush1.msra.mxu0 0.0
    %7697 = vmatprep.subr.mxu0 0.0
    %7698 = vmatpush1.msra.mxu0 0.0
    %7699 = vmatprep.subr.mxu0 0.0
    %7700 = vmatpush1.msra.mxu0 0.0
    %7701 = vmatprep.subr.mxu0 0.0
    %7702 = vmatpush1.msra.mxu0 0.0
    %7703 = vmatprep.subr.mxu0 0.0
    %7704 = vmatpush1.msra.mxu0 0.0
    %7705 = vmatprep.subr.mxu0 0.0
    %7706 = vmatpush1.msra.mxu0 0.0
    %7707 = vmatprep.subr.mxu0 0.0
    %7708 = vmatpush1.msra.mxu0 0.0
    %7709 = vmatprep.subr.mxu0 0.0
    %7710 = vmatpush1.msra.mxu0 0.0
    %7711 = vmatprep.subr.mxu0 0.0
    %7712 = vmatpush1.msra.mxu0 0.0
    %7713 = vmatprep.subr.mxu0 0.0
    %7714 = vmatpush1.msra.mxu0 0.0
    %7715 = vmatprep.subr.mxu0 0.0
    %7716 = vmatpush1.msra.mxu0 0.0
    %7717 = vmatprep.subr.mxu0 0.0
    %7718 = vmatpush1.msra.mxu0 0.0
    %7719 = vmatprep.subr.mxu0 0.0
    %7720 = vmatpush1.msra.mxu0 0.0
    %7721 = vmatprep.subr.mxu0 0.0
    %7722 = vmatpush1.msra.mxu0 0.0
    %7723 = vmatprep.subr.mxu0 0.0
    %7724 = vmatpush1.msra.mxu0 0.0
    %7725 = vmatprep.subr.mxu0 0.0
    %7726 = vmatpush1.msra.mxu0 0.0
    %7727 = vmatprep.subr.mxu0 0.0
    %7728 = vmatpush1.msra.mxu0 0.0
    %7729 = vmatprep.subr.mxu0 0.0
    %7730 = vmatpush1.msra.mxu0 0.0
    %7731 = vmatprep.subr.mxu0 0.0
    %7732 = vmatpush1.msra.mxu0 0.0
    %7733 = vmatprep.subr.mxu0 0.0
    %7734 = vmatpush1.msra.mxu0 0.0
    %7735 = vmatprep.subr.mxu0 0.0
    %7736 = vmatpush1.msra.mxu0 0.0
    %7737 = vmatprep.subr.mxu0 0.0
    %7738 = vmatpush1.msra.mxu0 0.0
    %7739 = vmatprep.subr.mxu0 0.0
    %7740 = vmatpush1.msra.mxu0 0.0
    %7741 = vmatprep.subr.mxu0 0.0
    %7742 = vmatpush1.msra.mxu0 0.0
    %7743 = vmatprep.subr.mxu0 0.0
    %7744 = vmatpush1.msra.mxu0 0.0
    %7745 = vmatprep.subr.mxu0 0.0
    %7746 = vmatpush1.msra.mxu0 0.0
    %7747 = vmatprep.subr.mxu0 0.0
    %7748 = vmatpush1.msra.mxu0 0.0
    %7749 = vmatprep.subr.mxu0 0.0
    %7750 = vmatpush1.msra.mxu0 0.0
    %7751 = vmatprep.mubr.f32.mxu0 0.0
    %7752 = vmatmul.mubr.f32.gmra.mrb[0].mxu0 %v7685
    %v7753 = vpop.f32.mrb[0].mxu0
    %v7754 = vadd.f32 %v2359, %v7753
    %v7755 = vpop.f32.mrb[0].mxu0
    %7756 = vdwg.mxu0
    %s7757 = scalar_lea.vmem %s15, 30
    %7758 = vst [vmem:[%s7757] sm:$0x3] %v7754
    %s7759 = scalar_lea.vmem [#allocation16], 480
    %v7760 = vld [vmem:[%s7759] sm:$0xff]
    %v7761 = vld [vmem:[%s7759 + $0x8] sm:$0xff]
    %v7762 = vld [vmem:[%s7759 + $0x10] sm:$0xff]
    %v7763 = vld [vmem:[%s7759 + $0x18] sm:$0xff]
    %7764 = vmatprep.subr.mxu0 0.0
    %7765 = vmatpush1.msra.mxu0 %v7760
    %7766 = vmatprep.subr.mxu0 0.0
    %7767 = vmatpush1.msra.mxu0 %v7761
    %7768 = vmatprep.subr.mxu0 0.0
    %7769 = vmatpush1.msra.mxu0 %v7762
    %7770 = vmatprep.subr.mxu0 0.0
    %7771 = vmatpush1.msra.mxu0 %v7763
    %7772 = vmatprep.subr.mxu0 0.0
    %7773 = vmatpush1.msra.mxu0 0.0
    %7774 = vmatprep.subr.mxu0 0.0
    %7775 = vmatpush1.msra.mxu0 0.0
    %7776 = vmatprep.subr.mxu0 0.0
    %7777 = vmatpush1.msra.mxu0 0.0
    %7778 = vmatprep.subr.mxu0 0.0
    %7779 = vmatpush1.msra.mxu0 0.0
    %7780 = vmatprep.subr.mxu0 0.0
    %7781 = vmatpush1.msra.mxu0 0.0
    %7782 = vmatprep.subr.mxu0 0.0
    %7783 = vmatpush1.msra.mxu0 0.0
    %7784 = vmatprep.subr.mxu0 0.0
    %7785 = vmatpush1.msra.mxu0 0.0
    %7786 = vmatprep.subr.mxu0 0.0
    %7787 = vmatpush1.msra.mxu0 0.0
    %7788 = vmatprep.subr.mxu0 0.0
    %7789 = vmatpush1.msra.mxu0 0.0
    %7790 = vmatprep.subr.mxu0 0.0
    %7791 = vmatpush1.msra.mxu0 0.0
    %7792 = vmatprep.subr.mxu0 0.0
    %7793 = vmatpush1.msra.mxu0 0.0
    %7794 = vmatprep.subr.mxu0 0.0
    %7795 = vmatpush1.msra.mxu0 0.0
    %7796 = vmatprep.subr.mxu0 0.0
    %7797 = vmatpush1.msra.mxu0 0.0
    %7798 = vmatprep.subr.mxu0 0.0
    %7799 = vmatpush1.msra.mxu0 0.0
    %7800 = vmatprep.subr.mxu0 0.0
    %7801 = vmatpush1.msra.mxu0 0.0
    %7802 = vmatprep.subr.mxu0 0.0
    %7803 = vmatpush1.msra.mxu0 0.0
    %7804 = vmatprep.subr.mxu0 0.0
    %7805 = vmatpush1.msra.mxu0 0.0
    %7806 = vmatprep.subr.mxu0 0.0
    %7807 = vmatpush1.msra.mxu0 0.0
    %7808 = vmatprep.subr.mxu0 0.0
    %7809 = vmatpush1.msra.mxu0 0.0
    %7810 = vmatprep.subr.mxu0 0.0
    %7811 = vmatpush1.msra.mxu0 0.0
    %7812 = vmatprep.subr.mxu0 0.0
    %7813 = vmatpush1.msra.mxu0 0.0
    %7814 = vmatprep.subr.mxu0 0.0
    %7815 = vmatpush1.msra.mxu0 0.0
    %7816 = vmatprep.subr.mxu0 0.0
    %7817 = vmatpush1.msra.mxu0 0.0
    %7818 = vmatprep.subr.mxu0 0.0
    %7819 = vmatpush1.msra.mxu0 0.0
    %7820 = vmatprep.subr.mxu0 0.0
    %7821 = vmatpush1.msra.mxu0 0.0
    %7822 = vmatprep.subr.mxu0 0.0
    %7823 = vmatpush1.msra.mxu0 0.0
    %7824 = vmatprep.subr.mxu0 0.0
    %7825 = vmatpush1.msra.mxu0 0.0
    %7826 = vmatprep.subr.mxu0 0.0
    %7827 = vmatpush1.msra.mxu0 0.0
    %7828 = vmatprep.mubr.f32.mxu0 0.0
    %7829 = vmatmul.mubr.f32.gmra.mrb[0].mxu0 %v7685
    %v7830 = vpop.f32.mrb[0].mxu0
    %v7831 = vadd.f32 0.0, %v7830
    %v7832 = vpop.f32.mrb[0].mxu0
    %7833 = vdwg.mxu0
    %v7834 = vadd.f32 %v7479, %v7831
    %v7835 = vld [vmem:[%s14] sm:$0x1]
    %v7837 = vlaneseq
    %v7838 = vshrl.u32 %v7837, 7
    %v7839 = vsub.s32 0, %v7838
    %v7840 = vrot.slane %v7835, %v7839
    %v7842 = vadd.f32 %v7834, %v7840
    %7843 = vst [vmem:[#allocation17] sm:$0x3] %v7842
    // Predicated region
    $region98: #{autoencoder_forward.1} parent=1 // pred_check
      _
    $region99: #{autoencoder_forward.1} parent=1 // pred_check_branch
      %7845 = sbr.rel (0) target = $region101
    $region100: #{autoencoder_forward.1} parent=1 // pred_region
      _
    $region101: #{autoencoder_forward.1} parent=1 // pred_fallthru
      _
    // Predicated region
    $region102: #{autoencoder_forward.1} parent=1 // pred_check
      _
    $region103: #{autoencoder_forward.1} parent=1 // pred_check_branch
      %7847 = sbr.rel (0) target = $region105
    $region104: #{autoencoder_forward.1} parent=1 // pred_region
      %s7849 = ssub.s32 32, 32
      %7850 = vsyncadd [#allocation4], %s7849
      %s7852 = sshll.u32 [#allocation17], 4
      %s7853 = int_to_ptr.vmem [resolvable:$true] %s7852
      %7855 = dma.vmem_to_hbm [thread:$0]  %s7853, 32, %s16, [#allocation4]
    $region105: #{autoencoder_forward.1} parent=1 // pred_fallthru
      _
    // Predicated region
    $region106: #{autoencoder_forward.1} parent=1 // pred_check
      _
    $region107: #{autoencoder_forward.1} parent=1 // pred_check_branch
      %7857 = sbr.rel (0) target = $region109
    $region108: #{autoencoder_forward.1} parent=1 // pred_region
      _
    $region109: #{autoencoder_forward.1} parent=1 // pred_fallthru
      _
    // Predicated region
    $region110: #{autoencoder_forward.1} parent=1 // pred_check
      _
    $region111: #{autoencoder_forward.1} parent=1 // pred_check_branch
      %7859 = sbr.rel (0) target = $region113
    $region112: #{autoencoder_forward.1} parent=1 // pred_region
      %7860 = dma.done [#allocation4], 32
    $region113: #{autoencoder_forward.1} parent=1 // pred_fallthru
      _
    %7861 = vsyncpa [#allocation3], 1
    %7862 = vsyncpa [#allocation6], 1
    %7863 = vsyncpa [#allocation9], 1
    %7864 = vsyncpa [#allocation12], 1
    %7865 = vsyncpa [#allocation15], 1
    %7866 = vsyncpa [#allocation4], 1

</llo_original>
